<compile_context>
chip_gen: v5e
topology: v5e:2x2
jax: 0.10.0
libtpu: 0.0.40
codegen_flags: <defaults>
</compile_context>

<pallas_src>
import functools
import math

import jax
import jax.numpy as jnp
from jax import lax
from jax.experimental import pallas as pl
from jax.experimental.pallas import tpu as pltpu

# ----------------------- small synthetic RoBERTa config ----------------------
VOCAB = 64
HIDDEN = 32
N_LAYERS = 2
N_HEADS = 2
HEAD_DIM = HIDDEN // N_HEADS
INTERMEDIATE = 64
MAX_POS = 40
NUM_LABELS = 2
PAD_ID = 1
LN_EPS = 1e-5

H_PAD = 128          # lane-dense padded width (hidden / intermediate / labels)
ROWS = 128           # sublane-padded row count for the resident activation

W_PER_LAYER = 6      # w_q, w_k, w_v, w_o, w_fi, w_fo
V_PER_LAYER = 10     # q_b, k_b, v_b, o_b, ln1_g, ln1_b, fi_b, fo_b, ln2_g, ln2_b


# ------------------------------ fused kernel ---------------------------------
def _roberta_fwd_kernel(emb_ref, bias_ref, w_ref, vec_ref, logits_ref, *, out_rows):
    f32 = jnp.float32
    bf16 = jnp.bfloat16
    scale = 1.0 / math.sqrt(HEAD_DIM)

    lane = lax.broadcasted_iota(jnp.int32, (1, H_PAD), 1)
    col_mask = (lane < HIDDEN).astype(f32)
    # per-head lane masks (trace-time constants, hoisted out of the layer loop)
    head_masks = [((lane >= h * HEAD_DIM) & (lane < (h + 1) * HEAD_DIM)).astype(f32)
                  for h in range(N_HEADS)]

    def vrow(i):                                   # (1, 128) f32 bias/LN row
        return vec_ref[i:i + 1, :]

    def mm(x, widx):                               # bf16 MXU matmul, f32 accumulate
        return jnp.dot(x.astype(bf16), w_ref[widx], preferred_element_type=f32)

    def layer_norm(x, g, b):
        # stats over the HIDDEN real lanes only; padded lanes stay exactly 0
        mean = jnp.sum(x * col_mask, axis=-1, keepdims=True) * (1.0 / HIDDEN)
        diff = (x - mean) * col_mask
        var = jnp.sum(diff * diff, axis=-1, keepdims=True) * (1.0 / HIDDEN)
        return diff * lax.rsqrt(var + LN_EPS) * g + b

    attn_bias = bias_ref[...]                      # (ROWS, ROWS) block-diag mask

    # embedding LayerNorm (embedding sum done outside; padded rows/lanes are 0)
    h = layer_norm(emb_ref[...], vrow(0), vrow(1))   # (ROWS, 128) f32

    # ----------------------------- encoder stack -----------------------------
    for l in range(N_LAYERS):
        wb = W_PER_LAYER * l
        vb = 2 + V_PER_LAYER * l

        q = mm(h, wb + 0) + vrow(vb + 0)           # (ROWS, 128), real lanes 0:32
        k = mm(h, wb + 1) + vrow(vb + 1)
        v = mm(h, wb + 2) + vrow(vb + 2)

        ctx = jnp.zeros((ROWS, H_PAD), f32)
        for hm in head_masks:
            # scores: one lane-dense (ROWS, ROWS) QK^T per head
            s = lax.dot_general((q * hm).astype(bf16), (k * hm).astype(bf16),
                                (((1,), (1,)), ((), ())),
                                preferred_element_type=f32)
            s = s * scale + attn_bias              # -1e9 on invalid keys
            m = jnp.max(s, axis=-1, keepdims=True)            # full-lane reduce
            p = jnp.exp(s - m)
            p = p * pl.reciprocal(jnp.sum(p, axis=-1, keepdims=True),
                                  approx=True)     # EUP reciprocal
            # PV lands the head's context directly in its own lanes of ctx
            ctx = ctx + jnp.dot(p.astype(bf16), (v * hm).astype(bf16),
                                preferred_element_type=f32)

        attn_out = mm(ctx, wb + 3) + vrow(vb + 3)  # one 128-wide output proj
        h = layer_norm(attn_out + h, vrow(vb + 4), vrow(vb + 5))

        # feed-forward (padded lanes stay 0 through GELU)
        ffn = mm(h, wb + 4) + vrow(vb + 6)
        ffn = 0.5 * ffn * (1.0 + lax.erf(ffn * 0.7071067811865476))  # exact GELU
        ffn = mm(ffn, wb + 5) + vrow(vb + 7)
        h = layer_norm(ffn + h, vrow(vb + 8), vrow(vb + 9))

    # ---- classification head on the first out_rows rows (contains all CLS) ---
    wb = W_PER_LAYER * N_LAYERS
    vb = 2 + V_PER_LAYER * N_LAYERS
    cls_rows = h[:out_rows, :]                     # static 2-vreg sublane slice
    t = jnp.tanh(mm(cls_rows, wb + 0) + vrow(vb + 0))
    logits_ref[...] = mm(t, wb + 1) + vrow(vb + 1)   # (out_rows, 128), lane-dense


# ------------------------------- parameters ----------------------------------
def init_params(key):
    keys = iter(jax.random.split(key, 64))

    def nrm(shape):
        return 0.02 * jax.random.normal(next(keys), shape, jnp.float32)

    params = {
        "word_emb": nrm((VOCAB, HIDDEN)),
        "pos_emb": nrm((MAX_POS, HIDDEN)),
        "type_emb": nrm((1, HIDDEN)),
        "emb_ln_g": jnp.ones((HIDDEN,), jnp.float32),
        "emb_ln_b": jnp.zeros((HIDDEN,), jnp.float32),
        "cls_dense_w": nrm((HIDDEN, HIDDEN)),
        "cls_dense_b": jnp.zeros((HIDDEN,), jnp.float32),
        "cls_out_w": nrm((HIDDEN, NUM_LABELS)),
        "cls_out_b": jnp.zeros((NUM_LABELS,), jnp.float32),
        "layers": [],
    }
    for _ in range(N_LAYERS):
        params["layers"].append({
            "q_w": nrm((HIDDEN, HIDDEN)), "q_b": jnp.zeros((HIDDEN,), jnp.float32),
            "k_w": nrm((HIDDEN, HIDDEN)), "k_b": jnp.zeros((HIDDEN,), jnp.float32),
            "v_w": nrm((HIDDEN, HIDDEN)), "v_b": jnp.zeros((HIDDEN,), jnp.float32),
            "o_w": nrm((HIDDEN, HIDDEN)), "o_b": jnp.zeros((HIDDEN,), jnp.float32),
            "attn_ln_g": jnp.ones((HIDDEN,), jnp.float32),
            "attn_ln_b": jnp.zeros((HIDDEN,), jnp.float32),
            "ffn_in_w": nrm((HIDDEN, INTERMEDIATE)),
            "ffn_in_b": jnp.zeros((INTERMEDIATE,), jnp.float32),
            "ffn_out_w": nrm((INTERMEDIATE, HIDDEN)),
            "ffn_out_b": jnp.zeros((HIDDEN,), jnp.float32),
            "ffn_ln_g": jnp.ones((HIDDEN,), jnp.float32),
            "ffn_ln_b": jnp.zeros((HIDDEN,), jnp.float32),
        })
    return params


def pack_params(params):
    """Zero-pad to 128 lanes, cast weights to bf16, stack into 2 big operands."""
    def pad_mat(w):
        out = jnp.zeros((H_PAD, H_PAD), jnp.float32)
        out = out.at[:w.shape[0], :w.shape[1]].set(w)
        return out.astype(jnp.bfloat16)

    def pad_vec(v):
        return jnp.zeros((H_PAD,), jnp.float32).at[:v.shape[0]].set(v)

    def pad_table(t):
        return jnp.zeros((t.shape[0], H_PAD), jnp.float32).at[:, :t.shape[1]].set(t)

    w_list = []
    v_list = [pad_vec(params["emb_ln_g"]), pad_vec(params["emb_ln_b"])]
    for p in params["layers"]:
        w_list += [pad_mat(p["q_w"]), pad_mat(p["k_w"]), pad_mat(p["v_w"]),
                   pad_mat(p["o_w"]), pad_mat(p["ffn_in_w"]), pad_mat(p["ffn_out_w"])]
        v_list += [pad_vec(p["q_b"]), pad_vec(p["k_b"]), pad_vec(p["v_b"]),
                   pad_vec(p["o_b"]), pad_vec(p["attn_ln_g"]), pad_vec(p["attn_ln_b"]),
                   pad_vec(p["ffn_in_b"]), pad_vec(p["ffn_out_b"]),
                   pad_vec(p["ffn_ln_g"]), pad_vec(p["ffn_ln_b"])]
    w_list += [pad_mat(params["cls_dense_w"]), pad_mat(params["cls_out_w"])]
    v_list += [pad_vec(params["cls_dense_b"]), pad_vec(params["cls_out_b"])]

    return {
        "word_emb": pad_table(params["word_emb"]),
        "pos_emb": pad_table(params["pos_emb"]),
        "type_emb": pad_table(params["type_emb"]),
        "weights": jnp.stack(w_list, axis=0),    # (N_LAYERS*6+2, 128, 128) bf16
        "vectors": jnp.stack(v_list, axis=0),    # (N_LAYERS*10+4, 128) f32
    }


# ------------------------------ forward (glue) --------------------------------
def roberta_pair_forward(packed, word, mask):
    """word: (B, S) int32 ids, mask: (B, S) attention mask -> (B, 2) logits."""
    B, S = word.shape
    BS = B * S
    assert BS <= ROWS and BS % 8 == 0, "toy-size whole-resident kernel"

    # RoBERTa position ids + embedding gather (tables pre-padded to 128 lanes).
    pos_mask = (word != PAD_ID).astype(jnp.int32)
    pos_ids = jnp.cumsum(pos_mask, axis=1) * pos_mask + PAD_ID
    emb = (packed["word_emb"][word]
           + packed["pos_emb"][pos_ids]
           + packed["type_emb"][0][None, None, :]).astype(jnp.float32)
    emb_pad = jnp.zeros((ROWS, H_PAD), jnp.float32).at[:BS].set(emb.reshape(BS, H_PAD))

    # Block-diagonal additive attention bias, lane- and sublane-dense:
    # 0 where (same batch AND key is a real, unpadded token), else -1e9.
    # Also masks the padding rows 16..127 and cross-batch attention.
    row_id = jnp.arange(ROWS)
    is_real = row_id < BS
    q_batch = jnp.where(is_real, row_id // S, -1)
    k_batch = jnp.where(is_real, row_id // S, -2)
    key_ok = jnp.zeros((ROWS,), bool).at[:BS].set(mask.reshape(BS) > 0.5)
    allowed = (q_batch[:, None] == k_batch[None, :]) & key_ok[None, :]
    attn_bias = jnp.where(allowed, 0.0, -1e9).astype(jnp.float32)

    out_rows = BS
    kern = functools.partial(_roberta_fwd_kernel, out_rows=out_rows)

    n_mm = N_LAYERS * (W_PER_LAYER + 2 * N_HEADS) + 2
    cost = pl.CostEstimate(
        flops=2 * ROWS * H_PAD * H_PAD * n_mm,
        transcendentals=ROWS * ROWS * N_HEADS * N_LAYERS + ROWS * H_PAD * N_LAYERS,
        bytes_accessed=(emb_pad.size + attn_bias.size + out_rows * H_PAD) * 4
                       + packed["weights"].size * 2 + packed["vectors"].size * 4,
    )

    logits_pad = pl.pallas_call(
        kern,
        out_shape=jax.ShapeDtypeStruct((out_rows, H_PAD), jnp.float32),
        in_specs=[pl.BlockSpec(memory_space=pltpu.MemorySpace.VMEM)] * 4,
        out_specs=pl.BlockSpec(memory_space=pltpu.MemorySpace.VMEM),
        cost_estimate=cost,
    )(emb_pad, attn_bias, packed["weights"], packed["vectors"])

    # pick the CLS row of each example and the NUM_LABELS real label lanes
    return logits_pad.reshape(B, S, H_PAD)[:, 0, :NUM_LABELS]


# ---------------------------- pure-JAX reference ------------------------------
def roberta_reference(params, word, mask):
    pos_mask = (word != PAD_ID).astype(jnp.int32)
    pos_ids = jnp.cumsum(pos_mask, axis=1) * pos_mask + PAD_ID
    h = (params["word_emb"][word] + params["pos_emb"][pos_ids]
         + params["type_emb"][0][None, None, :]).astype(jnp.float32)

    def ln(x, g, b):
        mu = x.mean(-1, keepdims=True)
        var = ((x - mu) ** 2).mean(-1, keepdims=True)
        return (x - mu) * lax.rsqrt(var + LN_EPS) * g + b

    h = ln(h, params["emb_ln_g"], params["emb_ln_b"])
    B, S, _ = h.shape
    bias = (1.0 - mask.astype(jnp.float32)) * -1e9
    for p in params["layers"]:
        q = h @ p["q_w"] + p["q_b"]
        k = h @ p["k_w"] + p["k_b"]
        v = h @ p["v_w"] + p["v_b"]

        def heads(x):
            return x.reshape(B, S, N_HEADS, HEAD_DIM).transpose(0, 2, 1, 3)

        s = jnp.einsum("bhqd,bhkd->bhqk", heads(q), heads(k)) / math.sqrt(HEAD_DIM)
        s = s + bias[:, None, None, :]
        pr = jax.nn.softmax(s, axis=-1)
        ctx = (jnp.einsum("bhqk,bhkd->bhqd", pr, heads(v))
               .transpose(0, 2, 1, 3).reshape(B, S, HIDDEN))
        attn = ctx @ p["o_w"] + p["o_b"]
        h = ln(attn + h, p["attn_ln_g"], p["attn_ln_b"])
        f = h @ p["ffn_in_w"] + p["ffn_in_b"]
        f = 0.5 * f * (1.0 + lax.erf(f * 0.7071067811865476))
        f = f @ p["ffn_out_w"] + p["ffn_out_b"]
        h = ln(f + h, p["ffn_ln_g"], p["ffn_ln_b"])
    cls = h[:, 0, :]
    t = jnp.tanh(cls @ params["cls_dense_w"] + params["cls_dense_b"])
    return t @ params["cls_out_w"] + params["cls_out_b"]


# ----------------------------------- main -------------------------------------
if __name__ == "__main__":
    # TODO(synk): the .tokenize() method is host-side string processing
    # (RobertaTokenizer); it has no TPU/Pallas equivalent and is omitted.
    B, S = 2, 8
    key = jax.random.PRNGKey(0)
    k_tok, _ = jax.random.split(key)

    word = jax.random.randint(k_tok, (B, S), 5, VOCAB, dtype=jnp.int32)
    word = word.at[:, 0].set(0)            # CLS
    word = word.at[1, S - 2:].set(PAD_ID)  # some padding in the 2nd example
    mask = (word != PAD_ID).astype(jnp.float32)

    params = init_params(jax.random.PRNGKey(0))
    packed = pack_params(params)

    forward = jax.jit(roberta_pair_forward)
    logits = jax.block_until_ready(forward(packed, word, mask))

    assert logits.shape == (B, NUM_LABELS) and logits.dtype == jnp.float32
    assert bool(jnp.all(jnp.isfinite(logits)))

    ref = jax.block_until_ready(roberta_reference(params, word, mask))
    max_diff = float(jnp.max(jnp.abs(logits - ref)))
    # tolerance covers bf16 weights + approx-reciprocal softmax vs the f32 reference
    assert max_diff < 5e-3, f"kernel/reference mismatch: {max_diff}"

    print("KERNEL_OK")
</pallas_src>

<mosaic_0001>
module attributes {stable_mosaic.version = 11 : i64} {
  func.func @_roberta_fwd_kernel(%arg0: memref<128x128xf32, #tpu.memory_space<vmem>>, %arg1: memref<128x128xf32, #tpu.memory_space<vmem>>, %arg2: memref<14x128x128xbf16, #tpu.memory_space<vmem>>, %arg3: memref<24x128xf32, #tpu.memory_space<vmem>>, %arg4: memref<16x128xf32, #tpu.memory_space<vmem>>) attributes {dimension_semantics = [], scalar_prefetch = 0 : i64, scratch_operands = 0 : i64, tpu.core_type = #tpu.core_type<tc>} {
    %0 = tpu.iota {dimensions = array<i32: 1>} : vector<1x128xi32>
    %c32_i32 = arith.constant 32 : i32
    %1 = vector.broadcast %c32_i32 : i32 to vector<1x128xi32>
    %2 = arith.cmpi slt, %0, %1 : vector<1x128xi32>
    %3 = arith.extui %2 : vector<1x128xi1> to vector<1x128xi32>
    %4 = arith.sitofp %3 : vector<1x128xi32> to vector<1x128xf32>
    %c0_i32 = arith.constant 0 : i32
    %5 = vector.broadcast %c0_i32 : i32 to vector<1x128xi32>
    %6 = arith.cmpi sge, %0, %5 : vector<1x128xi32>
    %c16_i32 = arith.constant 16 : i32
    %7 = vector.broadcast %c16_i32 : i32 to vector<1x128xi32>
    %8 = arith.cmpi slt, %0, %7 : vector<1x128xi32>
    %9 = arith.andi %6, %8 : vector<1x128xi1>
    %10 = arith.extui %9 : vector<1x128xi1> to vector<1x128xi32>
    %11 = arith.sitofp %10 : vector<1x128xi32> to vector<1x128xf32>
    %c16_i32_0 = arith.constant 16 : i32
    %12 = vector.broadcast %c16_i32_0 : i32 to vector<1x128xi32>
    %13 = arith.cmpi sge, %0, %12 : vector<1x128xi32>
    %c32_i32_1 = arith.constant 32 : i32
    %14 = vector.broadcast %c32_i32_1 : i32 to vector<1x128xi32>
    %15 = arith.cmpi slt, %0, %14 : vector<1x128xi32>
    %16 = arith.andi %13, %15 : vector<1x128xi1>
    %17 = arith.extui %16 : vector<1x128xi1> to vector<1x128xi32>
    %18 = arith.sitofp %17 : vector<1x128xi32> to vector<1x128xf32>
    %c0 = arith.constant 0 : index
    %c0_2 = arith.constant 0 : index
    %19 = vector.load %arg1[%c0, %c0_2] : memref<128x128xf32, #tpu.memory_space<vmem>>, vector<128x128xf32>
    %c0_3 = arith.constant 0 : index
    %c0_4 = arith.constant 0 : index
    %20 = vector.load %arg0[%c0_3, %c0_4] : memref<128x128xf32, #tpu.memory_space<vmem>>, vector<128x128xf32>
    %c0_5 = arith.constant 0 : index
    %c0_6 = arith.constant 0 : index
    %21 = vector.load %arg3[%c0_5, %c0_6] : memref<24x128xf32, #tpu.memory_space<vmem>>, vector<1x128xf32>
    %c1 = arith.constant 1 : index
    %c0_7 = arith.constant 0 : index
    %22 = vector.load %arg3[%c1, %c0_7] : memref<24x128xf32, #tpu.memory_space<vmem>>, vector<1x128xf32>
    %23 = vector.broadcast %4 : vector<1x128xf32> to vector<128x128xf32>
    %24 = arith.mulf %20, %23 : vector<128x128xf32>
    %cst = arith.constant dense<0.000000e+00> : vector<128xf32>
    %25 = vector.multi_reduction <add>, %24, %cst [1] : vector<128x128xf32> to vector<128xf32>
    %26 = vector.shape_cast %25 : vector<128xf32> to vector<128x1xf32>
    %cst_8 = arith.constant 3.125000e-02 : f32
    %27 = vector.broadcast %cst_8 : f32 to vector<128x1xf32>
    %28 = arith.mulf %26, %27 : vector<128x1xf32>
    %29 = vector.broadcast %28 : vector<128x1xf32> to vector<128x128xf32>
    %30 = arith.subf %20, %29 : vector<128x128xf32>
    %31 = vector.broadcast %4 : vector<1x128xf32> to vector<128x128xf32>
    %32 = arith.mulf %30, %31 : vector<128x128xf32>
    %33 = arith.mulf %32, %32 : vector<128x128xf32>
    %cst_9 = arith.constant dense<0.000000e+00> : vector<128xf32>
    %34 = vector.multi_reduction <add>, %33, %cst_9 [1] : vector<128x128xf32> to vector<128xf32>
    %35 = vector.shape_cast %34 : vector<128xf32> to vector<128x1xf32>
    %cst_10 = arith.constant 3.125000e-02 : f32
    %36 = vector.broadcast %cst_10 : f32 to vector<128x1xf32>
    %37 = arith.mulf %35, %36 : vector<128x1xf32>
    %cst_11 = arith.constant 9.99999974E-6 : f32
    %38 = vector.broadcast %cst_11 : f32 to vector<128x1xf32>
    %39 = arith.addf %37, %38 : vector<128x1xf32>
    %40 = math.rsqrt %39 : vector<128x1xf32>
    %41 = vector.broadcast %40 : vector<128x1xf32> to vector<128x128xf32>
    %42 = arith.mulf %32, %41 : vector<128x128xf32>
    %43 = vector.broadcast %21 : vector<1x128xf32> to vector<128x128xf32>
    %44 = arith.mulf %42, %43 : vector<128x128xf32>
    %45 = vector.broadcast %22 : vector<1x128xf32> to vector<128x128xf32>
    %46 = arith.addf %44, %45 : vector<128x128xf32>
    %47 = arith.truncf %46 : vector<128x128xf32> to vector<128x128xbf16>
    %c0_12 = arith.constant 0 : index
    %c0_13 = arith.constant 0 : index
    %c0_14 = arith.constant 0 : index
    %48 = vector.load %arg2[%c0_12, %c0_13, %c0_14] : memref<14x128x128xbf16, #tpu.memory_space<vmem>>, vector<1x128x128xbf16>
    %49 = vector.shape_cast %48 : vector<1x128x128xbf16> to vector<128x128xbf16>
    %cst_15 = arith.constant dense<0.000000e+00> : vector<128x128xf32>
    %50 = tpu.matmul %47, %49, %cst_15 {dimension_numbers = #tpu.dot_dimension_numbers<[1], [0], [0], [1], [0, 0, 1, 1], [], []>} : vector<128x128xbf16>, vector<128x128xbf16>, vector<128x128xf32> -> vector<128x128xf32>
    %c2 = arith.constant 2 : index
    %c0_16 = arith.constant 0 : index
    %51 = vector.load %arg3[%c2, %c0_16] : memref<24x128xf32, #tpu.memory_space<vmem>>, vector<1x128xf32>
    %52 = vector.broadcast %51 : vector<1x128xf32> to vector<128x128xf32>
    %53 = arith.addf %50, %52 : vector<128x128xf32>
    %54 = arith.truncf %46 : vector<128x128xf32> to vector<128x128xbf16>
    %c1_17 = arith.constant 1 : index
    %c0_18 = arith.constant 0 : index
    %c0_19 = arith.constant 0 : index
    %55 = vector.load %arg2[%c1_17, %c0_18, %c0_19] : memref<14x128x128xbf16, #tpu.memory_space<vmem>>, vector<1x128x128xbf16>
    %56 = vector.shape_cast %55 : vector<1x128x128xbf16> to vector<128x128xbf16>
    %cst_20 = arith.constant dense<0.000000e+00> : vector<128x128xf32>
    %57 = tpu.matmul %54, %56, %cst_20 {dimension_numbers = #tpu.dot_dimension_numbers<[1], [0], [0], [1], [0, 0, 1, 1], [], []>} : vector<128x128xbf16>, vector<128x128xbf16>, vector<128x128xf32> -> vector<128x128xf32>
    %c3 = arith.constant 3 : index
    %c0_21 = arith.constant 0 : index
    %58 = vector.load %arg3[%c3, %c0_21] : memref<24x128xf32, #tpu.memory_space<vmem>>, vector<1x128xf32>
    %59 = vector.broadcast %58 : vector<1x128xf32> to vector<128x128xf32>
    %60 = arith.addf %57, %59 : vector<128x128xf32>
    %61 = arith.truncf %46 : vector<128x128xf32> to vector<128x128xbf16>
    %c2_22 = arith.constant 2 : index
    %c0_23 = arith.constant 0 : index
    %c0_24 = arith.constant 0 : index
    %62 = vector.load %arg2[%c2_22, %c0_23, %c0_24] : memref<14x128x128xbf16, #tpu.memory_space<vmem>>, vector<1x128x128xbf16>
    %63 = vector.shape_cast %62 : vector<1x128x128xbf16> to vector<128x128xbf16>
    %cst_25 = arith.constant dense<0.000000e+00> : vector<128x128xf32>
    %64 = tpu.matmul %61, %63, %cst_25 {dimension_numbers = #tpu.dot_dimension_numbers<[1], [0], [0], [1], [0, 0, 1, 1], [], []>} : vector<128x128xbf16>, vector<128x128xbf16>, vector<128x128xf32> -> vector<128x128xf32>
    %c4 = arith.constant 4 : index
    %c0_26 = arith.constant 0 : index
    %65 = vector.load %arg3[%c4, %c0_26] : memref<24x128xf32, #tpu.memory_space<vmem>>, vector<1x128xf32>
    %66 = vector.broadcast %65 : vector<1x128xf32> to vector<128x128xf32>
    %67 = arith.addf %64, %66 : vector<128x128xf32>
    %cst_27 = arith.constant 0.000000e+00 : f32
    %68 = vector.broadcast %cst_27 : f32 to vector<128x128xf32>
    %69 = vector.broadcast %11 : vector<1x128xf32> to vector<128x128xf32>
    %70 = arith.mulf %53, %69 : vector<128x128xf32>
    %71 = arith.truncf %70 : vector<128x128xf32> to vector<128x128xbf16>
    %72 = vector.broadcast %11 : vector<1x128xf32> to vector<128x128xf32>
    %73 = arith.mulf %60, %72 : vector<128x128xf32>
    %74 = arith.truncf %73 : vector<128x128xf32> to vector<128x128xbf16>
    %cst_28 = arith.constant dense<0.000000e+00> : vector<128x128xf32>
    %75 = tpu.matmul %71, %74, %cst_28 {dimension_numbers = #tpu.dot_dimension_numbers<[1], [1], [0], [0], [0, 0, 1, 0], [], []>} : vector<128x128xbf16>, vector<128x128xbf16>, vector<128x128xf32> -> vector<128x128xf32>
    %cst_29 = arith.constant 2.500000e-01 : f32
    %76 = vector.broadcast %cst_29 : f32 to vector<128x128xf32>
    %77 = arith.mulf %75, %76 : vector<128x128xf32>
    %78 = arith.addf %77, %19 : vector<128x128xf32>
    %cst_30 = arith.constant dense<0xFF800000> : vector<128xf32>
    %79 = vector.multi_reduction <maximumf>, %78, %cst_30 [1] : vector<128x128xf32> to vector<128xf32>
    %80 = vector.shape_cast %79 : vector<128xf32> to vector<128x1xf32>
    %81 = vector.broadcast %80 : vector<128x1xf32> to vector<128x128xf32>
    %82 = arith.subf %78, %81 : vector<128x128xf32>
    %83 = math.exp %82 : vector<128x128xf32>
    %cst_31 = arith.constant dense<0.000000e+00> : vector<128xf32>
    %84 = vector.multi_reduction <add>, %83, %cst_31 [1] : vector<128x128xf32> to vector<128xf32>
    %85 = vector.shape_cast %84 : vector<128xf32> to vector<128x1xf32>
    %86 = tpu.reciprocal %85 {approx = true} : vector<128x1xf32> -> vector<128x1xf32>
    %87 = vector.broadcast %86 : vector<128x1xf32> to vector<128x128xf32>
    %88 = arith.mulf %83, %87 : vector<128x128xf32>
    %89 = arith.truncf %88 : vector<128x128xf32> to vector<128x128xbf16>
    %90 = vector.broadcast %11 : vector<1x128xf32> to vector<128x128xf32>
    %91 = arith.mulf %67, %90 : vector<128x128xf32>
    %92 = arith.truncf %91 : vector<128x128xf32> to vector<128x128xbf16>
    %cst_32 = arith.constant dense<0.000000e+00> : vector<128x128xf32>
    %93 = tpu.matmul %89, %92, %cst_32 {dimension_numbers = #tpu.dot_dimension_numbers<[1], [0], [0], [1], [0, 0, 1, 1], [], []>} : vector<128x128xbf16>, vector<128x128xbf16>, vector<128x128xf32> -> vector<128x128xf32>
    %94 = arith.addf %68, %93 : vector<128x128xf32>
    %95 = vector.broadcast %18 : vector<1x128xf32> to vector<128x128xf32>
    %96 = arith.mulf %53, %95 : vector<128x128xf32>
    %97 = arith.truncf %96 : vector<128x128xf32> to vector<128x128xbf16>
    %98 = vector.broadcast %18 : vector<1x128xf32> to vector<128x128xf32>
    %99 = arith.mulf %60, %98 : vector<128x128xf32>
    %100 = arith.truncf %99 : vector<128x128xf32> to vector<128x128xbf16>
    %cst_33 = arith.constant dense<0.000000e+00> : vector<128x128xf32>
    %101 = tpu.matmul %97, %100, %cst_33 {dimension_numbers = #tpu.dot_dimension_numbers<[1], [1], [0], [0], [0, 0, 1, 0], [], []>} : vector<128x128xbf16>, vector<128x128xbf16>, vector<128x128xf32> -> vector<128x128xf32>
    %cst_34 = arith.constant 2.500000e-01 : f32
    %102 = vector.broadcast %cst_34 : f32 to vector<128x128xf32>
    %103 = arith.mulf %101, %102 : vector<128x128xf32>
    %104 = arith.addf %103, %19 : vector<128x128xf32>
    %cst_35 = arith.constant dense<0xFF800000> : vector<128xf32>
    %105 = vector.multi_reduction <maximumf>, %104, %cst_35 [1] : vector<128x128xf32> to vector<128xf32>
    %106 = vector.shape_cast %105 : vector<128xf32> to vector<128x1xf32>
    %107 = vector.broadcast %106 : vector<128x1xf32> to vector<128x128xf32>
    %108 = arith.subf %104, %107 : vector<128x128xf32>
    %109 = math.exp %108 : vector<128x128xf32>
    %cst_36 = arith.constant dense<0.000000e+00> : vector<128xf32>
    %110 = vector.multi_reduction <add>, %109, %cst_36 [1] : vector<128x128xf32> to vector<128xf32>
    %111 = vector.shape_cast %110 : vector<128xf32> to vector<128x1xf32>
    %112 = tpu.reciprocal %111 {approx = true} : vector<128x1xf32> -> vector<128x1xf32>
    %113 = vector.broadcast %112 : vector<128x1xf32> to vector<128x128xf32>
    %114 = arith.mulf %109, %113 : vector<128x128xf32>
    %115 = arith.truncf %114 : vector<128x128xf32> to vector<128x128xbf16>
    %116 = vector.broadcast %18 : vector<1x128xf32> to vector<128x128xf32>
    %117 = arith.mulf %67, %116 : vector<128x128xf32>
    %118 = arith.truncf %117 : vector<128x128xf32> to vector<128x128xbf16>
    %cst_37 = arith.constant dense<0.000000e+00> : vector<128x128xf32>
    %119 = tpu.matmul %115, %118, %cst_37 {dimension_numbers = #tpu.dot_dimension_numbers<[1], [0], [0], [1], [0, 0, 1, 1], [], []>} : vector<128x128xbf16>, vector<128x128xbf16>, vector<128x128xf32> -> vector<128x128xf32>
    %120 = arith.addf %94, %119 : vector<128x128xf32>
    %121 = arith.truncf %120 : vector<128x128xf32> to vector<128x128xbf16>
    %c3_38 = arith.constant 3 : index
    %c0_39 = arith.constant 0 : index
    %c0_40 = arith.constant 0 : index
    %122 = vector.load %arg2[%c3_38, %c0_39, %c0_40] : memref<14x128x128xbf16, #tpu.memory_space<vmem>>, vector<1x128x128xbf16>
    %123 = vector.shape_cast %122 : vector<1x128x128xbf16> to vector<128x128xbf16>
    %cst_41 = arith.constant dense<0.000000e+00> : vector<128x128xf32>
    %124 = tpu.matmul %121, %123, %cst_41 {dimension_numbers = #tpu.dot_dimension_numbers<[1], [0], [0], [1], [0, 0, 1, 1], [], []>} : vector<128x128xbf16>, vector<128x128xbf16>, vector<128x128xf32> -> vector<128x128xf32>
    %c5 = arith.constant 5 : index
    %c0_42 = arith.constant 0 : index
    %125 = vector.load %arg3[%c5, %c0_42] : memref<24x128xf32, #tpu.memory_space<vmem>>, vector<1x128xf32>
    %126 = vector.broadcast %125 : vector<1x128xf32> to vector<128x128xf32>
    %127 = arith.addf %124, %126 : vector<128x128xf32>
    %128 = arith.addf %127, %46 : vector<128x128xf32>
    %c6 = arith.constant 6 : index
    %c0_43 = arith.constant 0 : index
    %129 = vector.load %arg3[%c6, %c0_43] : memref<24x128xf32, #tpu.memory_space<vmem>>, vector<1x128xf32>
    %c7 = arith.constant 7 : index
    %c0_44 = arith.constant 0 : index
    %130 = vector.load %arg3[%c7, %c0_44] : memref<24x128xf32, #tpu.memory_space<vmem>>, vector<1x128xf32>
    %131 = vector.broadcast %4 : vector<1x128xf32> to vector<128x128xf32>
    %132 = arith.mulf %128, %131 : vector<128x128xf32>
    %cst_45 = arith.constant dense<0.000000e+00> : vector<128xf32>
    %133 = vector.multi_reduction <add>, %132, %cst_45 [1] : vector<128x128xf32> to vector<128xf32>
    %134 = vector.shape_cast %133 : vector<128xf32> to vector<128x1xf32>
    %cst_46 = arith.constant 3.125000e-02 : f32
    %135 = vector.broadcast %cst_46 : f32 to vector<128x1xf32>
    %136 = arith.mulf %134, %135 : vector<128x1xf32>
    %137 = vector.broadcast %136 : vector<128x1xf32> to vector<128x128xf32>
    %138 = arith.subf %128, %137 : vector<128x128xf32>
    %139 = vector.broadcast %4 : vector<1x128xf32> to vector<128x128xf32>
    %140 = arith.mulf %138, %139 : vector<128x128xf32>
    %141 = arith.mulf %140, %140 : vector<128x128xf32>
    %cst_47 = arith.constant dense<0.000000e+00> : vector<128xf32>
    %142 = vector.multi_reduction <add>, %141, %cst_47 [1] : vector<128x128xf32> to vector<128xf32>
    %143 = vector.shape_cast %142 : vector<128xf32> to vector<128x1xf32>
    %cst_48 = arith.constant 3.125000e-02 : f32
    %144 = vector.broadcast %cst_48 : f32 to vector<128x1xf32>
    %145 = arith.mulf %143, %144 : vector<128x1xf32>
    %cst_49 = arith.constant 9.99999974E-6 : f32
    %146 = vector.broadcast %cst_49 : f32 to vector<128x1xf32>
    %147 = arith.addf %145, %146 : vector<128x1xf32>
    %148 = math.rsqrt %147 : vector<128x1xf32>
    %149 = vector.broadcast %148 : vector<128x1xf32> to vector<128x128xf32>
    %150 = arith.mulf %140, %149 : vector<128x128xf32>
    %151 = vector.broadcast %129 : vector<1x128xf32> to vector<128x128xf32>
    %152 = arith.mulf %150, %151 : vector<128x128xf32>
    %153 = vector.broadcast %130 : vector<1x128xf32> to vector<128x128xf32>
    %154 = arith.addf %152, %153 : vector<128x128xf32>
    %155 = arith.truncf %154 : vector<128x128xf32> to vector<128x128xbf16>
    %c4_50 = arith.constant 4 : index
    %c0_51 = arith.constant 0 : index
    %c0_52 = arith.constant 0 : index
    %156 = vector.load %arg2[%c4_50, %c0_51, %c0_52] : memref<14x128x128xbf16, #tpu.memory_space<vmem>>, vector<1x128x128xbf16>
    %157 = vector.shape_cast %156 : vector<1x128x128xbf16> to vector<128x128xbf16>
    %cst_53 = arith.constant dense<0.000000e+00> : vector<128x128xf32>
    %158 = tpu.matmul %155, %157, %cst_53 {dimension_numbers = #tpu.dot_dimension_numbers<[1], [0], [0], [1], [0, 0, 1, 1], [], []>} : vector<128x128xbf16>, vector<128x128xbf16>, vector<128x128xf32> -> vector<128x128xf32>
    %c8 = arith.constant 8 : index
    %c0_54 = arith.constant 0 : index
    %159 = vector.load %arg3[%c8, %c0_54] : memref<24x128xf32, #tpu.memory_space<vmem>>, vector<1x128xf32>
    %160 = vector.broadcast %159 : vector<1x128xf32> to vector<128x128xf32>
    %161 = arith.addf %158, %160 : vector<128x128xf32>
    %cst_55 = arith.constant 5.000000e-01 : f32
    %162 = vector.broadcast %cst_55 : f32 to vector<128x128xf32>
    %163 = arith.mulf %162, %161 : vector<128x128xf32>
    %cst_56 = arith.constant 0.707106769 : f32
    %164 = vector.broadcast %cst_56 : f32 to vector<128x128xf32>
    %165 = arith.mulf %161, %164 : vector<128x128xf32>
    %166 = math.erf %165 : vector<128x128xf32>
    %cst_57 = arith.constant 1.000000e+00 : f32
    %167 = vector.broadcast %cst_57 : f32 to vector<128x128xf32>
    %168 = arith.addf %167, %166 : vector<128x128xf32>
    %169 = arith.mulf %163, %168 : vector<128x128xf32>
    %170 = arith.truncf %169 : vector<128x128xf32> to vector<128x128xbf16>
    %c5_58 = arith.constant 5 : index
    %c0_59 = arith.constant 0 : index
    %c0_60 = arith.constant 0 : index
    %171 = vector.load %arg2[%c5_58, %c0_59, %c0_60] : memref<14x128x128xbf16, #tpu.memory_space<vmem>>, vector<1x128x128xbf16>
    %172 = vector.shape_cast %171 : vector<1x128x128xbf16> to vector<128x128xbf16>
    %cst_61 = arith.constant dense<0.000000e+00> : vector<128x128xf32>
    %173 = tpu.matmul %170, %172, %cst_61 {dimension_numbers = #tpu.dot_dimension_numbers<[1], [0], [0], [1], [0, 0, 1, 1], [], []>} : vector<128x128xbf16>, vector<128x128xbf16>, vector<128x128xf32> -> vector<128x128xf32>
    %c9 = arith.constant 9 : index
    %c0_62 = arith.constant 0 : index
    %174 = vector.load %arg3[%c9, %c0_62] : memref<24x128xf32, #tpu.memory_space<vmem>>, vector<1x128xf32>
    %175 = vector.broadcast %174 : vector<1x128xf32> to vector<128x128xf32>
    %176 = arith.addf %173, %175 : vector<128x128xf32>
    %177 = arith.addf %176, %154 : vector<128x128xf32>
    %c10 = arith.constant 10 : index
    %c0_63 = arith.constant 0 : index
    %178 = vector.load %arg3[%c10, %c0_63] : memref<24x128xf32, #tpu.memory_space<vmem>>, vector<1x128xf32>
    %c11 = arith.constant 11 : index
    %c0_64 = arith.constant 0 : index
    %179 = vector.load %arg3[%c11, %c0_64] : memref<24x128xf32, #tpu.memory_space<vmem>>, vector<1x128xf32>
    %180 = vector.broadcast %4 : vector<1x128xf32> to vector<128x128xf32>
    %181 = arith.mulf %177, %180 : vector<128x128xf32>
    %cst_65 = arith.constant dense<0.000000e+00> : vector<128xf32>
    %182 = vector.multi_reduction <add>, %181, %cst_65 [1] : vector<128x128xf32> to vector<128xf32>
    %183 = vector.shape_cast %182 : vector<128xf32> to vector<128x1xf32>
    %cst_66 = arith.constant 3.125000e-02 : f32
    %184 = vector.broadcast %cst_66 : f32 to vector<128x1xf32>
    %185 = arith.mulf %183, %184 : vector<128x1xf32>
    %186 = vector.broadcast %185 : vector<128x1xf32> to vector<128x128xf32>
    %187 = arith.subf %177, %186 : vector<128x128xf32>
    %188 = vector.broadcast %4 : vector<1x128xf32> to vector<128x128xf32>
    %189 = arith.mulf %187, %188 : vector<128x128xf32>
    %190 = arith.mulf %189, %189 : vector<128x128xf32>
    %cst_67 = arith.constant dense<0.000000e+00> : vector<128xf32>
    %191 = vector.multi_reduction <add>, %190, %cst_67 [1] : vector<128x128xf32> to vector<128xf32>
    %192 = vector.shape_cast %191 : vector<128xf32> to vector<128x1xf32>
    %cst_68 = arith.constant 3.125000e-02 : f32
    %193 = vector.broadcast %cst_68 : f32 to vector<128x1xf32>
    %194 = arith.mulf %192, %193 : vector<128x1xf32>
    %cst_69 = arith.constant 9.99999974E-6 : f32
    %195 = vector.broadcast %cst_69 : f32 to vector<128x1xf32>
    %196 = arith.addf %194, %195 : vector<128x1xf32>
    %197 = math.rsqrt %196 : vector<128x1xf32>
    %198 = vector.broadcast %197 : vector<128x1xf32> to vector<128x128xf32>
    %199 = arith.mulf %189, %198 : vector<128x128xf32>
    %200 = vector.broadcast %178 : vector<1x128xf32> to vector<128x128xf32>
    %201 = arith.mulf %199, %200 : vector<128x128xf32>
    %202 = vector.broadcast %179 : vector<1x128xf32> to vector<128x128xf32>
    %203 = arith.addf %201, %202 : vector<128x128xf32>
    %204 = arith.truncf %203 : vector<128x128xf32> to vector<128x128xbf16>
    %c6_70 = arith.constant 6 : index
    %c0_71 = arith.constant 0 : index
    %c0_72 = arith.constant 0 : index
    %205 = vector.load %arg2[%c6_70, %c0_71, %c0_72] : memref<14x128x128xbf16, #tpu.memory_space<vmem>>, vector<1x128x128xbf16>
    %206 = vector.shape_cast %205 : vector<1x128x128xbf16> to vector<128x128xbf16>
    %cst_73 = arith.constant dense<0.000000e+00> : vector<128x128xf32>
    %207 = tpu.matmul %204, %206, %cst_73 {dimension_numbers = #tpu.dot_dimension_numbers<[1], [0], [0], [1], [0, 0, 1, 1], [], []>} : vector<128x128xbf16>, vector<128x128xbf16>, vector<128x128xf32> -> vector<128x128xf32>
    %c12 = arith.constant 12 : index
    %c0_74 = arith.constant 0 : index
    %208 = vector.load %arg3[%c12, %c0_74] : memref<24x128xf32, #tpu.memory_space<vmem>>, vector<1x128xf32>
    %209 = vector.broadcast %208 : vector<1x128xf32> to vector<128x128xf32>
    %210 = arith.addf %207, %209 : vector<128x128xf32>
    %211 = arith.truncf %203 : vector<128x128xf32> to vector<128x128xbf16>
    %c7_75 = arith.constant 7 : index
    %c0_76 = arith.constant 0 : index
    %c0_77 = arith.constant 0 : index
    %212 = vector.load %arg2[%c7_75, %c0_76, %c0_77] : memref<14x128x128xbf16, #tpu.memory_space<vmem>>, vector<1x128x128xbf16>
    %213 = vector.shape_cast %212 : vector<1x128x128xbf16> to vector<128x128xbf16>
    %cst_78 = arith.constant dense<0.000000e+00> : vector<128x128xf32>
    %214 = tpu.matmul %211, %213, %cst_78 {dimension_numbers = #tpu.dot_dimension_numbers<[1], [0], [0], [1], [0, 0, 1, 1], [], []>} : vector<128x128xbf16>, vector<128x128xbf16>, vector<128x128xf32> -> vector<128x128xf32>
    %c13 = arith.constant 13 : index
    %c0_79 = arith.constant 0 : index
    %215 = vector.load %arg3[%c13, %c0_79] : memref<24x128xf32, #tpu.memory_space<vmem>>, vector<1x128xf32>
    %216 = vector.broadcast %215 : vector<1x128xf32> to vector<128x128xf32>
    %217 = arith.addf %214, %216 : vector<128x128xf32>
    %218 = arith.truncf %203 : vector<128x128xf32> to vector<128x128xbf16>
    %c8_80 = arith.constant 8 : index
    %c0_81 = arith.constant 0 : index
    %c0_82 = arith.constant 0 : index
    %219 = vector.load %arg2[%c8_80, %c0_81, %c0_82] : memref<14x128x128xbf16, #tpu.memory_space<vmem>>, vector<1x128x128xbf16>
    %220 = vector.shape_cast %219 : vector<1x128x128xbf16> to vector<128x128xbf16>
    %cst_83 = arith.constant dense<0.000000e+00> : vector<128x128xf32>
    %221 = tpu.matmul %218, %220, %cst_83 {dimension_numbers = #tpu.dot_dimension_numbers<[1], [0], [0], [1], [0, 0, 1, 1], [], []>} : vector<128x128xbf16>, vector<128x128xbf16>, vector<128x128xf32> -> vector<128x128xf32>
    %c14 = arith.constant 14 : index
    %c0_84 = arith.constant 0 : index
    %222 = vector.load %arg3[%c14, %c0_84] : memref<24x128xf32, #tpu.memory_space<vmem>>, vector<1x128xf32>
    %223 = vector.broadcast %222 : vector<1x128xf32> to vector<128x128xf32>
    %224 = arith.addf %221, %223 : vector<128x128xf32>
    %cst_85 = arith.constant 0.000000e+00 : f32
    %225 = vector.broadcast %cst_85 : f32 to vector<128x128xf32>
    %226 = vector.broadcast %11 : vector<1x128xf32> to vector<128x128xf32>
    %227 = arith.mulf %210, %226 : vector<128x128xf32>
    %228 = arith.truncf %227 : vector<128x128xf32> to vector<128x128xbf16>
    %229 = vector.broadcast %11 : vector<1x128xf32> to vector<128x128xf32>
    %230 = arith.mulf %217, %229 : vector<128x128xf32>
    %231 = arith.truncf %230 : vector<128x128xf32> to vector<128x128xbf16>
    %cst_86 = arith.constant dense<0.000000e+00> : vector<128x128xf32>
    %232 = tpu.matmul %228, %231, %cst_86 {dimension_numbers = #tpu.dot_dimension_numbers<[1], [1], [0], [0], [0, 0, 1, 0], [], []>} : vector<128x128xbf16>, vector<128x128xbf16>, vector<128x128xf32> -> vector<128x128xf32>
    %cst_87 = arith.constant 2.500000e-01 : f32
    %233 = vector.broadcast %cst_87 : f32 to vector<128x128xf32>
    %234 = arith.mulf %232, %233 : vector<128x128xf32>
    %235 = arith.addf %234, %19 : vector<128x128xf32>
    %cst_88 = arith.constant dense<0xFF800000> : vector<128xf32>
    %236 = vector.multi_reduction <maximumf>, %235, %cst_88 [1] : vector<128x128xf32> to vector<128xf32>
    %237 = vector.shape_cast %236 : vector<128xf32> to vector<128x1xf32>
    %238 = vector.broadcast %237 : vector<128x1xf32> to vector<128x128xf32>
    %239 = arith.subf %235, %238 : vector<128x128xf32>
    %240 = math.exp %239 : vector<128x128xf32>
    %cst_89 = arith.constant dense<0.000000e+00> : vector<128xf32>
    %241 = vector.multi_reduction <add>, %240, %cst_89 [1] : vector<128x128xf32> to vector<128xf32>
    %242 = vector.shape_cast %241 : vector<128xf32> to vector<128x1xf32>
    %243 = tpu.reciprocal %242 {approx = true} : vector<128x1xf32> -> vector<128x1xf32>
    %244 = vector.broadcast %243 : vector<128x1xf32> to vector<128x128xf32>
    %245 = arith.mulf %240, %244 : vector<128x128xf32>
    %246 = arith.truncf %245 : vector<128x128xf32> to vector<128x128xbf16>
    %247 = vector.broadcast %11 : vector<1x128xf32> to vector<128x128xf32>
    %248 = arith.mulf %224, %247 : vector<128x128xf32>
    %249 = arith.truncf %248 : vector<128x128xf32> to vector<128x128xbf16>
    %cst_90 = arith.constant dense<0.000000e+00> : vector<128x128xf32>
    %250 = tpu.matmul %246, %249, %cst_90 {dimension_numbers = #tpu.dot_dimension_numbers<[1], [0], [0], [1], [0, 0, 1, 1], [], []>} : vector<128x128xbf16>, vector<128x128xbf16>, vector<128x128xf32> -> vector<128x128xf32>
    %251 = arith.addf %225, %250 : vector<128x128xf32>
    %252 = vector.broadcast %18 : vector<1x128xf32> to vector<128x128xf32>
    %253 = arith.mulf %210, %252 : vector<128x128xf32>
    %254 = arith.truncf %253 : vector<128x128xf32> to vector<128x128xbf16>
    %255 = vector.broadcast %18 : vector<1x128xf32> to vector<128x128xf32>
    %256 = arith.mulf %217, %255 : vector<128x128xf32>
    %257 = arith.truncf %256 : vector<128x128xf32> to vector<128x128xbf16>
    %cst_91 = arith.constant dense<0.000000e+00> : vector<128x128xf32>
    %258 = tpu.matmul %254, %257, %cst_91 {dimension_numbers = #tpu.dot_dimension_numbers<[1], [1], [0], [0], [0, 0, 1, 0], [], []>} : vector<128x128xbf16>, vector<128x128xbf16>, vector<128x128xf32> -> vector<128x128xf32>
    %cst_92 = arith.constant 2.500000e-01 : f32
    %259 = vector.broadcast %cst_92 : f32 to vector<128x128xf32>
    %260 = arith.mulf %258, %259 : vector<128x128xf32>
    %261 = arith.addf %260, %19 : vector<128x128xf32>
    %cst_93 = arith.constant dense<0xFF800000> : vector<128xf32>
    %262 = vector.multi_reduction <maximumf>, %261, %cst_93 [1] : vector<128x128xf32> to vector<128xf32>
    %263 = vector.shape_cast %262 : vector<128xf32> to vector<128x1xf32>
    %264 = vector.broadcast %263 : vector<128x1xf32> to vector<128x128xf32>
    %265 = arith.subf %261, %264 : vector<128x128xf32>
    %266 = math.exp %265 : vector<128x128xf32>
    %cst_94 = arith.constant dense<0.000000e+00> : vector<128xf32>
    %267 = vector.multi_reduction <add>, %266, %cst_94 [1] : vector<128x128xf32> to vector<128xf32>
    %268 = vector.shape_cast %267 : vector<128xf32> to vector<128x1xf32>
    %269 = tpu.reciprocal %268 {approx = true} : vector<128x1xf32> -> vector<128x1xf32>
    %270 = vector.broadcast %269 : vector<128x1xf32> to vector<128x128xf32>
    %271 = arith.mulf %266, %270 : vector<128x128xf32>
    %272 = arith.truncf %271 : vector<128x128xf32> to vector<128x128xbf16>
    %273 = vector.broadcast %18 : vector<1x128xf32> to vector<128x128xf32>
    %274 = arith.mulf %224, %273 : vector<128x128xf32>
    %275 = arith.truncf %274 : vector<128x128xf32> to vector<128x128xbf16>
    %cst_95 = arith.constant dense<0.000000e+00> : vector<128x128xf32>
    %276 = tpu.matmul %272, %275, %cst_95 {dimension_numbers = #tpu.dot_dimension_numbers<[1], [0], [0], [1], [0, 0, 1, 1], [], []>} : vector<128x128xbf16>, vector<128x128xbf16>, vector<128x128xf32> -> vector<128x128xf32>
    %277 = arith.addf %251, %276 : vector<128x128xf32>
    %278 = arith.truncf %277 : vector<128x128xf32> to vector<128x128xbf16>
    %c9_96 = arith.constant 9 : index
    %c0_97 = arith.constant 0 : index
    %c0_98 = arith.constant 0 : index
    %279 = vector.load %arg2[%c9_96, %c0_97, %c0_98] : memref<14x128x128xbf16, #tpu.memory_space<vmem>>, vector<1x128x128xbf16>
    %280 = vector.shape_cast %279 : vector<1x128x128xbf16> to vector<128x128xbf16>
    %cst_99 = arith.constant dense<0.000000e+00> : vector<128x128xf32>
    %281 = tpu.matmul %278, %280, %cst_99 {dimension_numbers = #tpu.dot_dimension_numbers<[1], [0], [0], [1], [0, 0, 1, 1], [], []>} : vector<128x128xbf16>, vector<128x128xbf16>, vector<128x128xf32> -> vector<128x128xf32>
    %c15 = arith.constant 15 : index
    %c0_100 = arith.constant 0 : index
    %282 = vector.load %arg3[%c15, %c0_100] : memref<24x128xf32, #tpu.memory_space<vmem>>, vector<1x128xf32>
    %283 = vector.broadcast %282 : vector<1x128xf32> to vector<128x128xf32>
    %284 = arith.addf %281, %283 : vector<128x128xf32>
    %285 = arith.addf %284, %203 : vector<128x128xf32>
    %c16 = arith.constant 16 : index
    %c0_101 = arith.constant 0 : index
    %286 = vector.load %arg3[%c16, %c0_101] : memref<24x128xf32, #tpu.memory_space<vmem>>, vector<1x128xf32>
    %c17 = arith.constant 17 : index
    %c0_102 = arith.constant 0 : index
    %287 = vector.load %arg3[%c17, %c0_102] : memref<24x128xf32, #tpu.memory_space<vmem>>, vector<1x128xf32>
    %288 = vector.broadcast %4 : vector<1x128xf32> to vector<128x128xf32>
    %289 = arith.mulf %285, %288 : vector<128x128xf32>
    %cst_103 = arith.constant dense<0.000000e+00> : vector<128xf32>
    %290 = vector.multi_reduction <add>, %289, %cst_103 [1] : vector<128x128xf32> to vector<128xf32>
    %291 = vector.shape_cast %290 : vector<128xf32> to vector<128x1xf32>
    %cst_104 = arith.constant 3.125000e-02 : f32
    %292 = vector.broadcast %cst_104 : f32 to vector<128x1xf32>
    %293 = arith.mulf %291, %292 : vector<128x1xf32>
    %294 = vector.broadcast %293 : vector<128x1xf32> to vector<128x128xf32>
    %295 = arith.subf %285, %294 : vector<128x128xf32>
    %296 = vector.broadcast %4 : vector<1x128xf32> to vector<128x128xf32>
    %297 = arith.mulf %295, %296 : vector<128x128xf32>
    %298 = arith.mulf %297, %297 : vector<128x128xf32>
    %cst_105 = arith.constant dense<0.000000e+00> : vector<128xf32>
    %299 = vector.multi_reduction <add>, %298, %cst_105 [1] : vector<128x128xf32> to vector<128xf32>
    %300 = vector.shape_cast %299 : vector<128xf32> to vector<128x1xf32>
    %cst_106 = arith.constant 3.125000e-02 : f32
    %301 = vector.broadcast %cst_106 : f32 to vector<128x1xf32>
    %302 = arith.mulf %300, %301 : vector<128x1xf32>
    %cst_107 = arith.constant 9.99999974E-6 : f32
    %303 = vector.broadcast %cst_107 : f32 to vector<128x1xf32>
    %304 = arith.addf %302, %303 : vector<128x1xf32>
    %305 = math.rsqrt %304 : vector<128x1xf32>
    %306 = vector.broadcast %305 : vector<128x1xf32> to vector<128x128xf32>
    %307 = arith.mulf %297, %306 : vector<128x128xf32>
    %308 = vector.broadcast %286 : vector<1x128xf32> to vector<128x128xf32>
    %309 = arith.mulf %307, %308 : vector<128x128xf32>
    %310 = vector.broadcast %287 : vector<1x128xf32> to vector<128x128xf32>
    %311 = arith.addf %309, %310 : vector<128x128xf32>
    %312 = arith.truncf %311 : vector<128x128xf32> to vector<128x128xbf16>
    %c10_108 = arith.constant 10 : index
    %c0_109 = arith.constant 0 : index
    %c0_110 = arith.constant 0 : index
    %313 = vector.load %arg2[%c10_108, %c0_109, %c0_110] : memref<14x128x128xbf16, #tpu.memory_space<vmem>>, vector<1x128x128xbf16>
    %314 = vector.shape_cast %313 : vector<1x128x128xbf16> to vector<128x128xbf16>
    %cst_111 = arith.constant dense<0.000000e+00> : vector<128x128xf32>
    %315 = tpu.matmul %312, %314, %cst_111 {dimension_numbers = #tpu.dot_dimension_numbers<[1], [0], [0], [1], [0, 0, 1, 1], [], []>} : vector<128x128xbf16>, vector<128x128xbf16>, vector<128x128xf32> -> vector<128x128xf32>
    %c18 = arith.constant 18 : index
    %c0_112 = arith.constant 0 : index
    %316 = vector.load %arg3[%c18, %c0_112] : memref<24x128xf32, #tpu.memory_space<vmem>>, vector<1x128xf32>
    %317 = vector.broadcast %316 : vector<1x128xf32> to vector<128x128xf32>
    %318 = arith.addf %315, %317 : vector<128x128xf32>
    %cst_113 = arith.constant 5.000000e-01 : f32
    %319 = vector.broadcast %cst_113 : f32 to vector<128x128xf32>
    %320 = arith.mulf %319, %318 : vector<128x128xf32>
    %cst_114 = arith.constant 0.707106769 : f32
    %321 = vector.broadcast %cst_114 : f32 to vector<128x128xf32>
    %322 = arith.mulf %318, %321 : vector<128x128xf32>
    %323 = math.erf %322 : vector<128x128xf32>
    %cst_115 = arith.constant 1.000000e+00 : f32
    %324 = vector.broadcast %cst_115 : f32 to vector<128x128xf32>
    %325 = arith.addf %324, %323 : vector<128x128xf32>
    %326 = arith.mulf %320, %325 : vector<128x128xf32>
    %327 = arith.truncf %326 : vector<128x128xf32> to vector<128x128xbf16>
    %c11_116 = arith.constant 11 : index
    %c0_117 = arith.constant 0 : index
    %c0_118 = arith.constant 0 : index
    %328 = vector.load %arg2[%c11_116, %c0_117, %c0_118] : memref<14x128x128xbf16, #tpu.memory_space<vmem>>, vector<1x128x128xbf16>
    %329 = vector.shape_cast %328 : vector<1x128x128xbf16> to vector<128x128xbf16>
    %cst_119 = arith.constant dense<0.000000e+00> : vector<128x128xf32>
    %330 = tpu.matmul %327, %329, %cst_119 {dimension_numbers = #tpu.dot_dimension_numbers<[1], [0], [0], [1], [0, 0, 1, 1], [], []>} : vector<128x128xbf16>, vector<128x128xbf16>, vector<128x128xf32> -> vector<128x128xf32>
    %c19 = arith.constant 19 : index
    %c0_120 = arith.constant 0 : index
    %331 = vector.load %arg3[%c19, %c0_120] : memref<24x128xf32, #tpu.memory_space<vmem>>, vector<1x128xf32>
    %332 = vector.broadcast %331 : vector<1x128xf32> to vector<128x128xf32>
    %333 = arith.addf %330, %332 : vector<128x128xf32>
    %334 = arith.addf %333, %311 : vector<128x128xf32>
    %c20 = arith.constant 20 : index
    %c0_121 = arith.constant 0 : index
    %335 = vector.load %arg3[%c20, %c0_121] : memref<24x128xf32, #tpu.memory_space<vmem>>, vector<1x128xf32>
    %c21 = arith.constant 21 : index
    %c0_122 = arith.constant 0 : index
    %336 = vector.load %arg3[%c21, %c0_122] : memref<24x128xf32, #tpu.memory_space<vmem>>, vector<1x128xf32>
    %337 = vector.broadcast %4 : vector<1x128xf32> to vector<128x128xf32>
    %338 = arith.mulf %334, %337 : vector<128x128xf32>
    %cst_123 = arith.constant dense<0.000000e+00> : vector<128xf32>
    %339 = vector.multi_reduction <add>, %338, %cst_123 [1] : vector<128x128xf32> to vector<128xf32>
    %340 = vector.shape_cast %339 : vector<128xf32> to vector<128x1xf32>
    %cst_124 = arith.constant 3.125000e-02 : f32
    %341 = vector.broadcast %cst_124 : f32 to vector<128x1xf32>
    %342 = arith.mulf %340, %341 : vector<128x1xf32>
    %343 = vector.broadcast %342 : vector<128x1xf32> to vector<128x128xf32>
    %344 = arith.subf %334, %343 : vector<128x128xf32>
    %345 = vector.broadcast %4 : vector<1x128xf32> to vector<128x128xf32>
    %346 = arith.mulf %344, %345 : vector<128x128xf32>
    %347 = arith.mulf %346, %346 : vector<128x128xf32>
    %cst_125 = arith.constant dense<0.000000e+00> : vector<128xf32>
    %348 = vector.multi_reduction <add>, %347, %cst_125 [1] : vector<128x128xf32> to vector<128xf32>
    %349 = vector.shape_cast %348 : vector<128xf32> to vector<128x1xf32>
    %cst_126 = arith.constant 3.125000e-02 : f32
    %350 = vector.broadcast %cst_126 : f32 to vector<128x1xf32>
    %351 = arith.mulf %349, %350 : vector<128x1xf32>
    %cst_127 = arith.constant 9.99999974E-6 : f32
    %352 = vector.broadcast %cst_127 : f32 to vector<128x1xf32>
    %353 = arith.addf %351, %352 : vector<128x1xf32>
    %354 = math.rsqrt %353 : vector<128x1xf32>
    %355 = vector.broadcast %354 : vector<128x1xf32> to vector<128x128xf32>
    %356 = arith.mulf %346, %355 : vector<128x128xf32>
    %357 = vector.broadcast %335 : vector<1x128xf32> to vector<128x128xf32>
    %358 = arith.mulf %356, %357 : vector<128x128xf32>
    %359 = vector.broadcast %336 : vector<1x128xf32> to vector<128x128xf32>
    %360 = arith.addf %358, %359 : vector<128x128xf32>
    %361 = vector.extract_strided_slice %360 {offsets = [0, 0], sizes = [16, 128], strides = [1, 1]} : vector<128x128xf32> to vector<16x128xf32>
    %362 = arith.truncf %361 : vector<16x128xf32> to vector<16x128xbf16>
    %c12_128 = arith.constant 12 : index
    %c0_129 = arith.constant 0 : index
    %c0_130 = arith.constant 0 : index
    %363 = vector.load %arg2[%c12_128, %c0_129, %c0_130] : memref<14x128x128xbf16, #tpu.memory_space<vmem>>, vector<1x128x128xbf16>
    %364 = vector.shape_cast %363 : vector<1x128x128xbf16> to vector<128x128xbf16>
    %cst_131 = arith.constant dense<0.000000e+00> : vector<16x128xf32>
    %365 = tpu.matmul %362, %364, %cst_131 {dimension_numbers = #tpu.dot_dimension_numbers<[1], [0], [0], [1], [0, 0, 1, 1], [], []>} : vector<16x128xbf16>, vector<128x128xbf16>, vector<16x128xf32> -> vector<16x128xf32>
    %c22 = arith.constant 22 : index
    %c0_132 = arith.constant 0 : index
    %366 = vector.load %arg3[%c22, %c0_132] : memref<24x128xf32, #tpu.memory_space<vmem>>, vector<1x128xf32>
    %367 = vector.broadcast %366 : vector<1x128xf32> to vector<16x128xf32>
    %368 = arith.addf %365, %367 : vector<16x128xf32>
    %369 = math.tanh %368 : vector<16x128xf32>
    %370 = arith.truncf %369 : vector<16x128xf32> to vector<16x128xbf16>
    %c13_133 = arith.constant 13 : index
    %c0_134 = arith.constant 0 : index
    %c0_135 = arith.constant 0 : index
    %371 = vector.load %arg2[%c13_133, %c0_134, %c0_135] : memref<14x128x128xbf16, #tpu.memory_space<vmem>>, vector<1x128x128xbf16>
    %372 = vector.shape_cast %371 : vector<1x128x128xbf16> to vector<128x128xbf16>
    %cst_136 = arith.constant dense<0.000000e+00> : vector<16x128xf32>
    %373 = tpu.matmul %370, %372, %cst_136 {dimension_numbers = #tpu.dot_dimension_numbers<[1], [0], [0], [1], [0, 0, 1, 1], [], []>} : vector<16x128xbf16>, vector<128x128xbf16>, vector<16x128xf32> -> vector<16x128xf32>
    %c23 = arith.constant 23 : index
    %c0_137 = arith.constant 0 : index
    %374 = vector.load %arg3[%c23, %c0_137] : memref<24x128xf32, #tpu.memory_space<vmem>>, vector<1x128xf32>
    %375 = vector.broadcast %374 : vector<1x128xf32> to vector<16x128xf32>
    %376 = arith.addf %373, %375 : vector<16x128xf32>
    %c0_138 = arith.constant 0 : index
    %c0_139 = arith.constant 0 : index
    %377 = vector.load %arg4[%c0_138, %c0_139] : memref<16x128xf32, #tpu.memory_space<vmem>>, vector<16x128xf32>
    tpu.vector_store %arg4[%c0_138, %c0_139], %376 {strides = array<i32>} : memref<16x128xf32, #tpu.memory_space<vmem>>, vector<16x128xf32>,
    return
  }
}

</mosaic_0001>

<llo_original>
// kernel: roberta_pair_forward.1
$region0: #{roberta_pair_forward.1}
  #allocation0 [shape = 'u32[]', space=smem, size = 0x4, offset = 0x4, fixed_abs, tag = 'smem constant byte address 0x4 - core index']
  #allocation1 [shape = 'u32[72,128]{1,0:T(1,128)}', space=vmem, size = 0x9000, scoped, tag = 'internal scratch']
  %s0 = inlined_call_operand.vmem [shape: f32[128,128], index: 0, kind: input, shape index: {}]
  %s1 = inlined_call_operand.vmem [shape: f32[128,128], index: 1, kind: input, shape index: {}]
  %s2 = inlined_call_operand.hbm [shape: bf16[14,128,128], index: 2, kind: input, shape index: {}]
  %s3 = inlined_call_operand.vmem [shape: f32[24,128], index: 3, kind: input, shape index: {}]
  %s4 = inlined_call_operand.vmem [shape: f32[16,128], index: 4, kind: output, shape index: {}]
  %s5 = sld [smem:[#allocation0]]
  $region30: #{roberta_pair_forward.1} parent=0
    _
  %s7 = ssub.s32 1, %s5
  %s8 = scalar_select 0, %s7, %s5
  $region1: #{roberta_pair_forward.1} parent=0
    #allocation2 [shape = 'u8[458752]{0}', space=vmem, size = 0x70000, scoped, tag = 'input window, operand 2, single buffered']
    #allocation3 [shape = 's32[1]{0}', space=sflag, size = 0x4, scoped, tag = 'scoped memory for roberta_pair_forward.1']
    %9 = vsyncpa [#allocation3], 0
    // Predicated region
    $region2: #{roberta_pair_forward.1} parent=1 // pred_check
      _
    $region3: #{roberta_pair_forward.1} parent=1 // pred_check_branch
      %11 = sbr.rel (0) target = $region5
    $region4: #{roberta_pair_forward.1} parent=1 // pred_region
      _
    $region5: #{roberta_pair_forward.1} parent=1 // pred_fallthru
      _
    // Predicated region
    $region6: #{roberta_pair_forward.1} parent=1 // pred_check
      _
    $region7: #{roberta_pair_forward.1} parent=1 // pred_check_branch
      %13 = sbr.rel (0) target = $region9
    $region8: #{roberta_pair_forward.1} parent=1 // pred_region
      _
    $region9: #{roberta_pair_forward.1} parent=1 // pred_fallthru
      _
    // Predicated region
    $region10: #{roberta_pair_forward.1} parent=1 // pred_check
      _
    $region11: #{roberta_pair_forward.1} parent=1 // pred_check_branch
      %15 = sbr.rel (0) target = $region13
    $region12: #{roberta_pair_forward.1} parent=1 // pred_region
      %17 = vsyncadd [#allocation3], 0
      %s18 = sshll.u32 %s2, 4
      %s19 = int_to_ptr.hbm [resolvable:$true] %s18
      %s20 = sshll.u32 [#allocation2], 4
      %s21 = int_to_ptr.vmem [resolvable:$true] %s20
      %26 = dma.hbm_to_vmem [thread:$0]  %s19, 14336, %s21, [#allocation3], 64, 64, 4
    $region13: #{roberta_pair_forward.1} parent=1 // pred_fallthru
      _
    // Predicated region
    $region14: #{roberta_pair_forward.1} parent=1 // pred_check
      _
    $region15: #{roberta_pair_forward.1} parent=1 // pred_check_branch
      %28 = sbr.rel (0) target = $region17
    $region16: #{roberta_pair_forward.1} parent=1 // pred_region
      _
    $region17: #{roberta_pair_forward.1} parent=1 // pred_fallthru
      _
    // Predicated region
    $region18: #{roberta_pair_forward.1} parent=1 // pred_check
      _
    $region19: #{roberta_pair_forward.1} parent=1 // pred_check_branch
      %30 = sbr.rel (0) target = $region21
    $region20: #{roberta_pair_forward.1} parent=1 // pred_region
      %32 = dma.done [#allocation3], 14336
    $region21: #{roberta_pair_forward.1} parent=1 // pred_fallthru
      _
    %v33 = vlaneseq
    %v34 = vand.u32 %v33, 127
    %vm35 = vcmp.lt.s32.totalorder %v34, 32
    %v36 = vsel %vm35, 1, 0
    %v37 = vcvt.s32.f32 %v36
    %vm38 = vcmp.ge.s32.totalorder %v34, 0
    %vm39 = vcmp.lt.s32.totalorder %v34, 16
    %vm40 = vmand %vm38, %vm39
    %v41 = vsel %vm40, 1, 0
    %v42 = vcvt.s32.f32 %v41
    %vm43 = vcmp.ge.s32.totalorder %v34, 16
    %vm44 = vmand %vm43, %vm35
    %v45 = vsel %vm44, 1, 0
    %v46 = vcvt.s32.f32 %v45
    %v47 = vld [vmem:[%s1] sm:$0xff]
    %v48 = vld [vmem:[%s1 + $0x8] sm:$0xff]
    %v49 = vld [vmem:[%s1 + $0x10] sm:$0xff]
    %v50 = vld [vmem:[%s1 + $0x18] sm:$0xff]
    %v51 = vld [vmem:[%s1 + $0x20] sm:$0xff]
    %v52 = vld [vmem:[%s1 + $0x28] sm:$0xff]
    %v53 = vld [vmem:[%s1 + $0x30] sm:$0xff]
    %v54 = vld [vmem:[%s1 + $0x38] sm:$0xff]
    %v55 = vld [vmem:[%s1 + $0x40] sm:$0xff]
    %v56 = vld [vmem:[%s1 + $0x48] sm:$0xff]
    %v57 = vld [vmem:[%s1 + $0x50] sm:$0xff]
    %v58 = vld [vmem:[%s1 + $0x58] sm:$0xff]
    %v59 = vld [vmem:[%s1 + $0x60] sm:$0xff]
    %v60 = vld [vmem:[%s1 + $0x68] sm:$0xff]
    %v61 = vld [vmem:[%s1 + $0x70] sm:$0xff]
    %v62 = vld [vmem:[%s1 + $0x78] sm:$0xff]
    %v63 = vld [vmem:[%s0] sm:$0xff]
    %v64 = vld [vmem:[%s0 + $0x8] sm:$0xff]
    %v65 = vld [vmem:[%s0 + $0x10] sm:$0xff]
    %v66 = vld [vmem:[%s0 + $0x18] sm:$0xff]
    %v67 = vld [vmem:[%s0 + $0x20] sm:$0xff]
    %v68 = vld [vmem:[%s0 + $0x28] sm:$0xff]
    %v69 = vld [vmem:[%s0 + $0x30] sm:$0xff]
    %v70 = vld [vmem:[%s0 + $0x38] sm:$0xff]
    %v71 = vld [vmem:[%s0 + $0x40] sm:$0xff]
    %v72 = vld [vmem:[%s0 + $0x48] sm:$0xff]
    %v73 = vld [vmem:[%s0 + $0x50] sm:$0xff]
    %v74 = vld [vmem:[%s0 + $0x58] sm:$0xff]
    %v75 = vld [vmem:[%s0 + $0x60] sm:$0xff]
    %v76 = vld [vmem:[%s0 + $0x68] sm:$0xff]
    %v77 = vld [vmem:[%s0 + $0x70] sm:$0xff]
    %v78 = vld [vmem:[%s0 + $0x78] sm:$0xff]
    %v79 = vld [vmem:[%s3] sm:$0x1]
    %v80 = vld [vmem:[%s3 + $0x1] sm:$0x1]
    %v81 = vmul.f32 %v63, %v37
    %v82 = vmul.f32 %v64, %v37
    %v83 = vmul.f32 %v65, %v37
    %v84 = vmul.f32 %v66, %v37
    %v85 = vmul.f32 %v67, %v37
    %v86 = vmul.f32 %v68, %v37
    %v87 = vmul.f32 %v69, %v37
    %v88 = vmul.f32 %v70, %v37
    %v89 = vmul.f32 %v71, %v37
    %v90 = vmul.f32 %v72, %v37
    %v91 = vmul.f32 %v73, %v37
    %v92 = vmul.f32 %v74, %v37
    %v93 = vmul.f32 %v75, %v37
    %v94 = vmul.f32 %v76, %v37
    %v95 = vmul.f32 %v77, %v37
    %v96 = vmul.f32 %v78, %v37
    %97 = vadd.xlane.f32.xlu0 %v81
    %v98 = vpop.xlane.xlu0 %97
    %99 = vadd.xlane.f32.xlu0 %v82
    %v100 = vpop.xlane.xlu0 %99
    %101 = vadd.xlane.f32.xlu0 %v83
    %v102 = vpop.xlane.xlu0 %101
    %103 = vadd.xlane.f32.xlu0 %v84
    %v104 = vpop.xlane.xlu0 %103
    %105 = vadd.xlane.f32.xlu0 %v85
    %v106 = vpop.xlane.xlu0 %105
    %107 = vadd.xlane.f32.xlu0 %v86
    %v108 = vpop.xlane.xlu0 %107
    %109 = vadd.xlane.f32.xlu0 %v87
    %v110 = vpop.xlane.xlu0 %109
    %111 = vadd.xlane.f32.xlu0 %v88
    %v112 = vpop.xlane.xlu0 %111
    %113 = vadd.xlane.f32.xlu0 %v89
    %v114 = vpop.xlane.xlu0 %113
    %115 = vadd.xlane.f32.xlu0 %v90
    %v116 = vpop.xlane.xlu0 %115
    %117 = vadd.xlane.f32.xlu0 %v91
    %v118 = vpop.xlane.xlu0 %117
    %119 = vadd.xlane.f32.xlu0 %v92
    %v120 = vpop.xlane.xlu0 %119
    %121 = vadd.xlane.f32.xlu0 %v93
    %v122 = vpop.xlane.xlu0 %121
    %123 = vadd.xlane.f32.xlu0 %v94
    %v124 = vpop.xlane.xlu0 %123
    %125 = vadd.xlane.f32.xlu0 %v95
    %v126 = vpop.xlane.xlu0 %125
    %127 = vadd.xlane.f32.xlu0 %v96
    %v128 = vpop.xlane.xlu0 %127
    %v129 = vmul.f32 %v98, 0.03125
    %v130 = vmul.f32 %v100, 0.03125
    %v131 = vmul.f32 %v102, 0.03125
    %v132 = vmul.f32 %v104, 0.03125
    %v133 = vmul.f32 %v106, 0.03125
    %v134 = vmul.f32 %v108, 0.03125
    %v135 = vmul.f32 %v110, 0.03125
    %v136 = vmul.f32 %v112, 0.03125
    %v137 = vmul.f32 %v114, 0.03125
    %v138 = vmul.f32 %v116, 0.03125
    %v139 = vmul.f32 %v118, 0.03125
    %v140 = vmul.f32 %v120, 0.03125
    %v141 = vmul.f32 %v122, 0.03125
    %v142 = vmul.f32 %v124, 0.03125
    %v143 = vmul.f32 %v126, 0.03125
    %v144 = vmul.f32 %v128, 0.03125
    %v145 = vsub.f32 %v63, %v129
    %v146 = vsub.f32 %v64, %v130
    %v147 = vsub.f32 %v65, %v131
    %v148 = vsub.f32 %v66, %v132
    %v149 = vsub.f32 %v67, %v133
    %v150 = vsub.f32 %v68, %v134
    %v151 = vsub.f32 %v69, %v135
    %v152 = vsub.f32 %v70, %v136
    %v153 = vsub.f32 %v71, %v137
    %v154 = vsub.f32 %v72, %v138
    %v155 = vsub.f32 %v73, %v139
    %v156 = vsub.f32 %v74, %v140
    %v157 = vsub.f32 %v75, %v141
    %v158 = vsub.f32 %v76, %v142
    %v159 = vsub.f32 %v77, %v143
    %v160 = vsub.f32 %v78, %v144
    %v161 = vmul.f32 %v145, %v37
    %v162 = vmul.f32 %v146, %v37
    %v163 = vmul.f32 %v147, %v37
    %v164 = vmul.f32 %v148, %v37
    %v165 = vmul.f32 %v149, %v37
    %v166 = vmul.f32 %v150, %v37
    %v167 = vmul.f32 %v151, %v37
    %v168 = vmul.f32 %v152, %v37
    %v169 = vmul.f32 %v153, %v37
    %v170 = vmul.f32 %v154, %v37
    %v171 = vmul.f32 %v155, %v37
    %v172 = vmul.f32 %v156, %v37
    %v173 = vmul.f32 %v157, %v37
    %v174 = vmul.f32 %v158, %v37
    %v175 = vmul.f32 %v159, %v37
    %v176 = vmul.f32 %v160, %v37
    %v177 = vmul.f32 %v161, %v161
    %v178 = vmul.f32 %v162, %v162
    %v179 = vmul.f32 %v163, %v163
    %v180 = vmul.f32 %v164, %v164
    %v181 = vmul.f32 %v165, %v165
    %v182 = vmul.f32 %v166, %v166
    %v183 = vmul.f32 %v167, %v167
    %v184 = vmul.f32 %v168, %v168
    %v185 = vmul.f32 %v169, %v169
    %v186 = vmul.f32 %v170, %v170
    %v187 = vmul.f32 %v171, %v171
    %v188 = vmul.f32 %v172, %v172
    %v189 = vmul.f32 %v173, %v173
    %v190 = vmul.f32 %v174, %v174
    %v191 = vmul.f32 %v175, %v175
    %v192 = vmul.f32 %v176, %v176
    %193 = vadd.xlane.f32.xlu0 %v177
    %v194 = vpop.xlane.xlu0 %193
    %195 = vadd.xlane.f32.xlu0 %v178
    %v196 = vpop.xlane.xlu0 %195
    %197 = vadd.xlane.f32.xlu0 %v179
    %v198 = vpop.xlane.xlu0 %197
    %199 = vadd.xlane.f32.xlu0 %v180
    %v200 = vpop.xlane.xlu0 %199
    %201 = vadd.xlane.f32.xlu0 %v181
    %v202 = vpop.xlane.xlu0 %201
    %203 = vadd.xlane.f32.xlu0 %v182
    %v204 = vpop.xlane.xlu0 %203
    %205 = vadd.xlane.f32.xlu0 %v183
    %v206 = vpop.xlane.xlu0 %205
    %207 = vadd.xlane.f32.xlu0 %v184
    %v208 = vpop.xlane.xlu0 %207
    %209 = vadd.xlane.f32.xlu0 %v185
    %v210 = vpop.xlane.xlu0 %209
    %211 = vadd.xlane.f32.xlu0 %v186
    %v212 = vpop.xlane.xlu0 %211
    %213 = vadd.xlane.f32.xlu0 %v187
    %v214 = vpop.xlane.xlu0 %213
    %215 = vadd.xlane.f32.xlu0 %v188
    %v216 = vpop.xlane.xlu0 %215
    %217 = vadd.xlane.f32.xlu0 %v189
    %v218 = vpop.xlane.xlu0 %217
    %219 = vadd.xlane.f32.xlu0 %v190
    %v220 = vpop.xlane.xlu0 %219
    %221 = vadd.xlane.f32.xlu0 %v191
    %v222 = vpop.xlane.xlu0 %221
    %223 = vadd.xlane.f32.xlu0 %v192
    %v224 = vpop.xlane.xlu0 %223
    %v225 = vmul.f32 %v194, 0.03125
    %v226 = vmul.f32 %v196, 0.03125
    %v227 = vmul.f32 %v198, 0.03125
    %v228 = vmul.f32 %v200, 0.03125
    %v229 = vmul.f32 %v202, 0.03125
    %v230 = vmul.f32 %v204, 0.03125
    %v231 = vmul.f32 %v206, 0.03125
    %v232 = vmul.f32 %v208, 0.03125
    %v233 = vmul.f32 %v210, 0.03125
    %v234 = vmul.f32 %v212, 0.03125
    %v235 = vmul.f32 %v214, 0.03125
    %v236 = vmul.f32 %v216, 0.03125
    %v237 = vmul.f32 %v218, 0.03125
    %v238 = vmul.f32 %v220, 0.03125
    %v239 = vmul.f32 %v222, 0.03125
    %v240 = vmul.f32 %v224, 0.03125
    %v241 = vadd.f32 %v225, 1e-05
    %v242 = vadd.f32 %v226, 1e-05
    %v243 = vadd.f32 %v227, 1e-05
    %v244 = vadd.f32 %v228, 1e-05
    %v245 = vadd.f32 %v229, 1e-05
    %v246 = vadd.f32 %v230, 1e-05
    %v247 = vadd.f32 %v231, 1e-05
    %v248 = vadd.f32 %v232, 1e-05
    %v249 = vadd.f32 %v233, 1e-05
    %v250 = vadd.f32 %v234, 1e-05
    %v251 = vadd.f32 %v235, 1e-05
    %v252 = vadd.f32 %v236, 1e-05
    %v253 = vadd.f32 %v237, 1e-05
    %v254 = vadd.f32 %v238, 1e-05
    %v255 = vadd.f32 %v239, 1e-05
    %v256 = vadd.f32 %v240, 1e-05
    %v257 = vrsqrt.pop %v241
    %v258 = vmul.f32 %v257, %v241
    %v259 = vmul.f32 %v258, %v257
    %v260 = vmul.f32 0.5, %v259
    %v261 = vsub.f32 1.5, %v260
    %v262 = vmul.f32 %v257, %v261
    %vm263 = vweird.f32 %v241
    %vm264 = vweird.f32 %v257
    %vm265 = vmor %vm263, %vm264
    %v266 = vsel %vm265, %v257, %v262
    %v267 = vrsqrt.pop %v242
    %v268 = vmul.f32 %v267, %v242
    %v269 = vmul.f32 %v268, %v267
    %v270 = vmul.f32 0.5, %v269
    %v271 = vsub.f32 1.5, %v270
    %v272 = vmul.f32 %v267, %v271
    %vm273 = vweird.f32 %v242
    %vm274 = vweird.f32 %v267
    %vm275 = vmor %vm273, %vm274
    %v276 = vsel %vm275, %v267, %v272
    %v277 = vrsqrt.pop %v243
    %v278 = vmul.f32 %v277, %v243
    %v279 = vmul.f32 %v278, %v277
    %v280 = vmul.f32 0.5, %v279
    %v281 = vsub.f32 1.5, %v280
    %v282 = vmul.f32 %v277, %v281
    %vm283 = vweird.f32 %v243
    %vm284 = vweird.f32 %v277
    %vm285 = vmor %vm283, %vm284
    %v286 = vsel %vm285, %v277, %v282
    %v287 = vrsqrt.pop %v244
    %v288 = vmul.f32 %v287, %v244
    %v289 = vmul.f32 %v288, %v287
    %v290 = vmul.f32 0.5, %v289
    %v291 = vsub.f32 1.5, %v290
    %v292 = vmul.f32 %v287, %v291
    %vm293 = vweird.f32 %v244
    %vm294 = vweird.f32 %v287
    %vm295 = vmor %vm293, %vm294
    %v296 = vsel %vm295, %v287, %v292
    %v297 = vrsqrt.pop %v245
    %v298 = vmul.f32 %v297, %v245
    %v299 = vmul.f32 %v298, %v297
    %v300 = vmul.f32 0.5, %v299
    %v301 = vsub.f32 1.5, %v300
    %v302 = vmul.f32 %v297, %v301
    %vm303 = vweird.f32 %v245
    %vm304 = vweird.f32 %v297
    %vm305 = vmor %vm303, %vm304
    %v306 = vsel %vm305, %v297, %v302
    %v307 = vrsqrt.pop %v246
    %v308 = vmul.f32 %v307, %v246
    %v309 = vmul.f32 %v308, %v307
    %v310 = vmul.f32 0.5, %v309
    %v311 = vsub.f32 1.5, %v310
    %v312 = vmul.f32 %v307, %v311
    %vm313 = vweird.f32 %v246
    %vm314 = vweird.f32 %v307
    %vm315 = vmor %vm313, %vm314
    %v316 = vsel %vm315, %v307, %v312
    %v317 = vrsqrt.pop %v247
    %v318 = vmul.f32 %v317, %v247
    %v319 = vmul.f32 %v318, %v317
    %v320 = vmul.f32 0.5, %v319
    %v321 = vsub.f32 1.5, %v320
    %v322 = vmul.f32 %v317, %v321
    %vm323 = vweird.f32 %v247
    %vm324 = vweird.f32 %v317
    %vm325 = vmor %vm323, %vm324
    %v326 = vsel %vm325, %v317, %v322
    %v327 = vrsqrt.pop %v248
    %v328 = vmul.f32 %v327, %v248
    %v329 = vmul.f32 %v328, %v327
    %v330 = vmul.f32 0.5, %v329
    %v331 = vsub.f32 1.5, %v330
    %v332 = vmul.f32 %v327, %v331
    %vm333 = vweird.f32 %v248
    %vm334 = vweird.f32 %v327
    %vm335 = vmor %vm333, %vm334
    %v336 = vsel %vm335, %v327, %v332
    %v337 = vrsqrt.pop %v249
    %v338 = vmul.f32 %v337, %v249
    %v339 = vmul.f32 %v338, %v337
    %v340 = vmul.f32 0.5, %v339
    %v341 = vsub.f32 1.5, %v340
    %v342 = vmul.f32 %v337, %v341
    %vm343 = vweird.f32 %v249
    %vm344 = vweird.f32 %v337
    %vm345 = vmor %vm343, %vm344
    %v346 = vsel %vm345, %v337, %v342
    %v347 = vrsqrt.pop %v250
    %v348 = vmul.f32 %v347, %v250
    %v349 = vmul.f32 %v348, %v347
    %v350 = vmul.f32 0.5, %v349
    %v351 = vsub.f32 1.5, %v350
    %v352 = vmul.f32 %v347, %v351
    %vm353 = vweird.f32 %v250
    %vm354 = vweird.f32 %v347
    %vm355 = vmor %vm353, %vm354
    %v356 = vsel %vm355, %v347, %v352
    %v357 = vrsqrt.pop %v251
    %v358 = vmul.f32 %v357, %v251
    %v359 = vmul.f32 %v358, %v357
    %v360 = vmul.f32 0.5, %v359
    %v361 = vsub.f32 1.5, %v360
    %v362 = vmul.f32 %v357, %v361
    %vm363 = vweird.f32 %v251
    %vm364 = vweird.f32 %v357
    %vm365 = vmor %vm363, %vm364
    %v366 = vsel %vm365, %v357, %v362
    %v367 = vrsqrt.pop %v252
    %v368 = vmul.f32 %v367, %v252
    %v369 = vmul.f32 %v368, %v367
    %v370 = vmul.f32 0.5, %v369
    %v371 = vsub.f32 1.5, %v370
    %v372 = vmul.f32 %v367, %v371
    %vm373 = vweird.f32 %v252
    %vm374 = vweird.f32 %v367
    %vm375 = vmor %vm373, %vm374
    %v376 = vsel %vm375, %v367, %v372
    %v377 = vrsqrt.pop %v253
    %v378 = vmul.f32 %v377, %v253
    %v379 = vmul.f32 %v378, %v377
    %v380 = vmul.f32 0.5, %v379
    %v381 = vsub.f32 1.5, %v380
    %v382 = vmul.f32 %v377, %v381
    %vm383 = vweird.f32 %v253
    %vm384 = vweird.f32 %v377
    %vm385 = vmor %vm383, %vm384
    %v386 = vsel %vm385, %v377, %v382
    %v387 = vrsqrt.pop %v254
    %v388 = vmul.f32 %v387, %v254
    %v389 = vmul.f32 %v388, %v387
    %v390 = vmul.f32 0.5, %v389
    %v391 = vsub.f32 1.5, %v390
    %v392 = vmul.f32 %v387, %v391
    %vm393 = vweird.f32 %v254
    %vm394 = vweird.f32 %v387
    %vm395 = vmor %vm393, %vm394
    %v396 = vsel %vm395, %v387, %v392
    %v397 = vrsqrt.pop %v255
    %v398 = vmul.f32 %v397, %v255
    %v399 = vmul.f32 %v398, %v397
    %v400 = vmul.f32 0.5, %v399
    %v401 = vsub.f32 1.5, %v400
    %v402 = vmul.f32 %v397, %v401
    %vm403 = vweird.f32 %v255
    %vm404 = vweird.f32 %v397
    %vm405 = vmor %vm403, %vm404
    %v406 = vsel %vm405, %v397, %v402
    %v407 = vrsqrt.pop %v256
    %v408 = vmul.f32 %v407, %v256
    %v409 = vmul.f32 %v408, %v407
    %v410 = vmul.f32 0.5, %v409
    %v411 = vsub.f32 1.5, %v410
    %v412 = vmul.f32 %v407, %v411
    %vm413 = vweird.f32 %v256
    %vm414 = vweird.f32 %v407
    %vm415 = vmor %vm413, %vm414
    %v416 = vsel %vm415, %v407, %v412
    %v417 = vmul.f32 %v161, %v266
    %v418 = vmul.f32 %v162, %v276
    %v419 = vmul.f32 %v163, %v286
    %v420 = vmul.f32 %v164, %v296
    %v421 = vmul.f32 %v165, %v306
    %v422 = vmul.f32 %v166, %v316
    %v423 = vmul.f32 %v167, %v326
    %v424 = vmul.f32 %v168, %v336
    %v425 = vmul.f32 %v169, %v346
    %v426 = vmul.f32 %v170, %v356
    %v427 = vmul.f32 %v171, %v366
    %v428 = vmul.f32 %v172, %v376
    %v429 = vmul.f32 %v173, %v386
    %v430 = vmul.f32 %v174, %v396
    %v431 = vmul.f32 %v175, %v406
    %v432 = vmul.f32 %v176, %v416
    %v433 = vperm.slane %v79, 0
    %v434 = vmul.f32 %v417, %v433
    %v435 = vmul.f32 %v418, %v433
    %v436 = vmul.f32 %v419, %v433
    %v437 = vmul.f32 %v420, %v433
    %v438 = vmul.f32 %v421, %v433
    %v439 = vmul.f32 %v422, %v433
    %v440 = vmul.f32 %v423, %v433
    %v441 = vmul.f32 %v424, %v433
    %v442 = vmul.f32 %v425, %v433
    %v443 = vmul.f32 %v426, %v433
    %v444 = vmul.f32 %v427, %v433
    %v445 = vmul.f32 %v428, %v433
    %v446 = vmul.f32 %v429, %v433
    %v447 = vmul.f32 %v430, %v433
    %v448 = vmul.f32 %v431, %v433
    %v449 = vmul.f32 %v432, %v433
    %v450 = vperm.slane %v80, 0
    %v451 = vadd.f32 %v434, %v450
    %v452 = vadd.f32 %v435, %v450
    %v453 = vadd.f32 %v436, %v450
    %v454 = vadd.f32 %v437, %v450
    %v455 = vadd.f32 %v438, %v450
    %v456 = vadd.f32 %v439, %v450
    %v457 = vadd.f32 %v440, %v450
    %v458 = vadd.f32 %v441, %v450
    %v459 = vadd.f32 %v442, %v450
    %v460 = vadd.f32 %v443, %v450
    %v461 = vadd.f32 %v444, %v450
    %v462 = vadd.f32 %v445, %v450
    %v463 = vadd.f32 %v446, %v450
    %v464 = vadd.f32 %v447, %v450
    %v465 = vadd.f32 %v448, %v450
    %v466 = vadd.f32 %v449, %v450
    %v467 = vpack.c.bf16 %v452, %v451
    %v468 = vpack.c.bf16 %v454, %v453
    %v469 = vpack.c.bf16 %v456, %v455
    %v470 = vpack.c.bf16 %v458, %v457
    %v471 = vpack.c.bf16 %v460, %v459
    %v472 = vpack.c.bf16 %v462, %v461
    %v473 = vpack.c.bf16 %v464, %v463
    %v474 = vpack.c.bf16 %v466, %v465
    %v475 = vld [vmem:[#allocation2] sm:$0xf]
    %v476 = vld [vmem:[#allocation2 + $0x4] sm:$0xf]
    %v477 = vld [vmem:[#allocation2 + $0x8] sm:$0xf]
    %v478 = vld [vmem:[#allocation2 + $0xc] sm:$0xf]
    %v479 = vld [vmem:[#allocation2 + $0x10] sm:$0xf]
    %v480 = vld [vmem:[#allocation2 + $0x14] sm:$0xf]
    %v481 = vld [vmem:[#allocation2 + $0x18] sm:$0xf]
    %v482 = vld [vmem:[#allocation2 + $0x1c] sm:$0xf]
    %v483 = vld [vmem:[#allocation2 + $0x20] sm:$0xf]
    %v484 = vld [vmem:[#allocation2 + $0x24] sm:$0xf]
    %v485 = vld [vmem:[#allocation2 + $0x28] sm:$0xf]
    %v486 = vld [vmem:[#allocation2 + $0x2c] sm:$0xf]
    %v487 = vld [vmem:[#allocation2 + $0x30] sm:$0xf]
    %v488 = vld [vmem:[#allocation2 + $0x34] sm:$0xf]
    %v489 = vld [vmem:[#allocation2 + $0x38] sm:$0xf]
    %v490 = vld [vmem:[#allocation2 + $0x3c] sm:$0xf]
    %v491 = vld [vmem:[%s3 + $0x2] sm:$0x1]
    %v492 = vperm.slane %v491, 0
    %v509 = vunpack.c.l.b16 %v475
    %v510 = vunpack.c.l.b16 %v476
    %v511 = vunpack.c.l.b16 %v477
    %v512 = vunpack.c.l.b16 %v478
    %v513 = vunpack.c.l.b16 %v479
    %v514 = vunpack.c.l.b16 %v480
    %v515 = vunpack.c.l.b16 %v481
    %v516 = vunpack.c.l.b16 %v482
    %v517 = vunpack.c.l.b16 %v483
    %v518 = vunpack.c.l.b16 %v484
    %v519 = vunpack.c.l.b16 %v485
    %v520 = vunpack.c.l.b16 %v486
    %v521 = vunpack.c.l.b16 %v487
    %v522 = vunpack.c.l.b16 %v488
    %v523 = vunpack.c.l.b16 %v489
    %v524 = vunpack.c.l.b16 %v490
    %v525 = vpack.c.b16 %v510, %v509
    %v526 = vpack.c.b16 %v512, %v511
    %v527 = vpack.c.b16 %v514, %v513
    %v528 = vpack.c.b16 %v516, %v515
    %v529 = vpack.c.b16 %v518, %v517
    %v530 = vpack.c.b16 %v520, %v519
    %v531 = vpack.c.b16 %v522, %v521
    %v532 = vpack.c.b16 %v524, %v523
    %541 = vmatpush.bf16.msra.mxu0 %v532
    %542 = vmatpush.bf16.msra.mxu0 %v531
    %543 = vmatpush.bf16.msra.mxu0 %v530
    %544 = vmatpush.bf16.msra.mxu0 %v529
    %545 = vmatpush.bf16.msra.mxu0 %v528
    %546 = vmatpush.bf16.msra.mxu0 %v527
    %547 = vmatpush.bf16.msra.mxu0 %v526
    %548 = vmatpush.bf16.msra.mxu0 %v525
    %549 = vmatmul.bf16.gmra.mxu0 %v467
    %v550 = vpop.f32.mrf.mxu0
    %v551 = vadd.f32 %v492, %v550
    %v552 = vpop.f32.mrf.mxu0
    %v553 = vadd.f32 %v492, %v552
    %554 = vmatmul.bf16.gmra.mxu0 %v468
    %v555 = vpop.f32.mrf.mxu0
    %v556 = vadd.f32 %v492, %v555
    %v557 = vpop.f32.mrf.mxu0
    %v558 = vadd.f32 %v492, %v557
    %559 = vmatmul.bf16.gmra.mxu0 %v469
    %v560 = vpop.f32.mrf.mxu0
    %v561 = vadd.f32 %v492, %v560
    %v562 = vpop.f32.mrf.mxu0
    %v563 = vadd.f32 %v492, %v562
    %564 = vmatmul.bf16.gmra.mxu0 %v470
    %v565 = vpop.f32.mrf.mxu0
    %v566 = vadd.f32 %v492, %v565
    %v567 = vpop.f32.mrf.mxu0
    %v568 = vadd.f32 %v492, %v567
    %569 = vmatmul.bf16.gmra.mxu0 %v471
    %v570 = vpop.f32.mrf.mxu0
    %v571 = vadd.f32 %v492, %v570
    %v572 = vpop.f32.mrf.mxu0
    %v573 = vadd.f32 %v492, %v572
    %574 = vmatmul.bf16.gmra.mxu0 %v472
    %v575 = vpop.f32.mrf.mxu0
    %v576 = vadd.f32 %v492, %v575
    %v577 = vpop.f32.mrf.mxu0
    %v578 = vadd.f32 %v492, %v577
    %579 = vmatmul.bf16.gmra.mxu0 %v473
    %v580 = vpop.f32.mrf.mxu0
    %v581 = vadd.f32 %v492, %v580
    %v582 = vpop.f32.mrf.mxu0
    %v583 = vadd.f32 %v492, %v582
    %584 = vmatmul.bf16.gmra.mxu0 %v474
    %v585 = vpop.f32.mrf.mxu0
    %v586 = vadd.f32 %v492, %v585
    %v587 = vpop.f32.mrf.mxu0
    %v588 = vadd.f32 %v492, %v587
    %589 = vdwg.mxu0
    %s590 = scalar_lea.vmem [#allocation2], 64
    %v591 = vld [vmem:[%s590] sm:$0xf]
    %v592 = vld [vmem:[%s590 + $0x4] sm:$0xf]
    %v593 = vld [vmem:[%s590 + $0x8] sm:$0xf]
    %v594 = vld [vmem:[%s590 + $0xc] sm:$0xf]
    %v595 = vld [vmem:[%s590 + $0x10] sm:$0xf]
    %v596 = vld [vmem:[%s590 + $0x14] sm:$0xf]
    %v597 = vld [vmem:[%s590 + $0x18] sm:$0xf]
    %v598 = vld [vmem:[%s590 + $0x1c] sm:$0xf]
    %v599 = vld [vmem:[%s590 + $0x20] sm:$0xf]
    %v600 = vld [vmem:[%s590 + $0x24] sm:$0xf]
    %v601 = vld [vmem:[%s590 + $0x28] sm:$0xf]
    %v602 = vld [vmem:[%s590 + $0x2c] sm:$0xf]
    %v603 = vld [vmem:[%s590 + $0x30] sm:$0xf]
    %v604 = vld [vmem:[%s590 + $0x34] sm:$0xf]
    %v605 = vld [vmem:[%s590 + $0x38] sm:$0xf]
    %v606 = vld [vmem:[%s590 + $0x3c] sm:$0xf]
    %v607 = vld [vmem:[%s3 + $0x3] sm:$0x1]
    %v608 = vperm.slane %v607, 0
    %v625 = vunpack.c.l.b16 %v591
    %v626 = vunpack.c.l.b16 %v592
    %v627 = vunpack.c.l.b16 %v593
    %v628 = vunpack.c.l.b16 %v594
    %v629 = vunpack.c.l.b16 %v595
    %v630 = vunpack.c.l.b16 %v596
    %v631 = vunpack.c.l.b16 %v597
    %v632 = vunpack.c.l.b16 %v598
    %v633 = vunpack.c.l.b16 %v599
    %v634 = vunpack.c.l.b16 %v600
    %v635 = vunpack.c.l.b16 %v601
    %v636 = vunpack.c.l.b16 %v602
    %v637 = vunpack.c.l.b16 %v603
    %v638 = vunpack.c.l.b16 %v604
    %v639 = vunpack.c.l.b16 %v605
    %v640 = vunpack.c.l.b16 %v606
    %v641 = vpack.c.b16 %v626, %v625
    %v642 = vpack.c.b16 %v628, %v627
    %v643 = vpack.c.b16 %v630, %v629
    %v644 = vpack.c.b16 %v632, %v631
    %v645 = vpack.c.b16 %v634, %v633
    %v646 = vpack.c.b16 %v636, %v635
    %v647 = vpack.c.b16 %v638, %v637
    %v648 = vpack.c.b16 %v640, %v639
    %657 = vmatpush.bf16.msra.mxu0 %v648
    %658 = vmatpush.bf16.msra.mxu0 %v647
    %659 = vmatpush.bf16.msra.mxu0 %v646
    %660 = vmatpush.bf16.msra.mxu0 %v645
    %661 = vmatpush.bf16.msra.mxu0 %v644
    %662 = vmatpush.bf16.msra.mxu0 %v643
    %663 = vmatpush.bf16.msra.mxu0 %v642
    %664 = vmatpush.bf16.msra.mxu0 %v641
    %665 = vmatmul.bf16.gmra.mxu0 %v467
    %v666 = vpop.f32.mrf.mxu0
    %v667 = vadd.f32 %v608, %v666
    %v668 = vpop.f32.mrf.mxu0
    %v669 = vadd.f32 %v608, %v668
    %670 = vmatmul.bf16.gmra.mxu0 %v468
    %v671 = vpop.f32.mrf.mxu0
    %v672 = vadd.f32 %v608, %v671
    %v673 = vpop.f32.mrf.mxu0
    %v674 = vadd.f32 %v608, %v673
    %675 = vmatmul.bf16.gmra.mxu0 %v469
    %v676 = vpop.f32.mrf.mxu0
    %v677 = vadd.f32 %v608, %v676
    %v678 = vpop.f32.mrf.mxu0
    %v679 = vadd.f32 %v608, %v678
    %680 = vmatmul.bf16.gmra.mxu0 %v470
    %v681 = vpop.f32.mrf.mxu0
    %v682 = vadd.f32 %v608, %v681
    %v683 = vpop.f32.mrf.mxu0
    %v684 = vadd.f32 %v608, %v683
    %685 = vmatmul.bf16.gmra.mxu0 %v471
    %v686 = vpop.f32.mrf.mxu0
    %v687 = vadd.f32 %v608, %v686
    %v688 = vpop.f32.mrf.mxu0
    %v689 = vadd.f32 %v608, %v688
    %690 = vmatmul.bf16.gmra.mxu0 %v472
    %v691 = vpop.f32.mrf.mxu0
    %v692 = vadd.f32 %v608, %v691
    %v693 = vpop.f32.mrf.mxu0
    %v694 = vadd.f32 %v608, %v693
    %695 = vmatmul.bf16.gmra.mxu0 %v473
    %v696 = vpop.f32.mrf.mxu0
    %v697 = vadd.f32 %v608, %v696
    %v698 = vpop.f32.mrf.mxu0
    %v699 = vadd.f32 %v608, %v698
    %700 = vmatmul.bf16.gmra.mxu0 %v474
    %v701 = vpop.f32.mrf.mxu0
    %v702 = vadd.f32 %v608, %v701
    %v703 = vpop.f32.mrf.mxu0
    %v704 = vadd.f32 %v608, %v703
    %705 = vdwg.mxu0
    %s706 = scalar_lea.vmem [#allocation2], 128
    %v707 = vld [vmem:[%s706] sm:$0xf]
    %v708 = vld [vmem:[%s706 + $0x4] sm:$0xf]
    %v709 = vld [vmem:[%s706 + $0x8] sm:$0xf]
    %v710 = vld [vmem:[%s706 + $0xc] sm:$0xf]
    %v711 = vld [vmem:[%s706 + $0x10] sm:$0xf]
    %v712 = vld [vmem:[%s706 + $0x14] sm:$0xf]
    %v713 = vld [vmem:[%s706 + $0x18] sm:$0xf]
    %v714 = vld [vmem:[%s706 + $0x1c] sm:$0xf]
    %v715 = vld [vmem:[%s706 + $0x20] sm:$0xf]
    %v716 = vld [vmem:[%s706 + $0x24] sm:$0xf]
    %v717 = vld [vmem:[%s706 + $0x28] sm:$0xf]
    %v718 = vld [vmem:[%s706 + $0x2c] sm:$0xf]
    %v719 = vld [vmem:[%s706 + $0x30] sm:$0xf]
    %v720 = vld [vmem:[%s706 + $0x34] sm:$0xf]
    %v721 = vld [vmem:[%s706 + $0x38] sm:$0xf]
    %v722 = vld [vmem:[%s706 + $0x3c] sm:$0xf]
    %v723 = vld [vmem:[%s3 + $0x4] sm:$0x1]
    %v724 = vperm.slane %v723, 0
    %v741 = vunpack.c.l.b16 %v707
    %v742 = vunpack.c.l.b16 %v708
    %v743 = vunpack.c.l.b16 %v709
    %v744 = vunpack.c.l.b16 %v710
    %v745 = vunpack.c.l.b16 %v711
    %v746 = vunpack.c.l.b16 %v712
    %v747 = vunpack.c.l.b16 %v713
    %v748 = vunpack.c.l.b16 %v714
    %v749 = vunpack.c.l.b16 %v715
    %v750 = vunpack.c.l.b16 %v716
    %v751 = vunpack.c.l.b16 %v717
    %v752 = vunpack.c.l.b16 %v718
    %v753 = vunpack.c.l.b16 %v719
    %v754 = vunpack.c.l.b16 %v720
    %v755 = vunpack.c.l.b16 %v721
    %v756 = vunpack.c.l.b16 %v722
    %v757 = vpack.c.b16 %v742, %v741
    %v758 = vpack.c.b16 %v744, %v743
    %v759 = vpack.c.b16 %v746, %v745
    %v760 = vpack.c.b16 %v748, %v747
    %v761 = vpack.c.b16 %v750, %v749
    %v762 = vpack.c.b16 %v752, %v751
    %v763 = vpack.c.b16 %v754, %v753
    %v764 = vpack.c.b16 %v756, %v755
    %773 = vmatpush.bf16.msra.mxu0 %v764
    %774 = vmatpush.bf16.msra.mxu0 %v763
    %775 = vmatpush.bf16.msra.mxu0 %v762
    %776 = vmatpush.bf16.msra.mxu0 %v761
    %777 = vmatpush.bf16.msra.mxu0 %v760
    %778 = vmatpush.bf16.msra.mxu0 %v759
    %779 = vmatpush.bf16.msra.mxu0 %v758
    %780 = vmatpush.bf16.msra.mxu0 %v757
    %781 = vmatmul.bf16.gmra.mxu0 %v467
    %v782 = vpop.f32.mrf.mxu0
    %v783 = vadd.f32 %v724, %v782
    %v784 = vpop.f32.mrf.mxu0
    %v785 = vadd.f32 %v724, %v784
    %786 = vmatmul.bf16.gmra.mxu0 %v468
    %v787 = vpop.f32.mrf.mxu0
    %v788 = vadd.f32 %v724, %v787
    %v789 = vpop.f32.mrf.mxu0
    %v790 = vadd.f32 %v724, %v789
    %791 = vmatmul.bf16.gmra.mxu0 %v469
    %v792 = vpop.f32.mrf.mxu0
    %v793 = vadd.f32 %v724, %v792
    %v794 = vpop.f32.mrf.mxu0
    %v795 = vadd.f32 %v724, %v794
    %796 = vmatmul.bf16.gmra.mxu0 %v470
    %v797 = vpop.f32.mrf.mxu0
    %v798 = vadd.f32 %v724, %v797
    %v799 = vpop.f32.mrf.mxu0
    %v800 = vadd.f32 %v724, %v799
    %801 = vmatmul.bf16.gmra.mxu0 %v471
    %v802 = vpop.f32.mrf.mxu0
    %v803 = vadd.f32 %v724, %v802
    %v804 = vpop.f32.mrf.mxu0
    %v805 = vadd.f32 %v724, %v804
    %806 = vmatmul.bf16.gmra.mxu0 %v472
    %v807 = vpop.f32.mrf.mxu0
    %v808 = vadd.f32 %v724, %v807
    %v809 = vpop.f32.mrf.mxu0
    %v810 = vadd.f32 %v724, %v809
    %811 = vmatmul.bf16.gmra.mxu0 %v473
    %v812 = vpop.f32.mrf.mxu0
    %v813 = vadd.f32 %v724, %v812
    %v814 = vpop.f32.mrf.mxu0
    %v815 = vadd.f32 %v724, %v814
    %816 = vmatmul.bf16.gmra.mxu0 %v474
    %v817 = vpop.f32.mrf.mxu0
    %v818 = vadd.f32 %v724, %v817
    %v819 = vpop.f32.mrf.mxu0
    %v820 = vadd.f32 %v724, %v819
    %821 = vdwg.mxu0
    %v822 = vmul.f32 %v551, %v42
    %v823 = vmul.f32 %v553, %v42
    %v824 = vmul.f32 %v556, %v42
    %v825 = vmul.f32 %v558, %v42
    %v826 = vmul.f32 %v561, %v42
    %v827 = vmul.f32 %v563, %v42
    %v828 = vmul.f32 %v566, %v42
    %v829 = vmul.f32 %v568, %v42
    %v830 = vmul.f32 %v571, %v42
    %v831 = vmul.f32 %v573, %v42
    %v832 = vmul.f32 %v576, %v42
    %v833 = vmul.f32 %v578, %v42
    %v834 = vmul.f32 %v581, %v42
    %v835 = vmul.f32 %v583, %v42
    %v836 = vmul.f32 %v586, %v42
    %v837 = vmul.f32 %v588, %v42
    %v838 = vpack.c.bf16 %v823, %v822
    %v839 = vpack.c.bf16 %v825, %v824
    %v840 = vpack.c.bf16 %v827, %v826
    %v841 = vpack.c.bf16 %v829, %v828
    %v842 = vpack.c.bf16 %v831, %v830
    %v843 = vpack.c.bf16 %v833, %v832
    %v844 = vpack.c.bf16 %v835, %v834
    %v845 = vpack.c.bf16 %v837, %v836
    %v846 = vmul.f32 %v667, %v42
    %v847 = vmul.f32 %v669, %v42
    %v848 = vmul.f32 %v672, %v42
    %v849 = vmul.f32 %v674, %v42
    %v850 = vmul.f32 %v677, %v42
    %v851 = vmul.f32 %v679, %v42
    %v852 = vmul.f32 %v682, %v42
    %v853 = vmul.f32 %v684, %v42
    %v854 = vmul.f32 %v687, %v42
    %v855 = vmul.f32 %v689, %v42
    %v856 = vmul.f32 %v692, %v42
    %v857 = vmul.f32 %v694, %v42
    %v858 = vmul.f32 %v697, %v42
    %v859 = vmul.f32 %v699, %v42
    %v860 = vmul.f32 %v702, %v42
    %v861 = vmul.f32 %v704, %v42
    %v862 = vpack.c.bf16 %v847, %v846
    %v863 = vpack.c.bf16 %v849, %v848
    %v864 = vpack.c.bf16 %v851, %v850
    %v865 = vpack.c.bf16 %v853, %v852
    %v866 = vpack.c.bf16 %v855, %v854
    %v867 = vpack.c.bf16 %v857, %v856
    %v868 = vpack.c.bf16 %v859, %v858
    %v869 = vpack.c.bf16 %v861, %v860
    %870 = vmatpush.bf16.xpose.msra.mxu0 %v869
    %871 = vmatpush.bf16.xpose.msra.mxu0 %v868
    %872 = vmatpush.bf16.xpose.msra.mxu0 %v867
    %873 = vmatpush.bf16.xpose.msra.mxu0 %v866
    %874 = vmatpush.bf16.xpose.msra.mxu0 %v865
    %875 = vmatpush.bf16.xpose.msra.mxu0 %v864
    %876 = vmatpush.bf16.xpose.msra.mxu0 %v863
    %877 = vmatpush.bf16.xpose.msra.mxu0 %v862
    %878 = vmatmul.bf16.gmra.mxu0 %v838
    %v879 = vpop.f32.mrf.mxu0
    %v880 = vadd.f32 0.0, %v879
    %v881 = vpop.f32.mrf.mxu0
    %v882 = vadd.f32 0.0, %v881
    %883 = vmatmul.bf16.gmra.mxu0 %v839
    %v884 = vpop.f32.mrf.mxu0
    %v885 = vadd.f32 0.0, %v884
    %v886 = vpop.f32.mrf.mxu0
    %v887 = vadd.f32 0.0, %v886
    %888 = vmatmul.bf16.gmra.mxu0 %v840
    %v889 = vpop.f32.mrf.mxu0
    %v890 = vadd.f32 0.0, %v889
    %v891 = vpop.f32.mrf.mxu0
    %v892 = vadd.f32 0.0, %v891
    %893 = vmatmul.bf16.gmra.mxu0 %v841
    %v894 = vpop.f32.mrf.mxu0
    %v895 = vadd.f32 0.0, %v894
    %v896 = vpop.f32.mrf.mxu0
    %v897 = vadd.f32 0.0, %v896
    %898 = vmatmul.bf16.gmra.mxu0 %v842
    %v899 = vpop.f32.mrf.mxu0
    %v900 = vadd.f32 0.0, %v899
    %v901 = vpop.f32.mrf.mxu0
    %v902 = vadd.f32 0.0, %v901
    %903 = vmatmul.bf16.gmra.mxu0 %v843
    %v904 = vpop.f32.mrf.mxu0
    %v905 = vadd.f32 0.0, %v904
    %v906 = vpop.f32.mrf.mxu0
    %v907 = vadd.f32 0.0, %v906
    %908 = vmatmul.bf16.gmra.mxu0 %v844
    %v909 = vpop.f32.mrf.mxu0
    %v910 = vadd.f32 0.0, %v909
    %v911 = vpop.f32.mrf.mxu0
    %v912 = vadd.f32 0.0, %v911
    %913 = vmatmul.bf16.gmra.mxu0 %v845
    %v914 = vpop.f32.mrf.mxu0
    %v915 = vadd.f32 0.0, %v914
    %v916 = vpop.f32.mrf.mxu0
    %v917 = vadd.f32 0.0, %v916
    %918 = vdwg.mxu0
    %v919 = vmul.f32 %v880, 0.25
    %v920 = vmul.f32 %v882, 0.25
    %v921 = vmul.f32 %v885, 0.25
    %v922 = vmul.f32 %v887, 0.25
    %v923 = vmul.f32 %v890, 0.25
    %v924 = vmul.f32 %v892, 0.25
    %v925 = vmul.f32 %v895, 0.25
    %v926 = vmul.f32 %v897, 0.25
    %v927 = vmul.f32 %v900, 0.25
    %v928 = vmul.f32 %v902, 0.25
    %v929 = vmul.f32 %v905, 0.25
    %v930 = vmul.f32 %v907, 0.25
    %v931 = vmul.f32 %v910, 0.25
    %v932 = vmul.f32 %v912, 0.25
    %v933 = vmul.f32 %v915, 0.25
    %v934 = vmul.f32 %v917, 0.25
    %v935 = vadd.f32 %v919, %v47
    %v936 = vadd.f32 %v920, %v48
    %v937 = vadd.f32 %v921, %v49
    %v938 = vadd.f32 %v922, %v50
    %v939 = vadd.f32 %v923, %v51
    %v940 = vadd.f32 %v924, %v52
    %v941 = vadd.f32 %v925, %v53
    %v942 = vadd.f32 %v926, %v54
    %v943 = vadd.f32 %v927, %v55
    %v944 = vadd.f32 %v928, %v56
    %v945 = vadd.f32 %v929, %v57
    %v946 = vadd.f32 %v930, %v58
    %v947 = vadd.f32 %v931, %v59
    %v948 = vadd.f32 %v932, %v60
    %v949 = vadd.f32 %v933, %v61
    %v950 = vadd.f32 %v934, %v62
    %951 = vmax.xlane.f32.xlu0 %v935
    %v952 = vpop.xlane.xlu0 %951
    %953 = vmax.xlane.f32.xlu0 %v936
    %v954 = vpop.xlane.xlu0 %953
    %955 = vmax.xlane.f32.xlu0 %v937
    %v956 = vpop.xlane.xlu0 %955
    %957 = vmax.xlane.f32.xlu0 %v938
    %v958 = vpop.xlane.xlu0 %957
    %959 = vmax.xlane.f32.xlu0 %v939
    %v960 = vpop.xlane.xlu0 %959
    %961 = vmax.xlane.f32.xlu0 %v940
    %v962 = vpop.xlane.xlu0 %961
    %963 = vmax.xlane.f32.xlu0 %v941
    %v964 = vpop.xlane.xlu0 %963
    %965 = vmax.xlane.f32.xlu0 %v942
    %v966 = vpop.xlane.xlu0 %965
    %967 = vmax.xlane.f32.xlu0 %v943
    %v968 = vpop.xlane.xlu0 %967
    %969 = vmax.xlane.f32.xlu0 %v944
    %v970 = vpop.xlane.xlu0 %969
    %971 = vmax.xlane.f32.xlu0 %v945
    %v972 = vpop.xlane.xlu0 %971
    %973 = vmax.xlane.f32.xlu0 %v946
    %v974 = vpop.xlane.xlu0 %973
    %975 = vmax.xlane.f32.xlu0 %v947
    %v976 = vpop.xlane.xlu0 %975
    %977 = vmax.xlane.f32.xlu0 %v948
    %v978 = vpop.xlane.xlu0 %977
    %979 = vmax.xlane.f32.xlu0 %v949
    %v980 = vpop.xlane.xlu0 %979
    %981 = vmax.xlane.f32.xlu0 %v950
    %v982 = vpop.xlane.xlu0 %981
    %v983 = vsub.f32 %v935, %v952
    %v984 = vsub.f32 %v936, %v954
    %v985 = vsub.f32 %v937, %v956
    %v986 = vsub.f32 %v938, %v958
    %v987 = vsub.f32 %v939, %v960
    %v988 = vsub.f32 %v940, %v962
    %v989 = vsub.f32 %v941, %v964
    %v990 = vsub.f32 %v942, %v966
    %v991 = vsub.f32 %v943, %v968
    %v992 = vsub.f32 %v944, %v970
    %v993 = vsub.f32 %v945, %v972
    %v994 = vsub.f32 %v946, %v974
    %v995 = vsub.f32 %v947, %v976
    %v996 = vsub.f32 %v948, %v978
    %v997 = vsub.f32 %v949, %v980
    %v998 = vsub.f32 %v950, %v982
    %v999 = vmul.f32 %v983, 1.442695
    %v1000 = vpow.pop %v999
    %v1001 = vmul.f32 %v984, 1.442695
    %v1002 = vpow.pop %v1001
    %v1003 = vmul.f32 %v985, 1.442695
    %v1004 = vpow.pop %v1003
    %v1005 = vmul.f32 %v986, 1.442695
    %v1006 = vpow.pop %v1005
    %v1007 = vmul.f32 %v987, 1.442695
    %v1008 = vpow.pop %v1007
    %v1009 = vmul.f32 %v988, 1.442695
    %v1010 = vpow.pop %v1009
    %v1011 = vmul.f32 %v989, 1.442695
    %v1012 = vpow.pop %v1011
    %v1013 = vmul.f32 %v990, 1.442695
    %v1014 = vpow.pop %v1013
    %v1015 = vmul.f32 %v991, 1.442695
    %v1016 = vpow.pop %v1015
    %v1017 = vmul.f32 %v992, 1.442695
    %v1018 = vpow.pop %v1017
    %v1019 = vmul.f32 %v993, 1.442695
    %v1020 = vpow.pop %v1019
    %v1021 = vmul.f32 %v994, 1.442695
    %v1022 = vpow.pop %v1021
    %v1023 = vmul.f32 %v995, 1.442695
    %v1024 = vpow.pop %v1023
    %v1025 = vmul.f32 %v996, 1.442695
    %v1026 = vpow.pop %v1025
    %v1027 = vmul.f32 %v997, 1.442695
    %v1028 = vpow.pop %v1027
    %v1029 = vmul.f32 %v998, 1.442695
    %v1030 = vpow.pop %v1029
    %1031 = vadd.xlane.f32.xlu0 %v1000
    %v1032 = vpop.xlane.xlu0 %1031
    %1033 = vadd.xlane.f32.xlu0 %v1002
    %v1034 = vpop.xlane.xlu0 %1033
    %1035 = vadd.xlane.f32.xlu0 %v1004
    %v1036 = vpop.xlane.xlu0 %1035
    %1037 = vadd.xlane.f32.xlu0 %v1006
    %v1038 = vpop.xlane.xlu0 %1037
    %1039 = vadd.xlane.f32.xlu0 %v1008
    %v1040 = vpop.xlane.xlu0 %1039
    %1041 = vadd.xlane.f32.xlu0 %v1010
    %v1042 = vpop.xlane.xlu0 %1041
    %1043 = vadd.xlane.f32.xlu0 %v1012
    %v1044 = vpop.xlane.xlu0 %1043
    %1045 = vadd.xlane.f32.xlu0 %v1014
    %v1046 = vpop.xlane.xlu0 %1045
    %1047 = vadd.xlane.f32.xlu0 %v1016
    %v1048 = vpop.xlane.xlu0 %1047
    %1049 = vadd.xlane.f32.xlu0 %v1018
    %v1050 = vpop.xlane.xlu0 %1049
    %1051 = vadd.xlane.f32.xlu0 %v1020
    %v1052 = vpop.xlane.xlu0 %1051
    %1053 = vadd.xlane.f32.xlu0 %v1022
    %v1054 = vpop.xlane.xlu0 %1053
    %1055 = vadd.xlane.f32.xlu0 %v1024
    %v1056 = vpop.xlane.xlu0 %1055
    %1057 = vadd.xlane.f32.xlu0 %v1026
    %v1058 = vpop.xlane.xlu0 %1057
    %1059 = vadd.xlane.f32.xlu0 %v1028
    %v1060 = vpop.xlane.xlu0 %1059
    %1061 = vadd.xlane.f32.xlu0 %v1030
    %v1062 = vpop.xlane.xlu0 %1061
    %v1063 = vrcp.pop %v1032
    %v1064 = vrcp.pop %v1034
    %v1065 = vrcp.pop %v1036
    %v1066 = vrcp.pop %v1038
    %v1067 = vrcp.pop %v1040
    %v1068 = vrcp.pop %v1042
    %v1069 = vrcp.pop %v1044
    %v1070 = vrcp.pop %v1046
    %v1071 = vrcp.pop %v1048
    %v1072 = vrcp.pop %v1050
    %v1073 = vrcp.pop %v1052
    %v1074 = vrcp.pop %v1054
    %v1075 = vrcp.pop %v1056
    %v1076 = vrcp.pop %v1058
    %v1077 = vrcp.pop %v1060
    %v1078 = vrcp.pop %v1062
    %v1079 = vmul.f32 %v1000, %v1063
    %v1080 = vmul.f32 %v1002, %v1064
    %v1081 = vmul.f32 %v1004, %v1065
    %v1082 = vmul.f32 %v1006, %v1066
    %v1083 = vmul.f32 %v1008, %v1067
    %v1084 = vmul.f32 %v1010, %v1068
    %v1085 = vmul.f32 %v1012, %v1069
    %v1086 = vmul.f32 %v1014, %v1070
    %v1087 = vmul.f32 %v1016, %v1071
    %v1088 = vmul.f32 %v1018, %v1072
    %v1089 = vmul.f32 %v1020, %v1073
    %v1090 = vmul.f32 %v1022, %v1074
    %v1091 = vmul.f32 %v1024, %v1075
    %v1092 = vmul.f32 %v1026, %v1076
    %v1093 = vmul.f32 %v1028, %v1077
    %v1094 = vmul.f32 %v1030, %v1078
    %v1095 = vpack.c.bf16 %v1080, %v1079
    %v1096 = vpack.c.bf16 %v1082, %v1081
    %v1097 = vpack.c.bf16 %v1084, %v1083
    %v1098 = vpack.c.bf16 %v1086, %v1085
    %v1099 = vpack.c.bf16 %v1088, %v1087
    %v1100 = vpack.c.bf16 %v1090, %v1089
    %v1101 = vpack.c.bf16 %v1092, %v1091
    %v1102 = vpack.c.bf16 %v1094, %v1093
    %v1103 = vmul.f32 %v783, %v42
    %v1104 = vmul.f32 %v785, %v42
    %v1105 = vmul.f32 %v788, %v42
    %v1106 = vmul.f32 %v790, %v42
    %v1107 = vmul.f32 %v793, %v42
    %v1108 = vmul.f32 %v795, %v42
    %v1109 = vmul.f32 %v798, %v42
    %v1110 = vmul.f32 %v800, %v42
    %v1111 = vmul.f32 %v803, %v42
    %v1112 = vmul.f32 %v805, %v42
    %v1113 = vmul.f32 %v808, %v42
    %v1114 = vmul.f32 %v810, %v42
    %v1115 = vmul.f32 %v813, %v42
    %v1116 = vmul.f32 %v815, %v42
    %v1117 = vmul.f32 %v818, %v42
    %v1118 = vmul.f32 %v820, %v42
    %v1119 = vpack.c.bf16 %v1104, %v1103
    %v1120 = vpack.c.bf16 %v1106, %v1105
    %v1121 = vpack.c.bf16 %v1108, %v1107
    %v1122 = vpack.c.bf16 %v1110, %v1109
    %v1123 = vpack.c.bf16 %v1112, %v1111
    %v1124 = vpack.c.bf16 %v1114, %v1113
    %v1125 = vpack.c.bf16 %v1116, %v1115
    %v1126 = vpack.c.bf16 %v1118, %v1117
    %v1127 = vmul.f32 %v551, %v46
    %v1128 = vmul.f32 %v553, %v46
    %v1129 = vmul.f32 %v556, %v46
    %v1130 = vmul.f32 %v558, %v46
    %v1131 = vmul.f32 %v561, %v46
    %v1132 = vmul.f32 %v563, %v46
    %v1133 = vmul.f32 %v566, %v46
    %v1134 = vmul.f32 %v568, %v46
    %v1135 = vmul.f32 %v571, %v46
    %v1136 = vmul.f32 %v573, %v46
    %v1137 = vmul.f32 %v576, %v46
    %v1138 = vmul.f32 %v578, %v46
    %v1139 = vmul.f32 %v581, %v46
    %v1140 = vmul.f32 %v583, %v46
    %v1141 = vmul.f32 %v586, %v46
    %v1142 = vmul.f32 %v588, %v46
    %v1143 = vpack.c.bf16 %v1128, %v1127
    %v1144 = vpack.c.bf16 %v1130, %v1129
    %v1145 = vpack.c.bf16 %v1132, %v1131
    %v1146 = vpack.c.bf16 %v1134, %v1133
    %v1147 = vpack.c.bf16 %v1136, %v1135
    %v1148 = vpack.c.bf16 %v1138, %v1137
    %v1149 = vpack.c.bf16 %v1140, %v1139
    %v1150 = vpack.c.bf16 %v1142, %v1141
    %v1151 = vmul.f32 %v667, %v46
    %v1152 = vmul.f32 %v669, %v46
    %v1153 = vmul.f32 %v672, %v46
    %v1154 = vmul.f32 %v674, %v46
    %v1155 = vmul.f32 %v677, %v46
    %v1156 = vmul.f32 %v679, %v46
    %v1157 = vmul.f32 %v682, %v46
    %v1158 = vmul.f32 %v684, %v46
    %v1159 = vmul.f32 %v687, %v46
    %v1160 = vmul.f32 %v689, %v46
    %v1161 = vmul.f32 %v692, %v46
    %v1162 = vmul.f32 %v694, %v46
    %v1163 = vmul.f32 %v697, %v46
    %v1164 = vmul.f32 %v699, %v46
    %v1165 = vmul.f32 %v702, %v46
    %v1166 = vmul.f32 %v704, %v46
    %v1167 = vpack.c.bf16 %v1152, %v1151
    %v1168 = vpack.c.bf16 %v1154, %v1153
    %v1169 = vpack.c.bf16 %v1156, %v1155
    %v1170 = vpack.c.bf16 %v1158, %v1157
    %v1171 = vpack.c.bf16 %v1160, %v1159
    %v1172 = vpack.c.bf16 %v1162, %v1161
    %v1173 = vpack.c.bf16 %v1164, %v1163
    %v1174 = vpack.c.bf16 %v1166, %v1165
    %1175 = vmatpush.bf16.xpose.msra.mxu0 %v1174
    %1176 = vmatpush.bf16.xpose.msra.mxu0 %v1173
    %1177 = vmatpush.bf16.xpose.msra.mxu0 %v1172
    %1178 = vmatpush.bf16.xpose.msra.mxu0 %v1171
    %1179 = vmatpush.bf16.xpose.msra.mxu0 %v1170
    %1180 = vmatpush.bf16.xpose.msra.mxu0 %v1169
    %1181 = vmatpush.bf16.xpose.msra.mxu0 %v1168
    %1182 = vmatpush.bf16.xpose.msra.mxu0 %v1167
    %1183 = vmatmul.bf16.gmra.mxu0 %v1143
    %v1184 = vpop.f32.mrf.mxu0
    %v1185 = vadd.f32 0.0, %v1184
    %v1186 = vpop.f32.mrf.mxu0
    %v1187 = vadd.f32 0.0, %v1186
    %1188 = vmatmul.bf16.gmra.mxu0 %v1144
    %v1189 = vpop.f32.mrf.mxu0
    %v1190 = vadd.f32 0.0, %v1189
    %v1191 = vpop.f32.mrf.mxu0
    %v1192 = vadd.f32 0.0, %v1191
    %1193 = vmatmul.bf16.gmra.mxu0 %v1145
    %v1194 = vpop.f32.mrf.mxu0
    %v1195 = vadd.f32 0.0, %v1194
    %v1196 = vpop.f32.mrf.mxu0
    %v1197 = vadd.f32 0.0, %v1196
    %1198 = vmatmul.bf16.gmra.mxu0 %v1146
    %v1199 = vpop.f32.mrf.mxu0
    %v1200 = vadd.f32 0.0, %v1199
    %v1201 = vpop.f32.mrf.mxu0
    %v1202 = vadd.f32 0.0, %v1201
    %1203 = vmatmul.bf16.gmra.mxu0 %v1147
    %v1204 = vpop.f32.mrf.mxu0
    %v1205 = vadd.f32 0.0, %v1204
    %v1206 = vpop.f32.mrf.mxu0
    %v1207 = vadd.f32 0.0, %v1206
    %1208 = vmatmul.bf16.gmra.mxu0 %v1148
    %v1209 = vpop.f32.mrf.mxu0
    %v1210 = vadd.f32 0.0, %v1209
    %v1211 = vpop.f32.mrf.mxu0
    %v1212 = vadd.f32 0.0, %v1211
    %1213 = vmatmul.bf16.gmra.mxu0 %v1149
    %v1214 = vpop.f32.mrf.mxu0
    %v1215 = vadd.f32 0.0, %v1214
    %v1216 = vpop.f32.mrf.mxu0
    %v1217 = vadd.f32 0.0, %v1216
    %1218 = vmatmul.bf16.gmra.mxu0 %v1150
    %v1219 = vpop.f32.mrf.mxu0
    %v1220 = vadd.f32 0.0, %v1219
    %v1221 = vpop.f32.mrf.mxu0
    %v1222 = vadd.f32 0.0, %v1221
    %1223 = vdwg.mxu0
    %v1224 = vmul.f32 %v1185, 0.25
    %v1225 = vmul.f32 %v1187, 0.25
    %v1226 = vmul.f32 %v1190, 0.25
    %v1227 = vmul.f32 %v1192, 0.25
    %v1228 = vmul.f32 %v1195, 0.25
    %v1229 = vmul.f32 %v1197, 0.25
    %v1230 = vmul.f32 %v1200, 0.25
    %v1231 = vmul.f32 %v1202, 0.25
    %v1232 = vmul.f32 %v1205, 0.25
    %v1233 = vmul.f32 %v1207, 0.25
    %v1234 = vmul.f32 %v1210, 0.25
    %v1235 = vmul.f32 %v1212, 0.25
    %v1236 = vmul.f32 %v1215, 0.25
    %v1237 = vmul.f32 %v1217, 0.25
    %v1238 = vmul.f32 %v1220, 0.25
    %v1239 = vmul.f32 %v1222, 0.25
    %v1240 = vadd.f32 %v1224, %v47
    %v1241 = vadd.f32 %v1225, %v48
    %v1242 = vadd.f32 %v1226, %v49
    %v1243 = vadd.f32 %v1227, %v50
    %v1244 = vadd.f32 %v1228, %v51
    %v1245 = vadd.f32 %v1229, %v52
    %v1246 = vadd.f32 %v1230, %v53
    %v1247 = vadd.f32 %v1231, %v54
    %v1248 = vadd.f32 %v1232, %v55
    %v1249 = vadd.f32 %v1233, %v56
    %v1250 = vadd.f32 %v1234, %v57
    %v1251 = vadd.f32 %v1235, %v58
    %v1252 = vadd.f32 %v1236, %v59
    %v1253 = vadd.f32 %v1237, %v60
    %v1254 = vadd.f32 %v1238, %v61
    %v1255 = vadd.f32 %v1239, %v62
    %1256 = vmax.xlane.f32.xlu0 %v1240
    %v1257 = vpop.xlane.xlu0 %1256
    %1258 = vmax.xlane.f32.xlu0 %v1241
    %v1259 = vpop.xlane.xlu0 %1258
    %1260 = vmax.xlane.f32.xlu0 %v1242
    %v1261 = vpop.xlane.xlu0 %1260
    %1262 = vmax.xlane.f32.xlu0 %v1243
    %v1263 = vpop.xlane.xlu0 %1262
    %1264 = vmax.xlane.f32.xlu0 %v1244
    %v1265 = vpop.xlane.xlu0 %1264
    %1266 = vmax.xlane.f32.xlu0 %v1245
    %v1267 = vpop.xlane.xlu0 %1266
    %1268 = vmax.xlane.f32.xlu0 %v1246
    %v1269 = vpop.xlane.xlu0 %1268
    %1270 = vmax.xlane.f32.xlu0 %v1247
    %v1271 = vpop.xlane.xlu0 %1270
    %1272 = vmax.xlane.f32.xlu0 %v1248
    %v1273 = vpop.xlane.xlu0 %1272
    %1274 = vmax.xlane.f32.xlu0 %v1249
    %v1275 = vpop.xlane.xlu0 %1274
    %1276 = vmax.xlane.f32.xlu0 %v1250
    %v1277 = vpop.xlane.xlu0 %1276
    %1278 = vmax.xlane.f32.xlu0 %v1251
    %v1279 = vpop.xlane.xlu0 %1278
    %1280 = vmax.xlane.f32.xlu0 %v1252
    %v1281 = vpop.xlane.xlu0 %1280
    %1282 = vmax.xlane.f32.xlu0 %v1253
    %v1283 = vpop.xlane.xlu0 %1282
    %1284 = vmax.xlane.f32.xlu0 %v1254
    %v1285 = vpop.xlane.xlu0 %1284
    %1286 = vmax.xlane.f32.xlu0 %v1255
    %v1287 = vpop.xlane.xlu0 %1286
    %v1288 = vsub.f32 %v1240, %v1257
    %v1289 = vsub.f32 %v1241, %v1259
    %v1290 = vsub.f32 %v1242, %v1261
    %v1291 = vsub.f32 %v1243, %v1263
    %v1292 = vsub.f32 %v1244, %v1265
    %v1293 = vsub.f32 %v1245, %v1267
    %v1294 = vsub.f32 %v1246, %v1269
    %v1295 = vsub.f32 %v1247, %v1271
    %v1296 = vsub.f32 %v1248, %v1273
    %v1297 = vsub.f32 %v1249, %v1275
    %v1298 = vsub.f32 %v1250, %v1277
    %v1299 = vsub.f32 %v1251, %v1279
    %v1300 = vsub.f32 %v1252, %v1281
    %v1301 = vsub.f32 %v1253, %v1283
    %v1302 = vsub.f32 %v1254, %v1285
    %v1303 = vsub.f32 %v1255, %v1287
    %v1304 = vmul.f32 %v1288, 1.442695
    %v1305 = vpow.pop %v1304
    %v1306 = vmul.f32 %v1289, 1.442695
    %v1307 = vpow.pop %v1306
    %v1308 = vmul.f32 %v1290, 1.442695
    %v1309 = vpow.pop %v1308
    %v1310 = vmul.f32 %v1291, 1.442695
    %v1311 = vpow.pop %v1310
    %v1312 = vmul.f32 %v1292, 1.442695
    %v1313 = vpow.pop %v1312
    %v1314 = vmul.f32 %v1293, 1.442695
    %v1315 = vpow.pop %v1314
    %v1316 = vmul.f32 %v1294, 1.442695
    %v1317 = vpow.pop %v1316
    %v1318 = vmul.f32 %v1295, 1.442695
    %v1319 = vpow.pop %v1318
    %v1320 = vmul.f32 %v1296, 1.442695
    %v1321 = vpow.pop %v1320
    %v1322 = vmul.f32 %v1297, 1.442695
    %v1323 = vpow.pop %v1322
    %v1324 = vmul.f32 %v1298, 1.442695
    %v1325 = vpow.pop %v1324
    %v1326 = vmul.f32 %v1299, 1.442695
    %v1327 = vpow.pop %v1326
    %v1328 = vmul.f32 %v1300, 1.442695
    %v1329 = vpow.pop %v1328
    %v1330 = vmul.f32 %v1301, 1.442695
    %v1331 = vpow.pop %v1330
    %v1332 = vmul.f32 %v1302, 1.442695
    %v1333 = vpow.pop %v1332
    %v1334 = vmul.f32 %v1303, 1.442695
    %v1335 = vpow.pop %v1334
    %1336 = vadd.xlane.f32.xlu0 %v1305
    %v1337 = vpop.xlane.xlu0 %1336
    %1338 = vadd.xlane.f32.xlu0 %v1307
    %v1339 = vpop.xlane.xlu0 %1338
    %1340 = vadd.xlane.f32.xlu0 %v1309
    %v1341 = vpop.xlane.xlu0 %1340
    %1342 = vadd.xlane.f32.xlu0 %v1311
    %v1343 = vpop.xlane.xlu0 %1342
    %1344 = vadd.xlane.f32.xlu0 %v1313
    %v1345 = vpop.xlane.xlu0 %1344
    %1346 = vadd.xlane.f32.xlu0 %v1315
    %v1347 = vpop.xlane.xlu0 %1346
    %1348 = vadd.xlane.f32.xlu0 %v1317
    %v1349 = vpop.xlane.xlu0 %1348
    %1350 = vadd.xlane.f32.xlu0 %v1319
    %v1351 = vpop.xlane.xlu0 %1350
    %1352 = vadd.xlane.f32.xlu0 %v1321
    %v1353 = vpop.xlane.xlu0 %1352
    %1354 = vadd.xlane.f32.xlu0 %v1323
    %v1355 = vpop.xlane.xlu0 %1354
    %1356 = vadd.xlane.f32.xlu0 %v1325
    %v1357 = vpop.xlane.xlu0 %1356
    %1358 = vadd.xlane.f32.xlu0 %v1327
    %v1359 = vpop.xlane.xlu0 %1358
    %1360 = vadd.xlane.f32.xlu0 %v1329
    %v1361 = vpop.xlane.xlu0 %1360
    %1362 = vadd.xlane.f32.xlu0 %v1331
    %v1363 = vpop.xlane.xlu0 %1362
    %1364 = vadd.xlane.f32.xlu0 %v1333
    %v1365 = vpop.xlane.xlu0 %1364
    %1366 = vadd.xlane.f32.xlu0 %v1335
    %v1367 = vpop.xlane.xlu0 %1366
    %v1368 = vrcp.pop %v1337
    %v1369 = vrcp.pop %v1339
    %v1370 = vrcp.pop %v1341
    %v1371 = vrcp.pop %v1343
    %v1372 = vrcp.pop %v1345
    %v1373 = vrcp.pop %v1347
    %v1374 = vrcp.pop %v1349
    %v1375 = vrcp.pop %v1351
    %v1376 = vrcp.pop %v1353
    %v1377 = vrcp.pop %v1355
    %v1378 = vrcp.pop %v1357
    %v1379 = vrcp.pop %v1359
    %v1380 = vrcp.pop %v1361
    %v1381 = vrcp.pop %v1363
    %v1382 = vrcp.pop %v1365
    %v1383 = vrcp.pop %v1367
    %v1384 = vmul.f32 %v1305, %v1368
    %v1385 = vmul.f32 %v1307, %v1369
    %v1386 = vmul.f32 %v1309, %v1370
    %v1387 = vmul.f32 %v1311, %v1371
    %v1388 = vmul.f32 %v1313, %v1372
    %v1389 = vmul.f32 %v1315, %v1373
    %v1390 = vmul.f32 %v1317, %v1374
    %v1391 = vmul.f32 %v1319, %v1375
    %v1392 = vmul.f32 %v1321, %v1376
    %v1393 = vmul.f32 %v1323, %v1377
    %v1394 = vmul.f32 %v1325, %v1378
    %v1395 = vmul.f32 %v1327, %v1379
    %v1396 = vmul.f32 %v1329, %v1380
    %v1397 = vmul.f32 %v1331, %v1381
    %v1398 = vmul.f32 %v1333, %v1382
    %v1399 = vmul.f32 %v1335, %v1383
    %v1400 = vpack.c.bf16 %v1385, %v1384
    %v1401 = vpack.c.bf16 %v1387, %v1386
    %v1402 = vpack.c.bf16 %v1389, %v1388
    %v1403 = vpack.c.bf16 %v1391, %v1390
    %v1404 = vpack.c.bf16 %v1393, %v1392
    %v1405 = vpack.c.bf16 %v1395, %v1394
    %v1406 = vpack.c.bf16 %v1397, %v1396
    %v1407 = vpack.c.bf16 %v1399, %v1398
    %v1408 = vmul.f32 %v783, %v46
    %v1409 = vmul.f32 %v785, %v46
    %v1410 = vmul.f32 %v788, %v46
    %v1411 = vmul.f32 %v790, %v46
    %v1412 = vmul.f32 %v793, %v46
    %v1413 = vmul.f32 %v795, %v46
    %v1414 = vmul.f32 %v798, %v46
    %v1415 = vmul.f32 %v800, %v46
    %v1416 = vmul.f32 %v803, %v46
    %v1417 = vmul.f32 %v805, %v46
    %v1418 = vmul.f32 %v808, %v46
    %v1419 = vmul.f32 %v810, %v46
    %v1420 = vmul.f32 %v813, %v46
    %v1421 = vmul.f32 %v815, %v46
    %v1422 = vmul.f32 %v818, %v46
    %v1423 = vmul.f32 %v820, %v46
    %v1424 = vpack.c.bf16 %v1409, %v1408
    %v1425 = vpack.c.bf16 %v1411, %v1410
    %v1426 = vpack.c.bf16 %v1413, %v1412
    %v1427 = vpack.c.bf16 %v1415, %v1414
    %v1428 = vpack.c.bf16 %v1417, %v1416
    %v1429 = vpack.c.bf16 %v1419, %v1418
    %v1430 = vpack.c.bf16 %v1421, %v1420
    %v1431 = vpack.c.bf16 %v1423, %v1422
    %1432 = vmatpush.bf16.msra.mxu0 %v1431
    %1433 = vmatpush.bf16.msra.mxu0 %v1430
    %1434 = vmatpush.bf16.msra.mxu0 %v1429
    %1435 = vmatpush.bf16.msra.mxu0 %v1428
    %1436 = vmatpush.bf16.msra.mxu0 %v1427
    %1437 = vmatpush.bf16.msra.mxu0 %v1426
    %1438 = vmatpush.bf16.msra.mxu0 %v1425
    %1439 = vmatpush.bf16.msra.mxu0 %v1424
    %1440 = vmatmul.bf16.gmra.mxu0 %v1400
    %v1441 = vpop.f32.mrf.mxu0
    %v1442 = vadd.f32 0.0, %v1441
    %v1443 = vpop.f32.mrf.mxu0
    %v1444 = vadd.f32 0.0, %v1443
    %1445 = vmatmul.bf16.gmra.mxu0 %v1401
    %v1446 = vpop.f32.mrf.mxu0
    %v1447 = vadd.f32 0.0, %v1446
    %v1448 = vpop.f32.mrf.mxu0
    %v1449 = vadd.f32 0.0, %v1448
    %1450 = vmatmul.bf16.gmra.mxu0 %v1402
    %v1451 = vpop.f32.mrf.mxu0
    %v1452 = vadd.f32 0.0, %v1451
    %v1453 = vpop.f32.mrf.mxu0
    %v1454 = vadd.f32 0.0, %v1453
    %1455 = vmatmul.bf16.gmra.mxu0 %v1403
    %v1456 = vpop.f32.mrf.mxu0
    %v1457 = vadd.f32 0.0, %v1456
    %v1458 = vpop.f32.mrf.mxu0
    %v1459 = vadd.f32 0.0, %v1458
    %1460 = vmatmul.bf16.gmra.mxu0 %v1404
    %v1461 = vpop.f32.mrf.mxu0
    %v1462 = vadd.f32 0.0, %v1461
    %v1463 = vpop.f32.mrf.mxu0
    %v1464 = vadd.f32 0.0, %v1463
    %1465 = vmatmul.bf16.gmra.mxu0 %v1405
    %v1466 = vpop.f32.mrf.mxu0
    %v1467 = vadd.f32 0.0, %v1466
    %v1468 = vpop.f32.mrf.mxu0
    %v1469 = vadd.f32 0.0, %v1468
    %1470 = vmatmul.bf16.gmra.mxu0 %v1406
    %v1471 = vpop.f32.mrf.mxu0
    %v1472 = vadd.f32 0.0, %v1471
    %v1473 = vpop.f32.mrf.mxu0
    %v1474 = vadd.f32 0.0, %v1473
    %1475 = vmatmul.bf16.gmra.mxu0 %v1407
    %v1476 = vpop.f32.mrf.mxu0
    %v1477 = vadd.f32 0.0, %v1476
    %v1478 = vpop.f32.mrf.mxu0
    %v1479 = vadd.f32 0.0, %v1478
    %1480 = vdwg.mxu0
    %1481 = vmatpush.bf16.msra.mxu0 %v1126
    %1482 = vmatpush.bf16.msra.mxu0 %v1125
    %1483 = vmatpush.bf16.msra.mxu0 %v1124
    %1484 = vmatpush.bf16.msra.mxu0 %v1123
    %1485 = vmatpush.bf16.msra.mxu0 %v1122
    %1486 = vmatpush.bf16.msra.mxu0 %v1121
    %1487 = vmatpush.bf16.msra.mxu0 %v1120
    %1488 = vmatpush.bf16.msra.mxu0 %v1119
    %1489 = vmatmul.bf16.gmra.mxu0 %v1095
    %v1490 = vpop.f32.mrf.mxu0
    %v1491 = vadd.f32 %v1442, %v1490
    %v1492 = vpop.f32.mrf.mxu0
    %v1493 = vadd.f32 %v1444, %v1492
    %1494 = vmatmul.bf16.gmra.mxu0 %v1096
    %v1495 = vpop.f32.mrf.mxu0
    %v1496 = vadd.f32 %v1447, %v1495
    %v1497 = vpop.f32.mrf.mxu0
    %v1498 = vadd.f32 %v1449, %v1497
    %1499 = vmatmul.bf16.gmra.mxu0 %v1097
    %v1500 = vpop.f32.mrf.mxu0
    %v1501 = vadd.f32 %v1452, %v1500
    %v1502 = vpop.f32.mrf.mxu0
    %v1503 = vadd.f32 %v1454, %v1502
    %1504 = vmatmul.bf16.gmra.mxu0 %v1098
    %v1505 = vpop.f32.mrf.mxu0
    %v1506 = vadd.f32 %v1457, %v1505
    %v1507 = vpop.f32.mrf.mxu0
    %v1508 = vadd.f32 %v1459, %v1507
    %1509 = vmatmul.bf16.gmra.mxu0 %v1099
    %v1510 = vpop.f32.mrf.mxu0
    %v1511 = vadd.f32 %v1462, %v1510
    %v1512 = vpop.f32.mrf.mxu0
    %v1513 = vadd.f32 %v1464, %v1512
    %1514 = vmatmul.bf16.gmra.mxu0 %v1100
    %v1515 = vpop.f32.mrf.mxu0
    %v1516 = vadd.f32 %v1467, %v1515
    %v1517 = vpop.f32.mrf.mxu0
    %v1518 = vadd.f32 %v1469, %v1517
    %1519 = vmatmul.bf16.gmra.mxu0 %v1101
    %v1520 = vpop.f32.mrf.mxu0
    %v1521 = vadd.f32 %v1472, %v1520
    %v1522 = vpop.f32.mrf.mxu0
    %v1523 = vadd.f32 %v1474, %v1522
    %1524 = vmatmul.bf16.gmra.mxu0 %v1102
    %v1525 = vpop.f32.mrf.mxu0
    %v1526 = vadd.f32 %v1477, %v1525
    %v1527 = vpop.f32.mrf.mxu0
    %v1528 = vadd.f32 %v1479, %v1527
    %1529 = vdwg.mxu0
    %v1530 = vpack.c.bf16 %v1493, %v1491
    %v1531 = vpack.c.bf16 %v1498, %v1496
    %v1532 = vpack.c.bf16 %v1503, %v1501
    %v1533 = vpack.c.bf16 %v1508, %v1506
    %v1534 = vpack.c.bf16 %v1513, %v1511
    %v1535 = vpack.c.bf16 %v1518, %v1516
    %v1536 = vpack.c.bf16 %v1523, %v1521
    %v1537 = vpack.c.bf16 %v1528, %v1526
    %s1538 = scalar_lea.vmem [#allocation2], 192
    %v1539 = vld [vmem:[%s1538] sm:$0xf]
    %v1540 = vld [vmem:[%s1538 + $0x4] sm:$0xf]
    %v1541 = vld [vmem:[%s1538 + $0x8] sm:$0xf]
    %v1542 = vld [vmem:[%s1538 + $0xc] sm:$0xf]
    %v1543 = vld [vmem:[%s1538 + $0x10] sm:$0xf]
    %v1544 = vld [vmem:[%s1538 + $0x14] sm:$0xf]
    %v1545 = vld [vmem:[%s1538 + $0x18] sm:$0xf]
    %v1546 = vld [vmem:[%s1538 + $0x1c] sm:$0xf]
    %v1547 = vld [vmem:[%s1538 + $0x20] sm:$0xf]
    %v1548 = vld [vmem:[%s1538 + $0x24] sm:$0xf]
    %v1549 = vld [vmem:[%s1538 + $0x28] sm:$0xf]
    %v1550 = vld [vmem:[%s1538 + $0x2c] sm:$0xf]
    %v1551 = vld [vmem:[%s1538 + $0x30] sm:$0xf]
    %v1552 = vld [vmem:[%s1538 + $0x34] sm:$0xf]
    %v1553 = vld [vmem:[%s1538 + $0x38] sm:$0xf]
    %v1554 = vld [vmem:[%s1538 + $0x3c] sm:$0xf]
    %v1555 = vld [vmem:[%s3 + $0x5] sm:$0x1]
    %v1556 = vperm.slane %v1555, 0
    %v1573 = vunpack.c.l.b16 %v1539
    %v1574 = vunpack.c.l.b16 %v1540
    %v1575 = vunpack.c.l.b16 %v1541
    %v1576 = vunpack.c.l.b16 %v1542
    %v1577 = vunpack.c.l.b16 %v1543
    %v1578 = vunpack.c.l.b16 %v1544
    %v1579 = vunpack.c.l.b16 %v1545
    %v1580 = vunpack.c.l.b16 %v1546
    %v1581 = vunpack.c.l.b16 %v1547
    %v1582 = vunpack.c.l.b16 %v1548
    %v1583 = vunpack.c.l.b16 %v1549
    %v1584 = vunpack.c.l.b16 %v1550
    %v1585 = vunpack.c.l.b16 %v1551
    %v1586 = vunpack.c.l.b16 %v1552
    %v1587 = vunpack.c.l.b16 %v1553
    %v1588 = vunpack.c.l.b16 %v1554
    %v1589 = vpack.c.b16 %v1574, %v1573
    %v1590 = vpack.c.b16 %v1576, %v1575
    %v1591 = vpack.c.b16 %v1578, %v1577
    %v1592 = vpack.c.b16 %v1580, %v1579
    %v1593 = vpack.c.b16 %v1582, %v1581
    %v1594 = vpack.c.b16 %v1584, %v1583
    %v1595 = vpack.c.b16 %v1586, %v1585
    %v1596 = vpack.c.b16 %v1588, %v1587
    %1605 = vmatpush.bf16.msra.mxu0 %v1596
    %1606 = vmatpush.bf16.msra.mxu0 %v1595
    %1607 = vmatpush.bf16.msra.mxu0 %v1594
    %1608 = vmatpush.bf16.msra.mxu0 %v1593
    %1609 = vmatpush.bf16.msra.mxu0 %v1592
    %1610 = vmatpush.bf16.msra.mxu0 %v1591
    %1611 = vmatpush.bf16.msra.mxu0 %v1590
    %1612 = vmatpush.bf16.msra.mxu0 %v1589
    %1613 = vmatmul.bf16.gmra.mxu0 %v1530
    %v1614 = vpop.f32.mrf.mxu0
    %v1615 = vadd.f32 %v1556, %v1614
    %v1616 = vpop.f32.mrf.mxu0
    %v1617 = vadd.f32 %v1556, %v1616
    %1618 = vmatmul.bf16.gmra.mxu0 %v1531
    %v1619 = vpop.f32.mrf.mxu0
    %v1620 = vadd.f32 %v1556, %v1619
    %v1621 = vpop.f32.mrf.mxu0
    %v1622 = vadd.f32 %v1556, %v1621
    %1623 = vmatmul.bf16.gmra.mxu0 %v1532
    %v1624 = vpop.f32.mrf.mxu0
    %v1625 = vadd.f32 %v1556, %v1624
    %v1626 = vpop.f32.mrf.mxu0
    %v1627 = vadd.f32 %v1556, %v1626
    %1628 = vmatmul.bf16.gmra.mxu0 %v1533
    %v1629 = vpop.f32.mrf.mxu0
    %v1630 = vadd.f32 %v1556, %v1629
    %v1631 = vpop.f32.mrf.mxu0
    %v1632 = vadd.f32 %v1556, %v1631
    %1633 = vmatmul.bf16.gmra.mxu0 %v1534
    %v1634 = vpop.f32.mrf.mxu0
    %v1635 = vadd.f32 %v1556, %v1634
    %v1636 = vpop.f32.mrf.mxu0
    %v1637 = vadd.f32 %v1556, %v1636
    %1638 = vmatmul.bf16.gmra.mxu0 %v1535
    %v1639 = vpop.f32.mrf.mxu0
    %v1640 = vadd.f32 %v1556, %v1639
    %v1641 = vpop.f32.mrf.mxu0
    %v1642 = vadd.f32 %v1556, %v1641
    %1643 = vmatmul.bf16.gmra.mxu0 %v1536
    %v1644 = vpop.f32.mrf.mxu0
    %v1645 = vadd.f32 %v1556, %v1644
    %v1646 = vpop.f32.mrf.mxu0
    %v1647 = vadd.f32 %v1556, %v1646
    %1648 = vmatmul.bf16.gmra.mxu0 %v1537
    %v1649 = vpop.f32.mrf.mxu0
    %v1650 = vadd.f32 %v1556, %v1649
    %v1651 = vpop.f32.mrf.mxu0
    %v1652 = vadd.f32 %v1556, %v1651
    %1653 = vdwg.mxu0
    %v1654 = vadd.f32 %v1615, %v451
    %v1655 = vadd.f32 %v1617, %v452
    %v1656 = vadd.f32 %v1620, %v453
    %v1657 = vadd.f32 %v1622, %v454
    %v1658 = vadd.f32 %v1625, %v455
    %v1659 = vadd.f32 %v1627, %v456
    %v1660 = vadd.f32 %v1630, %v457
    %v1661 = vadd.f32 %v1632, %v458
    %v1662 = vadd.f32 %v1635, %v459
    %v1663 = vadd.f32 %v1637, %v460
    %v1664 = vadd.f32 %v1640, %v461
    %v1665 = vadd.f32 %v1642, %v462
    %v1666 = vadd.f32 %v1645, %v463
    %v1667 = vadd.f32 %v1647, %v464
    %v1668 = vadd.f32 %v1650, %v465
    %v1669 = vadd.f32 %v1652, %v466
    %v1670 = vld [vmem:[%s3 + $0x6] sm:$0x1]
    %v1671 = vld [vmem:[%s3 + $0x7] sm:$0x1]
    %v1672 = vmul.f32 %v1654, %v37
    %v1673 = vmul.f32 %v1655, %v37
    %v1674 = vmul.f32 %v1656, %v37
    %v1675 = vmul.f32 %v1657, %v37
    %v1676 = vmul.f32 %v1658, %v37
    %v1677 = vmul.f32 %v1659, %v37
    %v1678 = vmul.f32 %v1660, %v37
    %v1679 = vmul.f32 %v1661, %v37
    %v1680 = vmul.f32 %v1662, %v37
    %v1681 = vmul.f32 %v1663, %v37
    %v1682 = vmul.f32 %v1664, %v37
    %v1683 = vmul.f32 %v1665, %v37
    %v1684 = vmul.f32 %v1666, %v37
    %v1685 = vmul.f32 %v1667, %v37
    %v1686 = vmul.f32 %v1668, %v37
    %v1687 = vmul.f32 %v1669, %v37
    %1688 = vadd.xlane.f32.xlu0 %v1672
    %v1689 = vpop.xlane.xlu0 %1688
    %1690 = vadd.xlane.f32.xlu0 %v1673
    %v1691 = vpop.xlane.xlu0 %1690
    %1692 = vadd.xlane.f32.xlu0 %v1674
    %v1693 = vpop.xlane.xlu0 %1692
    %1694 = vadd.xlane.f32.xlu0 %v1675
    %v1695 = vpop.xlane.xlu0 %1694
    %1696 = vadd.xlane.f32.xlu0 %v1676
    %v1697 = vpop.xlane.xlu0 %1696
    %1698 = vadd.xlane.f32.xlu0 %v1677
    %v1699 = vpop.xlane.xlu0 %1698
    %1700 = vadd.xlane.f32.xlu0 %v1678
    %v1701 = vpop.xlane.xlu0 %1700
    %1702 = vadd.xlane.f32.xlu0 %v1679
    %v1703 = vpop.xlane.xlu0 %1702
    %1704 = vadd.xlane.f32.xlu0 %v1680
    %v1705 = vpop.xlane.xlu0 %1704
    %1706 = vadd.xlane.f32.xlu0 %v1681
    %v1707 = vpop.xlane.xlu0 %1706
    %1708 = vadd.xlane.f32.xlu0 %v1682
    %v1709 = vpop.xlane.xlu0 %1708
    %1710 = vadd.xlane.f32.xlu0 %v1683
    %v1711 = vpop.xlane.xlu0 %1710
    %1712 = vadd.xlane.f32.xlu0 %v1684
    %v1713 = vpop.xlane.xlu0 %1712
    %1714 = vadd.xlane.f32.xlu0 %v1685
    %v1715 = vpop.xlane.xlu0 %1714
    %1716 = vadd.xlane.f32.xlu0 %v1686
    %v1717 = vpop.xlane.xlu0 %1716
    %1718 = vadd.xlane.f32.xlu0 %v1687
    %v1719 = vpop.xlane.xlu0 %1718
    %v1720 = vmul.f32 %v1689, 0.03125
    %v1721 = vmul.f32 %v1691, 0.03125
    %v1722 = vmul.f32 %v1693, 0.03125
    %v1723 = vmul.f32 %v1695, 0.03125
    %v1724 = vmul.f32 %v1697, 0.03125
    %v1725 = vmul.f32 %v1699, 0.03125
    %v1726 = vmul.f32 %v1701, 0.03125
    %v1727 = vmul.f32 %v1703, 0.03125
    %v1728 = vmul.f32 %v1705, 0.03125
    %v1729 = vmul.f32 %v1707, 0.03125
    %v1730 = vmul.f32 %v1709, 0.03125
    %v1731 = vmul.f32 %v1711, 0.03125
    %v1732 = vmul.f32 %v1713, 0.03125
    %v1733 = vmul.f32 %v1715, 0.03125
    %v1734 = vmul.f32 %v1717, 0.03125
    %v1735 = vmul.f32 %v1719, 0.03125
    %v1736 = vsub.f32 %v1654, %v1720
    %v1737 = vsub.f32 %v1655, %v1721
    %v1738 = vsub.f32 %v1656, %v1722
    %v1739 = vsub.f32 %v1657, %v1723
    %v1740 = vsub.f32 %v1658, %v1724
    %v1741 = vsub.f32 %v1659, %v1725
    %v1742 = vsub.f32 %v1660, %v1726
    %v1743 = vsub.f32 %v1661, %v1727
    %v1744 = vsub.f32 %v1662, %v1728
    %v1745 = vsub.f32 %v1663, %v1729
    %v1746 = vsub.f32 %v1664, %v1730
    %v1747 = vsub.f32 %v1665, %v1731
    %v1748 = vsub.f32 %v1666, %v1732
    %v1749 = vsub.f32 %v1667, %v1733
    %v1750 = vsub.f32 %v1668, %v1734
    %v1751 = vsub.f32 %v1669, %v1735
    %v1752 = vmul.f32 %v1736, %v37
    %v1753 = vmul.f32 %v1737, %v37
    %v1754 = vmul.f32 %v1738, %v37
    %v1755 = vmul.f32 %v1739, %v37
    %v1756 = vmul.f32 %v1740, %v37
    %v1757 = vmul.f32 %v1741, %v37
    %v1758 = vmul.f32 %v1742, %v37
    %v1759 = vmul.f32 %v1743, %v37
    %v1760 = vmul.f32 %v1744, %v37
    %v1761 = vmul.f32 %v1745, %v37
    %v1762 = vmul.f32 %v1746, %v37
    %v1763 = vmul.f32 %v1747, %v37
    %v1764 = vmul.f32 %v1748, %v37
    %v1765 = vmul.f32 %v1749, %v37
    %v1766 = vmul.f32 %v1750, %v37
    %v1767 = vmul.f32 %v1751, %v37
    %v1768 = vmul.f32 %v1752, %v1752
    %v1769 = vmul.f32 %v1753, %v1753
    %v1770 = vmul.f32 %v1754, %v1754
    %v1771 = vmul.f32 %v1755, %v1755
    %v1772 = vmul.f32 %v1756, %v1756
    %v1773 = vmul.f32 %v1757, %v1757
    %v1774 = vmul.f32 %v1758, %v1758
    %v1775 = vmul.f32 %v1759, %v1759
    %v1776 = vmul.f32 %v1760, %v1760
    %v1777 = vmul.f32 %v1761, %v1761
    %v1778 = vmul.f32 %v1762, %v1762
    %v1779 = vmul.f32 %v1763, %v1763
    %v1780 = vmul.f32 %v1764, %v1764
    %v1781 = vmul.f32 %v1765, %v1765
    %v1782 = vmul.f32 %v1766, %v1766
    %v1783 = vmul.f32 %v1767, %v1767
    %1784 = vadd.xlane.f32.xlu0 %v1768
    %v1785 = vpop.xlane.xlu0 %1784
    %1786 = vadd.xlane.f32.xlu0 %v1769
    %v1787 = vpop.xlane.xlu0 %1786
    %1788 = vadd.xlane.f32.xlu0 %v1770
    %v1789 = vpop.xlane.xlu0 %1788
    %1790 = vadd.xlane.f32.xlu0 %v1771
    %v1791 = vpop.xlane.xlu0 %1790
    %1792 = vadd.xlane.f32.xlu0 %v1772
    %v1793 = vpop.xlane.xlu0 %1792
    %1794 = vadd.xlane.f32.xlu0 %v1773
    %v1795 = vpop.xlane.xlu0 %1794
    %1796 = vadd.xlane.f32.xlu0 %v1774
    %v1797 = vpop.xlane.xlu0 %1796
    %1798 = vadd.xlane.f32.xlu0 %v1775
    %v1799 = vpop.xlane.xlu0 %1798
    %1800 = vadd.xlane.f32.xlu0 %v1776
    %v1801 = vpop.xlane.xlu0 %1800
    %1802 = vadd.xlane.f32.xlu0 %v1777
    %v1803 = vpop.xlane.xlu0 %1802
    %1804 = vadd.xlane.f32.xlu0 %v1778
    %v1805 = vpop.xlane.xlu0 %1804
    %1806 = vadd.xlane.f32.xlu0 %v1779
    %v1807 = vpop.xlane.xlu0 %1806
    %1808 = vadd.xlane.f32.xlu0 %v1780
    %v1809 = vpop.xlane.xlu0 %1808
    %1810 = vadd.xlane.f32.xlu0 %v1781
    %v1811 = vpop.xlane.xlu0 %1810
    %1812 = vadd.xlane.f32.xlu0 %v1782
    %v1813 = vpop.xlane.xlu0 %1812
    %1814 = vadd.xlane.f32.xlu0 %v1783
    %v1815 = vpop.xlane.xlu0 %1814
    %v1816 = vmul.f32 %v1785, 0.03125
    %v1817 = vmul.f32 %v1787, 0.03125
    %v1818 = vmul.f32 %v1789, 0.03125
    %v1819 = vmul.f32 %v1791, 0.03125
    %v1820 = vmul.f32 %v1793, 0.03125
    %v1821 = vmul.f32 %v1795, 0.03125
    %v1822 = vmul.f32 %v1797, 0.03125
    %v1823 = vmul.f32 %v1799, 0.03125
    %v1824 = vmul.f32 %v1801, 0.03125
    %v1825 = vmul.f32 %v1803, 0.03125
    %v1826 = vmul.f32 %v1805, 0.03125
    %v1827 = vmul.f32 %v1807, 0.03125
    %v1828 = vmul.f32 %v1809, 0.03125
    %v1829 = vmul.f32 %v1811, 0.03125
    %v1830 = vmul.f32 %v1813, 0.03125
    %v1831 = vmul.f32 %v1815, 0.03125
    %v1832 = vadd.f32 %v1816, 1e-05
    %v1833 = vadd.f32 %v1817, 1e-05
    %v1834 = vadd.f32 %v1818, 1e-05
    %v1835 = vadd.f32 %v1819, 1e-05
    %v1836 = vadd.f32 %v1820, 1e-05
    %v1837 = vadd.f32 %v1821, 1e-05
    %v1838 = vadd.f32 %v1822, 1e-05
    %v1839 = vadd.f32 %v1823, 1e-05
    %v1840 = vadd.f32 %v1824, 1e-05
    %v1841 = vadd.f32 %v1825, 1e-05
    %v1842 = vadd.f32 %v1826, 1e-05
    %v1843 = vadd.f32 %v1827, 1e-05
    %v1844 = vadd.f32 %v1828, 1e-05
    %v1845 = vadd.f32 %v1829, 1e-05
    %v1846 = vadd.f32 %v1830, 1e-05
    %v1847 = vadd.f32 %v1831, 1e-05
    %v1848 = vrsqrt.pop %v1832
    %v1849 = vmul.f32 %v1848, %v1832
    %v1850 = vmul.f32 %v1849, %v1848
    %v1851 = vmul.f32 0.5, %v1850
    %v1852 = vsub.f32 1.5, %v1851
    %v1853 = vmul.f32 %v1848, %v1852
    %vm1854 = vweird.f32 %v1832
    %vm1855 = vweird.f32 %v1848
    %vm1856 = vmor %vm1854, %vm1855
    %v1857 = vsel %vm1856, %v1848, %v1853
    %v1858 = vrsqrt.pop %v1833
    %v1859 = vmul.f32 %v1858, %v1833
    %v1860 = vmul.f32 %v1859, %v1858
    %v1861 = vmul.f32 0.5, %v1860
    %v1862 = vsub.f32 1.5, %v1861
    %v1863 = vmul.f32 %v1858, %v1862
    %vm1864 = vweird.f32 %v1833
    %vm1865 = vweird.f32 %v1858
    %vm1866 = vmor %vm1864, %vm1865
    %v1867 = vsel %vm1866, %v1858, %v1863
    %v1868 = vrsqrt.pop %v1834
    %v1869 = vmul.f32 %v1868, %v1834
    %v1870 = vmul.f32 %v1869, %v1868
    %v1871 = vmul.f32 0.5, %v1870
    %v1872 = vsub.f32 1.5, %v1871
    %v1873 = vmul.f32 %v1868, %v1872
    %vm1874 = vweird.f32 %v1834
    %vm1875 = vweird.f32 %v1868
    %vm1876 = vmor %vm1874, %vm1875
    %v1877 = vsel %vm1876, %v1868, %v1873
    %v1878 = vrsqrt.pop %v1835
    %v1879 = vmul.f32 %v1878, %v1835
    %v1880 = vmul.f32 %v1879, %v1878
    %v1881 = vmul.f32 0.5, %v1880
    %v1882 = vsub.f32 1.5, %v1881
    %v1883 = vmul.f32 %v1878, %v1882
    %vm1884 = vweird.f32 %v1835
    %vm1885 = vweird.f32 %v1878
    %vm1886 = vmor %vm1884, %vm1885
    %v1887 = vsel %vm1886, %v1878, %v1883
    %v1888 = vrsqrt.pop %v1836
    %v1889 = vmul.f32 %v1888, %v1836
    %v1890 = vmul.f32 %v1889, %v1888
    %v1891 = vmul.f32 0.5, %v1890
    %v1892 = vsub.f32 1.5, %v1891
    %v1893 = vmul.f32 %v1888, %v1892
    %vm1894 = vweird.f32 %v1836
    %vm1895 = vweird.f32 %v1888
    %vm1896 = vmor %vm1894, %vm1895
    %v1897 = vsel %vm1896, %v1888, %v1893
    %v1898 = vrsqrt.pop %v1837
    %v1899 = vmul.f32 %v1898, %v1837
    %v1900 = vmul.f32 %v1899, %v1898
    %v1901 = vmul.f32 0.5, %v1900
    %v1902 = vsub.f32 1.5, %v1901
    %v1903 = vmul.f32 %v1898, %v1902
    %vm1904 = vweird.f32 %v1837
    %vm1905 = vweird.f32 %v1898
    %vm1906 = vmor %vm1904, %vm1905
    %v1907 = vsel %vm1906, %v1898, %v1903
    %v1908 = vrsqrt.pop %v1838
    %v1909 = vmul.f32 %v1908, %v1838
    %v1910 = vmul.f32 %v1909, %v1908
    %v1911 = vmul.f32 0.5, %v1910
    %v1912 = vsub.f32 1.5, %v1911
    %v1913 = vmul.f32 %v1908, %v1912
    %vm1914 = vweird.f32 %v1838
    %vm1915 = vweird.f32 %v1908
    %vm1916 = vmor %vm1914, %vm1915
    %v1917 = vsel %vm1916, %v1908, %v1913
    %v1918 = vrsqrt.pop %v1839
    %v1919 = vmul.f32 %v1918, %v1839
    %v1920 = vmul.f32 %v1919, %v1918
    %v1921 = vmul.f32 0.5, %v1920
    %v1922 = vsub.f32 1.5, %v1921
    %v1923 = vmul.f32 %v1918, %v1922
    %vm1924 = vweird.f32 %v1839
    %vm1925 = vweird.f32 %v1918
    %vm1926 = vmor %vm1924, %vm1925
    %v1927 = vsel %vm1926, %v1918, %v1923
    %v1928 = vrsqrt.pop %v1840
    %v1929 = vmul.f32 %v1928, %v1840
    %v1930 = vmul.f32 %v1929, %v1928
    %v1931 = vmul.f32 0.5, %v1930
    %v1932 = vsub.f32 1.5, %v1931
    %v1933 = vmul.f32 %v1928, %v1932
    %vm1934 = vweird.f32 %v1840
    %vm1935 = vweird.f32 %v1928
    %vm1936 = vmor %vm1934, %vm1935
    %v1937 = vsel %vm1936, %v1928, %v1933
    %v1938 = vrsqrt.pop %v1841
    %v1939 = vmul.f32 %v1938, %v1841
    %v1940 = vmul.f32 %v1939, %v1938
    %v1941 = vmul.f32 0.5, %v1940
    %v1942 = vsub.f32 1.5, %v1941
    %v1943 = vmul.f32 %v1938, %v1942
    %vm1944 = vweird.f32 %v1841
    %vm1945 = vweird.f32 %v1938
    %vm1946 = vmor %vm1944, %vm1945
    %v1947 = vsel %vm1946, %v1938, %v1943
    %v1948 = vrsqrt.pop %v1842
    %v1949 = vmul.f32 %v1948, %v1842
    %v1950 = vmul.f32 %v1949, %v1948
    %v1951 = vmul.f32 0.5, %v1950
    %v1952 = vsub.f32 1.5, %v1951
    %v1953 = vmul.f32 %v1948, %v1952
    %vm1954 = vweird.f32 %v1842
    %vm1955 = vweird.f32 %v1948
    %vm1956 = vmor %vm1954, %vm1955
    %v1957 = vsel %vm1956, %v1948, %v1953
    %v1958 = vrsqrt.pop %v1843
    %v1959 = vmul.f32 %v1958, %v1843
    %v1960 = vmul.f32 %v1959, %v1958
    %v1961 = vmul.f32 0.5, %v1960
    %v1962 = vsub.f32 1.5, %v1961
    %v1963 = vmul.f32 %v1958, %v1962
    %vm1964 = vweird.f32 %v1843
    %vm1965 = vweird.f32 %v1958
    %vm1966 = vmor %vm1964, %vm1965
    %v1967 = vsel %vm1966, %v1958, %v1963
    %v1968 = vrsqrt.pop %v1844
    %v1969 = vmul.f32 %v1968, %v1844
    %v1970 = vmul.f32 %v1969, %v1968
    %v1971 = vmul.f32 0.5, %v1970
    %v1972 = vsub.f32 1.5, %v1971
    %v1973 = vmul.f32 %v1968, %v1972
    %vm1974 = vweird.f32 %v1844
    %vm1975 = vweird.f32 %v1968
    %vm1976 = vmor %vm1974, %vm1975
    %v1977 = vsel %vm1976, %v1968, %v1973
    %v1978 = vrsqrt.pop %v1845
    %v1979 = vmul.f32 %v1978, %v1845
    %v1980 = vmul.f32 %v1979, %v1978
    %v1981 = vmul.f32 0.5, %v1980
    %v1982 = vsub.f32 1.5, %v1981
    %v1983 = vmul.f32 %v1978, %v1982
    %vm1984 = vweird.f32 %v1845
    %vm1985 = vweird.f32 %v1978
    %vm1986 = vmor %vm1984, %vm1985
    %v1987 = vsel %vm1986, %v1978, %v1983
    %v1988 = vrsqrt.pop %v1846
    %v1989 = vmul.f32 %v1988, %v1846
    %v1990 = vmul.f32 %v1989, %v1988
    %v1991 = vmul.f32 0.5, %v1990
    %v1992 = vsub.f32 1.5, %v1991
    %v1993 = vmul.f32 %v1988, %v1992
    %vm1994 = vweird.f32 %v1846
    %vm1995 = vweird.f32 %v1988
    %vm1996 = vmor %vm1994, %vm1995
    %v1997 = vsel %vm1996, %v1988, %v1993
    %v1998 = vrsqrt.pop %v1847
    %v1999 = vmul.f32 %v1998, %v1847
    %v2000 = vmul.f32 %v1999, %v1998
    %v2001 = vmul.f32 0.5, %v2000
    %v2002 = vsub.f32 1.5, %v2001
    %v2003 = vmul.f32 %v1998, %v2002
    %vm2004 = vweird.f32 %v1847
    %vm2005 = vweird.f32 %v1998
    %vm2006 = vmor %vm2004, %vm2005
    %v2007 = vsel %vm2006, %v1998, %v2003
    %v2008 = vmul.f32 %v1752, %v1857
    %v2009 = vmul.f32 %v1753, %v1867
    %v2010 = vmul.f32 %v1754, %v1877
    %v2011 = vmul.f32 %v1755, %v1887
    %v2012 = vmul.f32 %v1756, %v1897
    %v2013 = vmul.f32 %v1757, %v1907
    %v2014 = vmul.f32 %v1758, %v1917
    %v2015 = vmul.f32 %v1759, %v1927
    %v2016 = vmul.f32 %v1760, %v1937
    %v2017 = vmul.f32 %v1761, %v1947
    %v2018 = vmul.f32 %v1762, %v1957
    %v2019 = vmul.f32 %v1763, %v1967
    %v2020 = vmul.f32 %v1764, %v1977
    %v2021 = vmul.f32 %v1765, %v1987
    %v2022 = vmul.f32 %v1766, %v1997
    %v2023 = vmul.f32 %v1767, %v2007
    %v2024 = vperm.slane %v1670, 0
    %v2025 = vmul.f32 %v2008, %v2024
    %v2026 = vmul.f32 %v2009, %v2024
    %v2027 = vmul.f32 %v2010, %v2024
    %v2028 = vmul.f32 %v2011, %v2024
    %v2029 = vmul.f32 %v2012, %v2024
    %v2030 = vmul.f32 %v2013, %v2024
    %v2031 = vmul.f32 %v2014, %v2024
    %v2032 = vmul.f32 %v2015, %v2024
    %v2033 = vmul.f32 %v2016, %v2024
    %v2034 = vmul.f32 %v2017, %v2024
    %v2035 = vmul.f32 %v2018, %v2024
    %v2036 = vmul.f32 %v2019, %v2024
    %v2037 = vmul.f32 %v2020, %v2024
    %v2038 = vmul.f32 %v2021, %v2024
    %v2039 = vmul.f32 %v2022, %v2024
    %v2040 = vmul.f32 %v2023, %v2024
    %v2041 = vperm.slane %v1671, 0
    %v2042 = vadd.f32 %v2025, %v2041
    %v2043 = vadd.f32 %v2026, %v2041
    %v2044 = vadd.f32 %v2027, %v2041
    %v2045 = vadd.f32 %v2028, %v2041
    %v2046 = vadd.f32 %v2029, %v2041
    %v2047 = vadd.f32 %v2030, %v2041
    %v2048 = vadd.f32 %v2031, %v2041
    %v2049 = vadd.f32 %v2032, %v2041
    %v2050 = vadd.f32 %v2033, %v2041
    %v2051 = vadd.f32 %v2034, %v2041
    %v2052 = vadd.f32 %v2035, %v2041
    %v2053 = vadd.f32 %v2036, %v2041
    %v2054 = vadd.f32 %v2037, %v2041
    %v2055 = vadd.f32 %v2038, %v2041
    %v2056 = vadd.f32 %v2039, %v2041
    %v2057 = vadd.f32 %v2040, %v2041
    %v2058 = vpack.c.bf16 %v2043, %v2042
    %v2059 = vpack.c.bf16 %v2045, %v2044
    %v2060 = vpack.c.bf16 %v2047, %v2046
    %v2061 = vpack.c.bf16 %v2049, %v2048
    %v2062 = vpack.c.bf16 %v2051, %v2050
    %v2063 = vpack.c.bf16 %v2053, %v2052
    %v2064 = vpack.c.bf16 %v2055, %v2054
    %v2065 = vpack.c.bf16 %v2057, %v2056
    %s2066 = scalar_lea.vmem [#allocation2], 256
    %v2067 = vld [vmem:[%s2066] sm:$0xf]
    %v2068 = vld [vmem:[%s2066 + $0x4] sm:$0xf]
    %v2069 = vld [vmem:[%s2066 + $0x8] sm:$0xf]
    %v2070 = vld [vmem:[%s2066 + $0xc] sm:$0xf]
    %v2071 = vld [vmem:[%s2066 + $0x10] sm:$0xf]
    %v2072 = vld [vmem:[%s2066 + $0x14] sm:$0xf]
    %v2073 = vld [vmem:[%s2066 + $0x18] sm:$0xf]
    %v2074 = vld [vmem:[%s2066 + $0x1c] sm:$0xf]
    %v2075 = vld [vmem:[%s2066 + $0x20] sm:$0xf]
    %v2076 = vld [vmem:[%s2066 + $0x24] sm:$0xf]
    %v2077 = vld [vmem:[%s2066 + $0x28] sm:$0xf]
    %v2078 = vld [vmem:[%s2066 + $0x2c] sm:$0xf]
    %v2079 = vld [vmem:[%s2066 + $0x30] sm:$0xf]
    %v2080 = vld [vmem:[%s2066 + $0x34] sm:$0xf]
    %v2081 = vld [vmem:[%s2066 + $0x38] sm:$0xf]
    %v2082 = vld [vmem:[%s2066 + $0x3c] sm:$0xf]
    %v2083 = vld [vmem:[%s3 + $0x8] sm:$0x1]
    %v2084 = vperm.slane %v2083, 0
    %v2101 = vunpack.c.l.b16 %v2067
    %v2102 = vunpack.c.l.b16 %v2068
    %v2103 = vunpack.c.l.b16 %v2069
    %v2104 = vunpack.c.l.b16 %v2070
    %v2105 = vunpack.c.l.b16 %v2071
    %v2106 = vunpack.c.l.b16 %v2072
    %v2107 = vunpack.c.l.b16 %v2073
    %v2108 = vunpack.c.l.b16 %v2074
    %v2109 = vunpack.c.l.b16 %v2075
    %v2110 = vunpack.c.l.b16 %v2076
    %v2111 = vunpack.c.l.b16 %v2077
    %v2112 = vunpack.c.l.b16 %v2078
    %v2113 = vunpack.c.l.b16 %v2079
    %v2114 = vunpack.c.l.b16 %v2080
    %v2115 = vunpack.c.l.b16 %v2081
    %v2116 = vunpack.c.l.b16 %v2082
    %v2117 = vpack.c.b16 %v2102, %v2101
    %v2118 = vpack.c.b16 %v2104, %v2103
    %v2119 = vpack.c.b16 %v2106, %v2105
    %v2120 = vpack.c.b16 %v2108, %v2107
    %v2121 = vpack.c.b16 %v2110, %v2109
    %v2122 = vpack.c.b16 %v2112, %v2111
    %v2123 = vpack.c.b16 %v2114, %v2113
    %v2124 = vpack.c.b16 %v2116, %v2115
    %2133 = vmatpush.bf16.msra.mxu0 %v2124
    %2134 = vmatpush.bf16.msra.mxu0 %v2123
    %2135 = vmatpush.bf16.msra.mxu0 %v2122
    %2136 = vmatpush.bf16.msra.mxu0 %v2121
    %2137 = vmatpush.bf16.msra.mxu0 %v2120
    %2138 = vmatpush.bf16.msra.mxu0 %v2119
    %2139 = vmatpush.bf16.msra.mxu0 %v2118
    %2140 = vmatpush.bf16.msra.mxu0 %v2117
    %2141 = vmatmul.bf16.gmra.mxu0 %v2058
    %v2142 = vpop.f32.mrf.mxu0
    %v2143 = vadd.f32 %v2084, %v2142
    %v2144 = vpop.f32.mrf.mxu0
    %v2145 = vadd.f32 %v2084, %v2144
    %2146 = vmatmul.bf16.gmra.mxu0 %v2059
    %v2147 = vpop.f32.mrf.mxu0
    %v2148 = vadd.f32 %v2084, %v2147
    %v2149 = vpop.f32.mrf.mxu0
    %v2150 = vadd.f32 %v2084, %v2149
    %2151 = vmatmul.bf16.gmra.mxu0 %v2060
    %v2152 = vpop.f32.mrf.mxu0
    %v2153 = vadd.f32 %v2084, %v2152
    %v2154 = vpop.f32.mrf.mxu0
    %v2155 = vadd.f32 %v2084, %v2154
    %2156 = vmatmul.bf16.gmra.mxu0 %v2061
    %v2157 = vpop.f32.mrf.mxu0
    %v2158 = vadd.f32 %v2084, %v2157
    %v2159 = vpop.f32.mrf.mxu0
    %v2160 = vadd.f32 %v2084, %v2159
    %2161 = vmatmul.bf16.gmra.mxu0 %v2062
    %v2162 = vpop.f32.mrf.mxu0
    %v2163 = vadd.f32 %v2084, %v2162
    %v2164 = vpop.f32.mrf.mxu0
    %v2165 = vadd.f32 %v2084, %v2164
    %2166 = vmatmul.bf16.gmra.mxu0 %v2063
    %v2167 = vpop.f32.mrf.mxu0
    %v2168 = vadd.f32 %v2084, %v2167
    %v2169 = vpop.f32.mrf.mxu0
    %v2170 = vadd.f32 %v2084, %v2169
    %2171 = vmatmul.bf16.gmra.mxu0 %v2064
    %v2172 = vpop.f32.mrf.mxu0
    %v2173 = vadd.f32 %v2084, %v2172
    %v2174 = vpop.f32.mrf.mxu0
    %v2175 = vadd.f32 %v2084, %v2174
    %2176 = vmatmul.bf16.gmra.mxu0 %v2065
    %v2177 = vpop.f32.mrf.mxu0
    %v2178 = vadd.f32 %v2084, %v2177
    %v2179 = vpop.f32.mrf.mxu0
    %v2180 = vadd.f32 %v2084, %v2179
    %2181 = vdwg.mxu0
    %v2182 = vmul.f32 %v2143, 0.5
    %v2183 = vmul.f32 %v2145, 0.5
    %v2184 = vmul.f32 %v2148, 0.5
    %v2185 = vmul.f32 %v2150, 0.5
    %v2186 = vmul.f32 %v2153, 0.5
    %v2187 = vmul.f32 %v2155, 0.5
    %v2188 = vmul.f32 %v2158, 0.5
    %v2189 = vmul.f32 %v2160, 0.5
    %v2190 = vmul.f32 %v2163, 0.5
    %v2191 = vmul.f32 %v2165, 0.5
    %v2192 = vmul.f32 %v2168, 0.5
    %v2193 = vmul.f32 %v2170, 0.5
    %v2194 = vmul.f32 %v2173, 0.5
    %v2195 = vmul.f32 %v2175, 0.5
    %v2196 = vmul.f32 %v2178, 0.5
    %v2197 = vmul.f32 %v2180, 0.5
    %v2198 = vmul.f32 %v2143, 0.70710677
    %v2199 = vmul.f32 %v2145, 0.70710677
    %v2200 = vmul.f32 %v2148, 0.70710677
    %v2201 = vmul.f32 %v2150, 0.70710677
    %v2202 = vmul.f32 %v2153, 0.70710677
    %v2203 = vmul.f32 %v2155, 0.70710677
    %v2204 = vmul.f32 %v2158, 0.70710677
    %v2205 = vmul.f32 %v2160, 0.70710677
    %v2206 = vmul.f32 %v2163, 0.70710677
    %v2207 = vmul.f32 %v2165, 0.70710677
    %v2208 = vmul.f32 %v2168, 0.70710677
    %v2209 = vmul.f32 %v2170, 0.70710677
    %v2210 = vmul.f32 %v2173, 0.70710677
    %v2211 = vmul.f32 %v2175, 0.70710677
    %v2212 = vmul.f32 %v2178, 0.70710677
    %v2213 = vmul.f32 %v2180, 0.70710677
    %v2214 = vmul.f32 %v2198, %v2198
    %v2215 = vmin.f32 16.0, %v2214
    %v2216 = vmul.f32 %v2215, 2.1237322e-06
    %v2217 = vadd.f32 %v2216, 0.00028619796
    %v2218 = vmul.f32 %v2215, %v2217
    %v2219 = vadd.f32 %v2218, 0.0036580483
    %v2220 = vmul.f32 %v2215, %v2219
    %v2221 = vadd.f32 %v2220, 0.05243302
    %v2222 = vmul.f32 %v2215, %v2221
    %v2223 = vadd.f32 %v2222, 0.18741608
    %v2224 = vmul.f32 %v2215, %v2223
    %v2225 = vadd.f32 %v2224, 1.1283791
    %v2226 = vmul.f32 %v2198, %v2225
    %v2227 = vmul.f32 %v2215, 3.8918573e-05
    %v2228 = vadd.f32 %v2227, 0.001143296
    %v2229 = vmul.f32 %v2215, %v2228
    %v2230 = vadd.f32 %v2229, 0.014752088
    %v2231 = vmul.f32 %v2215, %v2230
    %v2232 = vadd.f32 %v2231, 0.112945676
    %v2233 = vmul.f32 %v2215, %v2232
    %v2234 = vadd.f32 %v2233, 0.4994258
    %v2235 = vmul.f32 %v2215, %v2234
    %v2236 = vadd.f32 %v2235, 1.0
    %v2237 = vrcp.pop %v2236
    %v2238 = vmul.f32 %v2236, %v2237
    %v2239 = vsub.f32 1.0, %v2238
    %v2240 = vmul.f32 %v2237, %v2239
    %v2241 = vadd.f32 %v2237, %v2240
    %vm2242 = vweird.f32 %v2236
    %vm2243 = vweird.f32 %v2237
    %vm2244 = vmor %vm2242, %vm2243
    %v2245 = vsel %vm2244, %v2237, %v2241
    %v2246 = vand.u32 2147483647, %v2236
    %vm2247 = vcmp.eq.f32.partialorder %v2246, 8.507059e+37
    %v2248 = vand.u32 %v2236, 2147483648
    %v2249 = vor.u32 1.1754944e-38, %v2248
    %v2250 = vsel %vm2247, %v2249, %v2245
    %v2251 = vmul.f32 %v2226, %v2250
    %v2252 = vmin.f32 %v2251, 1.0
    %v2253 = vmax.f32 %v2252, -1.0
    %v2254 = vmul.f32 %v2199, %v2199
    %v2255 = vmin.f32 16.0, %v2254
    %v2256 = vmul.f32 %v2255, 2.1237322e-06
    %v2257 = vadd.f32 %v2256, 0.00028619796
    %v2258 = vmul.f32 %v2255, %v2257
    %v2259 = vadd.f32 %v2258, 0.0036580483
    %v2260 = vmul.f32 %v2255, %v2259
    %v2261 = vadd.f32 %v2260, 0.05243302
    %v2262 = vmul.f32 %v2255, %v2261
    %v2263 = vadd.f32 %v2262, 0.18741608
    %v2264 = vmul.f32 %v2255, %v2263
    %v2265 = vadd.f32 %v2264, 1.1283791
    %v2266 = vmul.f32 %v2199, %v2265
    %v2267 = vmul.f32 %v2255, 3.8918573e-05
    %v2268 = vadd.f32 %v2267, 0.001143296
    %v2269 = vmul.f32 %v2255, %v2268
    %v2270 = vadd.f32 %v2269, 0.014752088
    %v2271 = vmul.f32 %v2255, %v2270
    %v2272 = vadd.f32 %v2271, 0.112945676
    %v2273 = vmul.f32 %v2255, %v2272
    %v2274 = vadd.f32 %v2273, 0.4994258
    %v2275 = vmul.f32 %v2255, %v2274
    %v2276 = vadd.f32 %v2275, 1.0
    %v2277 = vrcp.pop %v2276
    %v2278 = vmul.f32 %v2276, %v2277
    %v2279 = vsub.f32 1.0, %v2278
    %v2280 = vmul.f32 %v2277, %v2279
    %v2281 = vadd.f32 %v2277, %v2280
    %vm2282 = vweird.f32 %v2276
    %vm2283 = vweird.f32 %v2277
    %vm2284 = vmor %vm2282, %vm2283
    %v2285 = vsel %vm2284, %v2277, %v2281
    %v2286 = vand.u32 2147483647, %v2276
    %vm2287 = vcmp.eq.f32.partialorder %v2286, 8.507059e+37
    %v2288 = vand.u32 %v2276, 2147483648
    %v2289 = vor.u32 1.1754944e-38, %v2288
    %v2290 = vsel %vm2287, %v2289, %v2285
    %v2291 = vmul.f32 %v2266, %v2290
    %v2292 = vmin.f32 %v2291, 1.0
    %v2293 = vmax.f32 %v2292, -1.0
    %v2294 = vmul.f32 %v2200, %v2200
    %v2295 = vmin.f32 16.0, %v2294
    %v2296 = vmul.f32 %v2295, 2.1237322e-06
    %v2297 = vadd.f32 %v2296, 0.00028619796
    %v2298 = vmul.f32 %v2295, %v2297
    %v2299 = vadd.f32 %v2298, 0.0036580483
    %v2300 = vmul.f32 %v2295, %v2299
    %v2301 = vadd.f32 %v2300, 0.05243302
    %v2302 = vmul.f32 %v2295, %v2301
    %v2303 = vadd.f32 %v2302, 0.18741608
    %v2304 = vmul.f32 %v2295, %v2303
    %v2305 = vadd.f32 %v2304, 1.1283791
    %v2306 = vmul.f32 %v2200, %v2305
    %v2307 = vmul.f32 %v2295, 3.8918573e-05
    %v2308 = vadd.f32 %v2307, 0.001143296
    %v2309 = vmul.f32 %v2295, %v2308
    %v2310 = vadd.f32 %v2309, 0.014752088
    %v2311 = vmul.f32 %v2295, %v2310
    %v2312 = vadd.f32 %v2311, 0.112945676
    %v2313 = vmul.f32 %v2295, %v2312
    %v2314 = vadd.f32 %v2313, 0.4994258
    %v2315 = vmul.f32 %v2295, %v2314
    %v2316 = vadd.f32 %v2315, 1.0
    %v2317 = vrcp.pop %v2316
    %v2318 = vmul.f32 %v2316, %v2317
    %v2319 = vsub.f32 1.0, %v2318
    %v2320 = vmul.f32 %v2317, %v2319
    %v2321 = vadd.f32 %v2317, %v2320
    %vm2322 = vweird.f32 %v2316
    %vm2323 = vweird.f32 %v2317
    %vm2324 = vmor %vm2322, %vm2323
    %v2325 = vsel %vm2324, %v2317, %v2321
    %v2326 = vand.u32 2147483647, %v2316
    %vm2327 = vcmp.eq.f32.partialorder %v2326, 8.507059e+37
    %v2328 = vand.u32 %v2316, 2147483648
    %v2329 = vor.u32 1.1754944e-38, %v2328
    %v2330 = vsel %vm2327, %v2329, %v2325
    %v2331 = vmul.f32 %v2306, %v2330
    %v2332 = vmin.f32 %v2331, 1.0
    %v2333 = vmax.f32 %v2332, -1.0
    %v2334 = vmul.f32 %v2201, %v2201
    %v2335 = vmin.f32 16.0, %v2334
    %v2336 = vmul.f32 %v2335, 2.1237322e-06
    %v2337 = vadd.f32 %v2336, 0.00028619796
    %v2338 = vmul.f32 %v2335, %v2337
    %v2339 = vadd.f32 %v2338, 0.0036580483
    %v2340 = vmul.f32 %v2335, %v2339
    %v2341 = vadd.f32 %v2340, 0.05243302
    %v2342 = vmul.f32 %v2335, %v2341
    %v2343 = vadd.f32 %v2342, 0.18741608
    %v2344 = vmul.f32 %v2335, %v2343
    %v2345 = vadd.f32 %v2344, 1.1283791
    %v2346 = vmul.f32 %v2201, %v2345
    %v2347 = vmul.f32 %v2335, 3.8918573e-05
    %v2348 = vadd.f32 %v2347, 0.001143296
    %v2349 = vmul.f32 %v2335, %v2348
    %v2350 = vadd.f32 %v2349, 0.014752088
    %v2351 = vmul.f32 %v2335, %v2350
    %v2352 = vadd.f32 %v2351, 0.112945676
    %v2353 = vmul.f32 %v2335, %v2352
    %v2354 = vadd.f32 %v2353, 0.4994258
    %v2355 = vmul.f32 %v2335, %v2354
    %v2356 = vadd.f32 %v2355, 1.0
    %v2357 = vrcp.pop %v2356
    %v2358 = vmul.f32 %v2356, %v2357
    %v2359 = vsub.f32 1.0, %v2358
    %v2360 = vmul.f32 %v2357, %v2359
    %v2361 = vadd.f32 %v2357, %v2360
    %vm2362 = vweird.f32 %v2356
    %vm2363 = vweird.f32 %v2357
    %vm2364 = vmor %vm2362, %vm2363
    %v2365 = vsel %vm2364, %v2357, %v2361
    %v2366 = vand.u32 2147483647, %v2356
    %vm2367 = vcmp.eq.f32.partialorder %v2366, 8.507059e+37
    %v2368 = vand.u32 %v2356, 2147483648
    %v2369 = vor.u32 1.1754944e-38, %v2368
    %v2370 = vsel %vm2367, %v2369, %v2365
    %v2371 = vmul.f32 %v2346, %v2370
    %v2372 = vmin.f32 %v2371, 1.0
    %v2373 = vmax.f32 %v2372, -1.0
    %v2374 = vmul.f32 %v2202, %v2202
    %v2375 = vmin.f32 16.0, %v2374
    %v2376 = vmul.f32 %v2375, 2.1237322e-06
    %v2377 = vadd.f32 %v2376, 0.00028619796
    %v2378 = vmul.f32 %v2375, %v2377
    %v2379 = vadd.f32 %v2378, 0.0036580483
    %v2380 = vmul.f32 %v2375, %v2379
    %v2381 = vadd.f32 %v2380, 0.05243302
    %v2382 = vmul.f32 %v2375, %v2381
    %v2383 = vadd.f32 %v2382, 0.18741608
    %v2384 = vmul.f32 %v2375, %v2383
    %v2385 = vadd.f32 %v2384, 1.1283791
    %v2386 = vmul.f32 %v2202, %v2385
    %v2387 = vmul.f32 %v2375, 3.8918573e-05
    %v2388 = vadd.f32 %v2387, 0.001143296
    %v2389 = vmul.f32 %v2375, %v2388
    %v2390 = vadd.f32 %v2389, 0.014752088
    %v2391 = vmul.f32 %v2375, %v2390
    %v2392 = vadd.f32 %v2391, 0.112945676
    %v2393 = vmul.f32 %v2375, %v2392
    %v2394 = vadd.f32 %v2393, 0.4994258
    %v2395 = vmul.f32 %v2375, %v2394
    %v2396 = vadd.f32 %v2395, 1.0
    %v2397 = vrcp.pop %v2396
    %v2398 = vmul.f32 %v2396, %v2397
    %v2399 = vsub.f32 1.0, %v2398
    %v2400 = vmul.f32 %v2397, %v2399
    %v2401 = vadd.f32 %v2397, %v2400
    %vm2402 = vweird.f32 %v2396
    %vm2403 = vweird.f32 %v2397
    %vm2404 = vmor %vm2402, %vm2403
    %v2405 = vsel %vm2404, %v2397, %v2401
    %v2406 = vand.u32 2147483647, %v2396
    %vm2407 = vcmp.eq.f32.partialorder %v2406, 8.507059e+37
    %v2408 = vand.u32 %v2396, 2147483648
    %v2409 = vor.u32 1.1754944e-38, %v2408
    %v2410 = vsel %vm2407, %v2409, %v2405
    %v2411 = vmul.f32 %v2386, %v2410
    %v2412 = vmin.f32 %v2411, 1.0
    %v2413 = vmax.f32 %v2412, -1.0
    %v2414 = vmul.f32 %v2203, %v2203
    %v2415 = vmin.f32 16.0, %v2414
    %v2416 = vmul.f32 %v2415, 2.1237322e-06
    %v2417 = vadd.f32 %v2416, 0.00028619796
    %v2418 = vmul.f32 %v2415, %v2417
    %v2419 = vadd.f32 %v2418, 0.0036580483
    %v2420 = vmul.f32 %v2415, %v2419
    %v2421 = vadd.f32 %v2420, 0.05243302
    %v2422 = vmul.f32 %v2415, %v2421
    %v2423 = vadd.f32 %v2422, 0.18741608
    %v2424 = vmul.f32 %v2415, %v2423
    %v2425 = vadd.f32 %v2424, 1.1283791
    %v2426 = vmul.f32 %v2203, %v2425
    %v2427 = vmul.f32 %v2415, 3.8918573e-05
    %v2428 = vadd.f32 %v2427, 0.001143296
    %v2429 = vmul.f32 %v2415, %v2428
    %v2430 = vadd.f32 %v2429, 0.014752088
    %v2431 = vmul.f32 %v2415, %v2430
    %v2432 = vadd.f32 %v2431, 0.112945676
    %v2433 = vmul.f32 %v2415, %v2432
    %v2434 = vadd.f32 %v2433, 0.4994258
    %v2435 = vmul.f32 %v2415, %v2434
    %v2436 = vadd.f32 %v2435, 1.0
    %v2437 = vrcp.pop %v2436
    %v2438 = vmul.f32 %v2436, %v2437
    %v2439 = vsub.f32 1.0, %v2438
    %v2440 = vmul.f32 %v2437, %v2439
    %v2441 = vadd.f32 %v2437, %v2440
    %vm2442 = vweird.f32 %v2436
    %vm2443 = vweird.f32 %v2437
    %vm2444 = vmor %vm2442, %vm2443
    %v2445 = vsel %vm2444, %v2437, %v2441
    %v2446 = vand.u32 2147483647, %v2436
    %vm2447 = vcmp.eq.f32.partialorder %v2446, 8.507059e+37
    %v2448 = vand.u32 %v2436, 2147483648
    %v2449 = vor.u32 1.1754944e-38, %v2448
    %v2450 = vsel %vm2447, %v2449, %v2445
    %v2451 = vmul.f32 %v2426, %v2450
    %v2452 = vmin.f32 %v2451, 1.0
    %v2453 = vmax.f32 %v2452, -1.0
    %v2454 = vmul.f32 %v2204, %v2204
    %v2455 = vmin.f32 16.0, %v2454
    %v2456 = vmul.f32 %v2455, 2.1237322e-06
    %v2457 = vadd.f32 %v2456, 0.00028619796
    %v2458 = vmul.f32 %v2455, %v2457
    %v2459 = vadd.f32 %v2458, 0.0036580483
    %v2460 = vmul.f32 %v2455, %v2459
    %v2461 = vadd.f32 %v2460, 0.05243302
    %v2462 = vmul.f32 %v2455, %v2461
    %v2463 = vadd.f32 %v2462, 0.18741608
    %v2464 = vmul.f32 %v2455, %v2463
    %v2465 = vadd.f32 %v2464, 1.1283791
    %v2466 = vmul.f32 %v2204, %v2465
    %v2467 = vmul.f32 %v2455, 3.8918573e-05
    %v2468 = vadd.f32 %v2467, 0.001143296
    %v2469 = vmul.f32 %v2455, %v2468
    %v2470 = vadd.f32 %v2469, 0.014752088
    %v2471 = vmul.f32 %v2455, %v2470
    %v2472 = vadd.f32 %v2471, 0.112945676
    %v2473 = vmul.f32 %v2455, %v2472
    %v2474 = vadd.f32 %v2473, 0.4994258
    %v2475 = vmul.f32 %v2455, %v2474
    %v2476 = vadd.f32 %v2475, 1.0
    %v2477 = vrcp.pop %v2476
    %v2478 = vmul.f32 %v2476, %v2477
    %v2479 = vsub.f32 1.0, %v2478
    %v2480 = vmul.f32 %v2477, %v2479
    %v2481 = vadd.f32 %v2477, %v2480
    %vm2482 = vweird.f32 %v2476
    %vm2483 = vweird.f32 %v2477
    %vm2484 = vmor %vm2482, %vm2483
    %v2485 = vsel %vm2484, %v2477, %v2481
    %v2486 = vand.u32 2147483647, %v2476
    %vm2487 = vcmp.eq.f32.partialorder %v2486, 8.507059e+37
    %v2488 = vand.u32 %v2476, 2147483648
    %v2489 = vor.u32 1.1754944e-38, %v2488
    %v2490 = vsel %vm2487, %v2489, %v2485
    %v2491 = vmul.f32 %v2466, %v2490
    %v2492 = vmin.f32 %v2491, 1.0
    %v2493 = vmax.f32 %v2492, -1.0
    %v2494 = vmul.f32 %v2205, %v2205
    %v2495 = vmin.f32 16.0, %v2494
    %v2496 = vmul.f32 %v2495, 2.1237322e-06
    %v2497 = vadd.f32 %v2496, 0.00028619796
    %v2498 = vmul.f32 %v2495, %v2497
    %v2499 = vadd.f32 %v2498, 0.0036580483
    %v2500 = vmul.f32 %v2495, %v2499
    %v2501 = vadd.f32 %v2500, 0.05243302
    %v2502 = vmul.f32 %v2495, %v2501
    %v2503 = vadd.f32 %v2502, 0.18741608
    %v2504 = vmul.f32 %v2495, %v2503
    %v2505 = vadd.f32 %v2504, 1.1283791
    %v2506 = vmul.f32 %v2205, %v2505
    %v2507 = vmul.f32 %v2495, 3.8918573e-05
    %v2508 = vadd.f32 %v2507, 0.001143296
    %v2509 = vmul.f32 %v2495, %v2508
    %v2510 = vadd.f32 %v2509, 0.014752088
    %v2511 = vmul.f32 %v2495, %v2510
    %v2512 = vadd.f32 %v2511, 0.112945676
    %v2513 = vmul.f32 %v2495, %v2512
    %v2514 = vadd.f32 %v2513, 0.4994258
    %v2515 = vmul.f32 %v2495, %v2514
    %v2516 = vadd.f32 %v2515, 1.0
    %v2517 = vrcp.pop %v2516
    %v2518 = vmul.f32 %v2516, %v2517
    %v2519 = vsub.f32 1.0, %v2518
    %v2520 = vmul.f32 %v2517, %v2519
    %v2521 = vadd.f32 %v2517, %v2520
    %vm2522 = vweird.f32 %v2516
    %vm2523 = vweird.f32 %v2517
    %vm2524 = vmor %vm2522, %vm2523
    %v2525 = vsel %vm2524, %v2517, %v2521
    %v2526 = vand.u32 2147483647, %v2516
    %vm2527 = vcmp.eq.f32.partialorder %v2526, 8.507059e+37
    %v2528 = vand.u32 %v2516, 2147483648
    %v2529 = vor.u32 1.1754944e-38, %v2528
    %v2530 = vsel %vm2527, %v2529, %v2525
    %v2531 = vmul.f32 %v2506, %v2530
    %v2532 = vmin.f32 %v2531, 1.0
    %v2533 = vmax.f32 %v2532, -1.0
    %v2534 = vmul.f32 %v2206, %v2206
    %v2535 = vmin.f32 16.0, %v2534
    %v2536 = vmul.f32 %v2535, 2.1237322e-06
    %v2537 = vadd.f32 %v2536, 0.00028619796
    %v2538 = vmul.f32 %v2535, %v2537
    %v2539 = vadd.f32 %v2538, 0.0036580483
    %v2540 = vmul.f32 %v2535, %v2539
    %v2541 = vadd.f32 %v2540, 0.05243302
    %v2542 = vmul.f32 %v2535, %v2541
    %v2543 = vadd.f32 %v2542, 0.18741608
    %v2544 = vmul.f32 %v2535, %v2543
    %v2545 = vadd.f32 %v2544, 1.1283791
    %v2546 = vmul.f32 %v2206, %v2545
    %v2547 = vmul.f32 %v2535, 3.8918573e-05
    %v2548 = vadd.f32 %v2547, 0.001143296
    %v2549 = vmul.f32 %v2535, %v2548
    %v2550 = vadd.f32 %v2549, 0.014752088
    %v2551 = vmul.f32 %v2535, %v2550
    %v2552 = vadd.f32 %v2551, 0.112945676
    %v2553 = vmul.f32 %v2535, %v2552
    %v2554 = vadd.f32 %v2553, 0.4994258
    %v2555 = vmul.f32 %v2535, %v2554
    %v2556 = vadd.f32 %v2555, 1.0
    %v2557 = vrcp.pop %v2556
    %v2558 = vmul.f32 %v2556, %v2557
    %v2559 = vsub.f32 1.0, %v2558
    %v2560 = vmul.f32 %v2557, %v2559
    %v2561 = vadd.f32 %v2557, %v2560
    %vm2562 = vweird.f32 %v2556
    %vm2563 = vweird.f32 %v2557
    %vm2564 = vmor %vm2562, %vm2563
    %v2565 = vsel %vm2564, %v2557, %v2561
    %v2566 = vand.u32 2147483647, %v2556
    %vm2567 = vcmp.eq.f32.partialorder %v2566, 8.507059e+37
    %v2568 = vand.u32 %v2556, 2147483648
    %v2569 = vor.u32 1.1754944e-38, %v2568
    %v2570 = vsel %vm2567, %v2569, %v2565
    %v2571 = vmul.f32 %v2546, %v2570
    %v2572 = vmin.f32 %v2571, 1.0
    %v2573 = vmax.f32 %v2572, -1.0
    %v2574 = vmul.f32 %v2207, %v2207
    %v2575 = vmin.f32 16.0, %v2574
    %v2576 = vmul.f32 %v2575, 2.1237322e-06
    %v2577 = vadd.f32 %v2576, 0.00028619796
    %v2578 = vmul.f32 %v2575, %v2577
    %v2579 = vadd.f32 %v2578, 0.0036580483
    %v2580 = vmul.f32 %v2575, %v2579
    %v2581 = vadd.f32 %v2580, 0.05243302
    %v2582 = vmul.f32 %v2575, %v2581
    %v2583 = vadd.f32 %v2582, 0.18741608
    %v2584 = vmul.f32 %v2575, %v2583
    %v2585 = vadd.f32 %v2584, 1.1283791
    %v2586 = vmul.f32 %v2207, %v2585
    %v2587 = vmul.f32 %v2575, 3.8918573e-05
    %v2588 = vadd.f32 %v2587, 0.001143296
    %v2589 = vmul.f32 %v2575, %v2588
    %v2590 = vadd.f32 %v2589, 0.014752088
    %v2591 = vmul.f32 %v2575, %v2590
    %v2592 = vadd.f32 %v2591, 0.112945676
    %v2593 = vmul.f32 %v2575, %v2592
    %v2594 = vadd.f32 %v2593, 0.4994258
    %v2595 = vmul.f32 %v2575, %v2594
    %v2596 = vadd.f32 %v2595, 1.0
    %v2597 = vrcp.pop %v2596
    %v2598 = vmul.f32 %v2596, %v2597
    %v2599 = vsub.f32 1.0, %v2598
    %v2600 = vmul.f32 %v2597, %v2599
    %v2601 = vadd.f32 %v2597, %v2600
    %vm2602 = vweird.f32 %v2596
    %vm2603 = vweird.f32 %v2597
    %vm2604 = vmor %vm2602, %vm2603
    %v2605 = vsel %vm2604, %v2597, %v2601
    %v2606 = vand.u32 2147483647, %v2596
    %vm2607 = vcmp.eq.f32.partialorder %v2606, 8.507059e+37
    %v2608 = vand.u32 %v2596, 2147483648
    %v2609 = vor.u32 1.1754944e-38, %v2608
    %v2610 = vsel %vm2607, %v2609, %v2605
    %v2611 = vmul.f32 %v2586, %v2610
    %v2612 = vmin.f32 %v2611, 1.0
    %v2613 = vmax.f32 %v2612, -1.0
    %v2614 = vmul.f32 %v2208, %v2208
    %v2615 = vmin.f32 16.0, %v2614
    %v2616 = vmul.f32 %v2615, 2.1237322e-06
    %v2617 = vadd.f32 %v2616, 0.00028619796
    %v2618 = vmul.f32 %v2615, %v2617
    %v2619 = vadd.f32 %v2618, 0.0036580483
    %v2620 = vmul.f32 %v2615, %v2619
    %v2621 = vadd.f32 %v2620, 0.05243302
    %v2622 = vmul.f32 %v2615, %v2621
    %v2623 = vadd.f32 %v2622, 0.18741608
    %v2624 = vmul.f32 %v2615, %v2623
    %v2625 = vadd.f32 %v2624, 1.1283791
    %v2626 = vmul.f32 %v2208, %v2625
    %v2627 = vmul.f32 %v2615, 3.8918573e-05
    %v2628 = vadd.f32 %v2627, 0.001143296
    %v2629 = vmul.f32 %v2615, %v2628
    %v2630 = vadd.f32 %v2629, 0.014752088
    %v2631 = vmul.f32 %v2615, %v2630
    %v2632 = vadd.f32 %v2631, 0.112945676
    %v2633 = vmul.f32 %v2615, %v2632
    %v2634 = vadd.f32 %v2633, 0.4994258
    %v2635 = vmul.f32 %v2615, %v2634
    %v2636 = vadd.f32 %v2635, 1.0
    %v2637 = vrcp.pop %v2636
    %v2638 = vmul.f32 %v2636, %v2637
    %v2639 = vsub.f32 1.0, %v2638
    %v2640 = vmul.f32 %v2637, %v2639
    %v2641 = vadd.f32 %v2637, %v2640
    %vm2642 = vweird.f32 %v2636
    %vm2643 = vweird.f32 %v2637
    %vm2644 = vmor %vm2642, %vm2643
    %v2645 = vsel %vm2644, %v2637, %v2641
    %v2646 = vand.u32 2147483647, %v2636
    %vm2647 = vcmp.eq.f32.partialorder %v2646, 8.507059e+37
    %v2648 = vand.u32 %v2636, 2147483648
    %v2649 = vor.u32 1.1754944e-38, %v2648
    %v2650 = vsel %vm2647, %v2649, %v2645
    %v2651 = vmul.f32 %v2626, %v2650
    %v2652 = vmin.f32 %v2651, 1.0
    %v2653 = vmax.f32 %v2652, -1.0
    %v2654 = vmul.f32 %v2209, %v2209
    %v2655 = vmin.f32 16.0, %v2654
    %v2656 = vmul.f32 %v2655, 2.1237322e-06
    %v2657 = vadd.f32 %v2656, 0.00028619796
    %v2658 = vmul.f32 %v2655, %v2657
    %v2659 = vadd.f32 %v2658, 0.0036580483
    %v2660 = vmul.f32 %v2655, %v2659
    %v2661 = vadd.f32 %v2660, 0.05243302
    %v2662 = vmul.f32 %v2655, %v2661
    %v2663 = vadd.f32 %v2662, 0.18741608
    %v2664 = vmul.f32 %v2655, %v2663
    %v2665 = vadd.f32 %v2664, 1.1283791
    %v2666 = vmul.f32 %v2209, %v2665
    %v2667 = vmul.f32 %v2655, 3.8918573e-05
    %v2668 = vadd.f32 %v2667, 0.001143296
    %v2669 = vmul.f32 %v2655, %v2668
    %v2670 = vadd.f32 %v2669, 0.014752088
    %v2671 = vmul.f32 %v2655, %v2670
    %v2672 = vadd.f32 %v2671, 0.112945676
    %v2673 = vmul.f32 %v2655, %v2672
    %v2674 = vadd.f32 %v2673, 0.4994258
    %v2675 = vmul.f32 %v2655, %v2674
    %v2676 = vadd.f32 %v2675, 1.0
    %v2677 = vrcp.pop %v2676
    %v2678 = vmul.f32 %v2676, %v2677
    %v2679 = vsub.f32 1.0, %v2678
    %v2680 = vmul.f32 %v2677, %v2679
    %v2681 = vadd.f32 %v2677, %v2680
    %vm2682 = vweird.f32 %v2676
    %vm2683 = vweird.f32 %v2677
    %vm2684 = vmor %vm2682, %vm2683
    %v2685 = vsel %vm2684, %v2677, %v2681
    %v2686 = vand.u32 2147483647, %v2676
    %vm2687 = vcmp.eq.f32.partialorder %v2686, 8.507059e+37
    %v2688 = vand.u32 %v2676, 2147483648
    %v2689 = vor.u32 1.1754944e-38, %v2688
    %v2690 = vsel %vm2687, %v2689, %v2685
    %v2691 = vmul.f32 %v2666, %v2690
    %v2692 = vmin.f32 %v2691, 1.0
    %v2693 = vmax.f32 %v2692, -1.0
    %v2694 = vmul.f32 %v2210, %v2210
    %v2695 = vmin.f32 16.0, %v2694
    %v2696 = vmul.f32 %v2695, 2.1237322e-06
    %v2697 = vadd.f32 %v2696, 0.00028619796
    %v2698 = vmul.f32 %v2695, %v2697
    %v2699 = vadd.f32 %v2698, 0.0036580483
    %v2700 = vmul.f32 %v2695, %v2699
    %v2701 = vadd.f32 %v2700, 0.05243302
    %v2702 = vmul.f32 %v2695, %v2701
    %v2703 = vadd.f32 %v2702, 0.18741608
    %v2704 = vmul.f32 %v2695, %v2703
    %v2705 = vadd.f32 %v2704, 1.1283791
    %v2706 = vmul.f32 %v2210, %v2705
    %v2707 = vmul.f32 %v2695, 3.8918573e-05
    %v2708 = vadd.f32 %v2707, 0.001143296
    %v2709 = vmul.f32 %v2695, %v2708
    %v2710 = vadd.f32 %v2709, 0.014752088
    %v2711 = vmul.f32 %v2695, %v2710
    %v2712 = vadd.f32 %v2711, 0.112945676
    %v2713 = vmul.f32 %v2695, %v2712
    %v2714 = vadd.f32 %v2713, 0.4994258
    %v2715 = vmul.f32 %v2695, %v2714
    %v2716 = vadd.f32 %v2715, 1.0
    %v2717 = vrcp.pop %v2716
    %v2718 = vmul.f32 %v2716, %v2717
    %v2719 = vsub.f32 1.0, %v2718
    %v2720 = vmul.f32 %v2717, %v2719
    %v2721 = vadd.f32 %v2717, %v2720
    %vm2722 = vweird.f32 %v2716
    %vm2723 = vweird.f32 %v2717
    %vm2724 = vmor %vm2722, %vm2723
    %v2725 = vsel %vm2724, %v2717, %v2721
    %v2726 = vand.u32 2147483647, %v2716
    %vm2727 = vcmp.eq.f32.partialorder %v2726, 8.507059e+37
    %v2728 = vand.u32 %v2716, 2147483648
    %v2729 = vor.u32 1.1754944e-38, %v2728
    %v2730 = vsel %vm2727, %v2729, %v2725
    %v2731 = vmul.f32 %v2706, %v2730
    %v2732 = vmin.f32 %v2731, 1.0
    %v2733 = vmax.f32 %v2732, -1.0
    %v2734 = vmul.f32 %v2211, %v2211
    %v2735 = vmin.f32 16.0, %v2734
    %v2736 = vmul.f32 %v2735, 2.1237322e-06
    %v2737 = vadd.f32 %v2736, 0.00028619796
    %v2738 = vmul.f32 %v2735, %v2737
    %v2739 = vadd.f32 %v2738, 0.0036580483
    %v2740 = vmul.f32 %v2735, %v2739
    %v2741 = vadd.f32 %v2740, 0.05243302
    %v2742 = vmul.f32 %v2735, %v2741
    %v2743 = vadd.f32 %v2742, 0.18741608
    %v2744 = vmul.f32 %v2735, %v2743
    %v2745 = vadd.f32 %v2744, 1.1283791
    %v2746 = vmul.f32 %v2211, %v2745
    %v2747 = vmul.f32 %v2735, 3.8918573e-05
    %v2748 = vadd.f32 %v2747, 0.001143296
    %v2749 = vmul.f32 %v2735, %v2748
    %v2750 = vadd.f32 %v2749, 0.014752088
    %v2751 = vmul.f32 %v2735, %v2750
    %v2752 = vadd.f32 %v2751, 0.112945676
    %v2753 = vmul.f32 %v2735, %v2752
    %v2754 = vadd.f32 %v2753, 0.4994258
    %v2755 = vmul.f32 %v2735, %v2754
    %v2756 = vadd.f32 %v2755, 1.0
    %v2757 = vrcp.pop %v2756
    %v2758 = vmul.f32 %v2756, %v2757
    %v2759 = vsub.f32 1.0, %v2758
    %v2760 = vmul.f32 %v2757, %v2759
    %v2761 = vadd.f32 %v2757, %v2760
    %vm2762 = vweird.f32 %v2756
    %vm2763 = vweird.f32 %v2757
    %vm2764 = vmor %vm2762, %vm2763
    %v2765 = vsel %vm2764, %v2757, %v2761
    %v2766 = vand.u32 2147483647, %v2756
    %vm2767 = vcmp.eq.f32.partialorder %v2766, 8.507059e+37
    %v2768 = vand.u32 %v2756, 2147483648
    %v2769 = vor.u32 1.1754944e-38, %v2768
    %v2770 = vsel %vm2767, %v2769, %v2765
    %v2771 = vmul.f32 %v2746, %v2770
    %v2772 = vmin.f32 %v2771, 1.0
    %v2773 = vmax.f32 %v2772, -1.0
    %v2774 = vmul.f32 %v2212, %v2212
    %v2775 = vmin.f32 16.0, %v2774
    %v2776 = vmul.f32 %v2775, 2.1237322e-06
    %v2777 = vadd.f32 %v2776, 0.00028619796
    %v2778 = vmul.f32 %v2775, %v2777
    %v2779 = vadd.f32 %v2778, 0.0036580483
    %v2780 = vmul.f32 %v2775, %v2779
    %v2781 = vadd.f32 %v2780, 0.05243302
    %v2782 = vmul.f32 %v2775, %v2781
    %v2783 = vadd.f32 %v2782, 0.18741608
    %v2784 = vmul.f32 %v2775, %v2783
    %v2785 = vadd.f32 %v2784, 1.1283791
    %v2786 = vmul.f32 %v2212, %v2785
    %v2787 = vmul.f32 %v2775, 3.8918573e-05
    %v2788 = vadd.f32 %v2787, 0.001143296
    %v2789 = vmul.f32 %v2775, %v2788
    %v2790 = vadd.f32 %v2789, 0.014752088
    %v2791 = vmul.f32 %v2775, %v2790
    %v2792 = vadd.f32 %v2791, 0.112945676
    %v2793 = vmul.f32 %v2775, %v2792
    %v2794 = vadd.f32 %v2793, 0.4994258
    %v2795 = vmul.f32 %v2775, %v2794
    %v2796 = vadd.f32 %v2795, 1.0
    %v2797 = vrcp.pop %v2796
    %v2798 = vmul.f32 %v2796, %v2797
    %v2799 = vsub.f32 1.0, %v2798
    %v2800 = vmul.f32 %v2797, %v2799
    %v2801 = vadd.f32 %v2797, %v2800
    %vm2802 = vweird.f32 %v2796
    %vm2803 = vweird.f32 %v2797
    %vm2804 = vmor %vm2802, %vm2803
    %v2805 = vsel %vm2804, %v2797, %v2801
    %v2806 = vand.u32 2147483647, %v2796
    %vm2807 = vcmp.eq.f32.partialorder %v2806, 8.507059e+37
    %v2808 = vand.u32 %v2796, 2147483648
    %v2809 = vor.u32 1.1754944e-38, %v2808
    %v2810 = vsel %vm2807, %v2809, %v2805
    %v2811 = vmul.f32 %v2786, %v2810
    %v2812 = vmin.f32 %v2811, 1.0
    %v2813 = vmax.f32 %v2812, -1.0
    %v2814 = vmul.f32 %v2213, %v2213
    %v2815 = vmin.f32 16.0, %v2814
    %v2816 = vmul.f32 %v2815, 2.1237322e-06
    %v2817 = vadd.f32 %v2816, 0.00028619796
    %v2818 = vmul.f32 %v2815, %v2817
    %v2819 = vadd.f32 %v2818, 0.0036580483
    %v2820 = vmul.f32 %v2815, %v2819
    %v2821 = vadd.f32 %v2820, 0.05243302
    %v2822 = vmul.f32 %v2815, %v2821
    %v2823 = vadd.f32 %v2822, 0.18741608
    %v2824 = vmul.f32 %v2815, %v2823
    %v2825 = vadd.f32 %v2824, 1.1283791
    %v2826 = vmul.f32 %v2213, %v2825
    %v2827 = vmul.f32 %v2815, 3.8918573e-05
    %v2828 = vadd.f32 %v2827, 0.001143296
    %v2829 = vmul.f32 %v2815, %v2828
    %v2830 = vadd.f32 %v2829, 0.014752088
    %v2831 = vmul.f32 %v2815, %v2830
    %v2832 = vadd.f32 %v2831, 0.112945676
    %v2833 = vmul.f32 %v2815, %v2832
    %v2834 = vadd.f32 %v2833, 0.4994258
    %v2835 = vmul.f32 %v2815, %v2834
    %v2836 = vadd.f32 %v2835, 1.0
    %v2837 = vrcp.pop %v2836
    %v2838 = vmul.f32 %v2836, %v2837
    %v2839 = vsub.f32 1.0, %v2838
    %v2840 = vmul.f32 %v2837, %v2839
    %v2841 = vadd.f32 %v2837, %v2840
    %vm2842 = vweird.f32 %v2836
    %vm2843 = vweird.f32 %v2837
    %vm2844 = vmor %vm2842, %vm2843
    %v2845 = vsel %vm2844, %v2837, %v2841
    %v2846 = vand.u32 2147483647, %v2836
    %vm2847 = vcmp.eq.f32.partialorder %v2846, 8.507059e+37
    %v2848 = vand.u32 %v2836, 2147483648
    %v2849 = vor.u32 1.1754944e-38, %v2848
    %v2850 = vsel %vm2847, %v2849, %v2845
    %v2851 = vmul.f32 %v2826, %v2850
    %v2852 = vmin.f32 %v2851, 1.0
    %v2853 = vmax.f32 %v2852, -1.0
    %v2854 = vadd.f32 %v2253, 1.0
    %v2855 = vadd.f32 %v2293, 1.0
    %v2856 = vadd.f32 %v2333, 1.0
    %v2857 = vadd.f32 %v2373, 1.0
    %v2858 = vadd.f32 %v2413, 1.0
    %v2859 = vadd.f32 %v2453, 1.0
    %v2860 = vadd.f32 %v2493, 1.0
    %v2861 = vadd.f32 %v2533, 1.0
    %v2862 = vadd.f32 %v2573, 1.0
    %v2863 = vadd.f32 %v2613, 1.0
    %v2864 = vadd.f32 %v2653, 1.0
    %v2865 = vadd.f32 %v2693, 1.0
    %v2866 = vadd.f32 %v2733, 1.0
    %v2867 = vadd.f32 %v2773, 1.0
    %v2868 = vadd.f32 %v2813, 1.0
    %v2869 = vadd.f32 %v2853, 1.0
    %v2870 = vmul.f32 %v2182, %v2854
    %v2871 = vmul.f32 %v2183, %v2855
    %v2872 = vmul.f32 %v2184, %v2856
    %v2873 = vmul.f32 %v2185, %v2857
    %v2874 = vmul.f32 %v2186, %v2858
    %v2875 = vmul.f32 %v2187, %v2859
    %v2876 = vmul.f32 %v2188, %v2860
    %v2877 = vmul.f32 %v2189, %v2861
    %v2878 = vmul.f32 %v2190, %v2862
    %v2879 = vmul.f32 %v2191, %v2863
    %v2880 = vmul.f32 %v2192, %v2864
    %v2881 = vmul.f32 %v2193, %v2865
    %v2882 = vmul.f32 %v2194, %v2866
    %v2883 = vmul.f32 %v2195, %v2867
    %v2884 = vmul.f32 %v2196, %v2868
    %v2885 = vmul.f32 %v2197, %v2869
    %v2886 = vpack.c.bf16 %v2871, %v2870
    %v2887 = vpack.c.bf16 %v2873, %v2872
    %v2888 = vpack.c.bf16 %v2875, %v2874
    %v2889 = vpack.c.bf16 %v2877, %v2876
    %v2890 = vpack.c.bf16 %v2879, %v2878
    %v2891 = vpack.c.bf16 %v2881, %v2880
    %v2892 = vpack.c.bf16 %v2883, %v2882
    %v2893 = vpack.c.bf16 %v2885, %v2884
    %s2894 = scalar_lea.vmem [#allocation2], 320
    %v2895 = vld [vmem:[%s2894] sm:$0xf]
    %v2896 = vld [vmem:[%s2894 + $0x4] sm:$0xf]
    %v2897 = vld [vmem:[%s2894 + $0x8] sm:$0xf]
    %v2898 = vld [vmem:[%s2894 + $0xc] sm:$0xf]
    %v2899 = vld [vmem:[%s2894 + $0x10] sm:$0xf]
    %v2900 = vld [vmem:[%s2894 + $0x14] sm:$0xf]
    %v2901 = vld [vmem:[%s2894 + $0x18] sm:$0xf]
    %v2902 = vld [vmem:[%s2894 + $0x1c] sm:$0xf]
    %v2903 = vld [vmem:[%s2894 + $0x20] sm:$0xf]
    %v2904 = vld [vmem:[%s2894 + $0x24] sm:$0xf]
    %v2905 = vld [vmem:[%s2894 + $0x28] sm:$0xf]
    %v2906 = vld [vmem:[%s2894 + $0x2c] sm:$0xf]
    %v2907 = vld [vmem:[%s2894 + $0x30] sm:$0xf]
    %v2908 = vld [vmem:[%s2894 + $0x34] sm:$0xf]
    %v2909 = vld [vmem:[%s2894 + $0x38] sm:$0xf]
    %v2910 = vld [vmem:[%s2894 + $0x3c] sm:$0xf]
    %v2911 = vld [vmem:[%s3 + $0x9] sm:$0x1]
    %v2912 = vperm.slane %v2911, 0
    %v2929 = vunpack.c.l.b16 %v2895
    %v2930 = vunpack.c.l.b16 %v2896
    %v2931 = vunpack.c.l.b16 %v2897
    %v2932 = vunpack.c.l.b16 %v2898
    %v2933 = vunpack.c.l.b16 %v2899
    %v2934 = vunpack.c.l.b16 %v2900
    %v2935 = vunpack.c.l.b16 %v2901
    %v2936 = vunpack.c.l.b16 %v2902
    %v2937 = vunpack.c.l.b16 %v2903
    %v2938 = vunpack.c.l.b16 %v2904
    %v2939 = vunpack.c.l.b16 %v2905
    %v2940 = vunpack.c.l.b16 %v2906
    %v2941 = vunpack.c.l.b16 %v2907
    %v2942 = vunpack.c.l.b16 %v2908
    %v2943 = vunpack.c.l.b16 %v2909
    %v2944 = vunpack.c.l.b16 %v2910
    %v2945 = vpack.c.b16 %v2930, %v2929
    %v2946 = vpack.c.b16 %v2932, %v2931
    %v2947 = vpack.c.b16 %v2934, %v2933
    %v2948 = vpack.c.b16 %v2936, %v2935
    %v2949 = vpack.c.b16 %v2938, %v2937
    %v2950 = vpack.c.b16 %v2940, %v2939
    %v2951 = vpack.c.b16 %v2942, %v2941
    %v2952 = vpack.c.b16 %v2944, %v2943
    %2961 = vmatpush.bf16.msra.mxu0 %v2952
    %2962 = vmatpush.bf16.msra.mxu0 %v2951
    %2963 = vmatpush.bf16.msra.mxu0 %v2950
    %2964 = vmatpush.bf16.msra.mxu0 %v2949
    %2965 = vmatpush.bf16.msra.mxu0 %v2948
    %2966 = vmatpush.bf16.msra.mxu0 %v2947
    %2967 = vmatpush.bf16.msra.mxu0 %v2946
    %2968 = vmatpush.bf16.msra.mxu0 %v2945
    %2969 = vmatmul.bf16.gmra.mxu0 %v2886
    %v2970 = vpop.f32.mrf.mxu0
    %v2971 = vadd.f32 %v2912, %v2970
    %v2972 = vpop.f32.mrf.mxu0
    %v2973 = vadd.f32 %v2912, %v2972
    %2974 = vmatmul.bf16.gmra.mxu0 %v2887
    %v2975 = vpop.f32.mrf.mxu0
    %v2976 = vadd.f32 %v2912, %v2975
    %v2977 = vpop.f32.mrf.mxu0
    %v2978 = vadd.f32 %v2912, %v2977
    %2979 = vmatmul.bf16.gmra.mxu0 %v2888
    %v2980 = vpop.f32.mrf.mxu0
    %v2981 = vadd.f32 %v2912, %v2980
    %v2982 = vpop.f32.mrf.mxu0
    %v2983 = vadd.f32 %v2912, %v2982
    %2984 = vmatmul.bf16.gmra.mxu0 %v2889
    %v2985 = vpop.f32.mrf.mxu0
    %v2986 = vadd.f32 %v2912, %v2985
    %v2987 = vpop.f32.mrf.mxu0
    %v2988 = vadd.f32 %v2912, %v2987
    %2989 = vmatmul.bf16.gmra.mxu0 %v2890
    %v2990 = vpop.f32.mrf.mxu0
    %v2991 = vadd.f32 %v2912, %v2990
    %v2992 = vpop.f32.mrf.mxu0
    %v2993 = vadd.f32 %v2912, %v2992
    %2994 = vmatmul.bf16.gmra.mxu0 %v2891
    %v2995 = vpop.f32.mrf.mxu0
    %v2996 = vadd.f32 %v2912, %v2995
    %v2997 = vpop.f32.mrf.mxu0
    %v2998 = vadd.f32 %v2912, %v2997
    %2999 = vmatmul.bf16.gmra.mxu0 %v2892
    %v3000 = vpop.f32.mrf.mxu0
    %v3001 = vadd.f32 %v2912, %v3000
    %v3002 = vpop.f32.mrf.mxu0
    %v3003 = vadd.f32 %v2912, %v3002
    %3004 = vmatmul.bf16.gmra.mxu0 %v2893
    %v3005 = vpop.f32.mrf.mxu0
    %v3006 = vadd.f32 %v2912, %v3005
    %v3007 = vpop.f32.mrf.mxu0
    %v3008 = vadd.f32 %v2912, %v3007
    %3009 = vdwg.mxu0
    %v3010 = vadd.f32 %v2971, %v2042
    %v3011 = vadd.f32 %v2973, %v2043
    %v3012 = vadd.f32 %v2976, %v2044
    %v3013 = vadd.f32 %v2978, %v2045
    %v3014 = vadd.f32 %v2981, %v2046
    %v3015 = vadd.f32 %v2983, %v2047
    %v3016 = vadd.f32 %v2986, %v2048
    %v3017 = vadd.f32 %v2988, %v2049
    %v3018 = vadd.f32 %v2991, %v2050
    %v3019 = vadd.f32 %v2993, %v2051
    %v3020 = vadd.f32 %v2996, %v2052
    %v3021 = vadd.f32 %v2998, %v2053
    %v3022 = vadd.f32 %v3001, %v2054
    %v3023 = vadd.f32 %v3003, %v2055
    %v3024 = vadd.f32 %v3006, %v2056
    %v3025 = vadd.f32 %v3008, %v2057
    %v3026 = vld [vmem:[%s3 + $0xa] sm:$0x1]
    %v3027 = vld [vmem:[%s3 + $0xb] sm:$0x1]
    %v3028 = vmul.f32 %v3010, %v37
    %v3029 = vmul.f32 %v3011, %v37
    %v3030 = vmul.f32 %v3012, %v37
    %v3031 = vmul.f32 %v3013, %v37
    %v3032 = vmul.f32 %v3014, %v37
    %v3033 = vmul.f32 %v3015, %v37
    %v3034 = vmul.f32 %v3016, %v37
    %v3035 = vmul.f32 %v3017, %v37
    %v3036 = vmul.f32 %v3018, %v37
    %v3037 = vmul.f32 %v3019, %v37
    %v3038 = vmul.f32 %v3020, %v37
    %v3039 = vmul.f32 %v3021, %v37
    %v3040 = vmul.f32 %v3022, %v37
    %v3041 = vmul.f32 %v3023, %v37
    %v3042 = vmul.f32 %v3024, %v37
    %v3043 = vmul.f32 %v3025, %v37
    %3044 = vadd.xlane.f32.xlu0 %v3028
    %v3045 = vpop.xlane.xlu0 %3044
    %3046 = vadd.xlane.f32.xlu0 %v3029
    %v3047 = vpop.xlane.xlu0 %3046
    %3048 = vadd.xlane.f32.xlu0 %v3030
    %v3049 = vpop.xlane.xlu0 %3048
    %3050 = vadd.xlane.f32.xlu0 %v3031
    %v3051 = vpop.xlane.xlu0 %3050
    %3052 = vadd.xlane.f32.xlu0 %v3032
    %v3053 = vpop.xlane.xlu0 %3052
    %3054 = vadd.xlane.f32.xlu0 %v3033
    %v3055 = vpop.xlane.xlu0 %3054
    %3056 = vadd.xlane.f32.xlu0 %v3034
    %v3057 = vpop.xlane.xlu0 %3056
    %3058 = vadd.xlane.f32.xlu0 %v3035
    %v3059 = vpop.xlane.xlu0 %3058
    %3060 = vadd.xlane.f32.xlu0 %v3036
    %v3061 = vpop.xlane.xlu0 %3060
    %3062 = vadd.xlane.f32.xlu0 %v3037
    %v3063 = vpop.xlane.xlu0 %3062
    %3064 = vadd.xlane.f32.xlu0 %v3038
    %v3065 = vpop.xlane.xlu0 %3064
    %3066 = vadd.xlane.f32.xlu0 %v3039
    %v3067 = vpop.xlane.xlu0 %3066
    %3068 = vadd.xlane.f32.xlu0 %v3040
    %v3069 = vpop.xlane.xlu0 %3068
    %3070 = vadd.xlane.f32.xlu0 %v3041
    %v3071 = vpop.xlane.xlu0 %3070
    %3072 = vadd.xlane.f32.xlu0 %v3042
    %v3073 = vpop.xlane.xlu0 %3072
    %3074 = vadd.xlane.f32.xlu0 %v3043
    %v3075 = vpop.xlane.xlu0 %3074
    %v3076 = vmul.f32 %v3045, 0.03125
    %v3077 = vmul.f32 %v3047, 0.03125
    %v3078 = vmul.f32 %v3049, 0.03125
    %v3079 = vmul.f32 %v3051, 0.03125
    %v3080 = vmul.f32 %v3053, 0.03125
    %v3081 = vmul.f32 %v3055, 0.03125
    %v3082 = vmul.f32 %v3057, 0.03125
    %v3083 = vmul.f32 %v3059, 0.03125
    %v3084 = vmul.f32 %v3061, 0.03125
    %v3085 = vmul.f32 %v3063, 0.03125
    %v3086 = vmul.f32 %v3065, 0.03125
    %v3087 = vmul.f32 %v3067, 0.03125
    %v3088 = vmul.f32 %v3069, 0.03125
    %v3089 = vmul.f32 %v3071, 0.03125
    %v3090 = vmul.f32 %v3073, 0.03125
    %v3091 = vmul.f32 %v3075, 0.03125
    %v3092 = vsub.f32 %v3010, %v3076
    %v3093 = vsub.f32 %v3011, %v3077
    %v3094 = vsub.f32 %v3012, %v3078
    %v3095 = vsub.f32 %v3013, %v3079
    %v3096 = vsub.f32 %v3014, %v3080
    %v3097 = vsub.f32 %v3015, %v3081
    %v3098 = vsub.f32 %v3016, %v3082
    %v3099 = vsub.f32 %v3017, %v3083
    %v3100 = vsub.f32 %v3018, %v3084
    %v3101 = vsub.f32 %v3019, %v3085
    %v3102 = vsub.f32 %v3020, %v3086
    %v3103 = vsub.f32 %v3021, %v3087
    %v3104 = vsub.f32 %v3022, %v3088
    %v3105 = vsub.f32 %v3023, %v3089
    %v3106 = vsub.f32 %v3024, %v3090
    %v3107 = vsub.f32 %v3025, %v3091
    %v3108 = vmul.f32 %v3092, %v37
    %v3109 = vmul.f32 %v3093, %v37
    %v3110 = vmul.f32 %v3094, %v37
    %v3111 = vmul.f32 %v3095, %v37
    %v3112 = vmul.f32 %v3096, %v37
    %v3113 = vmul.f32 %v3097, %v37
    %v3114 = vmul.f32 %v3098, %v37
    %v3115 = vmul.f32 %v3099, %v37
    %v3116 = vmul.f32 %v3100, %v37
    %v3117 = vmul.f32 %v3101, %v37
    %v3118 = vmul.f32 %v3102, %v37
    %v3119 = vmul.f32 %v3103, %v37
    %v3120 = vmul.f32 %v3104, %v37
    %v3121 = vmul.f32 %v3105, %v37
    %v3122 = vmul.f32 %v3106, %v37
    %v3123 = vmul.f32 %v3107, %v37
    %v3124 = vmul.f32 %v3108, %v3108
    %v3125 = vmul.f32 %v3109, %v3109
    %v3126 = vmul.f32 %v3110, %v3110
    %v3127 = vmul.f32 %v3111, %v3111
    %v3128 = vmul.f32 %v3112, %v3112
    %v3129 = vmul.f32 %v3113, %v3113
    %v3130 = vmul.f32 %v3114, %v3114
    %v3131 = vmul.f32 %v3115, %v3115
    %v3132 = vmul.f32 %v3116, %v3116
    %v3133 = vmul.f32 %v3117, %v3117
    %v3134 = vmul.f32 %v3118, %v3118
    %v3135 = vmul.f32 %v3119, %v3119
    %v3136 = vmul.f32 %v3120, %v3120
    %v3137 = vmul.f32 %v3121, %v3121
    %v3138 = vmul.f32 %v3122, %v3122
    %v3139 = vmul.f32 %v3123, %v3123
    %3140 = vadd.xlane.f32.xlu0 %v3124
    %v3141 = vpop.xlane.xlu0 %3140
    %3142 = vadd.xlane.f32.xlu0 %v3125
    %v3143 = vpop.xlane.xlu0 %3142
    %3144 = vadd.xlane.f32.xlu0 %v3126
    %v3145 = vpop.xlane.xlu0 %3144
    %3146 = vadd.xlane.f32.xlu0 %v3127
    %v3147 = vpop.xlane.xlu0 %3146
    %3148 = vadd.xlane.f32.xlu0 %v3128
    %v3149 = vpop.xlane.xlu0 %3148
    %3150 = vadd.xlane.f32.xlu0 %v3129
    %v3151 = vpop.xlane.xlu0 %3150
    %3152 = vadd.xlane.f32.xlu0 %v3130
    %v3153 = vpop.xlane.xlu0 %3152
    %3154 = vadd.xlane.f32.xlu0 %v3131
    %v3155 = vpop.xlane.xlu0 %3154
    %3156 = vadd.xlane.f32.xlu0 %v3132
    %v3157 = vpop.xlane.xlu0 %3156
    %3158 = vadd.xlane.f32.xlu0 %v3133
    %v3159 = vpop.xlane.xlu0 %3158
    %3160 = vadd.xlane.f32.xlu0 %v3134
    %v3161 = vpop.xlane.xlu0 %3160
    %3162 = vadd.xlane.f32.xlu0 %v3135
    %v3163 = vpop.xlane.xlu0 %3162
    %3164 = vadd.xlane.f32.xlu0 %v3136
    %v3165 = vpop.xlane.xlu0 %3164
    %3166 = vadd.xlane.f32.xlu0 %v3137
    %v3167 = vpop.xlane.xlu0 %3166
    %3168 = vadd.xlane.f32.xlu0 %v3138
    %v3169 = vpop.xlane.xlu0 %3168
    %3170 = vadd.xlane.f32.xlu0 %v3139
    %v3171 = vpop.xlane.xlu0 %3170
    %v3172 = vmul.f32 %v3141, 0.03125
    %v3173 = vmul.f32 %v3143, 0.03125
    %v3174 = vmul.f32 %v3145, 0.03125
    %v3175 = vmul.f32 %v3147, 0.03125
    %v3176 = vmul.f32 %v3149, 0.03125
    %v3177 = vmul.f32 %v3151, 0.03125
    %v3178 = vmul.f32 %v3153, 0.03125
    %v3179 = vmul.f32 %v3155, 0.03125
    %v3180 = vmul.f32 %v3157, 0.03125
    %v3181 = vmul.f32 %v3159, 0.03125
    %v3182 = vmul.f32 %v3161, 0.03125
    %v3183 = vmul.f32 %v3163, 0.03125
    %v3184 = vmul.f32 %v3165, 0.03125
    %v3185 = vmul.f32 %v3167, 0.03125
    %v3186 = vmul.f32 %v3169, 0.03125
    %v3187 = vmul.f32 %v3171, 0.03125
    %v3188 = vadd.f32 %v3172, 1e-05
    %v3189 = vadd.f32 %v3173, 1e-05
    %v3190 = vadd.f32 %v3174, 1e-05
    %v3191 = vadd.f32 %v3175, 1e-05
    %v3192 = vadd.f32 %v3176, 1e-05
    %v3193 = vadd.f32 %v3177, 1e-05
    %v3194 = vadd.f32 %v3178, 1e-05
    %v3195 = vadd.f32 %v3179, 1e-05
    %v3196 = vadd.f32 %v3180, 1e-05
    %v3197 = vadd.f32 %v3181, 1e-05
    %v3198 = vadd.f32 %v3182, 1e-05
    %v3199 = vadd.f32 %v3183, 1e-05
    %v3200 = vadd.f32 %v3184, 1e-05
    %v3201 = vadd.f32 %v3185, 1e-05
    %v3202 = vadd.f32 %v3186, 1e-05
    %v3203 = vadd.f32 %v3187, 1e-05
    %v3204 = vrsqrt.pop %v3188
    %v3205 = vmul.f32 %v3204, %v3188
    %v3206 = vmul.f32 %v3205, %v3204
    %v3207 = vmul.f32 0.5, %v3206
    %v3208 = vsub.f32 1.5, %v3207
    %v3209 = vmul.f32 %v3204, %v3208
    %vm3210 = vweird.f32 %v3188
    %vm3211 = vweird.f32 %v3204
    %vm3212 = vmor %vm3210, %vm3211
    %v3213 = vsel %vm3212, %v3204, %v3209
    %v3214 = vrsqrt.pop %v3189
    %v3215 = vmul.f32 %v3214, %v3189
    %v3216 = vmul.f32 %v3215, %v3214
    %v3217 = vmul.f32 0.5, %v3216
    %v3218 = vsub.f32 1.5, %v3217
    %v3219 = vmul.f32 %v3214, %v3218
    %vm3220 = vweird.f32 %v3189
    %vm3221 = vweird.f32 %v3214
    %vm3222 = vmor %vm3220, %vm3221
    %v3223 = vsel %vm3222, %v3214, %v3219
    %v3224 = vrsqrt.pop %v3190
    %v3225 = vmul.f32 %v3224, %v3190
    %v3226 = vmul.f32 %v3225, %v3224
    %v3227 = vmul.f32 0.5, %v3226
    %v3228 = vsub.f32 1.5, %v3227
    %v3229 = vmul.f32 %v3224, %v3228
    %vm3230 = vweird.f32 %v3190
    %vm3231 = vweird.f32 %v3224
    %vm3232 = vmor %vm3230, %vm3231
    %v3233 = vsel %vm3232, %v3224, %v3229
    %v3234 = vrsqrt.pop %v3191
    %v3235 = vmul.f32 %v3234, %v3191
    %v3236 = vmul.f32 %v3235, %v3234
    %v3237 = vmul.f32 0.5, %v3236
    %v3238 = vsub.f32 1.5, %v3237
    %v3239 = vmul.f32 %v3234, %v3238
    %vm3240 = vweird.f32 %v3191
    %vm3241 = vweird.f32 %v3234
    %vm3242 = vmor %vm3240, %vm3241
    %v3243 = vsel %vm3242, %v3234, %v3239
    %v3244 = vrsqrt.pop %v3192
    %v3245 = vmul.f32 %v3244, %v3192
    %v3246 = vmul.f32 %v3245, %v3244
    %v3247 = vmul.f32 0.5, %v3246
    %v3248 = vsub.f32 1.5, %v3247
    %v3249 = vmul.f32 %v3244, %v3248
    %vm3250 = vweird.f32 %v3192
    %vm3251 = vweird.f32 %v3244
    %vm3252 = vmor %vm3250, %vm3251
    %v3253 = vsel %vm3252, %v3244, %v3249
    %v3254 = vrsqrt.pop %v3193
    %v3255 = vmul.f32 %v3254, %v3193
    %v3256 = vmul.f32 %v3255, %v3254
    %v3257 = vmul.f32 0.5, %v3256
    %v3258 = vsub.f32 1.5, %v3257
    %v3259 = vmul.f32 %v3254, %v3258
    %vm3260 = vweird.f32 %v3193
    %vm3261 = vweird.f32 %v3254
    %vm3262 = vmor %vm3260, %vm3261
    %v3263 = vsel %vm3262, %v3254, %v3259
    %v3264 = vrsqrt.pop %v3194
    %v3265 = vmul.f32 %v3264, %v3194
    %v3266 = vmul.f32 %v3265, %v3264
    %v3267 = vmul.f32 0.5, %v3266
    %v3268 = vsub.f32 1.5, %v3267
    %v3269 = vmul.f32 %v3264, %v3268
    %vm3270 = vweird.f32 %v3194
    %vm3271 = vweird.f32 %v3264
    %vm3272 = vmor %vm3270, %vm3271
    %v3273 = vsel %vm3272, %v3264, %v3269
    %v3274 = vrsqrt.pop %v3195
    %v3275 = vmul.f32 %v3274, %v3195
    %v3276 = vmul.f32 %v3275, %v3274
    %v3277 = vmul.f32 0.5, %v3276
    %v3278 = vsub.f32 1.5, %v3277
    %v3279 = vmul.f32 %v3274, %v3278
    %vm3280 = vweird.f32 %v3195
    %vm3281 = vweird.f32 %v3274
    %vm3282 = vmor %vm3280, %vm3281
    %v3283 = vsel %vm3282, %v3274, %v3279
    %v3284 = vrsqrt.pop %v3196
    %v3285 = vmul.f32 %v3284, %v3196
    %v3286 = vmul.f32 %v3285, %v3284
    %v3287 = vmul.f32 0.5, %v3286
    %v3288 = vsub.f32 1.5, %v3287
    %v3289 = vmul.f32 %v3284, %v3288
    %vm3290 = vweird.f32 %v3196
    %vm3291 = vweird.f32 %v3284
    %vm3292 = vmor %vm3290, %vm3291
    %v3293 = vsel %vm3292, %v3284, %v3289
    %v3294 = vrsqrt.pop %v3197
    %v3295 = vmul.f32 %v3294, %v3197
    %v3296 = vmul.f32 %v3295, %v3294
    %v3297 = vmul.f32 0.5, %v3296
    %v3298 = vsub.f32 1.5, %v3297
    %v3299 = vmul.f32 %v3294, %v3298
    %vm3300 = vweird.f32 %v3197
    %vm3301 = vweird.f32 %v3294
    %vm3302 = vmor %vm3300, %vm3301
    %v3303 = vsel %vm3302, %v3294, %v3299
    %v3304 = vrsqrt.pop %v3198
    %v3305 = vmul.f32 %v3304, %v3198
    %v3306 = vmul.f32 %v3305, %v3304
    %v3307 = vmul.f32 0.5, %v3306
    %v3308 = vsub.f32 1.5, %v3307
    %v3309 = vmul.f32 %v3304, %v3308
    %vm3310 = vweird.f32 %v3198
    %vm3311 = vweird.f32 %v3304
    %vm3312 = vmor %vm3310, %vm3311
    %v3313 = vsel %vm3312, %v3304, %v3309
    %v3314 = vrsqrt.pop %v3199
    %v3315 = vmul.f32 %v3314, %v3199
    %v3316 = vmul.f32 %v3315, %v3314
    %v3317 = vmul.f32 0.5, %v3316
    %v3318 = vsub.f32 1.5, %v3317
    %v3319 = vmul.f32 %v3314, %v3318
    %vm3320 = vweird.f32 %v3199
    %vm3321 = vweird.f32 %v3314
    %vm3322 = vmor %vm3320, %vm3321
    %v3323 = vsel %vm3322, %v3314, %v3319
    %v3324 = vrsqrt.pop %v3200
    %v3325 = vmul.f32 %v3324, %v3200
    %v3326 = vmul.f32 %v3325, %v3324
    %v3327 = vmul.f32 0.5, %v3326
    %v3328 = vsub.f32 1.5, %v3327
    %v3329 = vmul.f32 %v3324, %v3328
    %vm3330 = vweird.f32 %v3200
    %vm3331 = vweird.f32 %v3324
    %vm3332 = vmor %vm3330, %vm3331
    %v3333 = vsel %vm3332, %v3324, %v3329
    %v3334 = vrsqrt.pop %v3201
    %v3335 = vmul.f32 %v3334, %v3201
    %v3336 = vmul.f32 %v3335, %v3334
    %v3337 = vmul.f32 0.5, %v3336
    %v3338 = vsub.f32 1.5, %v3337
    %v3339 = vmul.f32 %v3334, %v3338
    %vm3340 = vweird.f32 %v3201
    %vm3341 = vweird.f32 %v3334
    %vm3342 = vmor %vm3340, %vm3341
    %v3343 = vsel %vm3342, %v3334, %v3339
    %v3344 = vrsqrt.pop %v3202
    %v3345 = vmul.f32 %v3344, %v3202
    %v3346 = vmul.f32 %v3345, %v3344
    %v3347 = vmul.f32 0.5, %v3346
    %v3348 = vsub.f32 1.5, %v3347
    %v3349 = vmul.f32 %v3344, %v3348
    %vm3350 = vweird.f32 %v3202
    %vm3351 = vweird.f32 %v3344
    %vm3352 = vmor %vm3350, %vm3351
    %v3353 = vsel %vm3352, %v3344, %v3349
    %v3354 = vrsqrt.pop %v3203
    %v3355 = vmul.f32 %v3354, %v3203
    %v3356 = vmul.f32 %v3355, %v3354
    %v3357 = vmul.f32 0.5, %v3356
    %v3358 = vsub.f32 1.5, %v3357
    %v3359 = vmul.f32 %v3354, %v3358
    %vm3360 = vweird.f32 %v3203
    %vm3361 = vweird.f32 %v3354
    %vm3362 = vmor %vm3360, %vm3361
    %v3363 = vsel %vm3362, %v3354, %v3359
    %v3364 = vmul.f32 %v3108, %v3213
    %v3365 = vmul.f32 %v3109, %v3223
    %v3366 = vmul.f32 %v3110, %v3233
    %v3367 = vmul.f32 %v3111, %v3243
    %v3368 = vmul.f32 %v3112, %v3253
    %v3369 = vmul.f32 %v3113, %v3263
    %v3370 = vmul.f32 %v3114, %v3273
    %v3371 = vmul.f32 %v3115, %v3283
    %v3372 = vmul.f32 %v3116, %v3293
    %v3373 = vmul.f32 %v3117, %v3303
    %v3374 = vmul.f32 %v3118, %v3313
    %v3375 = vmul.f32 %v3119, %v3323
    %v3376 = vmul.f32 %v3120, %v3333
    %v3377 = vmul.f32 %v3121, %v3343
    %v3378 = vmul.f32 %v3122, %v3353
    %v3379 = vmul.f32 %v3123, %v3363
    %v3380 = vperm.slane %v3026, 0
    %v3381 = vmul.f32 %v3364, %v3380
    %v3382 = vmul.f32 %v3365, %v3380
    %v3383 = vmul.f32 %v3366, %v3380
    %v3384 = vmul.f32 %v3367, %v3380
    %v3385 = vmul.f32 %v3368, %v3380
    %v3386 = vmul.f32 %v3369, %v3380
    %v3387 = vmul.f32 %v3370, %v3380
    %v3388 = vmul.f32 %v3371, %v3380
    %v3389 = vmul.f32 %v3372, %v3380
    %v3390 = vmul.f32 %v3373, %v3380
    %v3391 = vmul.f32 %v3374, %v3380
    %v3392 = vmul.f32 %v3375, %v3380
    %v3393 = vmul.f32 %v3376, %v3380
    %v3394 = vmul.f32 %v3377, %v3380
    %v3395 = vmul.f32 %v3378, %v3380
    %v3396 = vmul.f32 %v3379, %v3380
    %v3397 = vperm.slane %v3027, 0
    %v3398 = vadd.f32 %v3381, %v3397
    %v3399 = vadd.f32 %v3382, %v3397
    %v3400 = vadd.f32 %v3383, %v3397
    %v3401 = vadd.f32 %v3384, %v3397
    %v3402 = vadd.f32 %v3385, %v3397
    %v3403 = vadd.f32 %v3386, %v3397
    %v3404 = vadd.f32 %v3387, %v3397
    %v3405 = vadd.f32 %v3388, %v3397
    %v3406 = vadd.f32 %v3389, %v3397
    %v3407 = vadd.f32 %v3390, %v3397
    %v3408 = vadd.f32 %v3391, %v3397
    %v3409 = vadd.f32 %v3392, %v3397
    %v3410 = vadd.f32 %v3393, %v3397
    %v3411 = vadd.f32 %v3394, %v3397
    %v3412 = vadd.f32 %v3395, %v3397
    %v3413 = vadd.f32 %v3396, %v3397
    %v3414 = vpack.c.bf16 %v3399, %v3398
    %v3415 = vpack.c.bf16 %v3401, %v3400
    %v3416 = vpack.c.bf16 %v3403, %v3402
    %v3417 = vpack.c.bf16 %v3405, %v3404
    %v3418 = vpack.c.bf16 %v3407, %v3406
    %v3419 = vpack.c.bf16 %v3409, %v3408
    %v3420 = vpack.c.bf16 %v3411, %v3410
    %v3421 = vpack.c.bf16 %v3413, %v3412
    %s3422 = scalar_lea.vmem [#allocation2], 384
    %v3423 = vld [vmem:[%s3422] sm:$0xf]
    %v3424 = vld [vmem:[%s3422 + $0x4] sm:$0xf]
    %v3425 = vld [vmem:[%s3422 + $0x8] sm:$0xf]
    %v3426 = vld [vmem:[%s3422 + $0xc] sm:$0xf]
    %v3427 = vld [vmem:[%s3422 + $0x10] sm:$0xf]
    %v3428 = vld [vmem:[%s3422 + $0x14] sm:$0xf]
    %v3429 = vld [vmem:[%s3422 + $0x18] sm:$0xf]
    %v3430 = vld [vmem:[%s3422 + $0x1c] sm:$0xf]
    %v3431 = vld [vmem:[%s3422 + $0x20] sm:$0xf]
    %v3432 = vld [vmem:[%s3422 + $0x24] sm:$0xf]
    %v3433 = vld [vmem:[%s3422 + $0x28] sm:$0xf]
    %v3434 = vld [vmem:[%s3422 + $0x2c] sm:$0xf]
    %v3435 = vld [vmem:[%s3422 + $0x30] sm:$0xf]
    %v3436 = vld [vmem:[%s3422 + $0x34] sm:$0xf]
    %v3437 = vld [vmem:[%s3422 + $0x38] sm:$0xf]
    %v3438 = vld [vmem:[%s3422 + $0x3c] sm:$0xf]
    %v3439 = vld [vmem:[%s3 + $0xc] sm:$0x1]
    %v3440 = vperm.slane %v3439, 0
    %v3457 = vunpack.c.l.b16 %v3423
    %v3458 = vunpack.c.l.b16 %v3424
    %v3459 = vunpack.c.l.b16 %v3425
    %v3460 = vunpack.c.l.b16 %v3426
    %v3461 = vunpack.c.l.b16 %v3427
    %v3462 = vunpack.c.l.b16 %v3428
    %v3463 = vunpack.c.l.b16 %v3429
    %v3464 = vunpack.c.l.b16 %v3430
    %v3465 = vunpack.c.l.b16 %v3431
    %v3466 = vunpack.c.l.b16 %v3432
    %v3467 = vunpack.c.l.b16 %v3433
    %v3468 = vunpack.c.l.b16 %v3434
    %v3469 = vunpack.c.l.b16 %v3435
    %v3470 = vunpack.c.l.b16 %v3436
    %v3471 = vunpack.c.l.b16 %v3437
    %v3472 = vunpack.c.l.b16 %v3438
    %v3473 = vpack.c.b16 %v3458, %v3457
    %v3474 = vpack.c.b16 %v3460, %v3459
    %v3475 = vpack.c.b16 %v3462, %v3461
    %v3476 = vpack.c.b16 %v3464, %v3463
    %v3477 = vpack.c.b16 %v3466, %v3465
    %v3478 = vpack.c.b16 %v3468, %v3467
    %v3479 = vpack.c.b16 %v3470, %v3469
    %v3480 = vpack.c.b16 %v3472, %v3471
    %3489 = vmatpush.bf16.msra.mxu0 %v3480
    %3490 = vmatpush.bf16.msra.mxu0 %v3479
    %3491 = vmatpush.bf16.msra.mxu0 %v3478
    %3492 = vmatpush.bf16.msra.mxu0 %v3477
    %3493 = vmatpush.bf16.msra.mxu0 %v3476
    %3494 = vmatpush.bf16.msra.mxu0 %v3475
    %3495 = vmatpush.bf16.msra.mxu0 %v3474
    %3496 = vmatpush.bf16.msra.mxu0 %v3473
    %3497 = vmatmul.bf16.gmra.mxu0 %v3414
    %v3498 = vpop.f32.mrf.mxu0
    %v3499 = vadd.f32 %v3440, %v3498
    %v3500 = vpop.f32.mrf.mxu0
    %v3501 = vadd.f32 %v3440, %v3500
    %3502 = vmatmul.bf16.gmra.mxu0 %v3415
    %v3503 = vpop.f32.mrf.mxu0
    %v3504 = vadd.f32 %v3440, %v3503
    %v3505 = vpop.f32.mrf.mxu0
    %v3506 = vadd.f32 %v3440, %v3505
    %3507 = vmatmul.bf16.gmra.mxu0 %v3416
    %v3508 = vpop.f32.mrf.mxu0
    %v3509 = vadd.f32 %v3440, %v3508
    %v3510 = vpop.f32.mrf.mxu0
    %v3511 = vadd.f32 %v3440, %v3510
    %3512 = vmatmul.bf16.gmra.mxu0 %v3417
    %v3513 = vpop.f32.mrf.mxu0
    %v3514 = vadd.f32 %v3440, %v3513
    %v3515 = vpop.f32.mrf.mxu0
    %v3516 = vadd.f32 %v3440, %v3515
    %3517 = vmatmul.bf16.gmra.mxu0 %v3418
    %v3518 = vpop.f32.mrf.mxu0
    %v3519 = vadd.f32 %v3440, %v3518
    %v3520 = vpop.f32.mrf.mxu0
    %v3521 = vadd.f32 %v3440, %v3520
    %3522 = vmatmul.bf16.gmra.mxu0 %v3419
    %v3523 = vpop.f32.mrf.mxu0
    %v3524 = vadd.f32 %v3440, %v3523
    %v3525 = vpop.f32.mrf.mxu0
    %v3526 = vadd.f32 %v3440, %v3525
    %3527 = vmatmul.bf16.gmra.mxu0 %v3420
    %v3528 = vpop.f32.mrf.mxu0
    %v3529 = vadd.f32 %v3440, %v3528
    %v3530 = vpop.f32.mrf.mxu0
    %v3531 = vadd.f32 %v3440, %v3530
    %3532 = vmatmul.bf16.gmra.mxu0 %v3421
    %v3533 = vpop.f32.mrf.mxu0
    %v3534 = vadd.f32 %v3440, %v3533
    %v3535 = vpop.f32.mrf.mxu0
    %v3536 = vadd.f32 %v3440, %v3535
    %3537 = vdwg.mxu0
    %s3538 = scalar_lea.vmem [#allocation2], 448
    %v3539 = vld [vmem:[%s3538] sm:$0xf]
    %v3540 = vld [vmem:[%s3538 + $0x4] sm:$0xf]
    %v3541 = vld [vmem:[%s3538 + $0x8] sm:$0xf]
    %v3542 = vld [vmem:[%s3538 + $0xc] sm:$0xf]
    %v3543 = vld [vmem:[%s3538 + $0x10] sm:$0xf]
    %v3544 = vld [vmem:[%s3538 + $0x14] sm:$0xf]
    %v3545 = vld [vmem:[%s3538 + $0x18] sm:$0xf]
    %v3546 = vld [vmem:[%s3538 + $0x1c] sm:$0xf]
    %v3547 = vld [vmem:[%s3538 + $0x20] sm:$0xf]
    %v3548 = vld [vmem:[%s3538 + $0x24] sm:$0xf]
    %v3549 = vld [vmem:[%s3538 + $0x28] sm:$0xf]
    %v3550 = vld [vmem:[%s3538 + $0x2c] sm:$0xf]
    %v3551 = vld [vmem:[%s3538 + $0x30] sm:$0xf]
    %v3552 = vld [vmem:[%s3538 + $0x34] sm:$0xf]
    %v3553 = vld [vmem:[%s3538 + $0x38] sm:$0xf]
    %v3554 = vld [vmem:[%s3538 + $0x3c] sm:$0xf]
    %v3555 = vld [vmem:[%s3 + $0xd] sm:$0x1]
    %v3556 = vperm.slane %v3555, 0
    %v3573 = vunpack.c.l.b16 %v3539
    %v3574 = vunpack.c.l.b16 %v3540
    %v3575 = vunpack.c.l.b16 %v3541
    %v3576 = vunpack.c.l.b16 %v3542
    %v3577 = vunpack.c.l.b16 %v3543
    %v3578 = vunpack.c.l.b16 %v3544
    %v3579 = vunpack.c.l.b16 %v3545
    %v3580 = vunpack.c.l.b16 %v3546
    %v3581 = vunpack.c.l.b16 %v3547
    %v3582 = vunpack.c.l.b16 %v3548
    %v3583 = vunpack.c.l.b16 %v3549
    %v3584 = vunpack.c.l.b16 %v3550
    %v3585 = vunpack.c.l.b16 %v3551
    %v3586 = vunpack.c.l.b16 %v3552
    %v3587 = vunpack.c.l.b16 %v3553
    %v3588 = vunpack.c.l.b16 %v3554
    %v3589 = vpack.c.b16 %v3574, %v3573
    %v3590 = vpack.c.b16 %v3576, %v3575
    %v3591 = vpack.c.b16 %v3578, %v3577
    %v3592 = vpack.c.b16 %v3580, %v3579
    %v3593 = vpack.c.b16 %v3582, %v3581
    %v3594 = vpack.c.b16 %v3584, %v3583
    %v3595 = vpack.c.b16 %v3586, %v3585
    %v3596 = vpack.c.b16 %v3588, %v3587
    %3605 = vmatpush.bf16.msra.mxu0 %v3596
    %3606 = vmatpush.bf16.msra.mxu0 %v3595
    %3607 = vmatpush.bf16.msra.mxu0 %v3594
    %3608 = vmatpush.bf16.msra.mxu0 %v3593
    %3609 = vmatpush.bf16.msra.mxu0 %v3592
    %3610 = vmatpush.bf16.msra.mxu0 %v3591
    %3611 = vmatpush.bf16.msra.mxu0 %v3590
    %3612 = vmatpush.bf16.msra.mxu0 %v3589
    %3613 = vmatmul.bf16.gmra.mxu0 %v3414
    %v3614 = vpop.f32.mrf.mxu0
    %v3615 = vadd.f32 %v3556, %v3614
    %v3616 = vpop.f32.mrf.mxu0
    %v3617 = vadd.f32 %v3556, %v3616
    %3618 = vmatmul.bf16.gmra.mxu0 %v3415
    %v3619 = vpop.f32.mrf.mxu0
    %v3620 = vadd.f32 %v3556, %v3619
    %v3621 = vpop.f32.mrf.mxu0
    %v3622 = vadd.f32 %v3556, %v3621
    %3623 = vmatmul.bf16.gmra.mxu0 %v3416
    %v3624 = vpop.f32.mrf.mxu0
    %v3625 = vadd.f32 %v3556, %v3624
    %v3626 = vpop.f32.mrf.mxu0
    %v3627 = vadd.f32 %v3556, %v3626
    %3628 = vmatmul.bf16.gmra.mxu0 %v3417
    %v3629 = vpop.f32.mrf.mxu0
    %v3630 = vadd.f32 %v3556, %v3629
    %v3631 = vpop.f32.mrf.mxu0
    %v3632 = vadd.f32 %v3556, %v3631
    %3633 = vmatmul.bf16.gmra.mxu0 %v3418
    %v3634 = vpop.f32.mrf.mxu0
    %v3635 = vadd.f32 %v3556, %v3634
    %v3636 = vpop.f32.mrf.mxu0
    %v3637 = vadd.f32 %v3556, %v3636
    %3638 = vmatmul.bf16.gmra.mxu0 %v3419
    %v3639 = vpop.f32.mrf.mxu0
    %v3640 = vadd.f32 %v3556, %v3639
    %v3641 = vpop.f32.mrf.mxu0
    %v3642 = vadd.f32 %v3556, %v3641
    %3643 = vmatmul.bf16.gmra.mxu0 %v3420
    %v3644 = vpop.f32.mrf.mxu0
    %v3645 = vadd.f32 %v3556, %v3644
    %v3646 = vpop.f32.mrf.mxu0
    %v3647 = vadd.f32 %v3556, %v3646
    %3648 = vmatmul.bf16.gmra.mxu0 %v3421
    %v3649 = vpop.f32.mrf.mxu0
    %v3650 = vadd.f32 %v3556, %v3649
    %v3651 = vpop.f32.mrf.mxu0
    %v3652 = vadd.f32 %v3556, %v3651
    %3653 = vdwg.mxu0
    %s3654 = scalar_lea.vmem [#allocation2], 512
    %v3655 = vld [vmem:[%s3654] sm:$0xf]
    %v3656 = vld [vmem:[%s3654 + $0x4] sm:$0xf]
    %v3657 = vld [vmem:[%s3654 + $0x8] sm:$0xf]
    %v3658 = vld [vmem:[%s3654 + $0xc] sm:$0xf]
    %v3659 = vld [vmem:[%s3654 + $0x10] sm:$0xf]
    %v3660 = vld [vmem:[%s3654 + $0x14] sm:$0xf]
    %v3661 = vld [vmem:[%s3654 + $0x18] sm:$0xf]
    %v3662 = vld [vmem:[%s3654 + $0x1c] sm:$0xf]
    %v3663 = vld [vmem:[%s3654 + $0x20] sm:$0xf]
    %v3664 = vld [vmem:[%s3654 + $0x24] sm:$0xf]
    %v3665 = vld [vmem:[%s3654 + $0x28] sm:$0xf]
    %v3666 = vld [vmem:[%s3654 + $0x2c] sm:$0xf]
    %v3667 = vld [vmem:[%s3654 + $0x30] sm:$0xf]
    %v3668 = vld [vmem:[%s3654 + $0x34] sm:$0xf]
    %v3669 = vld [vmem:[%s3654 + $0x38] sm:$0xf]
    %v3670 = vld [vmem:[%s3654 + $0x3c] sm:$0xf]
    %v3671 = vld [vmem:[%s3 + $0xe] sm:$0x1]
    %v3672 = vperm.slane %v3671, 0
    %v3689 = vunpack.c.l.b16 %v3655
    %v3690 = vunpack.c.l.b16 %v3656
    %v3691 = vunpack.c.l.b16 %v3657
    %v3692 = vunpack.c.l.b16 %v3658
    %v3693 = vunpack.c.l.b16 %v3659
    %v3694 = vunpack.c.l.b16 %v3660
    %v3695 = vunpack.c.l.b16 %v3661
    %v3696 = vunpack.c.l.b16 %v3662
    %v3697 = vunpack.c.l.b16 %v3663
    %v3698 = vunpack.c.l.b16 %v3664
    %v3699 = vunpack.c.l.b16 %v3665
    %v3700 = vunpack.c.l.b16 %v3666
    %v3701 = vunpack.c.l.b16 %v3667
    %v3702 = vunpack.c.l.b16 %v3668
    %v3703 = vunpack.c.l.b16 %v3669
    %v3704 = vunpack.c.l.b16 %v3670
    %v3705 = vpack.c.b16 %v3690, %v3689
    %v3706 = vpack.c.b16 %v3692, %v3691
    %v3707 = vpack.c.b16 %v3694, %v3693
    %v3708 = vpack.c.b16 %v3696, %v3695
    %v3709 = vpack.c.b16 %v3698, %v3697
    %v3710 = vpack.c.b16 %v3700, %v3699
    %v3711 = vpack.c.b16 %v3702, %v3701
    %v3712 = vpack.c.b16 %v3704, %v3703
    %3721 = vmatpush.bf16.msra.mxu0 %v3712
    %3722 = vmatpush.bf16.msra.mxu0 %v3711
    %3723 = vmatpush.bf16.msra.mxu0 %v3710
    %3724 = vmatpush.bf16.msra.mxu0 %v3709
    %3725 = vmatpush.bf16.msra.mxu0 %v3708
    %3726 = vmatpush.bf16.msra.mxu0 %v3707
    %3727 = vmatpush.bf16.msra.mxu0 %v3706
    %3728 = vmatpush.bf16.msra.mxu0 %v3705
    %3729 = vmatmul.bf16.gmra.mxu0 %v3414
    %v3730 = vpop.f32.mrf.mxu0
    %v3731 = vadd.f32 %v3672, %v3730
    %v3732 = vpop.f32.mrf.mxu0
    %v3733 = vadd.f32 %v3672, %v3732
    %3734 = vmatmul.bf16.gmra.mxu0 %v3415
    %v3735 = vpop.f32.mrf.mxu0
    %v3736 = vadd.f32 %v3672, %v3735
    %v3737 = vpop.f32.mrf.mxu0
    %v3738 = vadd.f32 %v3672, %v3737
    %3739 = vmatmul.bf16.gmra.mxu0 %v3416
    %v3740 = vpop.f32.mrf.mxu0
    %v3741 = vadd.f32 %v3672, %v3740
    %v3742 = vpop.f32.mrf.mxu0
    %v3743 = vadd.f32 %v3672, %v3742
    %3744 = vmatmul.bf16.gmra.mxu0 %v3417
    %v3745 = vpop.f32.mrf.mxu0
    %v3746 = vadd.f32 %v3672, %v3745
    %v3747 = vpop.f32.mrf.mxu0
    %v3748 = vadd.f32 %v3672, %v3747
    %3749 = vmatmul.bf16.gmra.mxu0 %v3418
    %v3750 = vpop.f32.mrf.mxu0
    %v3751 = vadd.f32 %v3672, %v3750
    %v3752 = vpop.f32.mrf.mxu0
    %v3753 = vadd.f32 %v3672, %v3752
    %3754 = vmatmul.bf16.gmra.mxu0 %v3419
    %v3755 = vpop.f32.mrf.mxu0
    %v3756 = vadd.f32 %v3672, %v3755
    %v3757 = vpop.f32.mrf.mxu0
    %v3758 = vadd.f32 %v3672, %v3757
    %3759 = vmatmul.bf16.gmra.mxu0 %v3420
    %v3760 = vpop.f32.mrf.mxu0
    %v3761 = vadd.f32 %v3672, %v3760
    %v3762 = vpop.f32.mrf.mxu0
    %v3763 = vadd.f32 %v3672, %v3762
    %3764 = vmatmul.bf16.gmra.mxu0 %v3421
    %v3765 = vpop.f32.mrf.mxu0
    %v3766 = vadd.f32 %v3672, %v3765
    %v3767 = vpop.f32.mrf.mxu0
    %v3768 = vadd.f32 %v3672, %v3767
    %3769 = vdwg.mxu0
    %v3770 = vmul.f32 %v3499, %v42
    %v3771 = vmul.f32 %v3501, %v42
    %v3772 = vmul.f32 %v3504, %v42
    %v3773 = vmul.f32 %v3506, %v42
    %v3774 = vmul.f32 %v3509, %v42
    %v3775 = vmul.f32 %v3511, %v42
    %v3776 = vmul.f32 %v3514, %v42
    %v3777 = vmul.f32 %v3516, %v42
    %v3778 = vmul.f32 %v3519, %v42
    %v3779 = vmul.f32 %v3521, %v42
    %v3780 = vmul.f32 %v3524, %v42
    %v3781 = vmul.f32 %v3526, %v42
    %v3782 = vmul.f32 %v3529, %v42
    %v3783 = vmul.f32 %v3531, %v42
    %v3784 = vmul.f32 %v3534, %v42
    %v3785 = vmul.f32 %v3536, %v42
    %v3786 = vpack.c.bf16 %v3771, %v3770
    %v3787 = vpack.c.bf16 %v3773, %v3772
    %v3788 = vpack.c.bf16 %v3775, %v3774
    %v3789 = vpack.c.bf16 %v3777, %v3776
    %v3790 = vpack.c.bf16 %v3779, %v3778
    %v3791 = vpack.c.bf16 %v3781, %v3780
    %v3792 = vpack.c.bf16 %v3783, %v3782
    %v3793 = vpack.c.bf16 %v3785, %v3784
    %v3794 = vmul.f32 %v3615, %v42
    %v3795 = vmul.f32 %v3617, %v42
    %v3796 = vmul.f32 %v3620, %v42
    %v3797 = vmul.f32 %v3622, %v42
    %v3798 = vmul.f32 %v3625, %v42
    %v3799 = vmul.f32 %v3627, %v42
    %v3800 = vmul.f32 %v3630, %v42
    %v3801 = vmul.f32 %v3632, %v42
    %v3802 = vmul.f32 %v3635, %v42
    %v3803 = vmul.f32 %v3637, %v42
    %v3804 = vmul.f32 %v3640, %v42
    %v3805 = vmul.f32 %v3642, %v42
    %v3806 = vmul.f32 %v3645, %v42
    %v3807 = vmul.f32 %v3647, %v42
    %v3808 = vmul.f32 %v3650, %v42
    %v3809 = vmul.f32 %v3652, %v42
    %v3810 = vpack.c.bf16 %v3795, %v3794
    %v3811 = vpack.c.bf16 %v3797, %v3796
    %v3812 = vpack.c.bf16 %v3799, %v3798
    %v3813 = vpack.c.bf16 %v3801, %v3800
    %v3814 = vpack.c.bf16 %v3803, %v3802
    %v3815 = vpack.c.bf16 %v3805, %v3804
    %v3816 = vpack.c.bf16 %v3807, %v3806
    %v3817 = vpack.c.bf16 %v3809, %v3808
    %3818 = vmatpush.bf16.xpose.msra.mxu0 %v3817
    %3819 = vmatpush.bf16.xpose.msra.mxu0 %v3816
    %3820 = vmatpush.bf16.xpose.msra.mxu0 %v3815
    %3821 = vmatpush.bf16.xpose.msra.mxu0 %v3814
    %3822 = vmatpush.bf16.xpose.msra.mxu0 %v3813
    %3823 = vmatpush.bf16.xpose.msra.mxu0 %v3812
    %3824 = vmatpush.bf16.xpose.msra.mxu0 %v3811
    %3825 = vmatpush.bf16.xpose.msra.mxu0 %v3810
    %3826 = vmatmul.bf16.gmra.mxu0 %v3786
    %v3827 = vpop.f32.mrf.mxu0
    %v3828 = vadd.f32 0.0, %v3827
    %v3829 = vpop.f32.mrf.mxu0
    %v3830 = vadd.f32 0.0, %v3829
    %3831 = vmatmul.bf16.gmra.mxu0 %v3787
    %v3832 = vpop.f32.mrf.mxu0
    %v3833 = vadd.f32 0.0, %v3832
    %v3834 = vpop.f32.mrf.mxu0
    %v3835 = vadd.f32 0.0, %v3834
    %3836 = vmatmul.bf16.gmra.mxu0 %v3788
    %v3837 = vpop.f32.mrf.mxu0
    %v3838 = vadd.f32 0.0, %v3837
    %v3839 = vpop.f32.mrf.mxu0
    %v3840 = vadd.f32 0.0, %v3839
    %3841 = vmatmul.bf16.gmra.mxu0 %v3789
    %v3842 = vpop.f32.mrf.mxu0
    %v3843 = vadd.f32 0.0, %v3842
    %v3844 = vpop.f32.mrf.mxu0
    %v3845 = vadd.f32 0.0, %v3844
    %3846 = vmatmul.bf16.gmra.mxu0 %v3790
    %v3847 = vpop.f32.mrf.mxu0
    %v3848 = vadd.f32 0.0, %v3847
    %v3849 = vpop.f32.mrf.mxu0
    %v3850 = vadd.f32 0.0, %v3849
    %3851 = vmatmul.bf16.gmra.mxu0 %v3791
    %v3852 = vpop.f32.mrf.mxu0
    %v3853 = vadd.f32 0.0, %v3852
    %v3854 = vpop.f32.mrf.mxu0
    %v3855 = vadd.f32 0.0, %v3854
    %3856 = vmatmul.bf16.gmra.mxu0 %v3792
    %v3857 = vpop.f32.mrf.mxu0
    %v3858 = vadd.f32 0.0, %v3857
    %v3859 = vpop.f32.mrf.mxu0
    %v3860 = vadd.f32 0.0, %v3859
    %3861 = vmatmul.bf16.gmra.mxu0 %v3793
    %v3862 = vpop.f32.mrf.mxu0
    %v3863 = vadd.f32 0.0, %v3862
    %v3864 = vpop.f32.mrf.mxu0
    %v3865 = vadd.f32 0.0, %v3864
    %3866 = vdwg.mxu0
    %v3867 = vmul.f32 %v3828, 0.25
    %v3868 = vmul.f32 %v3830, 0.25
    %v3869 = vmul.f32 %v3833, 0.25
    %v3870 = vmul.f32 %v3835, 0.25
    %v3871 = vmul.f32 %v3838, 0.25
    %v3872 = vmul.f32 %v3840, 0.25
    %v3873 = vmul.f32 %v3843, 0.25
    %v3874 = vmul.f32 %v3845, 0.25
    %v3875 = vmul.f32 %v3848, 0.25
    %v3876 = vmul.f32 %v3850, 0.25
    %v3877 = vmul.f32 %v3853, 0.25
    %v3878 = vmul.f32 %v3855, 0.25
    %v3879 = vmul.f32 %v3858, 0.25
    %v3880 = vmul.f32 %v3860, 0.25
    %v3881 = vmul.f32 %v3863, 0.25
    %v3882 = vmul.f32 %v3865, 0.25
    %v3883 = vadd.f32 %v3867, %v47
    %v3884 = vadd.f32 %v3868, %v48
    %v3885 = vadd.f32 %v3869, %v49
    %v3886 = vadd.f32 %v3870, %v50
    %v3887 = vadd.f32 %v3871, %v51
    %v3888 = vadd.f32 %v3872, %v52
    %v3889 = vadd.f32 %v3873, %v53
    %v3890 = vadd.f32 %v3874, %v54
    %v3891 = vadd.f32 %v3875, %v55
    %v3892 = vadd.f32 %v3876, %v56
    %v3893 = vadd.f32 %v3877, %v57
    %v3894 = vadd.f32 %v3878, %v58
    %v3895 = vadd.f32 %v3879, %v59
    %v3896 = vadd.f32 %v3880, %v60
    %v3897 = vadd.f32 %v3881, %v61
    %v3898 = vadd.f32 %v3882, %v62
    %3899 = vmax.xlane.f32.xlu0 %v3883
    %v3900 = vpop.xlane.xlu0 %3899
    %3901 = vmax.xlane.f32.xlu0 %v3884
    %v3902 = vpop.xlane.xlu0 %3901
    %3903 = vmax.xlane.f32.xlu0 %v3885
    %v3904 = vpop.xlane.xlu0 %3903
    %3905 = vmax.xlane.f32.xlu0 %v3886
    %v3906 = vpop.xlane.xlu0 %3905
    %3907 = vmax.xlane.f32.xlu0 %v3887
    %v3908 = vpop.xlane.xlu0 %3907
    %3909 = vmax.xlane.f32.xlu0 %v3888
    %v3910 = vpop.xlane.xlu0 %3909
    %3911 = vmax.xlane.f32.xlu0 %v3889
    %v3912 = vpop.xlane.xlu0 %3911
    %3913 = vmax.xlane.f32.xlu0 %v3890
    %v3914 = vpop.xlane.xlu0 %3913
    %3915 = vmax.xlane.f32.xlu0 %v3891
    %v3916 = vpop.xlane.xlu0 %3915
    %3917 = vmax.xlane.f32.xlu0 %v3892
    %v3918 = vpop.xlane.xlu0 %3917
    %3919 = vmax.xlane.f32.xlu0 %v3893
    %v3920 = vpop.xlane.xlu0 %3919
    %3921 = vmax.xlane.f32.xlu0 %v3894
    %v3922 = vpop.xlane.xlu0 %3921
    %3923 = vmax.xlane.f32.xlu0 %v3895
    %v3924 = vpop.xlane.xlu0 %3923
    %3925 = vmax.xlane.f32.xlu0 %v3896
    %v3926 = vpop.xlane.xlu0 %3925
    %3927 = vmax.xlane.f32.xlu0 %v3897
    %v3928 = vpop.xlane.xlu0 %3927
    %3929 = vmax.xlane.f32.xlu0 %v3898
    %v3930 = vpop.xlane.xlu0 %3929
    %v3931 = vsub.f32 %v3883, %v3900
    %v3932 = vsub.f32 %v3884, %v3902
    %v3933 = vsub.f32 %v3885, %v3904
    %v3934 = vsub.f32 %v3886, %v3906
    %v3935 = vsub.f32 %v3887, %v3908
    %v3936 = vsub.f32 %v3888, %v3910
    %v3937 = vsub.f32 %v3889, %v3912
    %v3938 = vsub.f32 %v3890, %v3914
    %v3939 = vsub.f32 %v3891, %v3916
    %v3940 = vsub.f32 %v3892, %v3918
    %v3941 = vsub.f32 %v3893, %v3920
    %v3942 = vsub.f32 %v3894, %v3922
    %v3943 = vsub.f32 %v3895, %v3924
    %v3944 = vsub.f32 %v3896, %v3926
    %v3945 = vsub.f32 %v3897, %v3928
    %v3946 = vsub.f32 %v3898, %v3930
    %v3947 = vmul.f32 %v3931, 1.442695
    %v3948 = vpow.pop %v3947
    %v3949 = vmul.f32 %v3932, 1.442695
    %v3950 = vpow.pop %v3949
    %v3951 = vmul.f32 %v3933, 1.442695
    %v3952 = vpow.pop %v3951
    %v3953 = vmul.f32 %v3934, 1.442695
    %v3954 = vpow.pop %v3953
    %v3955 = vmul.f32 %v3935, 1.442695
    %v3956 = vpow.pop %v3955
    %v3957 = vmul.f32 %v3936, 1.442695
    %v3958 = vpow.pop %v3957
    %v3959 = vmul.f32 %v3937, 1.442695
    %v3960 = vpow.pop %v3959
    %v3961 = vmul.f32 %v3938, 1.442695
    %v3962 = vpow.pop %v3961
    %v3963 = vmul.f32 %v3939, 1.442695
    %v3964 = vpow.pop %v3963
    %v3965 = vmul.f32 %v3940, 1.442695
    %v3966 = vpow.pop %v3965
    %v3967 = vmul.f32 %v3941, 1.442695
    %v3968 = vpow.pop %v3967
    %v3969 = vmul.f32 %v3942, 1.442695
    %v3970 = vpow.pop %v3969
    %v3971 = vmul.f32 %v3943, 1.442695
    %v3972 = vpow.pop %v3971
    %v3973 = vmul.f32 %v3944, 1.442695
    %v3974 = vpow.pop %v3973
    %v3975 = vmul.f32 %v3945, 1.442695
    %v3976 = vpow.pop %v3975
    %v3977 = vmul.f32 %v3946, 1.442695
    %v3978 = vpow.pop %v3977
    %3979 = vadd.xlane.f32.xlu0 %v3948
    %v3980 = vpop.xlane.xlu0 %3979
    %3981 = vadd.xlane.f32.xlu0 %v3950
    %v3982 = vpop.xlane.xlu0 %3981
    %3983 = vadd.xlane.f32.xlu0 %v3952
    %v3984 = vpop.xlane.xlu0 %3983
    %3985 = vadd.xlane.f32.xlu0 %v3954
    %v3986 = vpop.xlane.xlu0 %3985
    %3987 = vadd.xlane.f32.xlu0 %v3956
    %v3988 = vpop.xlane.xlu0 %3987
    %3989 = vadd.xlane.f32.xlu0 %v3958
    %v3990 = vpop.xlane.xlu0 %3989
    %3991 = vadd.xlane.f32.xlu0 %v3960
    %v3992 = vpop.xlane.xlu0 %3991
    %3993 = vadd.xlane.f32.xlu0 %v3962
    %v3994 = vpop.xlane.xlu0 %3993
    %3995 = vadd.xlane.f32.xlu0 %v3964
    %v3996 = vpop.xlane.xlu0 %3995
    %3997 = vadd.xlane.f32.xlu0 %v3966
    %v3998 = vpop.xlane.xlu0 %3997
    %3999 = vadd.xlane.f32.xlu0 %v3968
    %v4000 = vpop.xlane.xlu0 %3999
    %4001 = vadd.xlane.f32.xlu0 %v3970
    %v4002 = vpop.xlane.xlu0 %4001
    %4003 = vadd.xlane.f32.xlu0 %v3972
    %v4004 = vpop.xlane.xlu0 %4003
    %4005 = vadd.xlane.f32.xlu0 %v3974
    %v4006 = vpop.xlane.xlu0 %4005
    %4007 = vadd.xlane.f32.xlu0 %v3976
    %v4008 = vpop.xlane.xlu0 %4007
    %4009 = vadd.xlane.f32.xlu0 %v3978
    %v4010 = vpop.xlane.xlu0 %4009
    %v4011 = vrcp.pop %v3980
    %v4012 = vrcp.pop %v3982
    %v4013 = vrcp.pop %v3984
    %v4014 = vrcp.pop %v3986
    %v4015 = vrcp.pop %v3988
    %v4016 = vrcp.pop %v3990
    %v4017 = vrcp.pop %v3992
    %v4018 = vrcp.pop %v3994
    %v4019 = vrcp.pop %v3996
    %v4020 = vrcp.pop %v3998
    %v4021 = vrcp.pop %v4000
    %v4022 = vrcp.pop %v4002
    %v4023 = vrcp.pop %v4004
    %v4024 = vrcp.pop %v4006
    %v4025 = vrcp.pop %v4008
    %v4026 = vrcp.pop %v4010
    %v4027 = vmul.f32 %v3948, %v4011
    %v4028 = vmul.f32 %v3950, %v4012
    %v4029 = vmul.f32 %v3952, %v4013
    %v4030 = vmul.f32 %v3954, %v4014
    %v4031 = vmul.f32 %v3956, %v4015
    %v4032 = vmul.f32 %v3958, %v4016
    %v4033 = vmul.f32 %v3960, %v4017
    %v4034 = vmul.f32 %v3962, %v4018
    %v4035 = vmul.f32 %v3964, %v4019
    %v4036 = vmul.f32 %v3966, %v4020
    %v4037 = vmul.f32 %v3968, %v4021
    %v4038 = vmul.f32 %v3970, %v4022
    %v4039 = vmul.f32 %v3972, %v4023
    %v4040 = vmul.f32 %v3974, %v4024
    %v4041 = vmul.f32 %v3976, %v4025
    %v4042 = vmul.f32 %v3978, %v4026
    %v4043 = vpack.c.bf16 %v4028, %v4027
    %v4044 = vpack.c.bf16 %v4030, %v4029
    %v4045 = vpack.c.bf16 %v4032, %v4031
    %v4046 = vpack.c.bf16 %v4034, %v4033
    %v4047 = vpack.c.bf16 %v4036, %v4035
    %v4048 = vpack.c.bf16 %v4038, %v4037
    %v4049 = vpack.c.bf16 %v4040, %v4039
    %v4050 = vpack.c.bf16 %v4042, %v4041
    %v4051 = vmul.f32 %v3731, %v42
    %v4052 = vmul.f32 %v3733, %v42
    %v4053 = vmul.f32 %v3736, %v42
    %v4054 = vmul.f32 %v3738, %v42
    %v4055 = vmul.f32 %v3741, %v42
    %v4056 = vmul.f32 %v3743, %v42
    %v4057 = vmul.f32 %v3746, %v42
    %v4058 = vmul.f32 %v3748, %v42
    %v4059 = vmul.f32 %v3751, %v42
    %v4060 = vmul.f32 %v3753, %v42
    %v4061 = vmul.f32 %v3756, %v42
    %v4062 = vmul.f32 %v3758, %v42
    %v4063 = vmul.f32 %v3761, %v42
    %v4064 = vmul.f32 %v3763, %v42
    %v4065 = vmul.f32 %v3766, %v42
    %v4066 = vmul.f32 %v3768, %v42
    %v4067 = vpack.c.bf16 %v4052, %v4051
    %v4068 = vpack.c.bf16 %v4054, %v4053
    %v4069 = vpack.c.bf16 %v4056, %v4055
    %v4070 = vpack.c.bf16 %v4058, %v4057
    %v4071 = vpack.c.bf16 %v4060, %v4059
    %v4072 = vpack.c.bf16 %v4062, %v4061
    %v4073 = vpack.c.bf16 %v4064, %v4063
    %v4074 = vpack.c.bf16 %v4066, %v4065
    %v4075 = vmul.f32 %v3499, %v46
    %v4076 = vmul.f32 %v3501, %v46
    %v4077 = vmul.f32 %v3504, %v46
    %v4078 = vmul.f32 %v3506, %v46
    %v4079 = vmul.f32 %v3509, %v46
    %v4080 = vmul.f32 %v3511, %v46
    %v4081 = vmul.f32 %v3514, %v46
    %v4082 = vmul.f32 %v3516, %v46
    %v4083 = vmul.f32 %v3519, %v46
    %v4084 = vmul.f32 %v3521, %v46
    %v4085 = vmul.f32 %v3524, %v46
    %v4086 = vmul.f32 %v3526, %v46
    %v4087 = vmul.f32 %v3529, %v46
    %v4088 = vmul.f32 %v3531, %v46
    %v4089 = vmul.f32 %v3534, %v46
    %v4090 = vmul.f32 %v3536, %v46
    %v4091 = vpack.c.bf16 %v4076, %v4075
    %v4092 = vpack.c.bf16 %v4078, %v4077
    %v4093 = vpack.c.bf16 %v4080, %v4079
    %v4094 = vpack.c.bf16 %v4082, %v4081
    %v4095 = vpack.c.bf16 %v4084, %v4083
    %v4096 = vpack.c.bf16 %v4086, %v4085
    %v4097 = vpack.c.bf16 %v4088, %v4087
    %v4098 = vpack.c.bf16 %v4090, %v4089
    %v4099 = vmul.f32 %v3615, %v46
    %v4100 = vmul.f32 %v3617, %v46
    %v4101 = vmul.f32 %v3620, %v46
    %v4102 = vmul.f32 %v3622, %v46
    %v4103 = vmul.f32 %v3625, %v46
    %v4104 = vmul.f32 %v3627, %v46
    %v4105 = vmul.f32 %v3630, %v46
    %v4106 = vmul.f32 %v3632, %v46
    %v4107 = vmul.f32 %v3635, %v46
    %v4108 = vmul.f32 %v3637, %v46
    %v4109 = vmul.f32 %v3640, %v46
    %v4110 = vmul.f32 %v3642, %v46
    %v4111 = vmul.f32 %v3645, %v46
    %v4112 = vmul.f32 %v3647, %v46
    %v4113 = vmul.f32 %v3650, %v46
    %v4114 = vmul.f32 %v3652, %v46
    %v4115 = vpack.c.bf16 %v4100, %v4099
    %v4116 = vpack.c.bf16 %v4102, %v4101
    %v4117 = vpack.c.bf16 %v4104, %v4103
    %v4118 = vpack.c.bf16 %v4106, %v4105
    %v4119 = vpack.c.bf16 %v4108, %v4107
    %v4120 = vpack.c.bf16 %v4110, %v4109
    %v4121 = vpack.c.bf16 %v4112, %v4111
    %v4122 = vpack.c.bf16 %v4114, %v4113
    %4123 = vmatpush.bf16.xpose.msra.mxu0 %v4122
    %4124 = vmatpush.bf16.xpose.msra.mxu0 %v4121
    %4125 = vmatpush.bf16.xpose.msra.mxu0 %v4120
    %4126 = vmatpush.bf16.xpose.msra.mxu0 %v4119
    %4127 = vmatpush.bf16.xpose.msra.mxu0 %v4118
    %4128 = vmatpush.bf16.xpose.msra.mxu0 %v4117
    %4129 = vmatpush.bf16.xpose.msra.mxu0 %v4116
    %4130 = vmatpush.bf16.xpose.msra.mxu0 %v4115
    %4131 = vmatmul.bf16.gmra.mxu0 %v4091
    %v4132 = vpop.f32.mrf.mxu0
    %v4133 = vadd.f32 0.0, %v4132
    %v4134 = vpop.f32.mrf.mxu0
    %v4135 = vadd.f32 0.0, %v4134
    %4136 = vmatmul.bf16.gmra.mxu0 %v4092
    %v4137 = vpop.f32.mrf.mxu0
    %v4138 = vadd.f32 0.0, %v4137
    %v4139 = vpop.f32.mrf.mxu0
    %v4140 = vadd.f32 0.0, %v4139
    %4141 = vmatmul.bf16.gmra.mxu0 %v4093
    %v4142 = vpop.f32.mrf.mxu0
    %v4143 = vadd.f32 0.0, %v4142
    %v4144 = vpop.f32.mrf.mxu0
    %v4145 = vadd.f32 0.0, %v4144
    %4146 = vmatmul.bf16.gmra.mxu0 %v4094
    %v4147 = vpop.f32.mrf.mxu0
    %v4148 = vadd.f32 0.0, %v4147
    %v4149 = vpop.f32.mrf.mxu0
    %v4150 = vadd.f32 0.0, %v4149
    %4151 = vmatmul.bf16.gmra.mxu0 %v4095
    %v4152 = vpop.f32.mrf.mxu0
    %v4153 = vadd.f32 0.0, %v4152
    %v4154 = vpop.f32.mrf.mxu0
    %v4155 = vadd.f32 0.0, %v4154
    %4156 = vmatmul.bf16.gmra.mxu0 %v4096
    %v4157 = vpop.f32.mrf.mxu0
    %v4158 = vadd.f32 0.0, %v4157
    %v4159 = vpop.f32.mrf.mxu0
    %v4160 = vadd.f32 0.0, %v4159
    %4161 = vmatmul.bf16.gmra.mxu0 %v4097
    %v4162 = vpop.f32.mrf.mxu0
    %v4163 = vadd.f32 0.0, %v4162
    %v4164 = vpop.f32.mrf.mxu0
    %v4165 = vadd.f32 0.0, %v4164
    %4166 = vmatmul.bf16.gmra.mxu0 %v4098
    %v4167 = vpop.f32.mrf.mxu0
    %v4168 = vadd.f32 0.0, %v4167
    %v4169 = vpop.f32.mrf.mxu0
    %v4170 = vadd.f32 0.0, %v4169
    %4171 = vdwg.mxu0
    %v4172 = vmul.f32 %v4133, 0.25
    %v4173 = vmul.f32 %v4135, 0.25
    %v4174 = vmul.f32 %v4138, 0.25
    %v4175 = vmul.f32 %v4140, 0.25
    %v4176 = vmul.f32 %v4143, 0.25
    %v4177 = vmul.f32 %v4145, 0.25
    %v4178 = vmul.f32 %v4148, 0.25
    %v4179 = vmul.f32 %v4150, 0.25
    %v4180 = vmul.f32 %v4153, 0.25
    %v4181 = vmul.f32 %v4155, 0.25
    %v4182 = vmul.f32 %v4158, 0.25
    %v4183 = vmul.f32 %v4160, 0.25
    %v4184 = vmul.f32 %v4163, 0.25
    %v4185 = vmul.f32 %v4165, 0.25
    %v4186 = vmul.f32 %v4168, 0.25
    %v4187 = vmul.f32 %v4170, 0.25
    %v4188 = vadd.f32 %v4172, %v47
    %v4189 = vadd.f32 %v4173, %v48
    %v4190 = vadd.f32 %v4174, %v49
    %v4191 = vadd.f32 %v4175, %v50
    %v4192 = vadd.f32 %v4176, %v51
    %v4193 = vadd.f32 %v4177, %v52
    %v4194 = vadd.f32 %v4178, %v53
    %v4195 = vadd.f32 %v4179, %v54
    %v4196 = vadd.f32 %v4180, %v55
    %v4197 = vadd.f32 %v4181, %v56
    %v4198 = vadd.f32 %v4182, %v57
    %v4199 = vadd.f32 %v4183, %v58
    %v4200 = vadd.f32 %v4184, %v59
    %v4201 = vadd.f32 %v4185, %v60
    %v4202 = vadd.f32 %v4186, %v61
    %v4203 = vadd.f32 %v4187, %v62
    %4204 = vmax.xlane.f32.xlu0 %v4188
    %v4205 = vpop.xlane.xlu0 %4204
    %4206 = vmax.xlane.f32.xlu0 %v4189
    %v4207 = vpop.xlane.xlu0 %4206
    %4208 = vmax.xlane.f32.xlu0 %v4190
    %v4209 = vpop.xlane.xlu0 %4208
    %4210 = vmax.xlane.f32.xlu0 %v4191
    %v4211 = vpop.xlane.xlu0 %4210
    %4212 = vmax.xlane.f32.xlu0 %v4192
    %v4213 = vpop.xlane.xlu0 %4212
    %4214 = vmax.xlane.f32.xlu0 %v4193
    %v4215 = vpop.xlane.xlu0 %4214
    %4216 = vmax.xlane.f32.xlu0 %v4194
    %v4217 = vpop.xlane.xlu0 %4216
    %4218 = vmax.xlane.f32.xlu0 %v4195
    %v4219 = vpop.xlane.xlu0 %4218
    %4220 = vmax.xlane.f32.xlu0 %v4196
    %v4221 = vpop.xlane.xlu0 %4220
    %4222 = vmax.xlane.f32.xlu0 %v4197
    %v4223 = vpop.xlane.xlu0 %4222
    %4224 = vmax.xlane.f32.xlu0 %v4198
    %v4225 = vpop.xlane.xlu0 %4224
    %4226 = vmax.xlane.f32.xlu0 %v4199
    %v4227 = vpop.xlane.xlu0 %4226
    %4228 = vmax.xlane.f32.xlu0 %v4200
    %v4229 = vpop.xlane.xlu0 %4228
    %4230 = vmax.xlane.f32.xlu0 %v4201
    %v4231 = vpop.xlane.xlu0 %4230
    %4232 = vmax.xlane.f32.xlu0 %v4202
    %v4233 = vpop.xlane.xlu0 %4232
    %4234 = vmax.xlane.f32.xlu0 %v4203
    %v4235 = vpop.xlane.xlu0 %4234
    %v4236 = vsub.f32 %v4188, %v4205
    %v4237 = vsub.f32 %v4189, %v4207
    %v4238 = vsub.f32 %v4190, %v4209
    %v4239 = vsub.f32 %v4191, %v4211
    %v4240 = vsub.f32 %v4192, %v4213
    %v4241 = vsub.f32 %v4193, %v4215
    %v4242 = vsub.f32 %v4194, %v4217
    %v4243 = vsub.f32 %v4195, %v4219
    %v4244 = vsub.f32 %v4196, %v4221
    %v4245 = vsub.f32 %v4197, %v4223
    %v4246 = vsub.f32 %v4198, %v4225
    %v4247 = vsub.f32 %v4199, %v4227
    %v4248 = vsub.f32 %v4200, %v4229
    %v4249 = vsub.f32 %v4201, %v4231
    %v4250 = vsub.f32 %v4202, %v4233
    %v4251 = vsub.f32 %v4203, %v4235
    %v4252 = vmul.f32 %v4236, 1.442695
    %v4253 = vpow.pop %v4252
    %v4254 = vmul.f32 %v4237, 1.442695
    %v4255 = vpow.pop %v4254
    %v4256 = vmul.f32 %v4238, 1.442695
    %v4257 = vpow.pop %v4256
    %v4258 = vmul.f32 %v4239, 1.442695
    %v4259 = vpow.pop %v4258
    %v4260 = vmul.f32 %v4240, 1.442695
    %v4261 = vpow.pop %v4260
    %v4262 = vmul.f32 %v4241, 1.442695
    %v4263 = vpow.pop %v4262
    %v4264 = vmul.f32 %v4242, 1.442695
    %v4265 = vpow.pop %v4264
    %v4266 = vmul.f32 %v4243, 1.442695
    %v4267 = vpow.pop %v4266
    %v4268 = vmul.f32 %v4244, 1.442695
    %v4269 = vpow.pop %v4268
    %v4270 = vmul.f32 %v4245, 1.442695
    %v4271 = vpow.pop %v4270
    %v4272 = vmul.f32 %v4246, 1.442695
    %v4273 = vpow.pop %v4272
    %v4274 = vmul.f32 %v4247, 1.442695
    %v4275 = vpow.pop %v4274
    %v4276 = vmul.f32 %v4248, 1.442695
    %v4277 = vpow.pop %v4276
    %v4278 = vmul.f32 %v4249, 1.442695
    %v4279 = vpow.pop %v4278
    %v4280 = vmul.f32 %v4250, 1.442695
    %v4281 = vpow.pop %v4280
    %v4282 = vmul.f32 %v4251, 1.442695
    %v4283 = vpow.pop %v4282
    %4284 = vadd.xlane.f32.xlu0 %v4253
    %v4285 = vpop.xlane.xlu0 %4284
    %4286 = vadd.xlane.f32.xlu0 %v4255
    %v4287 = vpop.xlane.xlu0 %4286
    %4288 = vadd.xlane.f32.xlu0 %v4257
    %v4289 = vpop.xlane.xlu0 %4288
    %4290 = vadd.xlane.f32.xlu0 %v4259
    %v4291 = vpop.xlane.xlu0 %4290
    %4292 = vadd.xlane.f32.xlu0 %v4261
    %v4293 = vpop.xlane.xlu0 %4292
    %4294 = vadd.xlane.f32.xlu0 %v4263
    %v4295 = vpop.xlane.xlu0 %4294
    %4296 = vadd.xlane.f32.xlu0 %v4265
    %v4297 = vpop.xlane.xlu0 %4296
    %4298 = vadd.xlane.f32.xlu0 %v4267
    %v4299 = vpop.xlane.xlu0 %4298
    %4300 = vadd.xlane.f32.xlu0 %v4269
    %v4301 = vpop.xlane.xlu0 %4300
    %4302 = vadd.xlane.f32.xlu0 %v4271
    %v4303 = vpop.xlane.xlu0 %4302
    %4304 = vadd.xlane.f32.xlu0 %v4273
    %v4305 = vpop.xlane.xlu0 %4304
    %4306 = vadd.xlane.f32.xlu0 %v4275
    %v4307 = vpop.xlane.xlu0 %4306
    %4308 = vadd.xlane.f32.xlu0 %v4277
    %v4309 = vpop.xlane.xlu0 %4308
    %4310 = vadd.xlane.f32.xlu0 %v4279
    %v4311 = vpop.xlane.xlu0 %4310
    %4312 = vadd.xlane.f32.xlu0 %v4281
    %v4313 = vpop.xlane.xlu0 %4312
    %4314 = vadd.xlane.f32.xlu0 %v4283
    %v4315 = vpop.xlane.xlu0 %4314
    %v4316 = vrcp.pop %v4285
    %v4317 = vrcp.pop %v4287
    %v4318 = vrcp.pop %v4289
    %v4319 = vrcp.pop %v4291
    %v4320 = vrcp.pop %v4293
    %v4321 = vrcp.pop %v4295
    %v4322 = vrcp.pop %v4297
    %v4323 = vrcp.pop %v4299
    %v4324 = vrcp.pop %v4301
    %v4325 = vrcp.pop %v4303
    %v4326 = vrcp.pop %v4305
    %v4327 = vrcp.pop %v4307
    %v4328 = vrcp.pop %v4309
    %v4329 = vrcp.pop %v4311
    %v4330 = vrcp.pop %v4313
    %v4331 = vrcp.pop %v4315
    %v4332 = vmul.f32 %v4253, %v4316
    %v4333 = vmul.f32 %v4255, %v4317
    %v4334 = vmul.f32 %v4257, %v4318
    %v4335 = vmul.f32 %v4259, %v4319
    %v4336 = vmul.f32 %v4261, %v4320
    %v4337 = vmul.f32 %v4263, %v4321
    %v4338 = vmul.f32 %v4265, %v4322
    %v4339 = vmul.f32 %v4267, %v4323
    %v4340 = vmul.f32 %v4269, %v4324
    %v4341 = vmul.f32 %v4271, %v4325
    %v4342 = vmul.f32 %v4273, %v4326
    %v4343 = vmul.f32 %v4275, %v4327
    %v4344 = vmul.f32 %v4277, %v4328
    %v4345 = vmul.f32 %v4279, %v4329
    %v4346 = vmul.f32 %v4281, %v4330
    %v4347 = vmul.f32 %v4283, %v4331
    %v4348 = vpack.c.bf16 %v4333, %v4332
    %v4349 = vpack.c.bf16 %v4335, %v4334
    %v4350 = vpack.c.bf16 %v4337, %v4336
    %v4351 = vpack.c.bf16 %v4339, %v4338
    %v4352 = vpack.c.bf16 %v4341, %v4340
    %v4353 = vpack.c.bf16 %v4343, %v4342
    %v4354 = vpack.c.bf16 %v4345, %v4344
    %v4355 = vpack.c.bf16 %v4347, %v4346
    %v4356 = vmul.f32 %v3731, %v46
    %v4357 = vmul.f32 %v3733, %v46
    %v4358 = vmul.f32 %v3736, %v46
    %v4359 = vmul.f32 %v3738, %v46
    %v4360 = vmul.f32 %v3741, %v46
    %v4361 = vmul.f32 %v3743, %v46
    %v4362 = vmul.f32 %v3746, %v46
    %v4363 = vmul.f32 %v3748, %v46
    %v4364 = vmul.f32 %v3751, %v46
    %v4365 = vmul.f32 %v3753, %v46
    %v4366 = vmul.f32 %v3756, %v46
    %v4367 = vmul.f32 %v3758, %v46
    %v4368 = vmul.f32 %v3761, %v46
    %v4369 = vmul.f32 %v3763, %v46
    %v4370 = vmul.f32 %v3766, %v46
    %v4371 = vmul.f32 %v3768, %v46
    %v4372 = vpack.c.bf16 %v4357, %v4356
    %v4373 = vpack.c.bf16 %v4359, %v4358
    %v4374 = vpack.c.bf16 %v4361, %v4360
    %v4375 = vpack.c.bf16 %v4363, %v4362
    %v4376 = vpack.c.bf16 %v4365, %v4364
    %v4377 = vpack.c.bf16 %v4367, %v4366
    %v4378 = vpack.c.bf16 %v4369, %v4368
    %v4379 = vpack.c.bf16 %v4371, %v4370
    %4380 = vmatpush.bf16.msra.mxu0 %v4379
    %4381 = vmatpush.bf16.msra.mxu0 %v4378
    %4382 = vmatpush.bf16.msra.mxu0 %v4377
    %4383 = vmatpush.bf16.msra.mxu0 %v4376
    %4384 = vmatpush.bf16.msra.mxu0 %v4375
    %4385 = vmatpush.bf16.msra.mxu0 %v4374
    %4386 = vmatpush.bf16.msra.mxu0 %v4373
    %4387 = vmatpush.bf16.msra.mxu0 %v4372
    %4388 = vmatmul.bf16.gmra.mxu0 %v4348
    %v4389 = vpop.f32.mrf.mxu0
    %v4390 = vadd.f32 0.0, %v4389
    %v4391 = vpop.f32.mrf.mxu0
    %v4392 = vadd.f32 0.0, %v4391
    %4393 = vmatmul.bf16.gmra.mxu0 %v4349
    %v4394 = vpop.f32.mrf.mxu0
    %v4395 = vadd.f32 0.0, %v4394
    %v4396 = vpop.f32.mrf.mxu0
    %v4397 = vadd.f32 0.0, %v4396
    %4398 = vmatmul.bf16.gmra.mxu0 %v4350
    %v4399 = vpop.f32.mrf.mxu0
    %v4400 = vadd.f32 0.0, %v4399
    %v4401 = vpop.f32.mrf.mxu0
    %v4402 = vadd.f32 0.0, %v4401
    %4403 = vmatmul.bf16.gmra.mxu0 %v4351
    %v4404 = vpop.f32.mrf.mxu0
    %v4405 = vadd.f32 0.0, %v4404
    %v4406 = vpop.f32.mrf.mxu0
    %v4407 = vadd.f32 0.0, %v4406
    %4408 = vmatmul.bf16.gmra.mxu0 %v4352
    %v4409 = vpop.f32.mrf.mxu0
    %v4410 = vadd.f32 0.0, %v4409
    %v4411 = vpop.f32.mrf.mxu0
    %v4412 = vadd.f32 0.0, %v4411
    %4413 = vmatmul.bf16.gmra.mxu0 %v4353
    %v4414 = vpop.f32.mrf.mxu0
    %v4415 = vadd.f32 0.0, %v4414
    %v4416 = vpop.f32.mrf.mxu0
    %v4417 = vadd.f32 0.0, %v4416
    %4418 = vmatmul.bf16.gmra.mxu0 %v4354
    %v4419 = vpop.f32.mrf.mxu0
    %v4420 = vadd.f32 0.0, %v4419
    %v4421 = vpop.f32.mrf.mxu0
    %v4422 = vadd.f32 0.0, %v4421
    %4423 = vmatmul.bf16.gmra.mxu0 %v4355
    %v4424 = vpop.f32.mrf.mxu0
    %v4425 = vadd.f32 0.0, %v4424
    %v4426 = vpop.f32.mrf.mxu0
    %v4427 = vadd.f32 0.0, %v4426
    %4428 = vdwg.mxu0
    %4429 = vmatpush.bf16.msra.mxu0 %v4074
    %4430 = vmatpush.bf16.msra.mxu0 %v4073
    %4431 = vmatpush.bf16.msra.mxu0 %v4072
    %4432 = vmatpush.bf16.msra.mxu0 %v4071
    %4433 = vmatpush.bf16.msra.mxu0 %v4070
    %4434 = vmatpush.bf16.msra.mxu0 %v4069
    %4435 = vmatpush.bf16.msra.mxu0 %v4068
    %4436 = vmatpush.bf16.msra.mxu0 %v4067
    %4437 = vmatmul.bf16.gmra.mxu0 %v4043
    %v4438 = vpop.f32.mrf.mxu0
    %v4439 = vadd.f32 %v4390, %v4438
    %v4440 = vpop.f32.mrf.mxu0
    %v4441 = vadd.f32 %v4392, %v4440
    %4442 = vmatmul.bf16.gmra.mxu0 %v4044
    %v4443 = vpop.f32.mrf.mxu0
    %v4444 = vadd.f32 %v4395, %v4443
    %v4445 = vpop.f32.mrf.mxu0
    %v4446 = vadd.f32 %v4397, %v4445
    %4447 = vmatmul.bf16.gmra.mxu0 %v4045
    %v4448 = vpop.f32.mrf.mxu0
    %v4449 = vadd.f32 %v4400, %v4448
    %v4450 = vpop.f32.mrf.mxu0
    %v4451 = vadd.f32 %v4402, %v4450
    %4452 = vmatmul.bf16.gmra.mxu0 %v4046
    %v4453 = vpop.f32.mrf.mxu0
    %v4454 = vadd.f32 %v4405, %v4453
    %v4455 = vpop.f32.mrf.mxu0
    %v4456 = vadd.f32 %v4407, %v4455
    %4457 = vmatmul.bf16.gmra.mxu0 %v4047
    %v4458 = vpop.f32.mrf.mxu0
    %v4459 = vadd.f32 %v4410, %v4458
    %v4460 = vpop.f32.mrf.mxu0
    %v4461 = vadd.f32 %v4412, %v4460
    %4462 = vmatmul.bf16.gmra.mxu0 %v4048
    %v4463 = vpop.f32.mrf.mxu0
    %v4464 = vadd.f32 %v4415, %v4463
    %v4465 = vpop.f32.mrf.mxu0
    %v4466 = vadd.f32 %v4417, %v4465
    %4467 = vmatmul.bf16.gmra.mxu0 %v4049
    %v4468 = vpop.f32.mrf.mxu0
    %v4469 = vadd.f32 %v4420, %v4468
    %v4470 = vpop.f32.mrf.mxu0
    %v4471 = vadd.f32 %v4422, %v4470
    %4472 = vmatmul.bf16.gmra.mxu0 %v4050
    %v4473 = vpop.f32.mrf.mxu0
    %v4474 = vadd.f32 %v4425, %v4473
    %v4475 = vpop.f32.mrf.mxu0
    %v4476 = vadd.f32 %v4427, %v4475
    %4477 = vdwg.mxu0
    %v4478 = vpack.c.bf16 %v4441, %v4439
    %v4479 = vpack.c.bf16 %v4446, %v4444
    %v4480 = vpack.c.bf16 %v4451, %v4449
    %v4481 = vpack.c.bf16 %v4456, %v4454
    %v4482 = vpack.c.bf16 %v4461, %v4459
    %v4483 = vpack.c.bf16 %v4466, %v4464
    %v4484 = vpack.c.bf16 %v4471, %v4469
    %v4485 = vpack.c.bf16 %v4476, %v4474
    %s4486 = scalar_lea.vmem [#allocation2], 576
    %v4487 = vld [vmem:[%s4486] sm:$0xf]
    %v4488 = vld [vmem:[%s4486 + $0x4] sm:$0xf]
    %v4489 = vld [vmem:[%s4486 + $0x8] sm:$0xf]
    %v4490 = vld [vmem:[%s4486 + $0xc] sm:$0xf]
    %v4491 = vld [vmem:[%s4486 + $0x10] sm:$0xf]
    %v4492 = vld [vmem:[%s4486 + $0x14] sm:$0xf]
    %v4493 = vld [vmem:[%s4486 + $0x18] sm:$0xf]
    %v4494 = vld [vmem:[%s4486 + $0x1c] sm:$0xf]
    %v4495 = vld [vmem:[%s4486 + $0x20] sm:$0xf]
    %v4496 = vld [vmem:[%s4486 + $0x24] sm:$0xf]
    %v4497 = vld [vmem:[%s4486 + $0x28] sm:$0xf]
    %v4498 = vld [vmem:[%s4486 + $0x2c] sm:$0xf]
    %v4499 = vld [vmem:[%s4486 + $0x30] sm:$0xf]
    %v4500 = vld [vmem:[%s4486 + $0x34] sm:$0xf]
    %v4501 = vld [vmem:[%s4486 + $0x38] sm:$0xf]
    %v4502 = vld [vmem:[%s4486 + $0x3c] sm:$0xf]
    %v4503 = vld [vmem:[%s3 + $0xf] sm:$0x1]
    %v4504 = vperm.slane %v4503, 0
    %v4521 = vunpack.c.l.b16 %v4487
    %v4522 = vunpack.c.l.b16 %v4488
    %v4523 = vunpack.c.l.b16 %v4489
    %v4524 = vunpack.c.l.b16 %v4490
    %v4525 = vunpack.c.l.b16 %v4491
    %v4526 = vunpack.c.l.b16 %v4492
    %v4527 = vunpack.c.l.b16 %v4493
    %v4528 = vunpack.c.l.b16 %v4494
    %v4529 = vunpack.c.l.b16 %v4495
    %v4530 = vunpack.c.l.b16 %v4496
    %v4531 = vunpack.c.l.b16 %v4497
    %v4532 = vunpack.c.l.b16 %v4498
    %v4533 = vunpack.c.l.b16 %v4499
    %v4534 = vunpack.c.l.b16 %v4500
    %v4535 = vunpack.c.l.b16 %v4501
    %v4536 = vunpack.c.l.b16 %v4502
    %v4537 = vpack.c.b16 %v4522, %v4521
    %v4538 = vpack.c.b16 %v4524, %v4523
    %v4539 = vpack.c.b16 %v4526, %v4525
    %v4540 = vpack.c.b16 %v4528, %v4527
    %v4541 = vpack.c.b16 %v4530, %v4529
    %v4542 = vpack.c.b16 %v4532, %v4531
    %v4543 = vpack.c.b16 %v4534, %v4533
    %v4544 = vpack.c.b16 %v4536, %v4535
    %4553 = vmatpush.bf16.msra.mxu0 %v4544
    %4554 = vmatpush.bf16.msra.mxu0 %v4543
    %4555 = vmatpush.bf16.msra.mxu0 %v4542
    %4556 = vmatpush.bf16.msra.mxu0 %v4541
    %4557 = vmatpush.bf16.msra.mxu0 %v4540
    %4558 = vmatpush.bf16.msra.mxu0 %v4539
    %4559 = vmatpush.bf16.msra.mxu0 %v4538
    %4560 = vmatpush.bf16.msra.mxu0 %v4537
    %4561 = vmatmul.bf16.gmra.mxu0 %v4478
    %v4562 = vpop.f32.mrf.mxu0
    %v4563 = vadd.f32 %v4504, %v4562
    %v4564 = vpop.f32.mrf.mxu0
    %v4565 = vadd.f32 %v4504, %v4564
    %4566 = vmatmul.bf16.gmra.mxu0 %v4479
    %v4567 = vpop.f32.mrf.mxu0
    %v4568 = vadd.f32 %v4504, %v4567
    %v4569 = vpop.f32.mrf.mxu0
    %v4570 = vadd.f32 %v4504, %v4569
    %4571 = vmatmul.bf16.gmra.mxu0 %v4480
    %v4572 = vpop.f32.mrf.mxu0
    %v4573 = vadd.f32 %v4504, %v4572
    %v4574 = vpop.f32.mrf.mxu0
    %v4575 = vadd.f32 %v4504, %v4574
    %4576 = vmatmul.bf16.gmra.mxu0 %v4481
    %v4577 = vpop.f32.mrf.mxu0
    %v4578 = vadd.f32 %v4504, %v4577
    %v4579 = vpop.f32.mrf.mxu0
    %v4580 = vadd.f32 %v4504, %v4579
    %4581 = vmatmul.bf16.gmra.mxu0 %v4482
    %v4582 = vpop.f32.mrf.mxu0
    %v4583 = vadd.f32 %v4504, %v4582
    %v4584 = vpop.f32.mrf.mxu0
    %v4585 = vadd.f32 %v4504, %v4584
    %4586 = vmatmul.bf16.gmra.mxu0 %v4483
    %v4587 = vpop.f32.mrf.mxu0
    %v4588 = vadd.f32 %v4504, %v4587
    %v4589 = vpop.f32.mrf.mxu0
    %v4590 = vadd.f32 %v4504, %v4589
    %4591 = vmatmul.bf16.gmra.mxu0 %v4484
    %v4592 = vpop.f32.mrf.mxu0
    %v4593 = vadd.f32 %v4504, %v4592
    %v4594 = vpop.f32.mrf.mxu0
    %v4595 = vadd.f32 %v4504, %v4594
    %4596 = vmatmul.bf16.gmra.mxu0 %v4485
    %v4597 = vpop.f32.mrf.mxu0
    %v4598 = vadd.f32 %v4504, %v4597
    %v4599 = vpop.f32.mrf.mxu0
    %v4600 = vadd.f32 %v4504, %v4599
    %4601 = vdwg.mxu0
    %v4602 = vadd.f32 %v4563, %v3398
    %v4603 = vadd.f32 %v4565, %v3399
    %v4604 = vadd.f32 %v4568, %v3400
    %v4605 = vadd.f32 %v4570, %v3401
    %v4606 = vadd.f32 %v4573, %v3402
    %v4607 = vadd.f32 %v4575, %v3403
    %v4608 = vadd.f32 %v4578, %v3404
    %v4609 = vadd.f32 %v4580, %v3405
    %v4610 = vadd.f32 %v4583, %v3406
    %v4611 = vadd.f32 %v4585, %v3407
    %v4612 = vadd.f32 %v4588, %v3408
    %v4613 = vadd.f32 %v4590, %v3409
    %v4614 = vadd.f32 %v4593, %v3410
    %v4615 = vadd.f32 %v4595, %v3411
    %v4616 = vadd.f32 %v4598, %v3412
    %v4617 = vadd.f32 %v4600, %v3413
    %v4618 = vld [vmem:[%s3 + $0x10] sm:$0x1]
    %v4619 = vld [vmem:[%s3 + $0x11] sm:$0x1]
    %v4620 = vmul.f32 %v4602, %v37
    %v4621 = vmul.f32 %v4603, %v37
    %v4622 = vmul.f32 %v4604, %v37
    %v4623 = vmul.f32 %v4605, %v37
    %v4624 = vmul.f32 %v4606, %v37
    %v4625 = vmul.f32 %v4607, %v37
    %v4626 = vmul.f32 %v4608, %v37
    %v4627 = vmul.f32 %v4609, %v37
    %v4628 = vmul.f32 %v4610, %v37
    %v4629 = vmul.f32 %v4611, %v37
    %v4630 = vmul.f32 %v4612, %v37
    %v4631 = vmul.f32 %v4613, %v37
    %v4632 = vmul.f32 %v4614, %v37
    %v4633 = vmul.f32 %v4615, %v37
    %v4634 = vmul.f32 %v4616, %v37
    %v4635 = vmul.f32 %v4617, %v37
    %4636 = vadd.xlane.f32.xlu0 %v4620
    %v4637 = vpop.xlane.xlu0 %4636
    %4638 = vadd.xlane.f32.xlu0 %v4621
    %v4639 = vpop.xlane.xlu0 %4638
    %4640 = vadd.xlane.f32.xlu0 %v4622
    %v4641 = vpop.xlane.xlu0 %4640
    %4642 = vadd.xlane.f32.xlu0 %v4623
    %v4643 = vpop.xlane.xlu0 %4642
    %4644 = vadd.xlane.f32.xlu0 %v4624
    %v4645 = vpop.xlane.xlu0 %4644
    %4646 = vadd.xlane.f32.xlu0 %v4625
    %v4647 = vpop.xlane.xlu0 %4646
    %4648 = vadd.xlane.f32.xlu0 %v4626
    %v4649 = vpop.xlane.xlu0 %4648
    %4650 = vadd.xlane.f32.xlu0 %v4627
    %v4651 = vpop.xlane.xlu0 %4650
    %4652 = vadd.xlane.f32.xlu0 %v4628
    %v4653 = vpop.xlane.xlu0 %4652
    %4654 = vadd.xlane.f32.xlu0 %v4629
    %v4655 = vpop.xlane.xlu0 %4654
    %4656 = vadd.xlane.f32.xlu0 %v4630
    %v4657 = vpop.xlane.xlu0 %4656
    %4658 = vadd.xlane.f32.xlu0 %v4631
    %v4659 = vpop.xlane.xlu0 %4658
    %4660 = vadd.xlane.f32.xlu0 %v4632
    %v4661 = vpop.xlane.xlu0 %4660
    %4662 = vadd.xlane.f32.xlu0 %v4633
    %v4663 = vpop.xlane.xlu0 %4662
    %4664 = vadd.xlane.f32.xlu0 %v4634
    %v4665 = vpop.xlane.xlu0 %4664
    %4666 = vadd.xlane.f32.xlu0 %v4635
    %v4667 = vpop.xlane.xlu0 %4666
    %v4668 = vmul.f32 %v4637, 0.03125
    %v4669 = vmul.f32 %v4639, 0.03125
    %v4670 = vmul.f32 %v4641, 0.03125
    %v4671 = vmul.f32 %v4643, 0.03125
    %v4672 = vmul.f32 %v4645, 0.03125
    %v4673 = vmul.f32 %v4647, 0.03125
    %v4674 = vmul.f32 %v4649, 0.03125
    %v4675 = vmul.f32 %v4651, 0.03125
    %v4676 = vmul.f32 %v4653, 0.03125
    %v4677 = vmul.f32 %v4655, 0.03125
    %v4678 = vmul.f32 %v4657, 0.03125
    %v4679 = vmul.f32 %v4659, 0.03125
    %v4680 = vmul.f32 %v4661, 0.03125
    %v4681 = vmul.f32 %v4663, 0.03125
    %v4682 = vmul.f32 %v4665, 0.03125
    %v4683 = vmul.f32 %v4667, 0.03125
    %v4684 = vsub.f32 %v4602, %v4668
    %v4685 = vsub.f32 %v4603, %v4669
    %v4686 = vsub.f32 %v4604, %v4670
    %v4687 = vsub.f32 %v4605, %v4671
    %v4688 = vsub.f32 %v4606, %v4672
    %v4689 = vsub.f32 %v4607, %v4673
    %v4690 = vsub.f32 %v4608, %v4674
    %v4691 = vsub.f32 %v4609, %v4675
    %v4692 = vsub.f32 %v4610, %v4676
    %v4693 = vsub.f32 %v4611, %v4677
    %v4694 = vsub.f32 %v4612, %v4678
    %v4695 = vsub.f32 %v4613, %v4679
    %v4696 = vsub.f32 %v4614, %v4680
    %v4697 = vsub.f32 %v4615, %v4681
    %v4698 = vsub.f32 %v4616, %v4682
    %v4699 = vsub.f32 %v4617, %v4683
    %v4700 = vmul.f32 %v4684, %v37
    %v4701 = vmul.f32 %v4685, %v37
    %v4702 = vmul.f32 %v4686, %v37
    %v4703 = vmul.f32 %v4687, %v37
    %v4704 = vmul.f32 %v4688, %v37
    %v4705 = vmul.f32 %v4689, %v37
    %v4706 = vmul.f32 %v4690, %v37
    %v4707 = vmul.f32 %v4691, %v37
    %v4708 = vmul.f32 %v4692, %v37
    %v4709 = vmul.f32 %v4693, %v37
    %v4710 = vmul.f32 %v4694, %v37
    %v4711 = vmul.f32 %v4695, %v37
    %v4712 = vmul.f32 %v4696, %v37
    %v4713 = vmul.f32 %v4697, %v37
    %v4714 = vmul.f32 %v4698, %v37
    %v4715 = vmul.f32 %v4699, %v37
    %v4716 = vmul.f32 %v4700, %v4700
    %v4717 = vmul.f32 %v4701, %v4701
    %v4718 = vmul.f32 %v4702, %v4702
    %v4719 = vmul.f32 %v4703, %v4703
    %v4720 = vmul.f32 %v4704, %v4704
    %v4721 = vmul.f32 %v4705, %v4705
    %v4722 = vmul.f32 %v4706, %v4706
    %v4723 = vmul.f32 %v4707, %v4707
    %v4724 = vmul.f32 %v4708, %v4708
    %v4725 = vmul.f32 %v4709, %v4709
    %v4726 = vmul.f32 %v4710, %v4710
    %v4727 = vmul.f32 %v4711, %v4711
    %v4728 = vmul.f32 %v4712, %v4712
    %v4729 = vmul.f32 %v4713, %v4713
    %v4730 = vmul.f32 %v4714, %v4714
    %v4731 = vmul.f32 %v4715, %v4715
    %4732 = vadd.xlane.f32.xlu0 %v4716
    %v4733 = vpop.xlane.xlu0 %4732
    %4734 = vadd.xlane.f32.xlu0 %v4717
    %v4735 = vpop.xlane.xlu0 %4734
    %4736 = vadd.xlane.f32.xlu0 %v4718
    %v4737 = vpop.xlane.xlu0 %4736
    %4738 = vadd.xlane.f32.xlu0 %v4719
    %v4739 = vpop.xlane.xlu0 %4738
    %4740 = vadd.xlane.f32.xlu0 %v4720
    %v4741 = vpop.xlane.xlu0 %4740
    %4742 = vadd.xlane.f32.xlu0 %v4721
    %v4743 = vpop.xlane.xlu0 %4742
    %4744 = vadd.xlane.f32.xlu0 %v4722
    %v4745 = vpop.xlane.xlu0 %4744
    %4746 = vadd.xlane.f32.xlu0 %v4723
    %v4747 = vpop.xlane.xlu0 %4746
    %4748 = vadd.xlane.f32.xlu0 %v4724
    %v4749 = vpop.xlane.xlu0 %4748
    %4750 = vadd.xlane.f32.xlu0 %v4725
    %v4751 = vpop.xlane.xlu0 %4750
    %4752 = vadd.xlane.f32.xlu0 %v4726
    %v4753 = vpop.xlane.xlu0 %4752
    %4754 = vadd.xlane.f32.xlu0 %v4727
    %v4755 = vpop.xlane.xlu0 %4754
    %4756 = vadd.xlane.f32.xlu0 %v4728
    %v4757 = vpop.xlane.xlu0 %4756
    %4758 = vadd.xlane.f32.xlu0 %v4729
    %v4759 = vpop.xlane.xlu0 %4758
    %4760 = vadd.xlane.f32.xlu0 %v4730
    %v4761 = vpop.xlane.xlu0 %4760
    %4762 = vadd.xlane.f32.xlu0 %v4731
    %v4763 = vpop.xlane.xlu0 %4762
    %v4764 = vmul.f32 %v4733, 0.03125
    %v4765 = vmul.f32 %v4735, 0.03125
    %v4766 = vmul.f32 %v4737, 0.03125
    %v4767 = vmul.f32 %v4739, 0.03125
    %v4768 = vmul.f32 %v4741, 0.03125
    %v4769 = vmul.f32 %v4743, 0.03125
    %v4770 = vmul.f32 %v4745, 0.03125
    %v4771 = vmul.f32 %v4747, 0.03125
    %v4772 = vmul.f32 %v4749, 0.03125
    %v4773 = vmul.f32 %v4751, 0.03125
    %v4774 = vmul.f32 %v4753, 0.03125
    %v4775 = vmul.f32 %v4755, 0.03125
    %v4776 = vmul.f32 %v4757, 0.03125
    %v4777 = vmul.f32 %v4759, 0.03125
    %v4778 = vmul.f32 %v4761, 0.03125
    %v4779 = vmul.f32 %v4763, 0.03125
    %v4780 = vadd.f32 %v4764, 1e-05
    %v4781 = vadd.f32 %v4765, 1e-05
    %v4782 = vadd.f32 %v4766, 1e-05
    %v4783 = vadd.f32 %v4767, 1e-05
    %v4784 = vadd.f32 %v4768, 1e-05
    %v4785 = vadd.f32 %v4769, 1e-05
    %v4786 = vadd.f32 %v4770, 1e-05
    %v4787 = vadd.f32 %v4771, 1e-05
    %v4788 = vadd.f32 %v4772, 1e-05
    %v4789 = vadd.f32 %v4773, 1e-05
    %v4790 = vadd.f32 %v4774, 1e-05
    %v4791 = vadd.f32 %v4775, 1e-05
    %v4792 = vadd.f32 %v4776, 1e-05
    %v4793 = vadd.f32 %v4777, 1e-05
    %v4794 = vadd.f32 %v4778, 1e-05
    %v4795 = vadd.f32 %v4779, 1e-05
    %v4796 = vrsqrt.pop %v4780
    %v4797 = vmul.f32 %v4796, %v4780
    %v4798 = vmul.f32 %v4797, %v4796
    %v4799 = vmul.f32 0.5, %v4798
    %v4800 = vsub.f32 1.5, %v4799
    %v4801 = vmul.f32 %v4796, %v4800
    %vm4802 = vweird.f32 %v4780
    %vm4803 = vweird.f32 %v4796
    %vm4804 = vmor %vm4802, %vm4803
    %v4805 = vsel %vm4804, %v4796, %v4801
    %v4806 = vrsqrt.pop %v4781
    %v4807 = vmul.f32 %v4806, %v4781
    %v4808 = vmul.f32 %v4807, %v4806
    %v4809 = vmul.f32 0.5, %v4808
    %v4810 = vsub.f32 1.5, %v4809
    %v4811 = vmul.f32 %v4806, %v4810
    %vm4812 = vweird.f32 %v4781
    %vm4813 = vweird.f32 %v4806
    %vm4814 = vmor %vm4812, %vm4813
    %v4815 = vsel %vm4814, %v4806, %v4811
    %v4816 = vrsqrt.pop %v4782
    %v4817 = vmul.f32 %v4816, %v4782
    %v4818 = vmul.f32 %v4817, %v4816
    %v4819 = vmul.f32 0.5, %v4818
    %v4820 = vsub.f32 1.5, %v4819
    %v4821 = vmul.f32 %v4816, %v4820
    %vm4822 = vweird.f32 %v4782
    %vm4823 = vweird.f32 %v4816
    %vm4824 = vmor %vm4822, %vm4823
    %v4825 = vsel %vm4824, %v4816, %v4821
    %v4826 = vrsqrt.pop %v4783
    %v4827 = vmul.f32 %v4826, %v4783
    %v4828 = vmul.f32 %v4827, %v4826
    %v4829 = vmul.f32 0.5, %v4828
    %v4830 = vsub.f32 1.5, %v4829
    %v4831 = vmul.f32 %v4826, %v4830
    %vm4832 = vweird.f32 %v4783
    %vm4833 = vweird.f32 %v4826
    %vm4834 = vmor %vm4832, %vm4833
    %v4835 = vsel %vm4834, %v4826, %v4831
    %v4836 = vrsqrt.pop %v4784
    %v4837 = vmul.f32 %v4836, %v4784
    %v4838 = vmul.f32 %v4837, %v4836
    %v4839 = vmul.f32 0.5, %v4838
    %v4840 = vsub.f32 1.5, %v4839
    %v4841 = vmul.f32 %v4836, %v4840
    %vm4842 = vweird.f32 %v4784
    %vm4843 = vweird.f32 %v4836
    %vm4844 = vmor %vm4842, %vm4843
    %v4845 = vsel %vm4844, %v4836, %v4841
    %v4846 = vrsqrt.pop %v4785
    %v4847 = vmul.f32 %v4846, %v4785
    %v4848 = vmul.f32 %v4847, %v4846
    %v4849 = vmul.f32 0.5, %v4848
    %v4850 = vsub.f32 1.5, %v4849
    %v4851 = vmul.f32 %v4846, %v4850
    %vm4852 = vweird.f32 %v4785
    %vm4853 = vweird.f32 %v4846
    %vm4854 = vmor %vm4852, %vm4853
    %v4855 = vsel %vm4854, %v4846, %v4851
    %v4856 = vrsqrt.pop %v4786
    %v4857 = vmul.f32 %v4856, %v4786
    %v4858 = vmul.f32 %v4857, %v4856
    %v4859 = vmul.f32 0.5, %v4858
    %v4860 = vsub.f32 1.5, %v4859
    %v4861 = vmul.f32 %v4856, %v4860
    %vm4862 = vweird.f32 %v4786
    %vm4863 = vweird.f32 %v4856
    %vm4864 = vmor %vm4862, %vm4863
    %v4865 = vsel %vm4864, %v4856, %v4861
    %v4866 = vrsqrt.pop %v4787
    %v4867 = vmul.f32 %v4866, %v4787
    %v4868 = vmul.f32 %v4867, %v4866
    %v4869 = vmul.f32 0.5, %v4868
    %v4870 = vsub.f32 1.5, %v4869
    %v4871 = vmul.f32 %v4866, %v4870
    %vm4872 = vweird.f32 %v4787
    %vm4873 = vweird.f32 %v4866
    %vm4874 = vmor %vm4872, %vm4873
    %v4875 = vsel %vm4874, %v4866, %v4871
    %v4876 = vrsqrt.pop %v4788
    %v4877 = vmul.f32 %v4876, %v4788
    %v4878 = vmul.f32 %v4877, %v4876
    %v4879 = vmul.f32 0.5, %v4878
    %v4880 = vsub.f32 1.5, %v4879
    %v4881 = vmul.f32 %v4876, %v4880
    %vm4882 = vweird.f32 %v4788
    %vm4883 = vweird.f32 %v4876
    %vm4884 = vmor %vm4882, %vm4883
    %v4885 = vsel %vm4884, %v4876, %v4881
    %v4886 = vrsqrt.pop %v4789
    %v4887 = vmul.f32 %v4886, %v4789
    %v4888 = vmul.f32 %v4887, %v4886
    %v4889 = vmul.f32 0.5, %v4888
    %v4890 = vsub.f32 1.5, %v4889
    %v4891 = vmul.f32 %v4886, %v4890
    %vm4892 = vweird.f32 %v4789
    %vm4893 = vweird.f32 %v4886
    %vm4894 = vmor %vm4892, %vm4893
    %v4895 = vsel %vm4894, %v4886, %v4891
    %v4896 = vrsqrt.pop %v4790
    %v4897 = vmul.f32 %v4896, %v4790
    %v4898 = vmul.f32 %v4897, %v4896
    %v4899 = vmul.f32 0.5, %v4898
    %v4900 = vsub.f32 1.5, %v4899
    %v4901 = vmul.f32 %v4896, %v4900
    %vm4902 = vweird.f32 %v4790
    %vm4903 = vweird.f32 %v4896
    %vm4904 = vmor %vm4902, %vm4903
    %v4905 = vsel %vm4904, %v4896, %v4901
    %v4906 = vrsqrt.pop %v4791
    %v4907 = vmul.f32 %v4906, %v4791
    %v4908 = vmul.f32 %v4907, %v4906
    %v4909 = vmul.f32 0.5, %v4908
    %v4910 = vsub.f32 1.5, %v4909
    %v4911 = vmul.f32 %v4906, %v4910
    %vm4912 = vweird.f32 %v4791
    %vm4913 = vweird.f32 %v4906
    %vm4914 = vmor %vm4912, %vm4913
    %v4915 = vsel %vm4914, %v4906, %v4911
    %v4916 = vrsqrt.pop %v4792
    %v4917 = vmul.f32 %v4916, %v4792
    %v4918 = vmul.f32 %v4917, %v4916
    %v4919 = vmul.f32 0.5, %v4918
    %v4920 = vsub.f32 1.5, %v4919
    %v4921 = vmul.f32 %v4916, %v4920
    %vm4922 = vweird.f32 %v4792
    %vm4923 = vweird.f32 %v4916
    %vm4924 = vmor %vm4922, %vm4923
    %v4925 = vsel %vm4924, %v4916, %v4921
    %v4926 = vrsqrt.pop %v4793
    %v4927 = vmul.f32 %v4926, %v4793
    %v4928 = vmul.f32 %v4927, %v4926
    %v4929 = vmul.f32 0.5, %v4928
    %v4930 = vsub.f32 1.5, %v4929
    %v4931 = vmul.f32 %v4926, %v4930
    %vm4932 = vweird.f32 %v4793
    %vm4933 = vweird.f32 %v4926
    %vm4934 = vmor %vm4932, %vm4933
    %v4935 = vsel %vm4934, %v4926, %v4931
    %v4936 = vrsqrt.pop %v4794
    %v4937 = vmul.f32 %v4936, %v4794
    %v4938 = vmul.f32 %v4937, %v4936
    %v4939 = vmul.f32 0.5, %v4938
    %v4940 = vsub.f32 1.5, %v4939
    %v4941 = vmul.f32 %v4936, %v4940
    %vm4942 = vweird.f32 %v4794
    %vm4943 = vweird.f32 %v4936
    %vm4944 = vmor %vm4942, %vm4943
    %v4945 = vsel %vm4944, %v4936, %v4941
    %v4946 = vrsqrt.pop %v4795
    %v4947 = vmul.f32 %v4946, %v4795
    %v4948 = vmul.f32 %v4947, %v4946
    %v4949 = vmul.f32 0.5, %v4948
    %v4950 = vsub.f32 1.5, %v4949
    %v4951 = vmul.f32 %v4946, %v4950
    %vm4952 = vweird.f32 %v4795
    %vm4953 = vweird.f32 %v4946
    %vm4954 = vmor %vm4952, %vm4953
    %v4955 = vsel %vm4954, %v4946, %v4951
    %v4956 = vmul.f32 %v4700, %v4805
    %v4957 = vmul.f32 %v4701, %v4815
    %v4958 = vmul.f32 %v4702, %v4825
    %v4959 = vmul.f32 %v4703, %v4835
    %v4960 = vmul.f32 %v4704, %v4845
    %v4961 = vmul.f32 %v4705, %v4855
    %v4962 = vmul.f32 %v4706, %v4865
    %v4963 = vmul.f32 %v4707, %v4875
    %v4964 = vmul.f32 %v4708, %v4885
    %v4965 = vmul.f32 %v4709, %v4895
    %v4966 = vmul.f32 %v4710, %v4905
    %v4967 = vmul.f32 %v4711, %v4915
    %v4968 = vmul.f32 %v4712, %v4925
    %v4969 = vmul.f32 %v4713, %v4935
    %v4970 = vmul.f32 %v4714, %v4945
    %v4971 = vmul.f32 %v4715, %v4955
    %v4972 = vperm.slane %v4618, 0
    %v4973 = vmul.f32 %v4956, %v4972
    %v4974 = vmul.f32 %v4957, %v4972
    %v4975 = vmul.f32 %v4958, %v4972
    %v4976 = vmul.f32 %v4959, %v4972
    %v4977 = vmul.f32 %v4960, %v4972
    %v4978 = vmul.f32 %v4961, %v4972
    %v4979 = vmul.f32 %v4962, %v4972
    %v4980 = vmul.f32 %v4963, %v4972
    %v4981 = vmul.f32 %v4964, %v4972
    %v4982 = vmul.f32 %v4965, %v4972
    %v4983 = vmul.f32 %v4966, %v4972
    %v4984 = vmul.f32 %v4967, %v4972
    %v4985 = vmul.f32 %v4968, %v4972
    %v4986 = vmul.f32 %v4969, %v4972
    %v4987 = vmul.f32 %v4970, %v4972
    %v4988 = vmul.f32 %v4971, %v4972
    %v4989 = vperm.slane %v4619, 0
    %v4990 = vadd.f32 %v4973, %v4989
    %v4991 = vadd.f32 %v4974, %v4989
    %v4992 = vadd.f32 %v4975, %v4989
    %v4993 = vadd.f32 %v4976, %v4989
    %v4994 = vadd.f32 %v4977, %v4989
    %v4995 = vadd.f32 %v4978, %v4989
    %v4996 = vadd.f32 %v4979, %v4989
    %v4997 = vadd.f32 %v4980, %v4989
    %v4998 = vadd.f32 %v4981, %v4989
    %v4999 = vadd.f32 %v4982, %v4989
    %v5000 = vadd.f32 %v4983, %v4989
    %v5001 = vadd.f32 %v4984, %v4989
    %v5002 = vadd.f32 %v4985, %v4989
    %v5003 = vadd.f32 %v4986, %v4989
    %v5004 = vadd.f32 %v4987, %v4989
    %v5005 = vadd.f32 %v4988, %v4989
    %v5006 = vpack.c.bf16 %v4991, %v4990
    %v5007 = vpack.c.bf16 %v4993, %v4992
    %v5008 = vpack.c.bf16 %v4995, %v4994
    %v5009 = vpack.c.bf16 %v4997, %v4996
    %v5010 = vpack.c.bf16 %v4999, %v4998
    %v5011 = vpack.c.bf16 %v5001, %v5000
    %v5012 = vpack.c.bf16 %v5003, %v5002
    %v5013 = vpack.c.bf16 %v5005, %v5004
    %s5014 = scalar_lea.vmem [#allocation2], 640
    %v5015 = vld [vmem:[%s5014] sm:$0xf]
    %v5016 = vld [vmem:[%s5014 + $0x4] sm:$0xf]
    %v5017 = vld [vmem:[%s5014 + $0x8] sm:$0xf]
    %v5018 = vld [vmem:[%s5014 + $0xc] sm:$0xf]
    %v5019 = vld [vmem:[%s5014 + $0x10] sm:$0xf]
    %v5020 = vld [vmem:[%s5014 + $0x14] sm:$0xf]
    %v5021 = vld [vmem:[%s5014 + $0x18] sm:$0xf]
    %v5022 = vld [vmem:[%s5014 + $0x1c] sm:$0xf]
    %v5023 = vld [vmem:[%s5014 + $0x20] sm:$0xf]
    %v5024 = vld [vmem:[%s5014 + $0x24] sm:$0xf]
    %v5025 = vld [vmem:[%s5014 + $0x28] sm:$0xf]
    %v5026 = vld [vmem:[%s5014 + $0x2c] sm:$0xf]
    %v5027 = vld [vmem:[%s5014 + $0x30] sm:$0xf]
    %v5028 = vld [vmem:[%s5014 + $0x34] sm:$0xf]
    %v5029 = vld [vmem:[%s5014 + $0x38] sm:$0xf]
    %v5030 = vld [vmem:[%s5014 + $0x3c] sm:$0xf]
    %v5031 = vld [vmem:[%s3 + $0x12] sm:$0x1]
    %v5032 = vperm.slane %v5031, 0
    %v5049 = vunpack.c.l.b16 %v5015
    %v5050 = vunpack.c.l.b16 %v5016
    %v5051 = vunpack.c.l.b16 %v5017
    %v5052 = vunpack.c.l.b16 %v5018
    %v5053 = vunpack.c.l.b16 %v5019
    %v5054 = vunpack.c.l.b16 %v5020
    %v5055 = vunpack.c.l.b16 %v5021
    %v5056 = vunpack.c.l.b16 %v5022
    %v5057 = vunpack.c.l.b16 %v5023
    %v5058 = vunpack.c.l.b16 %v5024
    %v5059 = vunpack.c.l.b16 %v5025
    %v5060 = vunpack.c.l.b16 %v5026
    %v5061 = vunpack.c.l.b16 %v5027
    %v5062 = vunpack.c.l.b16 %v5028
    %v5063 = vunpack.c.l.b16 %v5029
    %v5064 = vunpack.c.l.b16 %v5030
    %v5065 = vpack.c.b16 %v5050, %v5049
    %v5066 = vpack.c.b16 %v5052, %v5051
    %v5067 = vpack.c.b16 %v5054, %v5053
    %v5068 = vpack.c.b16 %v5056, %v5055
    %v5069 = vpack.c.b16 %v5058, %v5057
    %v5070 = vpack.c.b16 %v5060, %v5059
    %v5071 = vpack.c.b16 %v5062, %v5061
    %v5072 = vpack.c.b16 %v5064, %v5063
    %5081 = vmatpush.bf16.msra.mxu0 %v5072
    %5082 = vmatpush.bf16.msra.mxu0 %v5071
    %5083 = vmatpush.bf16.msra.mxu0 %v5070
    %5084 = vmatpush.bf16.msra.mxu0 %v5069
    %5085 = vmatpush.bf16.msra.mxu0 %v5068
    %5086 = vmatpush.bf16.msra.mxu0 %v5067
    %5087 = vmatpush.bf16.msra.mxu0 %v5066
    %5088 = vmatpush.bf16.msra.mxu0 %v5065
    %5089 = vmatmul.bf16.gmra.mxu0 %v5006
    %v5090 = vpop.f32.mrf.mxu0
    %v5091 = vadd.f32 %v5032, %v5090
    %v5092 = vpop.f32.mrf.mxu0
    %v5093 = vadd.f32 %v5032, %v5092
    %5094 = vmatmul.bf16.gmra.mxu0 %v5007
    %v5095 = vpop.f32.mrf.mxu0
    %v5096 = vadd.f32 %v5032, %v5095
    %v5097 = vpop.f32.mrf.mxu0
    %v5098 = vadd.f32 %v5032, %v5097
    %5099 = vmatmul.bf16.gmra.mxu0 %v5008
    %v5100 = vpop.f32.mrf.mxu0
    %v5101 = vadd.f32 %v5032, %v5100
    %v5102 = vpop.f32.mrf.mxu0
    %v5103 = vadd.f32 %v5032, %v5102
    %5104 = vmatmul.bf16.gmra.mxu0 %v5009
    %v5105 = vpop.f32.mrf.mxu0
    %v5106 = vadd.f32 %v5032, %v5105
    %v5107 = vpop.f32.mrf.mxu0
    %v5108 = vadd.f32 %v5032, %v5107
    %5109 = vmatmul.bf16.gmra.mxu0 %v5010
    %v5110 = vpop.f32.mrf.mxu0
    %v5111 = vadd.f32 %v5032, %v5110
    %v5112 = vpop.f32.mrf.mxu0
    %v5113 = vadd.f32 %v5032, %v5112
    %5114 = vmatmul.bf16.gmra.mxu0 %v5011
    %v5115 = vpop.f32.mrf.mxu0
    %v5116 = vadd.f32 %v5032, %v5115
    %v5117 = vpop.f32.mrf.mxu0
    %v5118 = vadd.f32 %v5032, %v5117
    %5119 = vmatmul.bf16.gmra.mxu0 %v5012
    %v5120 = vpop.f32.mrf.mxu0
    %v5121 = vadd.f32 %v5032, %v5120
    %v5122 = vpop.f32.mrf.mxu0
    %v5123 = vadd.f32 %v5032, %v5122
    %5124 = vmatmul.bf16.gmra.mxu0 %v5013
    %v5125 = vpop.f32.mrf.mxu0
    %v5126 = vadd.f32 %v5032, %v5125
    %v5127 = vpop.f32.mrf.mxu0
    %v5128 = vadd.f32 %v5032, %v5127
    %5129 = vdwg.mxu0
    %v5130 = vmul.f32 %v5091, 0.5
    %v5131 = vmul.f32 %v5093, 0.5
    %v5132 = vmul.f32 %v5096, 0.5
    %v5133 = vmul.f32 %v5098, 0.5
    %v5134 = vmul.f32 %v5101, 0.5
    %v5135 = vmul.f32 %v5103, 0.5
    %v5136 = vmul.f32 %v5106, 0.5
    %v5137 = vmul.f32 %v5108, 0.5
    %v5138 = vmul.f32 %v5111, 0.5
    %v5139 = vmul.f32 %v5113, 0.5
    %v5140 = vmul.f32 %v5116, 0.5
    %v5141 = vmul.f32 %v5118, 0.5
    %v5142 = vmul.f32 %v5121, 0.5
    %v5143 = vmul.f32 %v5123, 0.5
    %v5144 = vmul.f32 %v5126, 0.5
    %v5145 = vmul.f32 %v5128, 0.5
    %v5146 = vmul.f32 %v5091, 0.70710677
    %v5147 = vmul.f32 %v5093, 0.70710677
    %v5148 = vmul.f32 %v5096, 0.70710677
    %v5149 = vmul.f32 %v5098, 0.70710677
    %v5150 = vmul.f32 %v5101, 0.70710677
    %v5151 = vmul.f32 %v5103, 0.70710677
    %v5152 = vmul.f32 %v5106, 0.70710677
    %v5153 = vmul.f32 %v5108, 0.70710677
    %v5154 = vmul.f32 %v5111, 0.70710677
    %v5155 = vmul.f32 %v5113, 0.70710677
    %v5156 = vmul.f32 %v5116, 0.70710677
    %v5157 = vmul.f32 %v5118, 0.70710677
    %v5158 = vmul.f32 %v5121, 0.70710677
    %v5159 = vmul.f32 %v5123, 0.70710677
    %v5160 = vmul.f32 %v5126, 0.70710677
    %v5161 = vmul.f32 %v5128, 0.70710677
    %v5162 = vmul.f32 %v5146, %v5146
    %v5163 = vmin.f32 16.0, %v5162
    %v5164 = vmul.f32 %v5163, 2.1237322e-06
    %v5165 = vadd.f32 %v5164, 0.00028619796
    %v5166 = vmul.f32 %v5163, %v5165
    %v5167 = vadd.f32 %v5166, 0.0036580483
    %v5168 = vmul.f32 %v5163, %v5167
    %v5169 = vadd.f32 %v5168, 0.05243302
    %v5170 = vmul.f32 %v5163, %v5169
    %v5171 = vadd.f32 %v5170, 0.18741608
    %v5172 = vmul.f32 %v5163, %v5171
    %v5173 = vadd.f32 %v5172, 1.1283791
    %v5174 = vmul.f32 %v5146, %v5173
    %v5175 = vmul.f32 %v5163, 3.8918573e-05
    %v5176 = vadd.f32 %v5175, 0.001143296
    %v5177 = vmul.f32 %v5163, %v5176
    %v5178 = vadd.f32 %v5177, 0.014752088
    %v5179 = vmul.f32 %v5163, %v5178
    %v5180 = vadd.f32 %v5179, 0.112945676
    %v5181 = vmul.f32 %v5163, %v5180
    %v5182 = vadd.f32 %v5181, 0.4994258
    %v5183 = vmul.f32 %v5163, %v5182
    %v5184 = vadd.f32 %v5183, 1.0
    %v5185 = vrcp.pop %v5184
    %v5186 = vmul.f32 %v5184, %v5185
    %v5187 = vsub.f32 1.0, %v5186
    %v5188 = vmul.f32 %v5185, %v5187
    %v5189 = vadd.f32 %v5185, %v5188
    %vm5190 = vweird.f32 %v5184
    %vm5191 = vweird.f32 %v5185
    %vm5192 = vmor %vm5190, %vm5191
    %v5193 = vsel %vm5192, %v5185, %v5189
    %v5194 = vand.u32 2147483647, %v5184
    %vm5195 = vcmp.eq.f32.partialorder %v5194, 8.507059e+37
    %v5196 = vand.u32 %v5184, 2147483648
    %v5197 = vor.u32 1.1754944e-38, %v5196
    %v5198 = vsel %vm5195, %v5197, %v5193
    %v5199 = vmul.f32 %v5174, %v5198
    %v5200 = vmin.f32 %v5199, 1.0
    %v5201 = vmax.f32 %v5200, -1.0
    %v5202 = vmul.f32 %v5147, %v5147
    %v5203 = vmin.f32 16.0, %v5202
    %v5204 = vmul.f32 %v5203, 2.1237322e-06
    %v5205 = vadd.f32 %v5204, 0.00028619796
    %v5206 = vmul.f32 %v5203, %v5205
    %v5207 = vadd.f32 %v5206, 0.0036580483
    %v5208 = vmul.f32 %v5203, %v5207
    %v5209 = vadd.f32 %v5208, 0.05243302
    %v5210 = vmul.f32 %v5203, %v5209
    %v5211 = vadd.f32 %v5210, 0.18741608
    %v5212 = vmul.f32 %v5203, %v5211
    %v5213 = vadd.f32 %v5212, 1.1283791
    %v5214 = vmul.f32 %v5147, %v5213
    %v5215 = vmul.f32 %v5203, 3.8918573e-05
    %v5216 = vadd.f32 %v5215, 0.001143296
    %v5217 = vmul.f32 %v5203, %v5216
    %v5218 = vadd.f32 %v5217, 0.014752088
    %v5219 = vmul.f32 %v5203, %v5218
    %v5220 = vadd.f32 %v5219, 0.112945676
    %v5221 = vmul.f32 %v5203, %v5220
    %v5222 = vadd.f32 %v5221, 0.4994258
    %v5223 = vmul.f32 %v5203, %v5222
    %v5224 = vadd.f32 %v5223, 1.0
    %v5225 = vrcp.pop %v5224
    %v5226 = vmul.f32 %v5224, %v5225
    %v5227 = vsub.f32 1.0, %v5226
    %v5228 = vmul.f32 %v5225, %v5227
    %v5229 = vadd.f32 %v5225, %v5228
    %vm5230 = vweird.f32 %v5224
    %vm5231 = vweird.f32 %v5225
    %vm5232 = vmor %vm5230, %vm5231
    %v5233 = vsel %vm5232, %v5225, %v5229
    %v5234 = vand.u32 2147483647, %v5224
    %vm5235 = vcmp.eq.f32.partialorder %v5234, 8.507059e+37
    %v5236 = vand.u32 %v5224, 2147483648
    %v5237 = vor.u32 1.1754944e-38, %v5236
    %v5238 = vsel %vm5235, %v5237, %v5233
    %v5239 = vmul.f32 %v5214, %v5238
    %v5240 = vmin.f32 %v5239, 1.0
    %v5241 = vmax.f32 %v5240, -1.0
    %v5242 = vmul.f32 %v5148, %v5148
    %v5243 = vmin.f32 16.0, %v5242
    %v5244 = vmul.f32 %v5243, 2.1237322e-06
    %v5245 = vadd.f32 %v5244, 0.00028619796
    %v5246 = vmul.f32 %v5243, %v5245
    %v5247 = vadd.f32 %v5246, 0.0036580483
    %v5248 = vmul.f32 %v5243, %v5247
    %v5249 = vadd.f32 %v5248, 0.05243302
    %v5250 = vmul.f32 %v5243, %v5249
    %v5251 = vadd.f32 %v5250, 0.18741608
    %v5252 = vmul.f32 %v5243, %v5251
    %v5253 = vadd.f32 %v5252, 1.1283791
    %v5254 = vmul.f32 %v5148, %v5253
    %v5255 = vmul.f32 %v5243, 3.8918573e-05
    %v5256 = vadd.f32 %v5255, 0.001143296
    %v5257 = vmul.f32 %v5243, %v5256
    %v5258 = vadd.f32 %v5257, 0.014752088
    %v5259 = vmul.f32 %v5243, %v5258
    %v5260 = vadd.f32 %v5259, 0.112945676
    %v5261 = vmul.f32 %v5243, %v5260
    %v5262 = vadd.f32 %v5261, 0.4994258
    %v5263 = vmul.f32 %v5243, %v5262
    %v5264 = vadd.f32 %v5263, 1.0
    %v5265 = vrcp.pop %v5264
    %v5266 = vmul.f32 %v5264, %v5265
    %v5267 = vsub.f32 1.0, %v5266
    %v5268 = vmul.f32 %v5265, %v5267
    %v5269 = vadd.f32 %v5265, %v5268
    %vm5270 = vweird.f32 %v5264
    %vm5271 = vweird.f32 %v5265
    %vm5272 = vmor %vm5270, %vm5271
    %v5273 = vsel %vm5272, %v5265, %v5269
    %v5274 = vand.u32 2147483647, %v5264
    %vm5275 = vcmp.eq.f32.partialorder %v5274, 8.507059e+37
    %v5276 = vand.u32 %v5264, 2147483648
    %v5277 = vor.u32 1.1754944e-38, %v5276
    %v5278 = vsel %vm5275, %v5277, %v5273
    %v5279 = vmul.f32 %v5254, %v5278
    %v5280 = vmin.f32 %v5279, 1.0
    %v5281 = vmax.f32 %v5280, -1.0
    %v5282 = vmul.f32 %v5149, %v5149
    %v5283 = vmin.f32 16.0, %v5282
    %v5284 = vmul.f32 %v5283, 2.1237322e-06
    %v5285 = vadd.f32 %v5284, 0.00028619796
    %v5286 = vmul.f32 %v5283, %v5285
    %v5287 = vadd.f32 %v5286, 0.0036580483
    %v5288 = vmul.f32 %v5283, %v5287
    %v5289 = vadd.f32 %v5288, 0.05243302
    %v5290 = vmul.f32 %v5283, %v5289
    %v5291 = vadd.f32 %v5290, 0.18741608
    %v5292 = vmul.f32 %v5283, %v5291
    %v5293 = vadd.f32 %v5292, 1.1283791
    %v5294 = vmul.f32 %v5149, %v5293
    %v5295 = vmul.f32 %v5283, 3.8918573e-05
    %v5296 = vadd.f32 %v5295, 0.001143296
    %v5297 = vmul.f32 %v5283, %v5296
    %v5298 = vadd.f32 %v5297, 0.014752088
    %v5299 = vmul.f32 %v5283, %v5298
    %v5300 = vadd.f32 %v5299, 0.112945676
    %v5301 = vmul.f32 %v5283, %v5300
    %v5302 = vadd.f32 %v5301, 0.4994258
    %v5303 = vmul.f32 %v5283, %v5302
    %v5304 = vadd.f32 %v5303, 1.0
    %v5305 = vrcp.pop %v5304
    %v5306 = vmul.f32 %v5304, %v5305
    %v5307 = vsub.f32 1.0, %v5306
    %v5308 = vmul.f32 %v5305, %v5307
    %v5309 = vadd.f32 %v5305, %v5308
    %vm5310 = vweird.f32 %v5304
    %vm5311 = vweird.f32 %v5305
    %vm5312 = vmor %vm5310, %vm5311
    %v5313 = vsel %vm5312, %v5305, %v5309
    %v5314 = vand.u32 2147483647, %v5304
    %vm5315 = vcmp.eq.f32.partialorder %v5314, 8.507059e+37
    %v5316 = vand.u32 %v5304, 2147483648
    %v5317 = vor.u32 1.1754944e-38, %v5316
    %v5318 = vsel %vm5315, %v5317, %v5313
    %v5319 = vmul.f32 %v5294, %v5318
    %v5320 = vmin.f32 %v5319, 1.0
    %v5321 = vmax.f32 %v5320, -1.0
    %v5322 = vmul.f32 %v5150, %v5150
    %v5323 = vmin.f32 16.0, %v5322
    %v5324 = vmul.f32 %v5323, 2.1237322e-06
    %v5325 = vadd.f32 %v5324, 0.00028619796
    %v5326 = vmul.f32 %v5323, %v5325
    %v5327 = vadd.f32 %v5326, 0.0036580483
    %v5328 = vmul.f32 %v5323, %v5327
    %v5329 = vadd.f32 %v5328, 0.05243302
    %v5330 = vmul.f32 %v5323, %v5329
    %v5331 = vadd.f32 %v5330, 0.18741608
    %v5332 = vmul.f32 %v5323, %v5331
    %v5333 = vadd.f32 %v5332, 1.1283791
    %v5334 = vmul.f32 %v5150, %v5333
    %v5335 = vmul.f32 %v5323, 3.8918573e-05
    %v5336 = vadd.f32 %v5335, 0.001143296
    %v5337 = vmul.f32 %v5323, %v5336
    %v5338 = vadd.f32 %v5337, 0.014752088
    %v5339 = vmul.f32 %v5323, %v5338
    %v5340 = vadd.f32 %v5339, 0.112945676
    %v5341 = vmul.f32 %v5323, %v5340
    %v5342 = vadd.f32 %v5341, 0.4994258
    %v5343 = vmul.f32 %v5323, %v5342
    %v5344 = vadd.f32 %v5343, 1.0
    %v5345 = vrcp.pop %v5344
    %v5346 = vmul.f32 %v5344, %v5345
    %v5347 = vsub.f32 1.0, %v5346
    %v5348 = vmul.f32 %v5345, %v5347
    %v5349 = vadd.f32 %v5345, %v5348
    %vm5350 = vweird.f32 %v5344
    %vm5351 = vweird.f32 %v5345
    %vm5352 = vmor %vm5350, %vm5351
    %v5353 = vsel %vm5352, %v5345, %v5349
    %v5354 = vand.u32 2147483647, %v5344
    %vm5355 = vcmp.eq.f32.partialorder %v5354, 8.507059e+37
    %v5356 = vand.u32 %v5344, 2147483648
    %v5357 = vor.u32 1.1754944e-38, %v5356
    %v5358 = vsel %vm5355, %v5357, %v5353
    %v5359 = vmul.f32 %v5334, %v5358
    %v5360 = vmin.f32 %v5359, 1.0
    %v5361 = vmax.f32 %v5360, -1.0
    %v5362 = vmul.f32 %v5151, %v5151
    %v5363 = vmin.f32 16.0, %v5362
    %v5364 = vmul.f32 %v5363, 2.1237322e-06
    %v5365 = vadd.f32 %v5364, 0.00028619796
    %v5366 = vmul.f32 %v5363, %v5365
    %v5367 = vadd.f32 %v5366, 0.0036580483
    %v5368 = vmul.f32 %v5363, %v5367
    %v5369 = vadd.f32 %v5368, 0.05243302
    %v5370 = vmul.f32 %v5363, %v5369
    %v5371 = vadd.f32 %v5370, 0.18741608
    %v5372 = vmul.f32 %v5363, %v5371
    %v5373 = vadd.f32 %v5372, 1.1283791
    %v5374 = vmul.f32 %v5151, %v5373
    %v5375 = vmul.f32 %v5363, 3.8918573e-05
    %v5376 = vadd.f32 %v5375, 0.001143296
    %v5377 = vmul.f32 %v5363, %v5376
    %v5378 = vadd.f32 %v5377, 0.014752088
    %v5379 = vmul.f32 %v5363, %v5378
    %v5380 = vadd.f32 %v5379, 0.112945676
    %v5381 = vmul.f32 %v5363, %v5380
    %v5382 = vadd.f32 %v5381, 0.4994258
    %v5383 = vmul.f32 %v5363, %v5382
    %v5384 = vadd.f32 %v5383, 1.0
    %v5385 = vrcp.pop %v5384
    %v5386 = vmul.f32 %v5384, %v5385
    %v5387 = vsub.f32 1.0, %v5386
    %v5388 = vmul.f32 %v5385, %v5387
    %v5389 = vadd.f32 %v5385, %v5388
    %vm5390 = vweird.f32 %v5384
    %vm5391 = vweird.f32 %v5385
    %vm5392 = vmor %vm5390, %vm5391
    %v5393 = vsel %vm5392, %v5385, %v5389
    %v5394 = vand.u32 2147483647, %v5384
    %vm5395 = vcmp.eq.f32.partialorder %v5394, 8.507059e+37
    %v5396 = vand.u32 %v5384, 2147483648
    %v5397 = vor.u32 1.1754944e-38, %v5396
    %v5398 = vsel %vm5395, %v5397, %v5393
    %v5399 = vmul.f32 %v5374, %v5398
    %v5400 = vmin.f32 %v5399, 1.0
    %v5401 = vmax.f32 %v5400, -1.0
    %v5402 = vmul.f32 %v5152, %v5152
    %v5403 = vmin.f32 16.0, %v5402
    %v5404 = vmul.f32 %v5403, 2.1237322e-06
    %v5405 = vadd.f32 %v5404, 0.00028619796
    %v5406 = vmul.f32 %v5403, %v5405
    %v5407 = vadd.f32 %v5406, 0.0036580483
    %v5408 = vmul.f32 %v5403, %v5407
    %v5409 = vadd.f32 %v5408, 0.05243302
    %v5410 = vmul.f32 %v5403, %v5409
    %v5411 = vadd.f32 %v5410, 0.18741608
    %v5412 = vmul.f32 %v5403, %v5411
    %v5413 = vadd.f32 %v5412, 1.1283791
    %v5414 = vmul.f32 %v5152, %v5413
    %v5415 = vmul.f32 %v5403, 3.8918573e-05
    %v5416 = vadd.f32 %v5415, 0.001143296
    %v5417 = vmul.f32 %v5403, %v5416
    %v5418 = vadd.f32 %v5417, 0.014752088
    %v5419 = vmul.f32 %v5403, %v5418
    %v5420 = vadd.f32 %v5419, 0.112945676
    %v5421 = vmul.f32 %v5403, %v5420
    %v5422 = vadd.f32 %v5421, 0.4994258
    %v5423 = vmul.f32 %v5403, %v5422
    %v5424 = vadd.f32 %v5423, 1.0
    %v5425 = vrcp.pop %v5424
    %v5426 = vmul.f32 %v5424, %v5425
    %v5427 = vsub.f32 1.0, %v5426
    %v5428 = vmul.f32 %v5425, %v5427
    %v5429 = vadd.f32 %v5425, %v5428
    %vm5430 = vweird.f32 %v5424
    %vm5431 = vweird.f32 %v5425
    %vm5432 = vmor %vm5430, %vm5431
    %v5433 = vsel %vm5432, %v5425, %v5429
    %v5434 = vand.u32 2147483647, %v5424
    %vm5435 = vcmp.eq.f32.partialorder %v5434, 8.507059e+37
    %v5436 = vand.u32 %v5424, 2147483648
    %v5437 = vor.u32 1.1754944e-38, %v5436
    %v5438 = vsel %vm5435, %v5437, %v5433
    %v5439 = vmul.f32 %v5414, %v5438
    %v5440 = vmin.f32 %v5439, 1.0
    %v5441 = vmax.f32 %v5440, -1.0
    %v5442 = vmul.f32 %v5153, %v5153
    %v5443 = vmin.f32 16.0, %v5442
    %v5444 = vmul.f32 %v5443, 2.1237322e-06
    %v5445 = vadd.f32 %v5444, 0.00028619796
    %v5446 = vmul.f32 %v5443, %v5445
    %v5447 = vadd.f32 %v5446, 0.0036580483
    %v5448 = vmul.f32 %v5443, %v5447
    %v5449 = vadd.f32 %v5448, 0.05243302
    %v5450 = vmul.f32 %v5443, %v5449
    %v5451 = vadd.f32 %v5450, 0.18741608
    %v5452 = vmul.f32 %v5443, %v5451
    %v5453 = vadd.f32 %v5452, 1.1283791
    %v5454 = vmul.f32 %v5153, %v5453
    %v5455 = vmul.f32 %v5443, 3.8918573e-05
    %v5456 = vadd.f32 %v5455, 0.001143296
    %v5457 = vmul.f32 %v5443, %v5456
    %v5458 = vadd.f32 %v5457, 0.014752088
    %v5459 = vmul.f32 %v5443, %v5458
    %v5460 = vadd.f32 %v5459, 0.112945676
    %v5461 = vmul.f32 %v5443, %v5460
    %v5462 = vadd.f32 %v5461, 0.4994258
    %v5463 = vmul.f32 %v5443, %v5462
    %v5464 = vadd.f32 %v5463, 1.0
    %v5465 = vrcp.pop %v5464
    %v5466 = vmul.f32 %v5464, %v5465
    %v5467 = vsub.f32 1.0, %v5466
    %v5468 = vmul.f32 %v5465, %v5467
    %v5469 = vadd.f32 %v5465, %v5468
    %vm5470 = vweird.f32 %v5464
    %vm5471 = vweird.f32 %v5465
    %vm5472 = vmor %vm5470, %vm5471
    %v5473 = vsel %vm5472, %v5465, %v5469
    %v5474 = vand.u32 2147483647, %v5464
    %vm5475 = vcmp.eq.f32.partialorder %v5474, 8.507059e+37
    %v5476 = vand.u32 %v5464, 2147483648
    %v5477 = vor.u32 1.1754944e-38, %v5476
    %v5478 = vsel %vm5475, %v5477, %v5473
    %v5479 = vmul.f32 %v5454, %v5478
    %v5480 = vmin.f32 %v5479, 1.0
    %v5481 = vmax.f32 %v5480, -1.0
    %v5482 = vmul.f32 %v5154, %v5154
    %v5483 = vmin.f32 16.0, %v5482
    %v5484 = vmul.f32 %v5483, 2.1237322e-06
    %v5485 = vadd.f32 %v5484, 0.00028619796
    %v5486 = vmul.f32 %v5483, %v5485
    %v5487 = vadd.f32 %v5486, 0.0036580483
    %v5488 = vmul.f32 %v5483, %v5487
    %v5489 = vadd.f32 %v5488, 0.05243302
    %v5490 = vmul.f32 %v5483, %v5489
    %v5491 = vadd.f32 %v5490, 0.18741608
    %v5492 = vmul.f32 %v5483, %v5491
    %v5493 = vadd.f32 %v5492, 1.1283791
    %v5494 = vmul.f32 %v5154, %v5493
    %v5495 = vmul.f32 %v5483, 3.8918573e-05
    %v5496 = vadd.f32 %v5495, 0.001143296
    %v5497 = vmul.f32 %v5483, %v5496
    %v5498 = vadd.f32 %v5497, 0.014752088
    %v5499 = vmul.f32 %v5483, %v5498
    %v5500 = vadd.f32 %v5499, 0.112945676
    %v5501 = vmul.f32 %v5483, %v5500
    %v5502 = vadd.f32 %v5501, 0.4994258
    %v5503 = vmul.f32 %v5483, %v5502
    %v5504 = vadd.f32 %v5503, 1.0
    %v5505 = vrcp.pop %v5504
    %v5506 = vmul.f32 %v5504, %v5505
    %v5507 = vsub.f32 1.0, %v5506
    %v5508 = vmul.f32 %v5505, %v5507
    %v5509 = vadd.f32 %v5505, %v5508
    %vm5510 = vweird.f32 %v5504
    %vm5511 = vweird.f32 %v5505
    %vm5512 = vmor %vm5510, %vm5511
    %v5513 = vsel %vm5512, %v5505, %v5509
    %v5514 = vand.u32 2147483647, %v5504
    %vm5515 = vcmp.eq.f32.partialorder %v5514, 8.507059e+37
    %v5516 = vand.u32 %v5504, 2147483648
    %v5517 = vor.u32 1.1754944e-38, %v5516
    %v5518 = vsel %vm5515, %v5517, %v5513
    %v5519 = vmul.f32 %v5494, %v5518
    %v5520 = vmin.f32 %v5519, 1.0
    %v5521 = vmax.f32 %v5520, -1.0
    %v5522 = vmul.f32 %v5155, %v5155
    %v5523 = vmin.f32 16.0, %v5522
    %v5524 = vmul.f32 %v5523, 2.1237322e-06
    %v5525 = vadd.f32 %v5524, 0.00028619796
    %v5526 = vmul.f32 %v5523, %v5525
    %v5527 = vadd.f32 %v5526, 0.0036580483
    %v5528 = vmul.f32 %v5523, %v5527
    %v5529 = vadd.f32 %v5528, 0.05243302
    %v5530 = vmul.f32 %v5523, %v5529
    %v5531 = vadd.f32 %v5530, 0.18741608
    %v5532 = vmul.f32 %v5523, %v5531
    %v5533 = vadd.f32 %v5532, 1.1283791
    %v5534 = vmul.f32 %v5155, %v5533
    %v5535 = vmul.f32 %v5523, 3.8918573e-05
    %v5536 = vadd.f32 %v5535, 0.001143296
    %v5537 = vmul.f32 %v5523, %v5536
    %v5538 = vadd.f32 %v5537, 0.014752088
    %v5539 = vmul.f32 %v5523, %v5538
    %v5540 = vadd.f32 %v5539, 0.112945676
    %v5541 = vmul.f32 %v5523, %v5540
    %v5542 = vadd.f32 %v5541, 0.4994258
    %v5543 = vmul.f32 %v5523, %v5542
    %v5544 = vadd.f32 %v5543, 1.0
    %v5545 = vrcp.pop %v5544
    %v5546 = vmul.f32 %v5544, %v5545
    %v5547 = vsub.f32 1.0, %v5546
    %v5548 = vmul.f32 %v5545, %v5547
    %v5549 = vadd.f32 %v5545, %v5548
    %vm5550 = vweird.f32 %v5544
    %vm5551 = vweird.f32 %v5545
    %vm5552 = vmor %vm5550, %vm5551
    %v5553 = vsel %vm5552, %v5545, %v5549
    %v5554 = vand.u32 2147483647, %v5544
    %vm5555 = vcmp.eq.f32.partialorder %v5554, 8.507059e+37
    %v5556 = vand.u32 %v5544, 2147483648
    %v5557 = vor.u32 1.1754944e-38, %v5556
    %v5558 = vsel %vm5555, %v5557, %v5553
    %v5559 = vmul.f32 %v5534, %v5558
    %v5560 = vmin.f32 %v5559, 1.0
    %v5561 = vmax.f32 %v5560, -1.0
    %v5562 = vmul.f32 %v5156, %v5156
    %v5563 = vmin.f32 16.0, %v5562
    %v5564 = vmul.f32 %v5563, 2.1237322e-06
    %v5565 = vadd.f32 %v5564, 0.00028619796
    %v5566 = vmul.f32 %v5563, %v5565
    %v5567 = vadd.f32 %v5566, 0.0036580483
    %v5568 = vmul.f32 %v5563, %v5567
    %v5569 = vadd.f32 %v5568, 0.05243302
    %v5570 = vmul.f32 %v5563, %v5569
    %v5571 = vadd.f32 %v5570, 0.18741608
    %v5572 = vmul.f32 %v5563, %v5571
    %v5573 = vadd.f32 %v5572, 1.1283791
    %v5574 = vmul.f32 %v5156, %v5573
    %v5575 = vmul.f32 %v5563, 3.8918573e-05
    %v5576 = vadd.f32 %v5575, 0.001143296
    %v5577 = vmul.f32 %v5563, %v5576
    %v5578 = vadd.f32 %v5577, 0.014752088
    %v5579 = vmul.f32 %v5563, %v5578
    %v5580 = vadd.f32 %v5579, 0.112945676
    %v5581 = vmul.f32 %v5563, %v5580
    %v5582 = vadd.f32 %v5581, 0.4994258
    %v5583 = vmul.f32 %v5563, %v5582
    %v5584 = vadd.f32 %v5583, 1.0
    %v5585 = vrcp.pop %v5584
    %v5586 = vmul.f32 %v5584, %v5585
    %v5587 = vsub.f32 1.0, %v5586
    %v5588 = vmul.f32 %v5585, %v5587
    %v5589 = vadd.f32 %v5585, %v5588
    %vm5590 = vweird.f32 %v5584
    %vm5591 = vweird.f32 %v5585
    %vm5592 = vmor %vm5590, %vm5591
    %v5593 = vsel %vm5592, %v5585, %v5589
    %v5594 = vand.u32 2147483647, %v5584
    %vm5595 = vcmp.eq.f32.partialorder %v5594, 8.507059e+37
    %v5596 = vand.u32 %v5584, 2147483648
    %v5597 = vor.u32 1.1754944e-38, %v5596
    %v5598 = vsel %vm5595, %v5597, %v5593
    %v5599 = vmul.f32 %v5574, %v5598
    %v5600 = vmin.f32 %v5599, 1.0
    %v5601 = vmax.f32 %v5600, -1.0
    %v5602 = vmul.f32 %v5157, %v5157
    %v5603 = vmin.f32 16.0, %v5602
    %v5604 = vmul.f32 %v5603, 2.1237322e-06
    %v5605 = vadd.f32 %v5604, 0.00028619796
    %v5606 = vmul.f32 %v5603, %v5605
    %v5607 = vadd.f32 %v5606, 0.0036580483
    %v5608 = vmul.f32 %v5603, %v5607
    %v5609 = vadd.f32 %v5608, 0.05243302
    %v5610 = vmul.f32 %v5603, %v5609
    %v5611 = vadd.f32 %v5610, 0.18741608
    %v5612 = vmul.f32 %v5603, %v5611
    %v5613 = vadd.f32 %v5612, 1.1283791
    %v5614 = vmul.f32 %v5157, %v5613
    %v5615 = vmul.f32 %v5603, 3.8918573e-05
    %v5616 = vadd.f32 %v5615, 0.001143296
    %v5617 = vmul.f32 %v5603, %v5616
    %v5618 = vadd.f32 %v5617, 0.014752088
    %v5619 = vmul.f32 %v5603, %v5618
    %v5620 = vadd.f32 %v5619, 0.112945676
    %v5621 = vmul.f32 %v5603, %v5620
    %v5622 = vadd.f32 %v5621, 0.4994258
    %v5623 = vmul.f32 %v5603, %v5622
    %v5624 = vadd.f32 %v5623, 1.0
    %v5625 = vrcp.pop %v5624
    %v5626 = vmul.f32 %v5624, %v5625
    %v5627 = vsub.f32 1.0, %v5626
    %v5628 = vmul.f32 %v5625, %v5627
    %v5629 = vadd.f32 %v5625, %v5628
    %vm5630 = vweird.f32 %v5624
    %vm5631 = vweird.f32 %v5625
    %vm5632 = vmor %vm5630, %vm5631
    %v5633 = vsel %vm5632, %v5625, %v5629
    %v5634 = vand.u32 2147483647, %v5624
    %vm5635 = vcmp.eq.f32.partialorder %v5634, 8.507059e+37
    %v5636 = vand.u32 %v5624, 2147483648
    %v5637 = vor.u32 1.1754944e-38, %v5636
    %v5638 = vsel %vm5635, %v5637, %v5633
    %v5639 = vmul.f32 %v5614, %v5638
    %v5640 = vmin.f32 %v5639, 1.0
    %v5641 = vmax.f32 %v5640, -1.0
    %v5642 = vmul.f32 %v5158, %v5158
    %v5643 = vmin.f32 16.0, %v5642
    %v5644 = vmul.f32 %v5643, 2.1237322e-06
    %v5645 = vadd.f32 %v5644, 0.00028619796
    %v5646 = vmul.f32 %v5643, %v5645
    %v5647 = vadd.f32 %v5646, 0.0036580483
    %v5648 = vmul.f32 %v5643, %v5647
    %v5649 = vadd.f32 %v5648, 0.05243302
    %v5650 = vmul.f32 %v5643, %v5649
    %v5651 = vadd.f32 %v5650, 0.18741608
    %v5652 = vmul.f32 %v5643, %v5651
    %v5653 = vadd.f32 %v5652, 1.1283791
    %v5654 = vmul.f32 %v5158, %v5653
    %v5655 = vmul.f32 %v5643, 3.8918573e-05
    %v5656 = vadd.f32 %v5655, 0.001143296
    %v5657 = vmul.f32 %v5643, %v5656
    %v5658 = vadd.f32 %v5657, 0.014752088
    %v5659 = vmul.f32 %v5643, %v5658
    %v5660 = vadd.f32 %v5659, 0.112945676
    %v5661 = vmul.f32 %v5643, %v5660
    %v5662 = vadd.f32 %v5661, 0.4994258
    %v5663 = vmul.f32 %v5643, %v5662
    %v5664 = vadd.f32 %v5663, 1.0
    %v5665 = vrcp.pop %v5664
    %v5666 = vmul.f32 %v5664, %v5665
    %v5667 = vsub.f32 1.0, %v5666
    %v5668 = vmul.f32 %v5665, %v5667
    %v5669 = vadd.f32 %v5665, %v5668
    %vm5670 = vweird.f32 %v5664
    %vm5671 = vweird.f32 %v5665
    %vm5672 = vmor %vm5670, %vm5671
    %v5673 = vsel %vm5672, %v5665, %v5669
    %v5674 = vand.u32 2147483647, %v5664
    %vm5675 = vcmp.eq.f32.partialorder %v5674, 8.507059e+37
    %v5676 = vand.u32 %v5664, 2147483648
    %v5677 = vor.u32 1.1754944e-38, %v5676
    %v5678 = vsel %vm5675, %v5677, %v5673
    %v5679 = vmul.f32 %v5654, %v5678
    %v5680 = vmin.f32 %v5679, 1.0
    %v5681 = vmax.f32 %v5680, -1.0
    %v5682 = vmul.f32 %v5159, %v5159
    %v5683 = vmin.f32 16.0, %v5682
    %v5684 = vmul.f32 %v5683, 2.1237322e-06
    %v5685 = vadd.f32 %v5684, 0.00028619796
    %v5686 = vmul.f32 %v5683, %v5685
    %v5687 = vadd.f32 %v5686, 0.0036580483
    %v5688 = vmul.f32 %v5683, %v5687
    %v5689 = vadd.f32 %v5688, 0.05243302
    %v5690 = vmul.f32 %v5683, %v5689
    %v5691 = vadd.f32 %v5690, 0.18741608
    %v5692 = vmul.f32 %v5683, %v5691
    %v5693 = vadd.f32 %v5692, 1.1283791
    %v5694 = vmul.f32 %v5159, %v5693
    %v5695 = vmul.f32 %v5683, 3.8918573e-05
    %v5696 = vadd.f32 %v5695, 0.001143296
    %v5697 = vmul.f32 %v5683, %v5696
    %v5698 = vadd.f32 %v5697, 0.014752088
    %v5699 = vmul.f32 %v5683, %v5698
    %v5700 = vadd.f32 %v5699, 0.112945676
    %v5701 = vmul.f32 %v5683, %v5700
    %v5702 = vadd.f32 %v5701, 0.4994258
    %v5703 = vmul.f32 %v5683, %v5702
    %v5704 = vadd.f32 %v5703, 1.0
    %v5705 = vrcp.pop %v5704
    %v5706 = vmul.f32 %v5704, %v5705
    %v5707 = vsub.f32 1.0, %v5706
    %v5708 = vmul.f32 %v5705, %v5707
    %v5709 = vadd.f32 %v5705, %v5708
    %vm5710 = vweird.f32 %v5704
    %vm5711 = vweird.f32 %v5705
    %vm5712 = vmor %vm5710, %vm5711
    %v5713 = vsel %vm5712, %v5705, %v5709
    %v5714 = vand.u32 2147483647, %v5704
    %vm5715 = vcmp.eq.f32.partialorder %v5714, 8.507059e+37
    %v5716 = vand.u32 %v5704, 2147483648
    %v5717 = vor.u32 1.1754944e-38, %v5716
    %v5718 = vsel %vm5715, %v5717, %v5713
    %v5719 = vmul.f32 %v5694, %v5718
    %v5720 = vmin.f32 %v5719, 1.0
    %v5721 = vmax.f32 %v5720, -1.0
    %v5722 = vmul.f32 %v5160, %v5160
    %v5723 = vmin.f32 16.0, %v5722
    %v5724 = vmul.f32 %v5723, 2.1237322e-06
    %v5725 = vadd.f32 %v5724, 0.00028619796
    %v5726 = vmul.f32 %v5723, %v5725
    %v5727 = vadd.f32 %v5726, 0.0036580483
    %v5728 = vmul.f32 %v5723, %v5727
    %v5729 = vadd.f32 %v5728, 0.05243302
    %v5730 = vmul.f32 %v5723, %v5729
    %v5731 = vadd.f32 %v5730, 0.18741608
    %v5732 = vmul.f32 %v5723, %v5731
    %v5733 = vadd.f32 %v5732, 1.1283791
    %v5734 = vmul.f32 %v5160, %v5733
    %v5735 = vmul.f32 %v5723, 3.8918573e-05
    %v5736 = vadd.f32 %v5735, 0.001143296
    %v5737 = vmul.f32 %v5723, %v5736
    %v5738 = vadd.f32 %v5737, 0.014752088
    %v5739 = vmul.f32 %v5723, %v5738
    %v5740 = vadd.f32 %v5739, 0.112945676
    %v5741 = vmul.f32 %v5723, %v5740
    %v5742 = vadd.f32 %v5741, 0.4994258
    %v5743 = vmul.f32 %v5723, %v5742
    %v5744 = vadd.f32 %v5743, 1.0
    %v5745 = vrcp.pop %v5744
    %v5746 = vmul.f32 %v5744, %v5745
    %v5747 = vsub.f32 1.0, %v5746
    %v5748 = vmul.f32 %v5745, %v5747
    %v5749 = vadd.f32 %v5745, %v5748
    %vm5750 = vweird.f32 %v5744
    %vm5751 = vweird.f32 %v5745
    %vm5752 = vmor %vm5750, %vm5751
    %v5753 = vsel %vm5752, %v5745, %v5749
    %v5754 = vand.u32 2147483647, %v5744
    %vm5755 = vcmp.eq.f32.partialorder %v5754, 8.507059e+37
    %v5756 = vand.u32 %v5744, 2147483648
    %v5757 = vor.u32 1.1754944e-38, %v5756
    %v5758 = vsel %vm5755, %v5757, %v5753
    %v5759 = vmul.f32 %v5734, %v5758
    %v5760 = vmin.f32 %v5759, 1.0
    %v5761 = vmax.f32 %v5760, -1.0
    %v5762 = vmul.f32 %v5161, %v5161
    %v5763 = vmin.f32 16.0, %v5762
    %v5764 = vmul.f32 %v5763, 2.1237322e-06
    %v5765 = vadd.f32 %v5764, 0.00028619796
    %v5766 = vmul.f32 %v5763, %v5765
    %v5767 = vadd.f32 %v5766, 0.0036580483
    %v5768 = vmul.f32 %v5763, %v5767
    %v5769 = vadd.f32 %v5768, 0.05243302
    %v5770 = vmul.f32 %v5763, %v5769
    %v5771 = vadd.f32 %v5770, 0.18741608
    %v5772 = vmul.f32 %v5763, %v5771
    %v5773 = vadd.f32 %v5772, 1.1283791
    %v5774 = vmul.f32 %v5161, %v5773
    %v5775 = vmul.f32 %v5763, 3.8918573e-05
    %v5776 = vadd.f32 %v5775, 0.001143296
    %v5777 = vmul.f32 %v5763, %v5776
    %v5778 = vadd.f32 %v5777, 0.014752088
    %v5779 = vmul.f32 %v5763, %v5778
    %v5780 = vadd.f32 %v5779, 0.112945676
    %v5781 = vmul.f32 %v5763, %v5780
    %v5782 = vadd.f32 %v5781, 0.4994258
    %v5783 = vmul.f32 %v5763, %v5782
    %v5784 = vadd.f32 %v5783, 1.0
    %v5785 = vrcp.pop %v5784
    %v5786 = vmul.f32 %v5784, %v5785
    %v5787 = vsub.f32 1.0, %v5786
    %v5788 = vmul.f32 %v5785, %v5787
    %v5789 = vadd.f32 %v5785, %v5788
    %vm5790 = vweird.f32 %v5784
    %vm5791 = vweird.f32 %v5785
    %vm5792 = vmor %vm5790, %vm5791
    %v5793 = vsel %vm5792, %v5785, %v5789
    %v5794 = vand.u32 2147483647, %v5784
    %vm5795 = vcmp.eq.f32.partialorder %v5794, 8.507059e+37
    %v5796 = vand.u32 %v5784, 2147483648
    %v5797 = vor.u32 1.1754944e-38, %v5796
    %v5798 = vsel %vm5795, %v5797, %v5793
    %v5799 = vmul.f32 %v5774, %v5798
    %v5800 = vmin.f32 %v5799, 1.0
    %v5801 = vmax.f32 %v5800, -1.0
    %v5802 = vadd.f32 %v5201, 1.0
    %v5803 = vadd.f32 %v5241, 1.0
    %v5804 = vadd.f32 %v5281, 1.0
    %v5805 = vadd.f32 %v5321, 1.0
    %v5806 = vadd.f32 %v5361, 1.0
    %v5807 = vadd.f32 %v5401, 1.0
    %v5808 = vadd.f32 %v5441, 1.0
    %v5809 = vadd.f32 %v5481, 1.0
    %v5810 = vadd.f32 %v5521, 1.0
    %v5811 = vadd.f32 %v5561, 1.0
    %v5812 = vadd.f32 %v5601, 1.0
    %v5813 = vadd.f32 %v5641, 1.0
    %v5814 = vadd.f32 %v5681, 1.0
    %v5815 = vadd.f32 %v5721, 1.0
    %v5816 = vadd.f32 %v5761, 1.0
    %v5817 = vadd.f32 %v5801, 1.0
    %v5818 = vmul.f32 %v5130, %v5802
    %v5819 = vmul.f32 %v5131, %v5803
    %v5820 = vmul.f32 %v5132, %v5804
    %v5821 = vmul.f32 %v5133, %v5805
    %v5822 = vmul.f32 %v5134, %v5806
    %v5823 = vmul.f32 %v5135, %v5807
    %v5824 = vmul.f32 %v5136, %v5808
    %v5825 = vmul.f32 %v5137, %v5809
    %v5826 = vmul.f32 %v5138, %v5810
    %v5827 = vmul.f32 %v5139, %v5811
    %v5828 = vmul.f32 %v5140, %v5812
    %v5829 = vmul.f32 %v5141, %v5813
    %v5830 = vmul.f32 %v5142, %v5814
    %v5831 = vmul.f32 %v5143, %v5815
    %v5832 = vmul.f32 %v5144, %v5816
    %v5833 = vmul.f32 %v5145, %v5817
    %v5834 = vpack.c.bf16 %v5819, %v5818
    %v5835 = vpack.c.bf16 %v5821, %v5820
    %v5836 = vpack.c.bf16 %v5823, %v5822
    %v5837 = vpack.c.bf16 %v5825, %v5824
    %v5838 = vpack.c.bf16 %v5827, %v5826
    %v5839 = vpack.c.bf16 %v5829, %v5828
    %v5840 = vpack.c.bf16 %v5831, %v5830
    %v5841 = vpack.c.bf16 %v5833, %v5832
    %s5842 = scalar_lea.vmem [#allocation2], 704
    %v5843 = vld [vmem:[%s5842] sm:$0xf]
    %v5844 = vld [vmem:[%s5842 + $0x4] sm:$0xf]
    %v5845 = vld [vmem:[%s5842 + $0x8] sm:$0xf]
    %v5846 = vld [vmem:[%s5842 + $0xc] sm:$0xf]
    %v5847 = vld [vmem:[%s5842 + $0x10] sm:$0xf]
    %v5848 = vld [vmem:[%s5842 + $0x14] sm:$0xf]
    %v5849 = vld [vmem:[%s5842 + $0x18] sm:$0xf]
    %v5850 = vld [vmem:[%s5842 + $0x1c] sm:$0xf]
    %v5851 = vld [vmem:[%s5842 + $0x20] sm:$0xf]
    %v5852 = vld [vmem:[%s5842 + $0x24] sm:$0xf]
    %v5853 = vld [vmem:[%s5842 + $0x28] sm:$0xf]
    %v5854 = vld [vmem:[%s5842 + $0x2c] sm:$0xf]
    %v5855 = vld [vmem:[%s5842 + $0x30] sm:$0xf]
    %v5856 = vld [vmem:[%s5842 + $0x34] sm:$0xf]
    %v5857 = vld [vmem:[%s5842 + $0x38] sm:$0xf]
    %v5858 = vld [vmem:[%s5842 + $0x3c] sm:$0xf]
    %v5859 = vld [vmem:[%s3 + $0x13] sm:$0x1]
    %v5860 = vperm.slane %v5859, 0
    %v5877 = vunpack.c.l.b16 %v5843
    %v5878 = vunpack.c.l.b16 %v5844
    %v5879 = vunpack.c.l.b16 %v5845
    %v5880 = vunpack.c.l.b16 %v5846
    %v5881 = vunpack.c.l.b16 %v5847
    %v5882 = vunpack.c.l.b16 %v5848
    %v5883 = vunpack.c.l.b16 %v5849
    %v5884 = vunpack.c.l.b16 %v5850
    %v5885 = vunpack.c.l.b16 %v5851
    %v5886 = vunpack.c.l.b16 %v5852
    %v5887 = vunpack.c.l.b16 %v5853
    %v5888 = vunpack.c.l.b16 %v5854
    %v5889 = vunpack.c.l.b16 %v5855
    %v5890 = vunpack.c.l.b16 %v5856
    %v5891 = vunpack.c.l.b16 %v5857
    %v5892 = vunpack.c.l.b16 %v5858
    %v5893 = vpack.c.b16 %v5878, %v5877
    %v5894 = vpack.c.b16 %v5880, %v5879
    %v5895 = vpack.c.b16 %v5882, %v5881
    %v5896 = vpack.c.b16 %v5884, %v5883
    %v5897 = vpack.c.b16 %v5886, %v5885
    %v5898 = vpack.c.b16 %v5888, %v5887
    %v5899 = vpack.c.b16 %v5890, %v5889
    %v5900 = vpack.c.b16 %v5892, %v5891
    %5909 = vmatpush.bf16.msra.mxu0 %v5900
    %5910 = vmatpush.bf16.msra.mxu0 %v5899
    %5911 = vmatpush.bf16.msra.mxu0 %v5898
    %5912 = vmatpush.bf16.msra.mxu0 %v5897
    %5913 = vmatpush.bf16.msra.mxu0 %v5896
    %5914 = vmatpush.bf16.msra.mxu0 %v5895
    %5915 = vmatpush.bf16.msra.mxu0 %v5894
    %5916 = vmatpush.bf16.msra.mxu0 %v5893
    %5917 = vmatmul.bf16.gmra.mxu0 %v5834
    %v5918 = vpop.f32.mrf.mxu0
    %v5919 = vadd.f32 %v5860, %v5918
    %v5920 = vpop.f32.mrf.mxu0
    %v5921 = vadd.f32 %v5860, %v5920
    %5922 = vmatmul.bf16.gmra.mxu0 %v5835
    %v5923 = vpop.f32.mrf.mxu0
    %v5924 = vpop.f32.mrf.mxu0
    %5925 = vmatmul.bf16.gmra.mxu0 %v5836
    %v5926 = vpop.f32.mrf.mxu0
    %v5927 = vpop.f32.mrf.mxu0
    %5928 = vmatmul.bf16.gmra.mxu0 %v5837
    %v5929 = vpop.f32.mrf.mxu0
    %v5930 = vpop.f32.mrf.mxu0
    %5931 = vmatmul.bf16.gmra.mxu0 %v5838
    %v5932 = vpop.f32.mrf.mxu0
    %v5933 = vpop.f32.mrf.mxu0
    %5934 = vmatmul.bf16.gmra.mxu0 %v5839
    %v5935 = vpop.f32.mrf.mxu0
    %v5936 = vpop.f32.mrf.mxu0
    %5937 = vmatmul.bf16.gmra.mxu0 %v5840
    %v5938 = vpop.f32.mrf.mxu0
    %v5939 = vpop.f32.mrf.mxu0
    %5940 = vmatmul.bf16.gmra.mxu0 %v5841
    %v5941 = vpop.f32.mrf.mxu0
    %v5942 = vpop.f32.mrf.mxu0
    %5943 = vdwg.mxu0
    %v5944 = vadd.f32 %v5919, %v4990
    %v5945 = vadd.f32 %v5921, %v4991
    %v5946 = vld [vmem:[%s3 + $0x14] sm:$0x1]
    %v5947 = vld [vmem:[%s3 + $0x15] sm:$0x1]
    %v5948 = vmul.f32 %v5944, %v37
    %v5949 = vmul.f32 %v5945, %v37
    %5950 = vadd.xlane.f32.xlu0 %v5948
    %v5951 = vpop.xlane.xlu0 %5950
    %5952 = vadd.xlane.f32.xlu0 %v5949
    %v5953 = vpop.xlane.xlu0 %5952
    %v5954 = vmul.f32 %v5951, 0.03125
    %v5955 = vmul.f32 %v5953, 0.03125
    %v5956 = vsub.f32 %v5944, %v5954
    %v5957 = vsub.f32 %v5945, %v5955
    %v5958 = vmul.f32 %v5956, %v37
    %v5959 = vmul.f32 %v5957, %v37
    %v5960 = vmul.f32 %v5958, %v5958
    %v5961 = vmul.f32 %v5959, %v5959
    %5962 = vadd.xlane.f32.xlu0 %v5960
    %v5963 = vpop.xlane.xlu0 %5962
    %5964 = vadd.xlane.f32.xlu0 %v5961
    %v5965 = vpop.xlane.xlu0 %5964
    %v5966 = vmul.f32 %v5963, 0.03125
    %v5967 = vmul.f32 %v5965, 0.03125
    %v5968 = vadd.f32 %v5966, 1e-05
    %v5969 = vadd.f32 %v5967, 1e-05
    %v5970 = vrsqrt.pop %v5968
    %v5971 = vmul.f32 %v5970, %v5968
    %v5972 = vmul.f32 %v5971, %v5970
    %v5973 = vmul.f32 0.5, %v5972
    %v5974 = vsub.f32 1.5, %v5973
    %v5975 = vmul.f32 %v5970, %v5974
    %vm5976 = vweird.f32 %v5968
    %vm5977 = vweird.f32 %v5970
    %vm5978 = vmor %vm5976, %vm5977
    %v5979 = vsel %vm5978, %v5970, %v5975
    %v5980 = vrsqrt.pop %v5969
    %v5981 = vmul.f32 %v5980, %v5969
    %v5982 = vmul.f32 %v5981, %v5980
    %v5983 = vmul.f32 0.5, %v5982
    %v5984 = vsub.f32 1.5, %v5983
    %v5985 = vmul.f32 %v5980, %v5984
    %vm5986 = vweird.f32 %v5969
    %vm5987 = vweird.f32 %v5980
    %vm5988 = vmor %vm5986, %vm5987
    %v5989 = vsel %vm5988, %v5980, %v5985
    %v5990 = vmul.f32 %v5958, %v5979
    %v5991 = vmul.f32 %v5959, %v5989
    %v5992 = vperm.slane %v5946, 0
    %v5993 = vmul.f32 %v5990, %v5992
    %v5994 = vmul.f32 %v5991, %v5992
    %v5995 = vperm.slane %v5947, 0
    %v5996 = vadd.f32 %v5993, %v5995
    %v5997 = vadd.f32 %v5994, %v5995
    %v5998 = vpack.c.bf16 %v5997, %v5996
    %s5999 = scalar_lea.vmem [#allocation2], 768
    %v6000 = vld [vmem:[%s5999] sm:$0xf]
    %v6001 = vld [vmem:[%s5999 + $0x4] sm:$0xf]
    %v6002 = vld [vmem:[%s5999 + $0x8] sm:$0xf]
    %v6003 = vld [vmem:[%s5999 + $0xc] sm:$0xf]
    %v6004 = vld [vmem:[%s5999 + $0x10] sm:$0xf]
    %v6005 = vld [vmem:[%s5999 + $0x14] sm:$0xf]
    %v6006 = vld [vmem:[%s5999 + $0x18] sm:$0xf]
    %v6007 = vld [vmem:[%s5999 + $0x1c] sm:$0xf]
    %v6008 = vld [vmem:[%s5999 + $0x20] sm:$0xf]
    %v6009 = vld [vmem:[%s5999 + $0x24] sm:$0xf]
    %v6010 = vld [vmem:[%s5999 + $0x28] sm:$0xf]
    %v6011 = vld [vmem:[%s5999 + $0x2c] sm:$0xf]
    %v6012 = vld [vmem:[%s5999 + $0x30] sm:$0xf]
    %v6013 = vld [vmem:[%s5999 + $0x34] sm:$0xf]
    %v6014 = vld [vmem:[%s5999 + $0x38] sm:$0xf]
    %v6015 = vld [vmem:[%s5999 + $0x3c] sm:$0xf]
    %v6016 = vld [vmem:[%s3 + $0x16] sm:$0x1]
    %v6017 = vperm.slane %v6016, 0
    %v6034 = vunpack.c.l.b16 %v6000
    %v6035 = vunpack.c.l.b16 %v6001
    %v6036 = vunpack.c.l.b16 %v6002
    %v6037 = vunpack.c.l.b16 %v6003
    %v6038 = vunpack.c.l.b16 %v6004
    %v6039 = vunpack.c.l.b16 %v6005
    %v6040 = vunpack.c.l.b16 %v6006
    %v6041 = vunpack.c.l.b16 %v6007
    %v6042 = vunpack.c.l.b16 %v6008
    %v6043 = vunpack.c.l.b16 %v6009
    %v6044 = vunpack.c.l.b16 %v6010
    %v6045 = vunpack.c.l.b16 %v6011
    %v6046 = vunpack.c.l.b16 %v6012
    %v6047 = vunpack.c.l.b16 %v6013
    %v6048 = vunpack.c.l.b16 %v6014
    %v6049 = vunpack.c.l.b16 %v6015
    %v6050 = vpack.c.b16 %v6035, %v6034
    %v6051 = vpack.c.b16 %v6037, %v6036
    %v6052 = vpack.c.b16 %v6039, %v6038
    %v6053 = vpack.c.b16 %v6041, %v6040
    %v6054 = vpack.c.b16 %v6043, %v6042
    %v6055 = vpack.c.b16 %v6045, %v6044
    %v6056 = vpack.c.b16 %v6047, %v6046
    %v6057 = vpack.c.b16 %v6049, %v6048
    %6066 = vmatpush.bf16.msra.mxu0 %v6057
    %6067 = vmatpush.bf16.msra.mxu0 %v6056
    %6068 = vmatpush.bf16.msra.mxu0 %v6055
    %6069 = vmatpush.bf16.msra.mxu0 %v6054
    %6070 = vmatpush.bf16.msra.mxu0 %v6053
    %6071 = vmatpush.bf16.msra.mxu0 %v6052
    %6072 = vmatpush.bf16.msra.mxu0 %v6051
    %6073 = vmatpush.bf16.msra.mxu0 %v6050
    %6074 = vmatmul.bf16.gmra.mxu0 %v5998
    %v6075 = vpop.f32.mrf.mxu0
    %v6076 = vadd.f32 %v6017, %v6075
    %v6077 = vpop.f32.mrf.mxu0
    %v6078 = vadd.f32 %v6017, %v6077
    %6079 = vdwg.mxu0
    %v6080 = vtanh.pop %v6076
    %v6081 = vtanh.pop %v6078
    %v6082 = vpack.c.bf16 %v6081, %v6080
    %s6083 = scalar_lea.vmem [#allocation2], 832
    %v6084 = vld [vmem:[%s6083] sm:$0xf]
    %v6085 = vld [vmem:[%s6083 + $0x4] sm:$0xf]
    %v6086 = vld [vmem:[%s6083 + $0x8] sm:$0xf]
    %v6087 = vld [vmem:[%s6083 + $0xc] sm:$0xf]
    %v6088 = vld [vmem:[%s6083 + $0x10] sm:$0xf]
    %v6089 = vld [vmem:[%s6083 + $0x14] sm:$0xf]
    %v6090 = vld [vmem:[%s6083 + $0x18] sm:$0xf]
    %v6091 = vld [vmem:[%s6083 + $0x1c] sm:$0xf]
    %v6092 = vld [vmem:[%s6083 + $0x20] sm:$0xf]
    %v6093 = vld [vmem:[%s6083 + $0x24] sm:$0xf]
    %v6094 = vld [vmem:[%s6083 + $0x28] sm:$0xf]
    %v6095 = vld [vmem:[%s6083 + $0x2c] sm:$0xf]
    %v6096 = vld [vmem:[%s6083 + $0x30] sm:$0xf]
    %v6097 = vld [vmem:[%s6083 + $0x34] sm:$0xf]
    %v6098 = vld [vmem:[%s6083 + $0x38] sm:$0xf]
    %v6099 = vld [vmem:[%s6083 + $0x3c] sm:$0xf]
    %v6100 = vld [vmem:[%s3 + $0x17] sm:$0x1]
    %v6101 = vperm.slane %v6100, 0
    %v6118 = vunpack.c.l.b16 %v6084
    %v6119 = vunpack.c.l.b16 %v6085
    %v6120 = vunpack.c.l.b16 %v6086
    %v6121 = vunpack.c.l.b16 %v6087
    %v6122 = vunpack.c.l.b16 %v6088
    %v6123 = vunpack.c.l.b16 %v6089
    %v6124 = vunpack.c.l.b16 %v6090
    %v6125 = vunpack.c.l.b16 %v6091
    %v6126 = vunpack.c.l.b16 %v6092
    %v6127 = vunpack.c.l.b16 %v6093
    %v6128 = vunpack.c.l.b16 %v6094
    %v6129 = vunpack.c.l.b16 %v6095
    %v6130 = vunpack.c.l.b16 %v6096
    %v6131 = vunpack.c.l.b16 %v6097
    %v6132 = vunpack.c.l.b16 %v6098
    %v6133 = vunpack.c.l.b16 %v6099
    %v6134 = vpack.c.b16 %v6119, %v6118
    %v6135 = vpack.c.b16 %v6121, %v6120
    %v6136 = vpack.c.b16 %v6123, %v6122
    %v6137 = vpack.c.b16 %v6125, %v6124
    %v6138 = vpack.c.b16 %v6127, %v6126
    %v6139 = vpack.c.b16 %v6129, %v6128
    %v6140 = vpack.c.b16 %v6131, %v6130
    %v6141 = vpack.c.b16 %v6133, %v6132
    %6150 = vmatpush.bf16.msra.mxu0 %v6141
    %6151 = vmatpush.bf16.msra.mxu0 %v6140
    %6152 = vmatpush.bf16.msra.mxu0 %v6139
    %6153 = vmatpush.bf16.msra.mxu0 %v6138
    %6154 = vmatpush.bf16.msra.mxu0 %v6137
    %6155 = vmatpush.bf16.msra.mxu0 %v6136
    %6156 = vmatpush.bf16.msra.mxu0 %v6135
    %6157 = vmatpush.bf16.msra.mxu0 %v6134
    %6158 = vmatmul.bf16.gmra.mxu0 %v6082
    %v6159 = vpop.f32.mrf.mxu0
    %v6160 = vadd.f32 %v6101, %v6159
    %v6161 = vpop.f32.mrf.mxu0
    %v6162 = vadd.f32 %v6101, %v6161
    %6163 = vdwg.mxu0
    %6164 = vst [vmem:[%s4] sm:$0xff] %v6160
    %6165 = vst [vmem:[%s4 + $0x8] sm:$0xff] %v6162
    // Predicated region
    $region22: #{roberta_pair_forward.1} parent=1 // pred_check
      _
    $region23: #{roberta_pair_forward.1} parent=1 // pred_check_branch
      %6167 = sbr.rel (0) target = $region25
    $region24: #{roberta_pair_forward.1} parent=1 // pred_region
      _
    $region25: #{roberta_pair_forward.1} parent=1 // pred_fallthru
      _
    // Predicated region
    $region26: #{roberta_pair_forward.1} parent=1 // pred_check
      _
    $region27: #{roberta_pair_forward.1} parent=1 // pred_check_branch
      %6169 = sbr.rel (0) target = $region29
    $region28: #{roberta_pair_forward.1} parent=1 // pred_region
      _
    $region29: #{roberta_pair_forward.1} parent=1 // pred_fallthru
      _
    %6170 = vsyncpa [#allocation3], 1

</llo_original>
